<compile_context>
chip_gen: v7x
topology: tpu7x:2x2x1
jax: 0.10.0
libtpu: 0.0.40
codegen_flags: <defaults>
</compile_context>

<pallas_src>
import math

import jax
import jax.numpy as jnp
from jax.experimental import pallas as pl
from jax.experimental.pallas import tpu as pltpu

F = 8       # real padded feature width (covers in=4, hid=6, out=3)
TM = 512    # A row tile (output-node tile)      — keeps v7x's 2 TCs balanced
TK = 2048   # A column tile (neighbour tile)     — 1 MiB int8 per step
_ALIGN = math.lcm(TM, TK)


def _round_up(v, m):
    return (v + m - 1) // m * m


def _pad2(a, rows, cols, dtype):
    out = jnp.zeros((rows, cols), dtype)
    return out.at[:a.shape[0], :a.shape[1]].set(a.astype(dtype))


def _sage_layer_kernel(a_ref, xn_ref, xs_ref, inv_ref, wl_ref, wr_ref, b_ref,
                       o_ref, acc_ref):
    """One SAGEConv(mean) layer + ReLU.

    grid = (rows of A / TM  [parallel],  neighbour dim / TK  [arbitrary])

    a_ref  : (TM, TK) int8   0/1 edge counts (upcast to bf16 for the MXU)
    xn_ref : (TK, F)  bf16   neighbour features (the only bf16 operand)
    xs_ref : (TM, F)  f32    self/root features
    inv    : (TM, 1)  f32    1/deg (exact mean post-scale)
    wl/wr  : (F, F)   f32    neighbour / root linear weights
    b      : (1, F)   f32    bias (lin_l bias only, as in PyG SAGEConv)
    """
    k = pl.program_id(1)

    @pl.when(k == 0)
    def _init():
        acc_ref[...] = jnp.zeros_like(acc_ref)

    # Sum of neighbour features for this row tile: int8 A -> bf16 on the VPU
    # (huge slack — DMA is the binding resource), bf16 MXU, f32 accumulate.
    acc_ref[...] += jnp.dot(a_ref[...].astype(jnp.bfloat16), xn_ref[...],
                            preferred_element_type=jnp.float32)

    @pl.when(k == pl.num_programs(1) - 1)
    def _finalize():
        agg = acc_ref[...] * inv_ref[...]                     # exact f32 mean
        h = (jnp.dot(agg, wl_ref[...], preferred_element_type=jnp.float32)
             + jnp.dot(xs_ref[...], wr_ref[...],
                       preferred_element_type=jnp.float32)
             + b_ref[...])
        o_ref[...] = jnp.maximum(h, 0.0).astype(o_ref.dtype)


def _sage_layer(a_i8, xn, xs, inv_deg, wl, wr, b, out_dtype):
    """Apply one SAGEConv layer with the gridded Pallas kernel."""
    np_ = a_i8.shape[0]
    f_in = xn.shape[1]
    f_out = wl.shape[1]
    grid = (np_ // TM, np_ // TK)

    flops = 2 * np_ * np_ * f_in + 2 * (2 * np_ * f_in * f_out)
    bytes_accessed = (a_i8.size                                   # A (int8), once
                      + (np_ // TM) * np_ * f_in * xn.dtype.itemsize   # xn re-stream
                      + xs.size * xs.dtype.itemsize
                      + np_ * 4                                    # 1/deg
                      + np_ * f_out * jnp.dtype(out_dtype).itemsize)

    return pl.pallas_call(
        _sage_layer_kernel,
        out_shape=jax.ShapeDtypeStruct((np_, f_out), out_dtype),
        grid_spec=pltpu.PrefetchScalarGridSpec(
            num_scalar_prefetch=0,
            grid=grid,
            in_specs=[
                pl.BlockSpec((TM, TK), lambda i, k: (i, k)),     # A tile (int8)
                pl.BlockSpec((TK, f_in), lambda i, k: (k, 0)),   # neighbour feats
                pl.BlockSpec((TM, f_in), lambda i, k: (i, 0)),   # self feats
                pl.BlockSpec((TM, 1), lambda i, k: (i, 0)),      # 1/deg
                pl.BlockSpec((f_in, f_out), lambda i, k: (0, 0)),  # W_l (once)
                pl.BlockSpec((f_in, f_out), lambda i, k: (0, 0)),  # W_r (once)
                pl.BlockSpec((1, f_out), lambda i, k: (0, 0)),     # bias (once)
            ],
            out_specs=pl.BlockSpec((TM, f_out), lambda i, k: (i, 0)),
            scratch_shapes=[pltpu.VMEM((TM, f_out), jnp.float32)],
        ),
        compiler_params=pltpu.CompilerParams(
            dimension_semantics=("parallel", "arbitrary"),
            vmem_limit_bytes=32 * 1024 * 1024,
        ),
        cost_estimate=pl.CostEstimate(flops=flops, transcendentals=0,
                                      bytes_accessed=bytes_accessed),
    )(a_i8, xn, xs, inv_deg, wl, wr, b)


def sage_net(x, edge_index, edge_attr, params):
    """Forward pass of SAGENet.

    x:          [N, C_in] float32 node features
    edge_index: [2, E] int32 (row 0 = source j, row 1 = target i)
    edge_attr:  [E] — accepted for call-signature parity; PyG SAGEConv's
                message() uses only x_j, so edge weights never affect the output.
    """
    del edge_attr  # unused, matching torch_geometric SAGEConv semantics
    N = x.shape[0]
    C_out = params["w2l"].shape[0]

    # Pad the node count so both tile sizes divide it exactly.
    Np = _round_up(max(N, 1), _ALIGN)

    src = edge_index[0].astype(jnp.int32)
    dst = edge_index[1].astype(jnp.int32)

    # Degree from a length-E scatter-add (no dense intermediate); mean scale
    # stays exact in f32 and is applied inside the kernel after the matmul.
    deg = jnp.zeros((Np,), jnp.float32).at[dst].add(1.0)
    inv_deg = (1.0 / jnp.maximum(deg, 1.0)).reshape(Np, 1)

    # Dense edge-count adjacency scattered directly into int8 (exact for up to
    # 127 duplicate edges per (dst, src) pair; 0/1 for simple graphs).
    a_i8 = (jnp.zeros((Np, Np), jnp.int8)
            .at[dst, src].add(jnp.ones(src.shape, jnp.int8)))

    # Features padded only to the real width F=8 (zero padding is exact and
    # stays zero through both layers).  Neighbour operand bf16 (MXU), self/root
    # operand and all weights f32.
    x_f32 = _pad2(x, Np, F, jnp.float32)
    x_bf16 = x_f32.astype(jnp.bfloat16)
    w1l = _pad2(params["w1l"].T, F, F, jnp.float32)   # torch Linear: [out, in]
    w1r = _pad2(params["w1r"].T, F, F, jnp.float32)
    b1 = _pad2(params["b1"][None, :], 1, F, jnp.float32)
    w2l = _pad2(params["w2l"].T, F, F, jnp.float32)
    w2r = _pad2(params["w2r"].T, F, F, jnp.float32)
    b2 = _pad2(params["b2"][None, :], 1, F, jnp.float32)

    # Layer 1 (in -> 6) + ReLU; h1 kept in f32, only the neighbour operand of
    # the layer-2 aggregation matmul is downcast to bf16.
    h1_f32 = _sage_layer(a_i8, x_bf16, x_f32, inv_deg, w1l, w1r, b1, jnp.float32)
    h1_bf16 = h1_f32.astype(jnp.bfloat16)

    # Layer 2 (6 -> out) + ReLU.
    h2 = _sage_layer(a_i8, h1_bf16, h1_f32, inv_deg, w2l, w2r, b2, jnp.float32)
    return h2[:N, :C_out]


def _sage_ref(x, edge_index, params):
    """Pure-JAX f32 reference (PyG SAGEConv semantics) for correctness check."""
    src, dst = edge_index[0], edge_index[1]
    n = x.shape[0]
    deg = jnp.zeros((n,), jnp.float32).at[dst].add(1.0)
    inv = 1.0 / jnp.maximum(deg, 1.0)

    def layer(h, wl, wr, b):
        agg = jnp.zeros((n, h.shape[1]), jnp.float32).at[dst].add(h[src])
        agg = agg * inv[:, None]
        return jnp.maximum(agg @ wl.T + b + h @ wr.T, 0.0)

    h1 = layer(x, params["w1l"], params["w1r"], params["b1"])
    return layer(h1, params["w2l"], params["w2r"], params["b2"])


if __name__ == "__main__":
    key = jax.random.PRNGKey(0)
    N, C_in, H, C_out, E = 16, 4, 6, 3, 48
    k1, k2, k3, k4, k5, k6, k7, k8 = jax.random.split(key, 8)

    # deterministic synthetic graph
    x = jax.random.normal(k1, (N, C_in), jnp.float32)
    src = jax.random.randint(k2, (E,), 0, N, dtype=jnp.int32)
    dst = jax.random.randint(k3, (E,), 0, N, dtype=jnp.int32)
    edge_index = jnp.stack([src, dst])
    edge_attr = jax.random.uniform(k4, (E,), jnp.float32)  # unused by SAGEConv

    # deterministic synthetic parameters (torch Linear layout: weight [out, in])
    params = {
        "w1l": jax.random.normal(k5, (H, C_in), jnp.float32) * 0.3,
        "w1r": jax.random.normal(k6, (H, C_in), jnp.float32) * 0.3,
        "b1":  jnp.linspace(-0.1, 0.1, H, dtype=jnp.float32),
        "w2l": jax.random.normal(k7, (C_out, H), jnp.float32) * 0.3,
        "w2r": jax.random.normal(k8, (C_out, H), jnp.float32) * 0.3,
        "b2":  jnp.linspace(-0.1, 0.1, C_out, dtype=jnp.float32),
    }

    out = sage_net(x, edge_index, edge_attr, params)
    jax.block_until_ready(out)

    assert out.shape == (N, C_out)
    assert bool(jnp.all(out >= 0.0))  # final ReLU

    ref = _sage_ref(x, edge_index, params)
    # Only bf16 rounding of the neighbour-feature operands remains in the chain.
    assert bool(jnp.allclose(out, ref, rtol=3e-2, atol=3e-2)), (
        f"max abs err {float(jnp.max(jnp.abs(out - ref)))}")

    print("KERNEL_OK")
</pallas_src>

<mosaic_0001>
module attributes {stable_mosaic.version = 11 : i64} {
  func.func @_sage_layer_kernel(%arg0: i32, %arg1: i32, %arg2: memref<512x2048xi8, #tpu.memory_space<vmem>>, %arg3: memref<2048x8xbf16, #tpu.memory_space<vmem>>, %arg4: memref<512x8xf32, #tpu.memory_space<vmem>>, %arg5: memref<512x1xf32, #tpu.memory_space<vmem>>, %arg6: memref<8x8xf32, #tpu.memory_space<vmem>>, %arg7: memref<8x8xf32, #tpu.memory_space<vmem>>, %arg8: memref<1x8xf32, #tpu.memory_space<vmem>>, %arg9: memref<512x8xf32, #tpu.memory_space<vmem>>, %arg10: memref<512x8xf32, #tpu.memory_space<vmem>>) attributes {dimension_semantics = [#tpu.dimension_semantics<parallel>, #tpu.dimension_semantics<arbitrary>], iteration_bounds = array<i64: 4, 1>, scalar_prefetch = 0 : i64, scratch_operands = 1 : i64, tpu.core_type = #tpu.core_type<tc>, window_params = [{transform_indices = @transform_0, window_bounds = array<i64: 512, 2048>}, {transform_indices = @transform_1, window_bounds = array<i64: 2048, 8>}, {transform_indices = @transform_2, window_bounds = array<i64: 512, 8>}, {transform_indices = @transform_3, window_bounds = array<i64: 512, 1>}, {pipeline_mode = #tpu.pipeline_mode<synchronous>, transform_indices = @transform_4, window_bounds = array<i64: 8, 8>}, {pipeline_mode = #tpu.pipeline_mode<synchronous>, transform_indices = @transform_5, window_bounds = array<i64: 8, 8>}, {pipeline_mode = #tpu.pipeline_mode<synchronous>, transform_indices = @transform_6, window_bounds = array<i64: 1, 8>}, {transform_indices = @transform_7, window_bounds = array<i64: 512, 8>}]} {
    %c0_i32 = arith.constant 0 : i32
    %0 = arith.cmpi eq, %arg1, %c0_i32 : i32
    %1 = arith.extui %0 : i1 to i32
    %c0_i32_0 = arith.constant 0 : i32
    %2 = arith.cmpi ne, %1, %c0_i32_0 : i32
    scf.if %2 {
      %cst_10 = arith.constant 0.000000e+00 : f32
      %13 = vector.broadcast %cst_10 : f32 to vector<512x8xf32>
      %c0_11 = arith.constant 0 : index
      %c0_12 = arith.constant 0 : index
      %14 = vector.load %arg10[%c0_11, %c0_12] : memref<512x8xf32, #tpu.memory_space<vmem>>, vector<512x8xf32>
      tpu.vector_store %arg10[%c0_11, %c0_12], %13 {strides = array<i32>} : memref<512x8xf32, #tpu.memory_space<vmem>>, vector<512x8xf32>,
    } else {
    }
    %c0 = arith.constant 0 : index
    %c0_1 = arith.constant 0 : index
    %3 = vector.load %arg10[%c0, %c0_1] : memref<512x8xf32, #tpu.memory_space<vmem>>, vector<512x8xf32>
    %c0_2 = arith.constant 0 : index
    %c0_3 = arith.constant 0 : index
    %4 = vector.load %arg2[%c0_2, %c0_3] : memref<512x2048xi8, #tpu.memory_space<vmem>>, vector<512x2048xi8>
    %5 = arith.sitofp %4 : vector<512x2048xi8> to vector<512x2048xbf16>
    %c0_4 = arith.constant 0 : index
    %c0_5 = arith.constant 0 : index
    %6 = vector.load %arg3[%c0_4, %c0_5] : memref<2048x8xbf16, #tpu.memory_space<vmem>>, vector<2048x8xbf16>
    %cst = arith.constant dense<0.000000e+00> : vector<512x8xf32>
    %7 = tpu.matmul %5, %6, %cst {dimension_numbers = #tpu.dot_dimension_numbers<[1], [0], [0], [1], [0, 0, 1, 1], [], []>} : vector<512x2048xbf16>, vector<2048x8xbf16>, vector<512x8xf32> -> vector<512x8xf32>
    %8 = arith.addf %3, %7 : vector<512x8xf32>
    %c0_6 = arith.constant 0 : index
    %c0_7 = arith.constant 0 : index
    %9 = vector.load %arg10[%c0_6, %c0_7] : memref<512x8xf32, #tpu.memory_space<vmem>>, vector<512x8xf32>
    tpu.vector_store %arg10[%c0_6, %c0_7], %8 {strides = array<i32>} : memref<512x8xf32, #tpu.memory_space<vmem>>, vector<512x8xf32>,
    %c0_i32_8 = arith.constant 0 : i32
    %10 = arith.cmpi eq, %arg1, %c0_i32_8 : i32
    %11 = arith.extui %10 : i1 to i32
    %c0_i32_9 = arith.constant 0 : i32
    %12 = arith.cmpi ne, %11, %c0_i32_9 : i32
    scf.if %12 {
      %c0_10 = arith.constant 0 : index
      %c0_11 = arith.constant 0 : index
      %13 = vector.load %arg10[%c0_10, %c0_11] : memref<512x8xf32, #tpu.memory_space<vmem>>, vector<512x8xf32>
      %c0_12 = arith.constant 0 : index
      %c0_13 = arith.constant 0 : index
      %14 = vector.load %arg5[%c0_12, %c0_13] : memref<512x1xf32, #tpu.memory_space<vmem>>, vector<512x1xf32>
      %15 = vector.broadcast %14 : vector<512x1xf32> to vector<512x8xf32>
      %16 = arith.mulf %13, %15 : vector<512x8xf32>
      %c0_14 = arith.constant 0 : index
      %c0_15 = arith.constant 0 : index
      %17 = vector.load %arg6[%c0_14, %c0_15] : memref<8x8xf32, #tpu.memory_space<vmem>>, vector<8x8xf32>
      %cst_16 = arith.constant dense<0.000000e+00> : vector<512x8xf32>
      %18 = tpu.matmul %16, %17, %cst_16 {dimension_numbers = #tpu.dot_dimension_numbers<[1], [0], [0], [1], [0, 0, 1, 1], [], []>} : vector<512x8xf32>, vector<8x8xf32>, vector<512x8xf32> -> vector<512x8xf32>
      %c0_17 = arith.constant 0 : index
      %c0_18 = arith.constant 0 : index
      %19 = vector.load %arg4[%c0_17, %c0_18] : memref<512x8xf32, #tpu.memory_space<vmem>>, vector<512x8xf32>
      %c0_19 = arith.constant 0 : index
      %c0_20 = arith.constant 0 : index
      %20 = vector.load %arg7[%c0_19, %c0_20] : memref<8x8xf32, #tpu.memory_space<vmem>>, vector<8x8xf32>
      %cst_21 = arith.constant dense<0.000000e+00> : vector<512x8xf32>
      %21 = tpu.matmul %19, %20, %cst_21 {dimension_numbers = #tpu.dot_dimension_numbers<[1], [0], [0], [1], [0, 0, 1, 1], [], []>} : vector<512x8xf32>, vector<8x8xf32>, vector<512x8xf32> -> vector<512x8xf32>
      %22 = arith.addf %18, %21 : vector<512x8xf32>
      %c0_22 = arith.constant 0 : index
      %c0_23 = arith.constant 0 : index
      %23 = vector.load %arg8[%c0_22, %c0_23] : memref<1x8xf32, #tpu.memory_space<vmem>>, vector<1x8xf32>
      %24 = vector.broadcast %23 : vector<1x8xf32> to vector<512x8xf32>
      %25 = arith.addf %22, %24 : vector<512x8xf32>
      %cst_24 = arith.constant 0.000000e+00 : f32
      %26 = vector.broadcast %cst_24 : f32 to vector<512x8xf32>
      %27 = arith.maximumf %25, %26 : vector<512x8xf32>
      %c0_25 = arith.constant 0 : index
      %c0_26 = arith.constant 0 : index
      %28 = vector.load %arg9[%c0_25, %c0_26] : memref<512x8xf32, #tpu.memory_space<vmem>>, vector<512x8xf32>
      tpu.vector_store %arg9[%c0_25, %c0_26], %27 {strides = array<i32>} : memref<512x8xf32, #tpu.memory_space<vmem>>, vector<512x8xf32>,
    } else {
    }
    return
  }
  func.func @transform_0(%arg0: i32, %arg1: i32) -> (i32, i32) {
    %c0_i32 = arith.constant 0 : i32
    return %arg0, %arg1 : i32, i32
  }
  func.func @transform_1(%arg0: i32, %arg1: i32) -> (i32, i32) {
    %c0_i32 = arith.constant 0 : i32
    %c0_i32_0 = arith.constant 0 : i32
    return %arg1, %c0_i32 : i32, i32
  }
  func.func @transform_2(%arg0: i32, %arg1: i32) -> (i32, i32) {
    %c0_i32 = arith.constant 0 : i32
    %c0_i32_0 = arith.constant 0 : i32
    return %arg0, %c0_i32 : i32, i32
  }
  func.func @transform_3(%arg0: i32, %arg1: i32) -> (i32, i32) {
    %c0_i32 = arith.constant 0 : i32
    %c0_i32_0 = arith.constant 0 : i32
    return %arg0, %c0_i32 : i32, i32
  }
  func.func @transform_4(%arg0: i32, %arg1: i32) -> (i32, i32) {
    %c0_i32 = arith.constant 0 : i32
    %c0_i32_0 = arith.constant 0 : i32
    %c0_i32_1 = arith.constant 0 : i32
    return %c0_i32, %c0_i32_0 : i32, i32
  }
  func.func @transform_5(%arg0: i32, %arg1: i32) -> (i32, i32) {
    %c0_i32 = arith.constant 0 : i32
    %c0_i32_0 = arith.constant 0 : i32
    %c0_i32_1 = arith.constant 0 : i32
    return %c0_i32, %c0_i32_0 : i32, i32
  }
  func.func @transform_6(%arg0: i32, %arg1: i32) -> (i32, i32) {
    %c0_i32 = arith.constant 0 : i32
    %c0_i32_0 = arith.constant 0 : i32
    %c0_i32_1 = arith.constant 0 : i32
    return %c0_i32, %c0_i32_0 : i32, i32
  }
  func.func @transform_7(%arg0: i32, %arg1: i32) -> (i32, i32) {
    %c0_i32 = arith.constant 0 : i32
    %c0_i32_0 = arith.constant 0 : i32
    return %arg0, %c0_i32 : i32, i32
  }
}

</mosaic_0001>

<llo_original>
// kernel: tpu_custom_call.1
$region0: #{tpu_custom_call.1}
  #allocation0 [shape = 'u32[]', space=smem, size = 0x4, offset = 0x4, fixed_abs, tag = 'smem constant byte address 0x4 - core index']
  #allocation1 [shape = 'u32[144,128]{1,0:T(1,128)}', space=vmem, size = 0x12000, scoped, tag = 'internal scratch']
  #allocation2 [shape = 'f32[512,8]{1,0:T(8,128)}', space=vmem, size = 0x40000, scoped, tag = 'scratch operand']
  %s0 = inlined_call_operand.hbm [shape: s8[2048,2048], index: 0, kind: input, shape index: {}]
  %s1 = inlined_call_operand.vmem [shape: bf16[2048,8], index: 1, kind: input, shape index: {}]
  %s2 = inlined_call_operand.vmem [shape: f32[2048,8], index: 2, kind: input, shape index: {}]
  %s3 = inlined_call_operand.vmem [shape: f32[2048,1], index: 3, kind: input, shape index: {}]
  %s4 = inlined_call_operand.hbm [shape: f32[8,8], index: 4, kind: input, shape index: {}]
  %s5 = inlined_call_operand.hbm [shape: f32[8,8], index: 5, kind: input, shape index: {}]
  %s6 = inlined_call_operand.hbm [shape: f32[1,8], index: 6, kind: input, shape index: {}]
  %s7 = inlined_call_operand.vmem [shape: f32[2048,8], index: 7, kind: output, shape index: {}]
  %s8 = sld [smem:[#allocation0]]
  $region85: #{tpu_custom_call.1} parent=0
    _
  %s10 = ssub.s32 1, %s8
  %s11 = scalar_select 0, %s10, %s8
  $region1: #{tpu_custom_call.1} parent=0
    #allocation3 [shape = 'u8[2097152]{0}', space=vmem, size = 0x200000, scoped, tag = 'input window, operand 0']
    #allocation4 [shape = 's32[2]{0}', space=sflag, size = 0x8, scoped, tag = 'scoped memory for tpu_custom_call.1']
    #allocation5 [shape = 'u8[4096]{0}', space=vmem, size = 0x1000, scoped, tag = 'input window, operand 4, single buffered']
    #allocation6 [shape = 's32[1]{0}', space=sflag, size = 0x4, scoped, tag = 'scoped memory for tpu_custom_call.1']
    #allocation7 [shape = 'u8[4096]{0}', space=vmem, size = 0x1000, scoped, tag = 'input window, operand 5, single buffered']
    #allocation8 [shape = 'u8[512]{0}', space=vmem, size = 0x400, scoped, tag = 'input window, operand 6, single buffered']
    #allocation9 [shape = 's32[1]{0}', space=sflag, size = 0x4, scoped, tag = 'scoped memory for tpu_custom_call.1']
    %12 = vsyncpa [#allocation4], 0
    %s13 = scalar_lea.sflag [#allocation4], 1
    %14 = vsyncpa %s13, 0
    %15 = vsyncpa [#allocation6], 0
    %16 = vsyncpa [#allocation9], 0
    loop: start=0, step=1, limit=6
    $region2: #{tpu_custom_call.1} parent=1 // loop_pre_header
      _
    $region3: #{tpu_custom_call.1} parent=1 // loop_header
      %s18 = sphi 0, %s22
      %p19 = scmp.ge.s32.totalorder %s18, 6
      %s25 = sphi 0, %s37
      %s26 = sphi 0, %s33
      %s27 = sphi 0, %s25
      %s28 = sphi 0, %s26
      %s29 = sphi 0, %s27
      %s30 = sphi 0, %s28
      %s42 = sphi 0, %s44
      %s45 = sphi 0, %s42
      %s46 = sphi 0, %s45
      %s62 = sphi 0, %s46
      %s68 = sphi 0, %s70
      %s71 = sphi 0, %s68
      %s72 = sphi 0, %s71
      %s88 = sphi 0, %s72
      %s94 = sphi 0, %s96
      %s97 = sphi 0, %s94
      %s98 = sphi 0, %s97
      %s114 = sphi 0, %s98
      %s120 = sphi 0, %s122
      %s123 = sphi 0, %s120
      %s124 = sphi 0, %s123
      %s140 = sphi 0, %s124
      %s144 = sphi 0, %s144
      %s146 = sphi 0, %s144
      %s147 = sphi 0, %s146
      %s161 = sphi 0, %s147
      %s165 = sphi 0, %s165
      %s167 = sphi 0, %s165
      %s168 = sphi 0, %s167
      %s182 = sphi 0, %s168
      %s186 = sphi 0, %s186
      %s188 = sphi 0, %s186
      %s189 = sphi 0, %s188
      %s203 = sphi 0, %s189
      %s209 = sphi 0, %s211
      %s212 = sphi 0, %s209
      %s213 = sphi 0, %s212
      %s229 = sphi 0, %s213
    $region4: #{tpu_custom_call.1} parent=1 // loop_header_branch
      %21 = sbr.rel (%p19) target = $region8
    $region5: #{tpu_custom_call.1} parent=1 // loop_body
      %s23 = ssub.s32 %s18, 1
      %s24 = ssub.s32 %s18, 2
      %s31 = sadd.s32 1, %s26
      %p32 = scmp.ge.s32.totalorder %s31, 1
      %s33 = scalar_select %p32, 0, %s31
      %s34 = sadd.s32 1, %s25
      %s35 = scalar_select %p32, %s34, %s25
      %p36 = scmp.ge.s32.totalorder %s35, 4
      %s37 = scalar_select %p36, 0, %s35
      %s38 = ssub.s32 %s25, %s37
      %s39 = ssub.s32 %s26, %s33
      %s40 = sor.u32 %s38, %s39
      %p41 = scmp.eq.s32.totalorder %s40, 0
      %s43 = sadd.s32 %s42, 1
      %s44 = scalar_select %p41, %s42, %s43
      %p47 = pneg %p41
      %p48 = scmp.eq.s32.totalorder %s18, 3
      %p49 = por %p47, %p48
      %p50 = scmp.ne.s32.totalorder %s42, %s45
      %p51 = scmp.eq.s32.totalorder %s18, 0
      %p52 = por %p50, %p51
      %p53 = scmp.ne.s32.totalorder %s42, %s45
      %p54 = scmp.eq.s32.totalorder %s23, 3
      %p55 = por %p53, %p54
      %p56 = scmp.ne.s32.totalorder %s45, %s46
      %p57 = scmp.eq.s32.totalorder %s23, 0
      %p58 = por %p56, %p57
      %p59 = scmp.ne.s32.totalorder %s45, %s46
      %p60 = scmp.eq.s32.totalorder %s24, 3
      %p61 = por %p59, %p60
      %p63 = scmp.ne.s32.totalorder %s46, %s62
      %p64 = scmp.eq.s32.totalorder %s24, 0
      %p65 = por %p63, %p64
      %s66 = ssub.s32 %s26, %s33
      %p67 = scmp.eq.s32.totalorder %s66, 0
      %s69 = sadd.s32 %s68, 1
      %s70 = scalar_select %p67, %s68, %s69
      %p73 = pneg %p67
      %p74 = scmp.eq.s32.totalorder %s18, 3
      %p75 = por %p73, %p74
      %p76 = scmp.ne.s32.totalorder %s68, %s71
      %p77 = scmp.eq.s32.totalorder %s18, 0
      %p78 = por %p76, %p77
      %p79 = scmp.ne.s32.totalorder %s68, %s71
      %p80 = scmp.eq.s32.totalorder %s23, 3
      %p81 = por %p79, %p80
      %p82 = scmp.ne.s32.totalorder %s71, %s72
      %p83 = scmp.eq.s32.totalorder %s23, 0
      %p84 = por %p82, %p83
      %p85 = scmp.ne.s32.totalorder %s71, %s72
      %p86 = scmp.eq.s32.totalorder %s24, 3
      %p87 = por %p85, %p86
      %p89 = scmp.ne.s32.totalorder %s72, %s88
      %p90 = scmp.eq.s32.totalorder %s24, 0
      %p91 = por %p89, %p90
      %s92 = ssub.s32 %s25, %s37
      %p93 = scmp.eq.s32.totalorder %s92, 0
      %s95 = sadd.s32 %s94, 1
      %s96 = scalar_select %p93, %s94, %s95
      %p99 = pneg %p93
      %p100 = scmp.eq.s32.totalorder %s18, 3
      %p101 = por %p99, %p100
      %p102 = scmp.ne.s32.totalorder %s94, %s97
      %p103 = scmp.eq.s32.totalorder %s18, 0
      %p104 = por %p102, %p103
      %p105 = scmp.ne.s32.totalorder %s94, %s97
      %p106 = scmp.eq.s32.totalorder %s23, 3
      %p107 = por %p105, %p106
      %p108 = scmp.ne.s32.totalorder %s97, %s98
      %p109 = scmp.eq.s32.totalorder %s23, 0
      %p110 = por %p108, %p109
      %p111 = scmp.ne.s32.totalorder %s97, %s98
      %p112 = scmp.eq.s32.totalorder %s24, 3
      %p113 = por %p111, %p112
      %p115 = scmp.ne.s32.totalorder %s98, %s114
      %p116 = scmp.eq.s32.totalorder %s24, 0
      %p117 = por %p115, %p116
      %s118 = ssub.s32 %s25, %s37
      %p119 = scmp.eq.s32.totalorder %s118, 0
      %s121 = sadd.s32 %s120, 1
      %s122 = scalar_select %p119, %s120, %s121
      %p125 = pneg %p119
      %p126 = scmp.eq.s32.totalorder %s18, 3
      %p127 = por %p125, %p126
      %p128 = scmp.ne.s32.totalorder %s120, %s123
      %p129 = scmp.eq.s32.totalorder %s18, 0
      %p130 = por %p128, %p129
      %p131 = scmp.ne.s32.totalorder %s120, %s123
      %p132 = scmp.eq.s32.totalorder %s23, 3
      %p133 = por %p131, %p132
      %p134 = scmp.ne.s32.totalorder %s123, %s124
      %p135 = scmp.eq.s32.totalorder %s23, 0
      %p136 = por %p134, %p135
      %p137 = scmp.ne.s32.totalorder %s123, %s124
      %p138 = scmp.eq.s32.totalorder %s24, 3
      %p139 = por %p137, %p138
      %p141 = scmp.ne.s32.totalorder %s124, %s140
      %p142 = scmp.eq.s32.totalorder %s24, 0
      %p143 = por %p141, %p142
      %s145 = sadd.s32 %s144, 1
      %p148 = scmp.eq.s32.totalorder %s18, 3
      %p149 = scmp.ne.s32.totalorder %s144, %s146
      %p150 = scmp.eq.s32.totalorder %s18, 0
      %p151 = por %p149, %p150
      %p152 = scmp.ne.s32.totalorder %s144, %s146
      %p153 = scmp.eq.s32.totalorder %s23, 3
      %p154 = por %p152, %p153
      %p155 = scmp.ne.s32.totalorder %s146, %s147
      %p156 = scmp.eq.s32.totalorder %s23, 0
      %p157 = por %p155, %p156
      %p158 = scmp.ne.s32.totalorder %s146, %s147
      %p159 = scmp.eq.s32.totalorder %s24, 3
      %p160 = por %p158, %p159
      %p162 = scmp.ne.s32.totalorder %s147, %s161
      %p163 = scmp.eq.s32.totalorder %s24, 0
      %p164 = por %p162, %p163
      %s166 = sadd.s32 %s165, 1
      %p169 = scmp.eq.s32.totalorder %s18, 3
      %p170 = scmp.ne.s32.totalorder %s165, %s167
      %p171 = scmp.eq.s32.totalorder %s18, 0
      %p172 = por %p170, %p171
      %p173 = scmp.ne.s32.totalorder %s165, %s167
      %p174 = scmp.eq.s32.totalorder %s23, 3
      %p175 = por %p173, %p174
      %p176 = scmp.ne.s32.totalorder %s167, %s168
      %p177 = scmp.eq.s32.totalorder %s23, 0
      %p178 = por %p176, %p177
      %p179 = scmp.ne.s32.totalorder %s167, %s168
      %p180 = scmp.eq.s32.totalorder %s24, 3
      %p181 = por %p179, %p180
      %p183 = scmp.ne.s32.totalorder %s168, %s182
      %p184 = scmp.eq.s32.totalorder %s24, 0
      %p185 = por %p183, %p184
      %s187 = sadd.s32 %s186, 1
      %p190 = scmp.eq.s32.totalorder %s18, 3
      %p191 = scmp.ne.s32.totalorder %s186, %s188
      %p192 = scmp.eq.s32.totalorder %s18, 0
      %p193 = por %p191, %p192
      %p194 = scmp.ne.s32.totalorder %s186, %s188
      %p195 = scmp.eq.s32.totalorder %s23, 3
      %p196 = por %p194, %p195
      %p197 = scmp.ne.s32.totalorder %s188, %s189
      %p198 = scmp.eq.s32.totalorder %s23, 0
      %p199 = por %p197, %p198
      %p200 = scmp.ne.s32.totalorder %s188, %s189
      %p201 = scmp.eq.s32.totalorder %s24, 3
      %p202 = por %p200, %p201
      %p204 = scmp.ne.s32.totalorder %s189, %s203
      %p205 = scmp.eq.s32.totalorder %s24, 0
      %p206 = por %p204, %p205
      %s207 = ssub.s32 %s25, %s37
      %p208 = scmp.eq.s32.totalorder %s207, 0
      %s210 = sadd.s32 %s209, 1
      %s211 = scalar_select %p208, %s209, %s210
      %p214 = pneg %p208
      %p215 = scmp.eq.s32.totalorder %s18, 3
      %p216 = por %p214, %p215
      %p217 = scmp.ne.s32.totalorder %s209, %s212
      %p218 = scmp.eq.s32.totalorder %s18, 0
      %p219 = por %p217, %p218
      %p220 = scmp.ne.s32.totalorder %s209, %s212
      %p221 = scmp.eq.s32.totalorder %s23, 3
      %p222 = por %p220, %p221
      %p223 = scmp.ne.s32.totalorder %s212, %s213
      %p224 = scmp.eq.s32.totalorder %s23, 0
      %p225 = por %p223, %p224
      %p226 = scmp.ne.s32.totalorder %s212, %s213
      %p227 = scmp.eq.s32.totalorder %s24, 3
      %p228 = por %p226, %p227
      %p230 = scmp.ne.s32.totalorder %s213, %s229
      %p231 = scmp.eq.s32.totalorder %s24, 0
      %p232 = por %p230, %p231
      %p233 = scmp.le.s32.totalorder 1, %s18
      %p234 = scmp.lt.s32.totalorder %s18, 5
      %p235 = pnand %p233, %p234
      %p236 = pneg %p235
      // Predicated region
      $region9: #{tpu_custom_call.1} parent=5 // pred_check
        _
      $region10: #{tpu_custom_call.1} parent=5 // pred_check_branch
        %238 = sbr.rel (%p235) target = $region12
      $region11: #{tpu_custom_call.1} parent=5 // pred_region
        %s239 = ssub.s32 %s18, 1
        // Predicated region
        $region13: #{tpu_custom_call.1} parent=11 // pred_check
          %p240 = pneg %p84
        $region14: #{tpu_custom_call.1} parent=11 // pred_check_branch
          %242 = sbr.rel (%p240) target = $region16
        $region15: #{tpu_custom_call.1} parent=11 // pred_region
          %s243 = smul.u32 256, %s28
          %p244 = scmp.lt.s32.totalorder %s243, 255
          %s245 = scalar_select %p244, %s243, 255
          %s246 = smul.addr %s245, 4
          %s247 = scalar_lea.vmem %s1, %s246
          %s248 = smul.u32 256, %s28
        $region16: #{tpu_custom_call.1} parent=11 // pred_fallthru
          _
        // Predicated region
        $region17: #{tpu_custom_call.1} parent=11 // pred_check
          %p249 = pneg %p157
        $region18: #{tpu_custom_call.1} parent=11 // pred_check_branch
          %251 = sbr.rel (%p249) target = $region20
        $region19: #{tpu_custom_call.1} parent=11 // pred_region
          %s253 = ssub.s32 128, 128
          %254 = vsyncadd [#allocation6], %s253
          %s256 = sshll.u32 [#allocation5], 4
          %s257 = int_to_ptr.vmem [resolvable:$true] %s256
          %259 = dma.hbm_to_vmem [thread:$0]  %s4, 128, %s257, [#allocation6]
        $region20: #{tpu_custom_call.1} parent=11 // pred_fallthru
          _
        // Predicated region
        $region21: #{tpu_custom_call.1} parent=11 // pred_check
          %p260 = pneg %p178
        $region22: #{tpu_custom_call.1} parent=11 // pred_check_branch
          %262 = sbr.rel (%p260) target = $region24
        $region23: #{tpu_custom_call.1} parent=11 // pred_region
          %s264 = ssub.s32 128, 128
          %265 = vsyncadd [#allocation6], %s264
          %s267 = sshll.u32 [#allocation7], 4
          %s268 = int_to_ptr.vmem [resolvable:$true] %s267
          %270 = dma.hbm_to_vmem [thread:$0]  %s5, 128, %s268, [#allocation6]
        $region24: #{tpu_custom_call.1} parent=11 // pred_fallthru
          _
        // Predicated region
        $region25: #{tpu_custom_call.1} parent=11 // pred_check
          %p271 = pneg %p199
        $region26: #{tpu_custom_call.1} parent=11 // pred_check_branch
          %273 = sbr.rel (%p271) target = $region28
        $region27: #{tpu_custom_call.1} parent=11 // pred_region
          %s275 = ssub.s32 16, 16
          %276 = vsyncadd [#allocation9], %s275
          %s278 = sshll.u32 [#allocation8], 4
          %s279 = int_to_ptr.vmem [resolvable:$true] %s278
          %281 = dma.hbm_to_vmem [thread:$0]  %s6, 16, %s279, [#allocation9]
        $region28: #{tpu_custom_call.1} parent=11 // pred_fallthru
          _
      $region12: #{tpu_custom_call.1} parent=5 // pred_fallthru
        _
      %p282 = scmp.lt.s32.totalorder %s18, 4
      // Predicated region
      $region29: #{tpu_custom_call.1} parent=5 // pred_check
        %p283 = pneg %p282
      $region30: #{tpu_custom_call.1} parent=5 // pred_check_branch
        %285 = sbr.rel (%p283) target = $region32
      $region31: #{tpu_custom_call.1} parent=5 // pred_region
        // Predicated region
        $region33: #{tpu_custom_call.1} parent=31 // pred_check
          %p286 = pneg %p52
        $region34: #{tpu_custom_call.1} parent=31 // pred_check_branch
          %288 = sbr.rel (%p286) target = $region36
        $region35: #{tpu_custom_call.1} parent=31 // pred_region
          %s289 = sand.u32 %s42, 1
          %s290 = scalar_lea.sflag [#allocation4], %s289
          %s291 = sand.u32 %s42, 1
          %s292 = smul.addr %s291, 2048
          %s293 = scalar_lea.vmem [#allocation3], %s292
          %s294 = smul.u32 16, %s25
          %s295 = smul.u32 16, %s26
          %s297 = ssub.s32 32768, 32768
          %298 = vsyncadd %s290, %s297
          %s299 = smul.addr %s294, 16
          %s300 = sadd.s32 %s295, %s299
          %s301 = smul.addr %s300, 128
          %s302 = scalar_lea.hbm %s0, %s301
          %s303 = sshll.u32 %s293, 4
          %s304 = int_to_ptr.vmem [resolvable:$true] %s303
          %309 = dma.hbm_to_vmem [thread:$0]  %s302, 32768, %s304, %s290, 2048, 2048, 128
        $region36: #{tpu_custom_call.1} parent=31 // pred_fallthru
          _
        // Predicated region
        $region37: #{tpu_custom_call.1} parent=31 // pred_check
          %p310 = pneg %p104
        $region38: #{tpu_custom_call.1} parent=31 // pred_check_branch
          %312 = sbr.rel (%p310) target = $region40
        $region39: #{tpu_custom_call.1} parent=31 // pred_region
          %s313 = smul.u32 64, %s25
          %p314 = scmp.lt.s32.totalorder %s313, 255
          %s315 = scalar_select %p314, %s313, 255
          %s316 = smul.addr %s315, 8
          %s317 = scalar_lea.vmem %s2, %s316
          %s318 = smul.u32 64, %s25
        $region40: #{tpu_custom_call.1} parent=31 // pred_fallthru
          _
        // Predicated region
        $region41: #{tpu_custom_call.1} parent=31 // pred_check
          %p319 = pneg %p130
        $region42: #{tpu_custom_call.1} parent=31 // pred_check_branch
          %321 = sbr.rel (%p319) target = $region44
        $region43: #{tpu_custom_call.1} parent=31 // pred_region
          %s322 = smul.u32 64, %s25
          %p323 = scmp.lt.s32.totalorder %s322, 255
          %s324 = scalar_select %p323, %s322, 255
          %s325 = smul.addr %s324, 8
          %s326 = scalar_lea.vmem %s3, %s325
          %s327 = smul.u32 64, %s25
        $region44: #{tpu_custom_call.1} parent=31 // pred_fallthru
          _
      $region32: #{tpu_custom_call.1} parent=5 // pred_fallthru
        _
      %p328 = scmp.le.s32.totalorder 1, %s18
      %p329 = scmp.lt.s32.totalorder %s18, 5
      %p330 = pnand %p328, %p329
      %p331 = pneg %p330
      // Predicated region
      $region45: #{tpu_custom_call.1} parent=5 // pred_check
        _
      $region46: #{tpu_custom_call.1} parent=5 // pred_check_branch
        %333 = sbr.rel (%p330) target = $region48
      $region47: #{tpu_custom_call.1} parent=5 // pred_region
        %s334 = ssub.s32 %s18, 1
        %s335 = sand.u32 %s45, 1
        %s336 = scalar_lea.sflag [#allocation4], %s335
        %s337 = sand.u32 %s45, 1
        %s338 = smul.addr %s337, 2048
        %s339 = scalar_lea.vmem [#allocation3], %s338
        // Predicated region
        $region49: #{tpu_custom_call.1} parent=47 // pred_check
          %p340 = pneg %p58
        $region50: #{tpu_custom_call.1} parent=47 // pred_check_branch
          %342 = sbr.rel (%p340) target = $region52
        $region51: #{tpu_custom_call.1} parent=47 // pred_region
          %343 = dma.done %s336, 32768
        $region52: #{tpu_custom_call.1} parent=47 // pred_fallthru
          _
        // Predicated region
        $region53: #{tpu_custom_call.1} parent=47 // pred_check
          %p344 = pneg %p157
        $region54: #{tpu_custom_call.1} parent=47 // pred_check_branch
          %346 = sbr.rel (%p344) target = $region56
        $region55: #{tpu_custom_call.1} parent=47 // pred_region
          %347 = dma.done [#allocation6], 128
        $region56: #{tpu_custom_call.1} parent=47 // pred_fallthru
          _
        // Predicated region
        $region57: #{tpu_custom_call.1} parent=47 // pred_check
          %p348 = pneg %p178
        $region58: #{tpu_custom_call.1} parent=47 // pred_check_branch
          %350 = sbr.rel (%p348) target = $region60
        $region59: #{tpu_custom_call.1} parent=47 // pred_region
          %351 = dma.done [#allocation6], 128
        $region60: #{tpu_custom_call.1} parent=47 // pred_fallthru
          _
        // Predicated region
        $region61: #{tpu_custom_call.1} parent=47 // pred_check
          %p352 = pneg %p199
        $region62: #{tpu_custom_call.1} parent=47 // pred_check_branch
          %354 = sbr.rel (%p352) target = $region64
        $region63: #{tpu_custom_call.1} parent=47 // pred_region
          %355 = dma.done [#allocation9], 16
        $region64: #{tpu_custom_call.1} parent=47 // pred_fallthru
          _
        %s356 = sand.u32 %s45, 1
        %s357 = scalar_lea.sflag [#allocation4], %s356
        %s358 = sand.u32 %s45, 1
        %s359 = smul.addr %s358, 2048
        %s360 = scalar_lea.vmem [#allocation3], %s359
        %p361 = pneg %p58
        %p362 = pneg %p55
        %s363 = smul.u32 256, %s28
        %p364 = scmp.lt.s32.totalorder %s363, 255
        %s365 = scalar_select %p364, %s363, 255
        %s366 = smul.addr %s365, 4
        %s367 = scalar_lea.vmem %s1, %s366
        %p368 = pneg %p84
        %p369 = pneg %p81
        %s370 = smul.u32 64, %s27
        %p371 = scmp.lt.s32.totalorder %s370, 255
        %s372 = scalar_select %p371, %s370, 255
        %s373 = smul.addr %s372, 8
        %s374 = scalar_lea.vmem %s2, %s373
        %p375 = pneg %p110
        %p376 = pneg %p107
        %s377 = smul.u32 64, %s27
        %p378 = scmp.lt.s32.totalorder %s377, 255
        %s379 = scalar_select %p378, %s377, 255
        %s380 = smul.addr %s379, 8
        %s381 = scalar_lea.vmem %s3, %s380
        %p382 = pneg %p136
        %p383 = pneg %p133
        %p384 = pneg %p157
        %p385 = pneg %p154
        %p386 = pneg %p178
        %p387 = pneg %p175
        %p388 = pneg %p199
        %p389 = pneg %p196
        %p390 = pneg %p225
        %p391 = pneg %p222
        %s392 = smul.u32 64, %s27
        %p393 = scmp.lt.s32.totalorder %s392, 255
        %s394 = scalar_select %p393, %s392, 255
        %s395 = smul.addr %s394, 8
        %s396 = scalar_lea.vmem %s7, %s395
        %s397 = smul.u32 16, %s27
        %s398 = smul.u32 16, %s28
        %s399 = smul.u32 256, %s28
        %p400 = scmp.lt.s32.totalorder %s399, 255
        %s401 = scalar_select %p400, %s399, 255
        %s402 = smul.addr %s401, 4
        %s403 = scalar_lea.vmem %s1, %s402
        %s404 = smul.u32 256, %s28
        %s405 = smul.u32 64, %s27
        %p406 = scmp.lt.s32.totalorder %s405, 255
        %s407 = scalar_select %p406, %s405, 255
        %s408 = smul.addr %s407, 8
        %s409 = scalar_lea.vmem %s2, %s408
        %s410 = smul.u32 64, %s27
        %s411 = smul.u32 64, %s27
        %p412 = scmp.lt.s32.totalorder %s411, 255
        %s413 = scalar_select %p412, %s411, 255
        %s414 = smul.addr %s413, 8
        %s415 = scalar_lea.vmem %s3, %s414
        %s416 = smul.u32 64, %s27
        %s417 = smul.u32 64, %s27
        %p418 = scmp.lt.s32.totalorder %s417, 255
        %s419 = scalar_select %p418, %s417, 255
        %s420 = smul.addr %s419, 8
        %s421 = scalar_lea.vmem %s7, %s420
        %s422 = smul.u32 64, %s27
        %p424 = scmp.eq.s32.totalorder %s28, 0
        // Predicated region
        $region65: #{tpu_custom_call.1} parent=47 // pred_check
          %p425 = pneg %p424
        $region66: #{tpu_custom_call.1} parent=47 // pred_check_branch
          %427 = sbr.rel (%p425) target = $region68
        $region67: #{tpu_custom_call.1} parent=47 // pred_region
          %vm428 = vcmask 64512
          %429 = vst.msk [vmem:[#allocation2] sm:$0xff] %vm428, 0.0
          %430 = vst.msk [vmem:[#allocation2 + $0x8] sm:$0xff] %vm428, 0.0
          %431 = vst.msk [vmem:[#allocation2 + $0x10] sm:$0xff] %vm428, 0.0
          %432 = vst.msk [vmem:[#allocation2 + $0x18] sm:$0xff] %vm428, 0.0
          %433 = vst.msk [vmem:[#allocation2 + $0x20] sm:$0xff] %vm428, 0.0
          %434 = vst.msk [vmem:[#allocation2 + $0x28] sm:$0xff] %vm428, 0.0
          %435 = vst.msk [vmem:[#allocation2 + $0x30] sm:$0xff] %vm428, 0.0
          %436 = vst.msk [vmem:[#allocation2 + $0x38] sm:$0xff] %vm428, 0.0
          %437 = vst.msk [vmem:[#allocation2 + $0x40] sm:$0xff] %vm428, 0.0
          %438 = vst.msk [vmem:[#allocation2 + $0x48] sm:$0xff] %vm428, 0.0
          %439 = vst.msk [vmem:[#allocation2 + $0x50] sm:$0xff] %vm428, 0.0
          %440 = vst.msk [vmem:[#allocation2 + $0x58] sm:$0xff] %vm428, 0.0
          %441 = vst.msk [vmem:[#allocation2 + $0x60] sm:$0xff] %vm428, 0.0
          %442 = vst.msk [vmem:[#allocation2 + $0x68] sm:$0xff] %vm428, 0.0
          %443 = vst.msk [vmem:[#allocation2 + $0x70] sm:$0xff] %vm428, 0.0
          %444 = vst.msk [vmem:[#allocation2 + $0x78] sm:$0xff] %vm428, 0.0
          %445 = vst.msk [vmem:[#allocation2 + $0x80] sm:$0xff] %vm428, 0.0
          %446 = vst.msk [vmem:[#allocation2 + $0x88] sm:$0xff] %vm428, 0.0
          %447 = vst.msk [vmem:[#allocation2 + $0x90] sm:$0xff] %vm428, 0.0
          %448 = vst.msk [vmem:[#allocation2 + $0x98] sm:$0xff] %vm428, 0.0
          %449 = vst.msk [vmem:[#allocation2 + $0xa0] sm:$0xff] %vm428, 0.0
          %450 = vst.msk [vmem:[#allocation2 + $0xa8] sm:$0xff] %vm428, 0.0
          %451 = vst.msk [vmem:[#allocation2 + $0xb0] sm:$0xff] %vm428, 0.0
          %452 = vst.msk [vmem:[#allocation2 + $0xb8] sm:$0xff] %vm428, 0.0
          %453 = vst.msk [vmem:[#allocation2 + $0xc0] sm:$0xff] %vm428, 0.0
          %454 = vst.msk [vmem:[#allocation2 + $0xc8] sm:$0xff] %vm428, 0.0
          %455 = vst.msk [vmem:[#allocation2 + $0xd0] sm:$0xff] %vm428, 0.0
          %456 = vst.msk [vmem:[#allocation2 + $0xd8] sm:$0xff] %vm428, 0.0
          %457 = vst.msk [vmem:[#allocation2 + $0xe0] sm:$0xff] %vm428, 0.0
          %458 = vst.msk [vmem:[#allocation2 + $0xe8] sm:$0xff] %vm428, 0.0
          %459 = vst.msk [vmem:[#allocation2 + $0xf0] sm:$0xff] %vm428, 0.0
          %460 = vst.msk [vmem:[#allocation2 + $0xf8] sm:$0xff] %vm428, 0.0
          %461 = vst.msk [vmem:[#allocation2 + $0x100] sm:$0xff] %vm428, 0.0
          %462 = vst.msk [vmem:[#allocation2 + $0x108] sm:$0xff] %vm428, 0.0
          %463 = vst.msk [vmem:[#allocation2 + $0x110] sm:$0xff] %vm428, 0.0
          %464 = vst.msk [vmem:[#allocation2 + $0x118] sm:$0xff] %vm428, 0.0
          %465 = vst.msk [vmem:[#allocation2 + $0x120] sm:$0xff] %vm428, 0.0
          %466 = vst.msk [vmem:[#allocation2 + $0x128] sm:$0xff] %vm428, 0.0
          %467 = vst.msk [vmem:[#allocation2 + $0x130] sm:$0xff] %vm428, 0.0
          %468 = vst.msk [vmem:[#allocation2 + $0x138] sm:$0xff] %vm428, 0.0
          %469 = vst.msk [vmem:[#allocation2 + $0x140] sm:$0xff] %vm428, 0.0
          %470 = vst.msk [vmem:[#allocation2 + $0x148] sm:$0xff] %vm428, 0.0
          %471 = vst.msk [vmem:[#allocation2 + $0x150] sm:$0xff] %vm428, 0.0
          %472 = vst.msk [vmem:[#allocation2 + $0x158] sm:$0xff] %vm428, 0.0
          %473 = vst.msk [vmem:[#allocation2 + $0x160] sm:$0xff] %vm428, 0.0
          %474 = vst.msk [vmem:[#allocation2 + $0x168] sm:$0xff] %vm428, 0.0
          %475 = vst.msk [vmem:[#allocation2 + $0x170] sm:$0xff] %vm428, 0.0
          %476 = vst.msk [vmem:[#allocation2 + $0x178] sm:$0xff] %vm428, 0.0
          %477 = vst.msk [vmem:[#allocation2 + $0x180] sm:$0xff] %vm428, 0.0
          %478 = vst.msk [vmem:[#allocation2 + $0x188] sm:$0xff] %vm428, 0.0
          %479 = vst.msk [vmem:[#allocation2 + $0x190] sm:$0xff] %vm428, 0.0
          %480 = vst.msk [vmem:[#allocation2 + $0x198] sm:$0xff] %vm428, 0.0
          %481 = vst.msk [vmem:[#allocation2 + $0x1a0] sm:$0xff] %vm428, 0.0
          %482 = vst.msk [vmem:[#allocation2 + $0x1a8] sm:$0xff] %vm428, 0.0
          %483 = vst.msk [vmem:[#allocation2 + $0x1b0] sm:$0xff] %vm428, 0.0
          %484 = vst.msk [vmem:[#allocation2 + $0x1b8] sm:$0xff] %vm428, 0.0
          %485 = vst.msk [vmem:[#allocation2 + $0x1c0] sm:$0xff] %vm428, 0.0
          %486 = vst.msk [vmem:[#allocation2 + $0x1c8] sm:$0xff] %vm428, 0.0
          %487 = vst.msk [vmem:[#allocation2 + $0x1d0] sm:$0xff] %vm428, 0.0
          %488 = vst.msk [vmem:[#allocation2 + $0x1d8] sm:$0xff] %vm428, 0.0
          %489 = vst.msk [vmem:[#allocation2 + $0x1e0] sm:$0xff] %vm428, 0.0
          %490 = vst.msk [vmem:[#allocation2 + $0x1e8] sm:$0xff] %vm428, 0.0
          %491 = vst.msk [vmem:[#allocation2 + $0x1f0] sm:$0xff] %vm428, 0.0
          %492 = vst.msk [vmem:[#allocation2 + $0x1f8] sm:$0xff] %vm428, 0.0
        $region68: #{tpu_custom_call.1} parent=47 // pred_fallthru
          _
        %v493 = vld [vmem:[#allocation2] sm:$0xff]
        %v494 = vld [vmem:[#allocation2 + $0x8] sm:$0xff]
        %v495 = vld [vmem:[#allocation2 + $0x10] sm:$0xff]
        %v496 = vld [vmem:[#allocation2 + $0x18] sm:$0xff]
        %v497 = vld [vmem:[#allocation2 + $0x20] sm:$0xff]
        %v498 = vld [vmem:[#allocation2 + $0x28] sm:$0xff]
        %v499 = vld [vmem:[#allocation2 + $0x30] sm:$0xff]
        %v500 = vld [vmem:[#allocation2 + $0x38] sm:$0xff]
        %v501 = vld [vmem:[#allocation2 + $0x40] sm:$0xff]
        %v502 = vld [vmem:[#allocation2 + $0x48] sm:$0xff]
        %v503 = vld [vmem:[#allocation2 + $0x50] sm:$0xff]
        %v504 = vld [vmem:[#allocation2 + $0x58] sm:$0xff]
        %v505 = vld [vmem:[#allocation2 + $0x60] sm:$0xff]
        %v506 = vld [vmem:[#allocation2 + $0x68] sm:$0xff]
        %v507 = vld [vmem:[#allocation2 + $0x70] sm:$0xff]
        %v508 = vld [vmem:[#allocation2 + $0x78] sm:$0xff]
        %v509 = vld [vmem:[#allocation2 + $0x80] sm:$0xff]
        %v510 = vld [vmem:[#allocation2 + $0x88] sm:$0xff]
        %v511 = vld [vmem:[#allocation2 + $0x90] sm:$0xff]
        %v512 = vld [vmem:[#allocation2 + $0x98] sm:$0xff]
        %v513 = vld [vmem:[#allocation2 + $0xa0] sm:$0xff]
        %v514 = vld [vmem:[#allocation2 + $0xa8] sm:$0xff]
        %v515 = vld [vmem:[#allocation2 + $0xb0] sm:$0xff]
        %v516 = vld [vmem:[#allocation2 + $0xb8] sm:$0xff]
        %v517 = vld [vmem:[#allocation2 + $0xc0] sm:$0xff]
        %v518 = vld [vmem:[#allocation2 + $0xc8] sm:$0xff]
        %v519 = vld [vmem:[#allocation2 + $0xd0] sm:$0xff]
        %v520 = vld [vmem:[#allocation2 + $0xd8] sm:$0xff]
        %v521 = vld [vmem:[#allocation2 + $0xe0] sm:$0xff]
        %v522 = vld [vmem:[#allocation2 + $0xe8] sm:$0xff]
        %v523 = vld [vmem:[#allocation2 + $0xf0] sm:$0xff]
        %v524 = vld [vmem:[#allocation2 + $0xf8] sm:$0xff]
        %v525 = vld [vmem:[#allocation2 + $0x100] sm:$0xff]
        %v526 = vld [vmem:[#allocation2 + $0x108] sm:$0xff]
        %v527 = vld [vmem:[#allocation2 + $0x110] sm:$0xff]
        %v528 = vld [vmem:[#allocation2 + $0x118] sm:$0xff]
        %v529 = vld [vmem:[#allocation2 + $0x120] sm:$0xff]
        %v530 = vld [vmem:[#allocation2 + $0x128] sm:$0xff]
        %v531 = vld [vmem:[#allocation2 + $0x130] sm:$0xff]
        %v532 = vld [vmem:[#allocation2 + $0x138] sm:$0xff]
        %v533 = vld [vmem:[#allocation2 + $0x140] sm:$0xff]
        %v534 = vld [vmem:[#allocation2 + $0x148] sm:$0xff]
        %v535 = vld [vmem:[#allocation2 + $0x150] sm:$0xff]
        %v536 = vld [vmem:[#allocation2 + $0x158] sm:$0xff]
        %v537 = vld [vmem:[#allocation2 + $0x160] sm:$0xff]
        %v538 = vld [vmem:[#allocation2 + $0x168] sm:$0xff]
        %v539 = vld [vmem:[#allocation2 + $0x170] sm:$0xff]
        %v540 = vld [vmem:[#allocation2 + $0x178] sm:$0xff]
        %v541 = vld [vmem:[#allocation2 + $0x180] sm:$0xff]
        %v542 = vld [vmem:[#allocation2 + $0x188] sm:$0xff]
        %v543 = vld [vmem:[#allocation2 + $0x190] sm:$0xff]
        %v544 = vld [vmem:[#allocation2 + $0x198] sm:$0xff]
        %v545 = vld [vmem:[#allocation2 + $0x1a0] sm:$0xff]
        %v546 = vld [vmem:[#allocation2 + $0x1a8] sm:$0xff]
        %v547 = vld [vmem:[#allocation2 + $0x1b0] sm:$0xff]
        %v548 = vld [vmem:[#allocation2 + $0x1b8] sm:$0xff]
        %v549 = vld [vmem:[#allocation2 + $0x1c0] sm:$0xff]
        %v550 = vld [vmem:[#allocation2 + $0x1c8] sm:$0xff]
        %v551 = vld [vmem:[#allocation2 + $0x1d0] sm:$0xff]
        %v552 = vld [vmem:[#allocation2 + $0x1d8] sm:$0xff]
        %v553 = vld [vmem:[#allocation2 + $0x1e0] sm:$0xff]
        %v554 = vld [vmem:[#allocation2 + $0x1e8] sm:$0xff]
        %v555 = vld [vmem:[#allocation2 + $0x1f0] sm:$0xff]
        %v556 = vld [vmem:[#allocation2 + $0x1f8] sm:$0xff]
        %v557 = vld [vmem:[%s339] sm:$0xff]
        %v558 = vld [vmem:[%s339 + $0x8] sm:$0xff]
        %v559 = vld [vmem:[%s339 + $0x10] sm:$0xff]
        %v560 = vld [vmem:[%s339 + $0x18] sm:$0xff]
        %v561 = vld [vmem:[%s339 + $0x20] sm:$0xff]
        %v562 = vld [vmem:[%s339 + $0x28] sm:$0xff]
        %v563 = vld [vmem:[%s339 + $0x30] sm:$0xff]
        %v564 = vld [vmem:[%s339 + $0x38] sm:$0xff]
        %v565 = vld [vmem:[%s339 + $0x40] sm:$0xff]
        %v566 = vld [vmem:[%s339 + $0x48] sm:$0xff]
        %v567 = vld [vmem:[%s339 + $0x50] sm:$0xff]
        %v568 = vld [vmem:[%s339 + $0x58] sm:$0xff]
        %v569 = vld [vmem:[%s339 + $0x60] sm:$0xff]
        %v570 = vld [vmem:[%s339 + $0x68] sm:$0xff]
        %v571 = vld [vmem:[%s339 + $0x70] sm:$0xff]
        %v572 = vld [vmem:[%s339 + $0x78] sm:$0xff]
        %v573 = vld [vmem:[%s339 + $0x80] sm:$0xff]
        %v574 = vld [vmem:[%s339 + $0x88] sm:$0xff]
        %v575 = vld [vmem:[%s339 + $0x90] sm:$0xff]
        %v576 = vld [vmem:[%s339 + $0x98] sm:$0xff]
        %v577 = vld [vmem:[%s339 + $0xa0] sm:$0xff]
        %v578 = vld [vmem:[%s339 + $0xa8] sm:$0xff]
        %v579 = vld [vmem:[%s339 + $0xb0] sm:$0xff]
        %v580 = vld [vmem:[%s339 + $0xb8] sm:$0xff]
        %v581 = vld [vmem:[%s339 + $0xc0] sm:$0xff]
        %v582 = vld [vmem:[%s339 + $0xc8] sm:$0xff]
        %v583 = vld [vmem:[%s339 + $0xd0] sm:$0xff]
        %v584 = vld [vmem:[%s339 + $0xd8] sm:$0xff]
        %v585 = vld [vmem:[%s339 + $0xe0] sm:$0xff]
        %v586 = vld [vmem:[%s339 + $0xe8] sm:$0xff]
        %v587 = vld [vmem:[%s339 + $0xf0] sm:$0xff]
        %v588 = vld [vmem:[%s339 + $0xf8] sm:$0xff]
        %v589 = vld [vmem:[%s339 + $0x100] sm:$0xff]
        %v590 = vld [vmem:[%s339 + $0x108] sm:$0xff]
        %v591 = vld [vmem:[%s339 + $0x110] sm:$0xff]
        %v592 = vld [vmem:[%s339 + $0x118] sm:$0xff]
        %v593 = vld [vmem:[%s339 + $0x120] sm:$0xff]
        %v594 = vld [vmem:[%s339 + $0x128] sm:$0xff]
        %v595 = vld [vmem:[%s339 + $0x130] sm:$0xff]
        %v596 = vld [vmem:[%s339 + $0x138] sm:$0xff]
        %v597 = vld [vmem:[%s339 + $0x140] sm:$0xff]
        %v598 = vld [vmem:[%s339 + $0x148] sm:$0xff]
        %v599 = vld [vmem:[%s339 + $0x150] sm:$0xff]
        %v600 = vld [vmem:[%s339 + $0x158] sm:$0xff]
        %v601 = vld [vmem:[%s339 + $0x160] sm:$0xff]
        %v602 = vld [vmem:[%s339 + $0x168] sm:$0xff]
        %v603 = vld [vmem:[%s339 + $0x170] sm:$0xff]
        %v604 = vld [vmem:[%s339 + $0x178] sm:$0xff]
        %v605 = vld [vmem:[%s339 + $0x180] sm:$0xff]
        %v606 = vld [vmem:[%s339 + $0x188] sm:$0xff]
        %v607 = vld [vmem:[%s339 + $0x190] sm:$0xff]
        %v608 = vld [vmem:[%s339 + $0x198] sm:$0xff]
        %v609 = vld [vmem:[%s339 + $0x1a0] sm:$0xff]
        %v610 = vld [vmem:[%s339 + $0x1a8] sm:$0xff]
        %v611 = vld [vmem:[%s339 + $0x1b0] sm:$0xff]
        %v612 = vld [vmem:[%s339 + $0x1b8] sm:$0xff]
        %v613 = vld [vmem:[%s339 + $0x1c0] sm:$0xff]
        %v614 = vld [vmem:[%s339 + $0x1c8] sm:$0xff]
        %v615 = vld [vmem:[%s339 + $0x1d0] sm:$0xff]
        %v616 = vld [vmem:[%s339 + $0x1d8] sm:$0xff]
        %v617 = vld [vmem:[%s339 + $0x1e0] sm:$0xff]
        %v618 = vld [vmem:[%s339 + $0x1e8] sm:$0xff]
        %v619 = vld [vmem:[%s339 + $0x1f0] sm:$0xff]
        %v620 = vld [vmem:[%s339 + $0x1f8] sm:$0xff]
        %v621 = vld [vmem:[%s339 + $0x200] sm:$0xff]
        %v622 = vld [vmem:[%s339 + $0x208] sm:$0xff]
        %v623 = vld [vmem:[%s339 + $0x210] sm:$0xff]
        %v624 = vld [vmem:[%s339 + $0x218] sm:$0xff]
        %v625 = vld [vmem:[%s339 + $0x220] sm:$0xff]
        %v626 = vld [vmem:[%s339 + $0x228] sm:$0xff]
        %v627 = vld [vmem:[%s339 + $0x230] sm:$0xff]
        %v628 = vld [vmem:[%s339 + $0x238] sm:$0xff]
        %v629 = vld [vmem:[%s339 + $0x240] sm:$0xff]
        %v630 = vld [vmem:[%s339 + $0x248] sm:$0xff]
        %v631 = vld [vmem:[%s339 + $0x250] sm:$0xff]
        %v632 = vld [vmem:[%s339 + $0x258] sm:$0xff]
        %v633 = vld [vmem:[%s339 + $0x260] sm:$0xff]
        %v634 = vld [vmem:[%s339 + $0x268] sm:$0xff]
        %v635 = vld [vmem:[%s339 + $0x270] sm:$0xff]
        %v636 = vld [vmem:[%s339 + $0x278] sm:$0xff]
        %v637 = vld [vmem:[%s339 + $0x280] sm:$0xff]
        %v638 = vld [vmem:[%s339 + $0x288] sm:$0xff]
        %v639 = vld [vmem:[%s339 + $0x290] sm:$0xff]
        %v640 = vld [vmem:[%s339 + $0x298] sm:$0xff]
        %v641 = vld [vmem:[%s339 + $0x2a0] sm:$0xff]
        %v642 = vld [vmem:[%s339 + $0x2a8] sm:$0xff]
        %v643 = vld [vmem:[%s339 + $0x2b0] sm:$0xff]
        %v644 = vld [vmem:[%s339 + $0x2b8] sm:$0xff]
        %v645 = vld [vmem:[%s339 + $0x2c0] sm:$0xff]
        %v646 = vld [vmem:[%s339 + $0x2c8] sm:$0xff]
        %v647 = vld [vmem:[%s339 + $0x2d0] sm:$0xff]
        %v648 = vld [vmem:[%s339 + $0x2d8] sm:$0xff]
        %v649 = vld [vmem:[%s339 + $0x2e0] sm:$0xff]
        %v650 = vld [vmem:[%s339 + $0x2e8] sm:$0xff]
        %v651 = vld [vmem:[%s339 + $0x2f0] sm:$0xff]
        %v652 = vld [vmem:[%s339 + $0x2f8] sm:$0xff]
        %v653 = vld [vmem:[%s339 + $0x300] sm:$0xff]
        %v654 = vld [vmem:[%s339 + $0x308] sm:$0xff]
        %v655 = vld [vmem:[%s339 + $0x310] sm:$0xff]
        %v656 = vld [vmem:[%s339 + $0x318] sm:$0xff]
        %v657 = vld [vmem:[%s339 + $0x320] sm:$0xff]
        %v658 = vld [vmem:[%s339 + $0x328] sm:$0xff]
        %v659 = vld [vmem:[%s339 + $0x330] sm:$0xff]
        %v660 = vld [vmem:[%s339 + $0x338] sm:$0xff]
        %v661 = vld [vmem:[%s339 + $0x340] sm:$0xff]
        %v662 = vld [vmem:[%s339 + $0x348] sm:$0xff]
        %v663 = vld [vmem:[%s339 + $0x350] sm:$0xff]
        %v664 = vld [vmem:[%s339 + $0x358] sm:$0xff]
        %v665 = vld [vmem:[%s339 + $0x360] sm:$0xff]
        %v666 = vld [vmem:[%s339 + $0x368] sm:$0xff]
        %v667 = vld [vmem:[%s339 + $0x370] sm:$0xff]
        %v668 = vld [vmem:[%s339 + $0x378] sm:$0xff]
        %v669 = vld [vmem:[%s339 + $0x380] sm:$0xff]
        %v670 = vld [vmem:[%s339 + $0x388] sm:$0xff]
        %v671 = vld [vmem:[%s339 + $0x390] sm:$0xff]
        %v672 = vld [vmem:[%s339 + $0x398] sm:$0xff]
        %v673 = vld [vmem:[%s339 + $0x3a0] sm:$0xff]
        %v674 = vld [vmem:[%s339 + $0x3a8] sm:$0xff]
        %v675 = vld [vmem:[%s339 + $0x3b0] sm:$0xff]
        %v676 = vld [vmem:[%s339 + $0x3b8] sm:$0xff]
        %v677 = vld [vmem:[%s339 + $0x3c0] sm:$0xff]
        %v678 = vld [vmem:[%s339 + $0x3c8] sm:$0xff]
        %v679 = vld [vmem:[%s339 + $0x3d0] sm:$0xff]
        %v680 = vld [vmem:[%s339 + $0x3d8] sm:$0xff]
        %v681 = vld [vmem:[%s339 + $0x3e0] sm:$0xff]
        %v682 = vld [vmem:[%s339 + $0x3e8] sm:$0xff]
        %v683 = vld [vmem:[%s339 + $0x3f0] sm:$0xff]
        %v684 = vld [vmem:[%s339 + $0x3f8] sm:$0xff]
        %v685 = vld [vmem:[%s339 + $0x400] sm:$0xff]
        %v686 = vld [vmem:[%s339 + $0x408] sm:$0xff]
        %v687 = vld [vmem:[%s339 + $0x410] sm:$0xff]
        %v688 = vld [vmem:[%s339 + $0x418] sm:$0xff]
        %v689 = vld [vmem:[%s339 + $0x420] sm:$0xff]
        %v690 = vld [vmem:[%s339 + $0x428] sm:$0xff]
        %v691 = vld [vmem:[%s339 + $0x430] sm:$0xff]
        %v692 = vld [vmem:[%s339 + $0x438] sm:$0xff]
        %v693 = vld [vmem:[%s339 + $0x440] sm:$0xff]
        %v694 = vld [vmem:[%s339 + $0x448] sm:$0xff]
        %v695 = vld [vmem:[%s339 + $0x450] sm:$0xff]
        %v696 = vld [vmem:[%s339 + $0x458] sm:$0xff]
        %v697 = vld [vmem:[%s339 + $0x460] sm:$0xff]
        %v698 = vld [vmem:[%s339 + $0x468] sm:$0xff]
        %v699 = vld [vmem:[%s339 + $0x470] sm:$0xff]
        %v700 = vld [vmem:[%s339 + $0x478] sm:$0xff]
        %v701 = vld [vmem:[%s339 + $0x480] sm:$0xff]
        %v702 = vld [vmem:[%s339 + $0x488] sm:$0xff]
        %v703 = vld [vmem:[%s339 + $0x490] sm:$0xff]
        %v704 = vld [vmem:[%s339 + $0x498] sm:$0xff]
        %v705 = vld [vmem:[%s339 + $0x4a0] sm:$0xff]
        %v706 = vld [vmem:[%s339 + $0x4a8] sm:$0xff]
        %v707 = vld [vmem:[%s339 + $0x4b0] sm:$0xff]
        %v708 = vld [vmem:[%s339 + $0x4b8] sm:$0xff]
        %v709 = vld [vmem:[%s339 + $0x4c0] sm:$0xff]
        %v710 = vld [vmem:[%s339 + $0x4c8] sm:$0xff]
        %v711 = vld [vmem:[%s339 + $0x4d0] sm:$0xff]
        %v712 = vld [vmem:[%s339 + $0x4d8] sm:$0xff]
        %v713 = vld [vmem:[%s339 + $0x4e0] sm:$0xff]
        %v714 = vld [vmem:[%s339 + $0x4e8] sm:$0xff]
        %v715 = vld [vmem:[%s339 + $0x4f0] sm:$0xff]
        %v716 = vld [vmem:[%s339 + $0x4f8] sm:$0xff]
        %v717 = vld [vmem:[%s339 + $0x500] sm:$0xff]
        %v718 = vld [vmem:[%s339 + $0x508] sm:$0xff]
        %v719 = vld [vmem:[%s339 + $0x510] sm:$0xff]
        %v720 = vld [vmem:[%s339 + $0x518] sm:$0xff]
        %v721 = vld [vmem:[%s339 + $0x520] sm:$0xff]
        %v722 = vld [vmem:[%s339 + $0x528] sm:$0xff]
        %v723 = vld [vmem:[%s339 + $0x530] sm:$0xff]
        %v724 = vld [vmem:[%s339 + $0x538] sm:$0xff]
        %v725 = vld [vmem:[%s339 + $0x540] sm:$0xff]
        %v726 = vld [vmem:[%s339 + $0x548] sm:$0xff]
        %v727 = vld [vmem:[%s339 + $0x550] sm:$0xff]
        %v728 = vld [vmem:[%s339 + $0x558] sm:$0xff]
        %v729 = vld [vmem:[%s339 + $0x560] sm:$0xff]
        %v730 = vld [vmem:[%s339 + $0x568] sm:$0xff]
        %v731 = vld [vmem:[%s339 + $0x570] sm:$0xff]
        %v732 = vld [vmem:[%s339 + $0x578] sm:$0xff]
        %v733 = vld [vmem:[%s339 + $0x580] sm:$0xff]
        %v734 = vld [vmem:[%s339 + $0x588] sm:$0xff]
        %v735 = vld [vmem:[%s339 + $0x590] sm:$0xff]
        %v736 = vld [vmem:[%s339 + $0x598] sm:$0xff]
        %v737 = vld [vmem:[%s339 + $0x5a0] sm:$0xff]
        %v738 = vld [vmem:[%s339 + $0x5a8] sm:$0xff]
        %v739 = vld [vmem:[%s339 + $0x5b0] sm:$0xff]
        %v740 = vld [vmem:[%s339 + $0x5b8] sm:$0xff]
        %v741 = vld [vmem:[%s339 + $0x5c0] sm:$0xff]
        %v742 = vld [vmem:[%s339 + $0x5c8] sm:$0xff]
        %v743 = vld [vmem:[%s339 + $0x5d0] sm:$0xff]
        %v744 = vld [vmem:[%s339 + $0x5d8] sm:$0xff]
        %v745 = vld [vmem:[%s339 + $0x5e0] sm:$0xff]
        %v746 = vld [vmem:[%s339 + $0x5e8] sm:$0xff]
        %v747 = vld [vmem:[%s339 + $0x5f0] sm:$0xff]
        %v748 = vld [vmem:[%s339 + $0x5f8] sm:$0xff]
        %v749 = vld [vmem:[%s339 + $0x600] sm:$0xff]
        %v750 = vld [vmem:[%s339 + $0x608] sm:$0xff]
        %v751 = vld [vmem:[%s339 + $0x610] sm:$0xff]
        %v752 = vld [vmem:[%s339 + $0x618] sm:$0xff]
        %v753 = vld [vmem:[%s339 + $0x620] sm:$0xff]
        %v754 = vld [vmem:[%s339 + $0x628] sm:$0xff]
        %v755 = vld [vmem:[%s339 + $0x630] sm:$0xff]
        %v756 = vld [vmem:[%s339 + $0x638] sm:$0xff]
        %v757 = vld [vmem:[%s339 + $0x640] sm:$0xff]
        %v758 = vld [vmem:[%s339 + $0x648] sm:$0xff]
        %v759 = vld [vmem:[%s339 + $0x650] sm:$0xff]
        %v760 = vld [vmem:[%s339 + $0x658] sm:$0xff]
        %v761 = vld [vmem:[%s339 + $0x660] sm:$0xff]
        %v762 = vld [vmem:[%s339 + $0x668] sm:$0xff]
        %v763 = vld [vmem:[%s339 + $0x670] sm:$0xff]
        %v764 = vld [vmem:[%s339 + $0x678] sm:$0xff]
        %v765 = vld [vmem:[%s339 + $0x680] sm:$0xff]
        %v766 = vld [vmem:[%s339 + $0x688] sm:$0xff]
        %v767 = vld [vmem:[%s339 + $0x690] sm:$0xff]
        %v768 = vld [vmem:[%s339 + $0x698] sm:$0xff]
        %v769 = vld [vmem:[%s339 + $0x6a0] sm:$0xff]
        %v770 = vld [vmem:[%s339 + $0x6a8] sm:$0xff]
        %v771 = vld [vmem:[%s339 + $0x6b0] sm:$0xff]
        %v772 = vld [vmem:[%s339 + $0x6b8] sm:$0xff]
        %v773 = vld [vmem:[%s339 + $0x6c0] sm:$0xff]
        %v774 = vld [vmem:[%s339 + $0x6c8] sm:$0xff]
        %v775 = vld [vmem:[%s339 + $0x6d0] sm:$0xff]
        %v776 = vld [vmem:[%s339 + $0x6d8] sm:$0xff]
        %v777 = vld [vmem:[%s339 + $0x6e0] sm:$0xff]
        %v778 = vld [vmem:[%s339 + $0x6e8] sm:$0xff]
        %v779 = vld [vmem:[%s339 + $0x6f0] sm:$0xff]
        %v780 = vld [vmem:[%s339 + $0x6f8] sm:$0xff]
        %v781 = vld [vmem:[%s339 + $0x700] sm:$0xff]
        %v782 = vld [vmem:[%s339 + $0x708] sm:$0xff]
        %v783 = vld [vmem:[%s339 + $0x710] sm:$0xff]
        %v784 = vld [vmem:[%s339 + $0x718] sm:$0xff]
        %v785 = vld [vmem:[%s339 + $0x720] sm:$0xff]
        %v786 = vld [vmem:[%s339 + $0x728] sm:$0xff]
        %v787 = vld [vmem:[%s339 + $0x730] sm:$0xff]
        %v788 = vld [vmem:[%s339 + $0x738] sm:$0xff]
        %v789 = vld [vmem:[%s339 + $0x740] sm:$0xff]
        %v790 = vld [vmem:[%s339 + $0x748] sm:$0xff]
        %v791 = vld [vmem:[%s339 + $0x750] sm:$0xff]
        %v792 = vld [vmem:[%s339 + $0x758] sm:$0xff]
        %v793 = vld [vmem:[%s339 + $0x760] sm:$0xff]
        %v794 = vld [vmem:[%s339 + $0x768] sm:$0xff]
        %v795 = vld [vmem:[%s339 + $0x770] sm:$0xff]
        %v796 = vld [vmem:[%s339 + $0x778] sm:$0xff]
        %v797 = vld [vmem:[%s339 + $0x780] sm:$0xff]
        %v798 = vld [vmem:[%s339 + $0x788] sm:$0xff]
        %v799 = vld [vmem:[%s339 + $0x790] sm:$0xff]
        %v800 = vld [vmem:[%s339 + $0x798] sm:$0xff]
        %v801 = vld [vmem:[%s339 + $0x7a0] sm:$0xff]
        %v802 = vld [vmem:[%s339 + $0x7a8] sm:$0xff]
        %v803 = vld [vmem:[%s339 + $0x7b0] sm:$0xff]
        %v804 = vld [vmem:[%s339 + $0x7b8] sm:$0xff]
        %v805 = vld [vmem:[%s339 + $0x7c0] sm:$0xff]
        %v806 = vld [vmem:[%s339 + $0x7c8] sm:$0xff]
        %v807 = vld [vmem:[%s339 + $0x7d0] sm:$0xff]
        %v808 = vld [vmem:[%s339 + $0x7d8] sm:$0xff]
        %v809 = vld [vmem:[%s339 + $0x7e0] sm:$0xff]
        %v810 = vld [vmem:[%s339 + $0x7e8] sm:$0xff]
        %v811 = vld [vmem:[%s339 + $0x7f0] sm:$0xff]
        %v812 = vld [vmem:[%s339 + $0x7f8] sm:$0xff]
        %v813 = vunpack.c.l.s8.bf16 %v557
        %v814 = vunpack.c.l.s8.bf16 %v558
        %v815 = vunpack.c.l.s8.bf16 %v559
        %v816 = vunpack.c.l.s8.bf16 %v560
        %v817 = vunpack.c.l.s8.bf16 %v561
        %v818 = vunpack.c.l.s8.bf16 %v562
        %v819 = vunpack.c.l.s8.bf16 %v563
        %v820 = vunpack.c.l.s8.bf16 %v564
        %v821 = vunpack.c.l.s8.bf16 %v565
        %v822 = vunpack.c.l.s8.bf16 %v566
        %v823 = vunpack.c.l.s8.bf16 %v567
        %v824 = vunpack.c.l.s8.bf16 %v568
        %v825 = vunpack.c.l.s8.bf16 %v569
        %v826 = vunpack.c.l.s8.bf16 %v570
        %v827 = vunpack.c.l.s8.bf16 %v571
        %v828 = vunpack.c.l.s8.bf16 %v572
        %v829 = vunpack.c.h.s8.bf16 %v557
        %v830 = vunpack.c.h.s8.bf16 %v558
        %v831 = vunpack.c.h.s8.bf16 %v559
        %v832 = vunpack.c.h.s8.bf16 %v560
        %v833 = vunpack.c.h.s8.bf16 %v561
        %v834 = vunpack.c.h.s8.bf16 %v562
        %v835 = vunpack.c.h.s8.bf16 %v563
        %v836 = vunpack.c.h.s8.bf16 %v564
        %v837 = vunpack.c.h.s8.bf16 %v565
        %v838 = vunpack.c.h.s8.bf16 %v566
        %v839 = vunpack.c.h.s8.bf16 %v567
        %v840 = vunpack.c.h.s8.bf16 %v568
        %v841 = vunpack.c.h.s8.bf16 %v569
        %v842 = vunpack.c.h.s8.bf16 %v570
        %v843 = vunpack.c.h.s8.bf16 %v571
        %v844 = vunpack.c.h.s8.bf16 %v572
        %v845 = vunpack.c.l.s8.bf16 %v573
        %v846 = vunpack.c.l.s8.bf16 %v574
        %v847 = vunpack.c.l.s8.bf16 %v575
        %v848 = vunpack.c.l.s8.bf16 %v576
        %v849 = vunpack.c.l.s8.bf16 %v577
        %v850 = vunpack.c.l.s8.bf16 %v578
        %v851 = vunpack.c.l.s8.bf16 %v579
        %v852 = vunpack.c.l.s8.bf16 %v580
        %v853 = vunpack.c.l.s8.bf16 %v581
        %v854 = vunpack.c.l.s8.bf16 %v582
        %v855 = vunpack.c.l.s8.bf16 %v583
        %v856 = vunpack.c.l.s8.bf16 %v584
        %v857 = vunpack.c.l.s8.bf16 %v585
        %v858 = vunpack.c.l.s8.bf16 %v586
        %v859 = vunpack.c.l.s8.bf16 %v587
        %v860 = vunpack.c.l.s8.bf16 %v588
        %v861 = vunpack.c.h.s8.bf16 %v573
        %v862 = vunpack.c.h.s8.bf16 %v574
        %v863 = vunpack.c.h.s8.bf16 %v575
        %v864 = vunpack.c.h.s8.bf16 %v576
        %v865 = vunpack.c.h.s8.bf16 %v577
        %v866 = vunpack.c.h.s8.bf16 %v578
        %v867 = vunpack.c.h.s8.bf16 %v579
        %v868 = vunpack.c.h.s8.bf16 %v580
        %v869 = vunpack.c.h.s8.bf16 %v581
        %v870 = vunpack.c.h.s8.bf16 %v582
        %v871 = vunpack.c.h.s8.bf16 %v583
        %v872 = vunpack.c.h.s8.bf16 %v584
        %v873 = vunpack.c.h.s8.bf16 %v585
        %v874 = vunpack.c.h.s8.bf16 %v586
        %v875 = vunpack.c.h.s8.bf16 %v587
        %v876 = vunpack.c.h.s8.bf16 %v588
        %v877 = vunpack.c.l.s8.bf16 %v589
        %v878 = vunpack.c.l.s8.bf16 %v590
        %v879 = vunpack.c.l.s8.bf16 %v591
        %v880 = vunpack.c.l.s8.bf16 %v592
        %v881 = vunpack.c.l.s8.bf16 %v593
        %v882 = vunpack.c.l.s8.bf16 %v594
        %v883 = vunpack.c.l.s8.bf16 %v595
        %v884 = vunpack.c.l.s8.bf16 %v596
        %v885 = vunpack.c.l.s8.bf16 %v597
        %v886 = vunpack.c.l.s8.bf16 %v598
        %v887 = vunpack.c.l.s8.bf16 %v599
        %v888 = vunpack.c.l.s8.bf16 %v600
        %v889 = vunpack.c.l.s8.bf16 %v601
        %v890 = vunpack.c.l.s8.bf16 %v602
        %v891 = vunpack.c.l.s8.bf16 %v603
        %v892 = vunpack.c.l.s8.bf16 %v604
        %v893 = vunpack.c.h.s8.bf16 %v589
        %v894 = vunpack.c.h.s8.bf16 %v590
        %v895 = vunpack.c.h.s8.bf16 %v591
        %v896 = vunpack.c.h.s8.bf16 %v592
        %v897 = vunpack.c.h.s8.bf16 %v593
        %v898 = vunpack.c.h.s8.bf16 %v594
        %v899 = vunpack.c.h.s8.bf16 %v595
        %v900 = vunpack.c.h.s8.bf16 %v596
        %v901 = vunpack.c.h.s8.bf16 %v597
        %v902 = vunpack.c.h.s8.bf16 %v598
        %v903 = vunpack.c.h.s8.bf16 %v599
        %v904 = vunpack.c.h.s8.bf16 %v600
        %v905 = vunpack.c.h.s8.bf16 %v601
        %v906 = vunpack.c.h.s8.bf16 %v602
        %v907 = vunpack.c.h.s8.bf16 %v603
        %v908 = vunpack.c.h.s8.bf16 %v604
        %v909 = vunpack.c.l.s8.bf16 %v605
        %v910 = vunpack.c.l.s8.bf16 %v606
        %v911 = vunpack.c.l.s8.bf16 %v607
        %v912 = vunpack.c.l.s8.bf16 %v608
        %v913 = vunpack.c.l.s8.bf16 %v609
        %v914 = vunpack.c.l.s8.bf16 %v610
        %v915 = vunpack.c.l.s8.bf16 %v611
        %v916 = vunpack.c.l.s8.bf16 %v612
        %v917 = vunpack.c.l.s8.bf16 %v613
        %v918 = vunpack.c.l.s8.bf16 %v614
        %v919 = vunpack.c.l.s8.bf16 %v615
        %v920 = vunpack.c.l.s8.bf16 %v616
        %v921 = vunpack.c.l.s8.bf16 %v617
        %v922 = vunpack.c.l.s8.bf16 %v618
        %v923 = vunpack.c.l.s8.bf16 %v619
        %v924 = vunpack.c.l.s8.bf16 %v620
        %v925 = vunpack.c.h.s8.bf16 %v605
        %v926 = vunpack.c.h.s8.bf16 %v606
        %v927 = vunpack.c.h.s8.bf16 %v607
        %v928 = vunpack.c.h.s8.bf16 %v608
        %v929 = vunpack.c.h.s8.bf16 %v609
        %v930 = vunpack.c.h.s8.bf16 %v610
        %v931 = vunpack.c.h.s8.bf16 %v611
        %v932 = vunpack.c.h.s8.bf16 %v612
        %v933 = vunpack.c.h.s8.bf16 %v613
        %v934 = vunpack.c.h.s8.bf16 %v614
        %v935 = vunpack.c.h.s8.bf16 %v615
        %v936 = vunpack.c.h.s8.bf16 %v616
        %v937 = vunpack.c.h.s8.bf16 %v617
        %v938 = vunpack.c.h.s8.bf16 %v618
        %v939 = vunpack.c.h.s8.bf16 %v619
        %v940 = vunpack.c.h.s8.bf16 %v620
        %v941 = vunpack.c.l.s8.bf16 %v621
        %v942 = vunpack.c.l.s8.bf16 %v622
        %v943 = vunpack.c.l.s8.bf16 %v623
        %v944 = vunpack.c.l.s8.bf16 %v624
        %v945 = vunpack.c.l.s8.bf16 %v625
        %v946 = vunpack.c.l.s8.bf16 %v626
        %v947 = vunpack.c.l.s8.bf16 %v627
        %v948 = vunpack.c.l.s8.bf16 %v628
        %v949 = vunpack.c.l.s8.bf16 %v629
        %v950 = vunpack.c.l.s8.bf16 %v630
        %v951 = vunpack.c.l.s8.bf16 %v631
        %v952 = vunpack.c.l.s8.bf16 %v632
        %v953 = vunpack.c.l.s8.bf16 %v633
        %v954 = vunpack.c.l.s8.bf16 %v634
        %v955 = vunpack.c.l.s8.bf16 %v635
        %v956 = vunpack.c.l.s8.bf16 %v636
        %v957 = vunpack.c.h.s8.bf16 %v621
        %v958 = vunpack.c.h.s8.bf16 %v622
        %v959 = vunpack.c.h.s8.bf16 %v623
        %v960 = vunpack.c.h.s8.bf16 %v624
        %v961 = vunpack.c.h.s8.bf16 %v625
        %v962 = vunpack.c.h.s8.bf16 %v626
        %v963 = vunpack.c.h.s8.bf16 %v627
        %v964 = vunpack.c.h.s8.bf16 %v628
        %v965 = vunpack.c.h.s8.bf16 %v629
        %v966 = vunpack.c.h.s8.bf16 %v630
        %v967 = vunpack.c.h.s8.bf16 %v631
        %v968 = vunpack.c.h.s8.bf16 %v632
        %v969 = vunpack.c.h.s8.bf16 %v633
        %v970 = vunpack.c.h.s8.bf16 %v634
        %v971 = vunpack.c.h.s8.bf16 %v635
        %v972 = vunpack.c.h.s8.bf16 %v636
        %v973 = vunpack.c.l.s8.bf16 %v637
        %v974 = vunpack.c.l.s8.bf16 %v638
        %v975 = vunpack.c.l.s8.bf16 %v639
        %v976 = vunpack.c.l.s8.bf16 %v640
        %v977 = vunpack.c.l.s8.bf16 %v641
        %v978 = vunpack.c.l.s8.bf16 %v642
        %v979 = vunpack.c.l.s8.bf16 %v643
        %v980 = vunpack.c.l.s8.bf16 %v644
        %v981 = vunpack.c.l.s8.bf16 %v645
        %v982 = vunpack.c.l.s8.bf16 %v646
        %v983 = vunpack.c.l.s8.bf16 %v647
        %v984 = vunpack.c.l.s8.bf16 %v648
        %v985 = vunpack.c.l.s8.bf16 %v649
        %v986 = vunpack.c.l.s8.bf16 %v650
        %v987 = vunpack.c.l.s8.bf16 %v651
        %v988 = vunpack.c.l.s8.bf16 %v652
        %v989 = vunpack.c.h.s8.bf16 %v637
        %v990 = vunpack.c.h.s8.bf16 %v638
        %v991 = vunpack.c.h.s8.bf16 %v639
        %v992 = vunpack.c.h.s8.bf16 %v640
        %v993 = vunpack.c.h.s8.bf16 %v641
        %v994 = vunpack.c.h.s8.bf16 %v642
        %v995 = vunpack.c.h.s8.bf16 %v643
        %v996 = vunpack.c.h.s8.bf16 %v644
        %v997 = vunpack.c.h.s8.bf16 %v645
        %v998 = vunpack.c.h.s8.bf16 %v646
        %v999 = vunpack.c.h.s8.bf16 %v647
        %v1000 = vunpack.c.h.s8.bf16 %v648
        %v1001 = vunpack.c.h.s8.bf16 %v649
        %v1002 = vunpack.c.h.s8.bf16 %v650
        %v1003 = vunpack.c.h.s8.bf16 %v651
        %v1004 = vunpack.c.h.s8.bf16 %v652
        %v1005 = vunpack.c.l.s8.bf16 %v653
        %v1006 = vunpack.c.l.s8.bf16 %v654
        %v1007 = vunpack.c.l.s8.bf16 %v655
        %v1008 = vunpack.c.l.s8.bf16 %v656
        %v1009 = vunpack.c.l.s8.bf16 %v657
        %v1010 = vunpack.c.l.s8.bf16 %v658
        %v1011 = vunpack.c.l.s8.bf16 %v659
        %v1012 = vunpack.c.l.s8.bf16 %v660
        %v1013 = vunpack.c.l.s8.bf16 %v661
        %v1014 = vunpack.c.l.s8.bf16 %v662
        %v1015 = vunpack.c.l.s8.bf16 %v663
        %v1016 = vunpack.c.l.s8.bf16 %v664
        %v1017 = vunpack.c.l.s8.bf16 %v665
        %v1018 = vunpack.c.l.s8.bf16 %v666
        %v1019 = vunpack.c.l.s8.bf16 %v667
        %v1020 = vunpack.c.l.s8.bf16 %v668
        %v1021 = vunpack.c.h.s8.bf16 %v653
        %v1022 = vunpack.c.h.s8.bf16 %v654
        %v1023 = vunpack.c.h.s8.bf16 %v655
        %v1024 = vunpack.c.h.s8.bf16 %v656
        %v1025 = vunpack.c.h.s8.bf16 %v657
        %v1026 = vunpack.c.h.s8.bf16 %v658
        %v1027 = vunpack.c.h.s8.bf16 %v659
        %v1028 = vunpack.c.h.s8.bf16 %v660
        %v1029 = vunpack.c.h.s8.bf16 %v661
        %v1030 = vunpack.c.h.s8.bf16 %v662
        %v1031 = vunpack.c.h.s8.bf16 %v663
        %v1032 = vunpack.c.h.s8.bf16 %v664
        %v1033 = vunpack.c.h.s8.bf16 %v665
        %v1034 = vunpack.c.h.s8.bf16 %v666
        %v1035 = vunpack.c.h.s8.bf16 %v667
        %v1036 = vunpack.c.h.s8.bf16 %v668
        %v1037 = vunpack.c.l.s8.bf16 %v669
        %v1038 = vunpack.c.l.s8.bf16 %v670
        %v1039 = vunpack.c.l.s8.bf16 %v671
        %v1040 = vunpack.c.l.s8.bf16 %v672
        %v1041 = vunpack.c.l.s8.bf16 %v673
        %v1042 = vunpack.c.l.s8.bf16 %v674
        %v1043 = vunpack.c.l.s8.bf16 %v675
        %v1044 = vunpack.c.l.s8.bf16 %v676
        %v1045 = vunpack.c.l.s8.bf16 %v677
        %v1046 = vunpack.c.l.s8.bf16 %v678
        %v1047 = vunpack.c.l.s8.bf16 %v679
        %v1048 = vunpack.c.l.s8.bf16 %v680
        %v1049 = vunpack.c.l.s8.bf16 %v681
        %v1050 = vunpack.c.l.s8.bf16 %v682
        %v1051 = vunpack.c.l.s8.bf16 %v683
        %v1052 = vunpack.c.l.s8.bf16 %v684
        %v1053 = vunpack.c.h.s8.bf16 %v669
        %v1054 = vunpack.c.h.s8.bf16 %v670
        %v1055 = vunpack.c.h.s8.bf16 %v671
        %v1056 = vunpack.c.h.s8.bf16 %v672
        %v1057 = vunpack.c.h.s8.bf16 %v673
        %v1058 = vunpack.c.h.s8.bf16 %v674
        %v1059 = vunpack.c.h.s8.bf16 %v675
        %v1060 = vunpack.c.h.s8.bf16 %v676
        %v1061 = vunpack.c.h.s8.bf16 %v677
        %v1062 = vunpack.c.h.s8.bf16 %v678
        %v1063 = vunpack.c.h.s8.bf16 %v679
        %v1064 = vunpack.c.h.s8.bf16 %v680
        %v1065 = vunpack.c.h.s8.bf16 %v681
        %v1066 = vunpack.c.h.s8.bf16 %v682
        %v1067 = vunpack.c.h.s8.bf16 %v683
        %v1068 = vunpack.c.h.s8.bf16 %v684
        %v1069 = vunpack.c.l.s8.bf16 %v685
        %v1070 = vunpack.c.l.s8.bf16 %v686
        %v1071 = vunpack.c.l.s8.bf16 %v687
        %v1072 = vunpack.c.l.s8.bf16 %v688
        %v1073 = vunpack.c.l.s8.bf16 %v689
        %v1074 = vunpack.c.l.s8.bf16 %v690
        %v1075 = vunpack.c.l.s8.bf16 %v691
        %v1076 = vunpack.c.l.s8.bf16 %v692
        %v1077 = vunpack.c.l.s8.bf16 %v693
        %v1078 = vunpack.c.l.s8.bf16 %v694
        %v1079 = vunpack.c.l.s8.bf16 %v695
        %v1080 = vunpack.c.l.s8.bf16 %v696
        %v1081 = vunpack.c.l.s8.bf16 %v697
        %v1082 = vunpack.c.l.s8.bf16 %v698
        %v1083 = vunpack.c.l.s8.bf16 %v699
        %v1084 = vunpack.c.l.s8.bf16 %v700
        %v1085 = vunpack.c.h.s8.bf16 %v685
        %v1086 = vunpack.c.h.s8.bf16 %v686
        %v1087 = vunpack.c.h.s8.bf16 %v687
        %v1088 = vunpack.c.h.s8.bf16 %v688
        %v1089 = vunpack.c.h.s8.bf16 %v689
        %v1090 = vunpack.c.h.s8.bf16 %v690
        %v1091 = vunpack.c.h.s8.bf16 %v691
        %v1092 = vunpack.c.h.s8.bf16 %v692
        %v1093 = vunpack.c.h.s8.bf16 %v693
        %v1094 = vunpack.c.h.s8.bf16 %v694
        %v1095 = vunpack.c.h.s8.bf16 %v695
        %v1096 = vunpack.c.h.s8.bf16 %v696
        %v1097 = vunpack.c.h.s8.bf16 %v697
        %v1098 = vunpack.c.h.s8.bf16 %v698
        %v1099 = vunpack.c.h.s8.bf16 %v699
        %v1100 = vunpack.c.h.s8.bf16 %v700
        %v1101 = vunpack.c.l.s8.bf16 %v701
        %v1102 = vunpack.c.l.s8.bf16 %v702
        %v1103 = vunpack.c.l.s8.bf16 %v703
        %v1104 = vunpack.c.l.s8.bf16 %v704
        %v1105 = vunpack.c.l.s8.bf16 %v705
        %v1106 = vunpack.c.l.s8.bf16 %v706
        %v1107 = vunpack.c.l.s8.bf16 %v707
        %v1108 = vunpack.c.l.s8.bf16 %v708
        %v1109 = vunpack.c.l.s8.bf16 %v709
        %v1110 = vunpack.c.l.s8.bf16 %v710
        %v1111 = vunpack.c.l.s8.bf16 %v711
        %v1112 = vunpack.c.l.s8.bf16 %v712
        %v1113 = vunpack.c.l.s8.bf16 %v713
        %v1114 = vunpack.c.l.s8.bf16 %v714
        %v1115 = vunpack.c.l.s8.bf16 %v715
        %v1116 = vunpack.c.l.s8.bf16 %v716
        %v1117 = vunpack.c.h.s8.bf16 %v701
        %v1118 = vunpack.c.h.s8.bf16 %v702
        %v1119 = vunpack.c.h.s8.bf16 %v703
        %v1120 = vunpack.c.h.s8.bf16 %v704
        %v1121 = vunpack.c.h.s8.bf16 %v705
        %v1122 = vunpack.c.h.s8.bf16 %v706
        %v1123 = vunpack.c.h.s8.bf16 %v707
        %v1124 = vunpack.c.h.s8.bf16 %v708
        %v1125 = vunpack.c.h.s8.bf16 %v709
        %v1126 = vunpack.c.h.s8.bf16 %v710
        %v1127 = vunpack.c.h.s8.bf16 %v711
        %v1128 = vunpack.c.h.s8.bf16 %v712
        %v1129 = vunpack.c.h.s8.bf16 %v713
        %v1130 = vunpack.c.h.s8.bf16 %v714
        %v1131 = vunpack.c.h.s8.bf16 %v715
        %v1132 = vunpack.c.h.s8.bf16 %v716
        %v1133 = vunpack.c.l.s8.bf16 %v717
        %v1134 = vunpack.c.l.s8.bf16 %v718
        %v1135 = vunpack.c.l.s8.bf16 %v719
        %v1136 = vunpack.c.l.s8.bf16 %v720
        %v1137 = vunpack.c.l.s8.bf16 %v721
        %v1138 = vunpack.c.l.s8.bf16 %v722
        %v1139 = vunpack.c.l.s8.bf16 %v723
        %v1140 = vunpack.c.l.s8.bf16 %v724
        %v1141 = vunpack.c.l.s8.bf16 %v725
        %v1142 = vunpack.c.l.s8.bf16 %v726
        %v1143 = vunpack.c.l.s8.bf16 %v727
        %v1144 = vunpack.c.l.s8.bf16 %v728
        %v1145 = vunpack.c.l.s8.bf16 %v729
        %v1146 = vunpack.c.l.s8.bf16 %v730
        %v1147 = vunpack.c.l.s8.bf16 %v731
        %v1148 = vunpack.c.l.s8.bf16 %v732
        %v1149 = vunpack.c.h.s8.bf16 %v717
        %v1150 = vunpack.c.h.s8.bf16 %v718
        %v1151 = vunpack.c.h.s8.bf16 %v719
        %v1152 = vunpack.c.h.s8.bf16 %v720
        %v1153 = vunpack.c.h.s8.bf16 %v721
        %v1154 = vunpack.c.h.s8.bf16 %v722
        %v1155 = vunpack.c.h.s8.bf16 %v723
        %v1156 = vunpack.c.h.s8.bf16 %v724
        %v1157 = vunpack.c.h.s8.bf16 %v725
        %v1158 = vunpack.c.h.s8.bf16 %v726
        %v1159 = vunpack.c.h.s8.bf16 %v727
        %v1160 = vunpack.c.h.s8.bf16 %v728
        %v1161 = vunpack.c.h.s8.bf16 %v729
        %v1162 = vunpack.c.h.s8.bf16 %v730
        %v1163 = vunpack.c.h.s8.bf16 %v731
        %v1164 = vunpack.c.h.s8.bf16 %v732
        %v1165 = vunpack.c.l.s8.bf16 %v733
        %v1166 = vunpack.c.l.s8.bf16 %v734
        %v1167 = vunpack.c.l.s8.bf16 %v735
        %v1168 = vunpack.c.l.s8.bf16 %v736
        %v1169 = vunpack.c.l.s8.bf16 %v737
        %v1170 = vunpack.c.l.s8.bf16 %v738
        %v1171 = vunpack.c.l.s8.bf16 %v739
        %v1172 = vunpack.c.l.s8.bf16 %v740
        %v1173 = vunpack.c.l.s8.bf16 %v741
        %v1174 = vunpack.c.l.s8.bf16 %v742
        %v1175 = vunpack.c.l.s8.bf16 %v743
        %v1176 = vunpack.c.l.s8.bf16 %v744
        %v1177 = vunpack.c.l.s8.bf16 %v745
        %v1178 = vunpack.c.l.s8.bf16 %v746
        %v1179 = vunpack.c.l.s8.bf16 %v747
        %v1180 = vunpack.c.l.s8.bf16 %v748
        %v1181 = vunpack.c.h.s8.bf16 %v733
        %v1182 = vunpack.c.h.s8.bf16 %v734
        %v1183 = vunpack.c.h.s8.bf16 %v735
        %v1184 = vunpack.c.h.s8.bf16 %v736
        %v1185 = vunpack.c.h.s8.bf16 %v737
        %v1186 = vunpack.c.h.s8.bf16 %v738
        %v1187 = vunpack.c.h.s8.bf16 %v739
        %v1188 = vunpack.c.h.s8.bf16 %v740
        %v1189 = vunpack.c.h.s8.bf16 %v741
        %v1190 = vunpack.c.h.s8.bf16 %v742
        %v1191 = vunpack.c.h.s8.bf16 %v743
        %v1192 = vunpack.c.h.s8.bf16 %v744
        %v1193 = vunpack.c.h.s8.bf16 %v745
        %v1194 = vunpack.c.h.s8.bf16 %v746
        %v1195 = vunpack.c.h.s8.bf16 %v747
        %v1196 = vunpack.c.h.s8.bf16 %v748
        %v1197 = vunpack.c.l.s8.bf16 %v749
        %v1198 = vunpack.c.l.s8.bf16 %v750
        %v1199 = vunpack.c.l.s8.bf16 %v751
        %v1200 = vunpack.c.l.s8.bf16 %v752
        %v1201 = vunpack.c.l.s8.bf16 %v753
        %v1202 = vunpack.c.l.s8.bf16 %v754
        %v1203 = vunpack.c.l.s8.bf16 %v755
        %v1204 = vunpack.c.l.s8.bf16 %v756
        %v1205 = vunpack.c.l.s8.bf16 %v757
        %v1206 = vunpack.c.l.s8.bf16 %v758
        %v1207 = vunpack.c.l.s8.bf16 %v759
        %v1208 = vunpack.c.l.s8.bf16 %v760
        %v1209 = vunpack.c.l.s8.bf16 %v761
        %v1210 = vunpack.c.l.s8.bf16 %v762
        %v1211 = vunpack.c.l.s8.bf16 %v763
        %v1212 = vunpack.c.l.s8.bf16 %v764
        %v1213 = vunpack.c.h.s8.bf16 %v749
        %v1214 = vunpack.c.h.s8.bf16 %v750
        %v1215 = vunpack.c.h.s8.bf16 %v751
        %v1216 = vunpack.c.h.s8.bf16 %v752
        %v1217 = vunpack.c.h.s8.bf16 %v753
        %v1218 = vunpack.c.h.s8.bf16 %v754
        %v1219 = vunpack.c.h.s8.bf16 %v755
        %v1220 = vunpack.c.h.s8.bf16 %v756
        %v1221 = vunpack.c.h.s8.bf16 %v757
        %v1222 = vunpack.c.h.s8.bf16 %v758
        %v1223 = vunpack.c.h.s8.bf16 %v759
        %v1224 = vunpack.c.h.s8.bf16 %v760
        %v1225 = vunpack.c.h.s8.bf16 %v761
        %v1226 = vunpack.c.h.s8.bf16 %v762
        %v1227 = vunpack.c.h.s8.bf16 %v763
        %v1228 = vunpack.c.h.s8.bf16 %v764
        %v1229 = vunpack.c.l.s8.bf16 %v765
        %v1230 = vunpack.c.l.s8.bf16 %v766
        %v1231 = vunpack.c.l.s8.bf16 %v767
        %v1232 = vunpack.c.l.s8.bf16 %v768
        %v1233 = vunpack.c.l.s8.bf16 %v769
        %v1234 = vunpack.c.l.s8.bf16 %v770
        %v1235 = vunpack.c.l.s8.bf16 %v771
        %v1236 = vunpack.c.l.s8.bf16 %v772
        %v1237 = vunpack.c.l.s8.bf16 %v773
        %v1238 = vunpack.c.l.s8.bf16 %v774
        %v1239 = vunpack.c.l.s8.bf16 %v775
        %v1240 = vunpack.c.l.s8.bf16 %v776
        %v1241 = vunpack.c.l.s8.bf16 %v777
        %v1242 = vunpack.c.l.s8.bf16 %v778
        %v1243 = vunpack.c.l.s8.bf16 %v779
        %v1244 = vunpack.c.l.s8.bf16 %v780
        %v1245 = vunpack.c.h.s8.bf16 %v765
        %v1246 = vunpack.c.h.s8.bf16 %v766
        %v1247 = vunpack.c.h.s8.bf16 %v767
        %v1248 = vunpack.c.h.s8.bf16 %v768
        %v1249 = vunpack.c.h.s8.bf16 %v769
        %v1250 = vunpack.c.h.s8.bf16 %v770
        %v1251 = vunpack.c.h.s8.bf16 %v771
        %v1252 = vunpack.c.h.s8.bf16 %v772
        %v1253 = vunpack.c.h.s8.bf16 %v773
        %v1254 = vunpack.c.h.s8.bf16 %v774
        %v1255 = vunpack.c.h.s8.bf16 %v775
        %v1256 = vunpack.c.h.s8.bf16 %v776
        %v1257 = vunpack.c.h.s8.bf16 %v777
        %v1258 = vunpack.c.h.s8.bf16 %v778
        %v1259 = vunpack.c.h.s8.bf16 %v779
        %v1260 = vunpack.c.h.s8.bf16 %v780
        %v1261 = vunpack.c.l.s8.bf16 %v781
        %v1262 = vunpack.c.l.s8.bf16 %v782
        %v1263 = vunpack.c.l.s8.bf16 %v783
        %v1264 = vunpack.c.l.s8.bf16 %v784
        %v1265 = vunpack.c.l.s8.bf16 %v785
        %v1266 = vunpack.c.l.s8.bf16 %v786
        %v1267 = vunpack.c.l.s8.bf16 %v787
        %v1268 = vunpack.c.l.s8.bf16 %v788
        %v1269 = vunpack.c.l.s8.bf16 %v789
        %v1270 = vunpack.c.l.s8.bf16 %v790
        %v1271 = vunpack.c.l.s8.bf16 %v791
        %v1272 = vunpack.c.l.s8.bf16 %v792
        %v1273 = vunpack.c.l.s8.bf16 %v793
        %v1274 = vunpack.c.l.s8.bf16 %v794
        %v1275 = vunpack.c.l.s8.bf16 %v795
        %v1276 = vunpack.c.l.s8.bf16 %v796
        %v1277 = vunpack.c.h.s8.bf16 %v781
        %v1278 = vunpack.c.h.s8.bf16 %v782
        %v1279 = vunpack.c.h.s8.bf16 %v783
        %v1280 = vunpack.c.h.s8.bf16 %v784
        %v1281 = vunpack.c.h.s8.bf16 %v785
        %v1282 = vunpack.c.h.s8.bf16 %v786
        %v1283 = vunpack.c.h.s8.bf16 %v787
        %v1284 = vunpack.c.h.s8.bf16 %v788
        %v1285 = vunpack.c.h.s8.bf16 %v789
        %v1286 = vunpack.c.h.s8.bf16 %v790
        %v1287 = vunpack.c.h.s8.bf16 %v791
        %v1288 = vunpack.c.h.s8.bf16 %v792
        %v1289 = vunpack.c.h.s8.bf16 %v793
        %v1290 = vunpack.c.h.s8.bf16 %v794
        %v1291 = vunpack.c.h.s8.bf16 %v795
        %v1292 = vunpack.c.h.s8.bf16 %v796
        %v1293 = vunpack.c.l.s8.bf16 %v797
        %v1294 = vunpack.c.l.s8.bf16 %v798
        %v1295 = vunpack.c.l.s8.bf16 %v799
        %v1296 = vunpack.c.l.s8.bf16 %v800
        %v1297 = vunpack.c.l.s8.bf16 %v801
        %v1298 = vunpack.c.l.s8.bf16 %v802
        %v1299 = vunpack.c.l.s8.bf16 %v803
        %v1300 = vunpack.c.l.s8.bf16 %v804
        %v1301 = vunpack.c.l.s8.bf16 %v805
        %v1302 = vunpack.c.l.s8.bf16 %v806
        %v1303 = vunpack.c.l.s8.bf16 %v807
        %v1304 = vunpack.c.l.s8.bf16 %v808
        %v1305 = vunpack.c.l.s8.bf16 %v809
        %v1306 = vunpack.c.l.s8.bf16 %v810
        %v1307 = vunpack.c.l.s8.bf16 %v811
        %v1308 = vunpack.c.l.s8.bf16 %v812
        %v1309 = vunpack.c.h.s8.bf16 %v797
        %v1310 = vunpack.c.h.s8.bf16 %v798
        %v1311 = vunpack.c.h.s8.bf16 %v799
        %v1312 = vunpack.c.h.s8.bf16 %v800
        %v1313 = vunpack.c.h.s8.bf16 %v801
        %v1314 = vunpack.c.h.s8.bf16 %v802
        %v1315 = vunpack.c.h.s8.bf16 %v803
        %v1316 = vunpack.c.h.s8.bf16 %v804
        %v1317 = vunpack.c.h.s8.bf16 %v805
        %v1318 = vunpack.c.h.s8.bf16 %v806
        %v1319 = vunpack.c.h.s8.bf16 %v807
        %v1320 = vunpack.c.h.s8.bf16 %v808
        %v1321 = vunpack.c.h.s8.bf16 %v809
        %v1322 = vunpack.c.h.s8.bf16 %v810
        %v1323 = vunpack.c.h.s8.bf16 %v811
        %v1324 = vunpack.c.h.s8.bf16 %v812
        %v1325 = vld [vmem:[%s403] sm:$0xf]
        %v1326 = vld [vmem:[%s403 + $0x4] sm:$0xf]
        %v1327 = vld [vmem:[%s403 + $0x8] sm:$0xf]
        %v1328 = vld [vmem:[%s403 + $0xc] sm:$0xf]
        %v1329 = vld [vmem:[%s403 + $0x10] sm:$0xf]
        %v1330 = vld [vmem:[%s403 + $0x14] sm:$0xf]
        %v1331 = vld [vmem:[%s403 + $0x18] sm:$0xf]
        %v1332 = vld [vmem:[%s403 + $0x1c] sm:$0xf]
        %v1333 = vld [vmem:[%s403 + $0x20] sm:$0xf]
        %v1334 = vld [vmem:[%s403 + $0x24] sm:$0xf]
        %v1335 = vld [vmem:[%s403 + $0x28] sm:$0xf]
        %v1336 = vld [vmem:[%s403 + $0x2c] sm:$0xf]
        %v1337 = vld [vmem:[%s403 + $0x30] sm:$0xf]
        %v1338 = vld [vmem:[%s403 + $0x34] sm:$0xf]
        %v1339 = vld [vmem:[%s403 + $0x38] sm:$0xf]
        %v1340 = vld [vmem:[%s403 + $0x3c] sm:$0xf]
        %v1341 = vld [vmem:[%s403 + $0x40] sm:$0xf]
        %v1342 = vld [vmem:[%s403 + $0x44] sm:$0xf]
        %v1343 = vld [vmem:[%s403 + $0x48] sm:$0xf]
        %v1344 = vld [vmem:[%s403 + $0x4c] sm:$0xf]
        %v1345 = vld [vmem:[%s403 + $0x50] sm:$0xf]
        %v1346 = vld [vmem:[%s403 + $0x54] sm:$0xf]
        %v1347 = vld [vmem:[%s403 + $0x58] sm:$0xf]
        %v1348 = vld [vmem:[%s403 + $0x5c] sm:$0xf]
        %v1349 = vld [vmem:[%s403 + $0x60] sm:$0xf]
        %v1350 = vld [vmem:[%s403 + $0x64] sm:$0xf]
        %v1351 = vld [vmem:[%s403 + $0x68] sm:$0xf]
        %v1352 = vld [vmem:[%s403 + $0x6c] sm:$0xf]
        %v1353 = vld [vmem:[%s403 + $0x70] sm:$0xf]
        %v1354 = vld [vmem:[%s403 + $0x74] sm:$0xf]
        %v1355 = vld [vmem:[%s403 + $0x78] sm:$0xf]
        %v1356 = vld [vmem:[%s403 + $0x7c] sm:$0xf]
        %v1357 = vld [vmem:[%s403 + $0x80] sm:$0xf]
        %v1358 = vld [vmem:[%s403 + $0x84] sm:$0xf]
        %v1359 = vld [vmem:[%s403 + $0x88] sm:$0xf]
        %v1360 = vld [vmem:[%s403 + $0x8c] sm:$0xf]
        %v1361 = vld [vmem:[%s403 + $0x90] sm:$0xf]
        %v1362 = vld [vmem:[%s403 + $0x94] sm:$0xf]
        %v1363 = vld [vmem:[%s403 + $0x98] sm:$0xf]
        %v1364 = vld [vmem:[%s403 + $0x9c] sm:$0xf]
        %v1365 = vld [vmem:[%s403 + $0xa0] sm:$0xf]
        %v1366 = vld [vmem:[%s403 + $0xa4] sm:$0xf]
        %v1367 = vld [vmem:[%s403 + $0xa8] sm:$0xf]
        %v1368 = vld [vmem:[%s403 + $0xac] sm:$0xf]
        %v1369 = vld [vmem:[%s403 + $0xb0] sm:$0xf]
        %v1370 = vld [vmem:[%s403 + $0xb4] sm:$0xf]
        %v1371 = vld [vmem:[%s403 + $0xb8] sm:$0xf]
        %v1372 = vld [vmem:[%s403 + $0xbc] sm:$0xf]
        %v1373 = vld [vmem:[%s403 + $0xc0] sm:$0xf]
        %v1374 = vld [vmem:[%s403 + $0xc4] sm:$0xf]
        %v1375 = vld [vmem:[%s403 + $0xc8] sm:$0xf]
        %v1376 = vld [vmem:[%s403 + $0xcc] sm:$0xf]
        %v1377 = vld [vmem:[%s403 + $0xd0] sm:$0xf]
        %v1378 = vld [vmem:[%s403 + $0xd4] sm:$0xf]
        %v1379 = vld [vmem:[%s403 + $0xd8] sm:$0xf]
        %v1380 = vld [vmem:[%s403 + $0xdc] sm:$0xf]
        %v1381 = vld [vmem:[%s403 + $0xe0] sm:$0xf]
        %v1382 = vld [vmem:[%s403 + $0xe4] sm:$0xf]
        %v1383 = vld [vmem:[%s403 + $0xe8] sm:$0xf]
        %v1384 = vld [vmem:[%s403 + $0xec] sm:$0xf]
        %v1385 = vld [vmem:[%s403 + $0xf0] sm:$0xf]
        %v1386 = vld [vmem:[%s403 + $0xf4] sm:$0xf]
        %v1387 = vld [vmem:[%s403 + $0xf8] sm:$0xf]
        %v1388 = vld [vmem:[%s403 + $0xfc] sm:$0xf]
        %v1389 = vld [vmem:[%s403 + $0x100] sm:$0xf]
        %v1390 = vld [vmem:[%s403 + $0x104] sm:$0xf]
        %v1391 = vld [vmem:[%s403 + $0x108] sm:$0xf]
        %v1392 = vld [vmem:[%s403 + $0x10c] sm:$0xf]
        %v1393 = vld [vmem:[%s403 + $0x110] sm:$0xf]
        %v1394 = vld [vmem:[%s403 + $0x114] sm:$0xf]
        %v1395 = vld [vmem:[%s403 + $0x118] sm:$0xf]
        %v1396 = vld [vmem:[%s403 + $0x11c] sm:$0xf]
        %v1397 = vld [vmem:[%s403 + $0x120] sm:$0xf]
        %v1398 = vld [vmem:[%s403 + $0x124] sm:$0xf]
        %v1399 = vld [vmem:[%s403 + $0x128] sm:$0xf]
        %v1400 = vld [vmem:[%s403 + $0x12c] sm:$0xf]
        %v1401 = vld [vmem:[%s403 + $0x130] sm:$0xf]
        %v1402 = vld [vmem:[%s403 + $0x134] sm:$0xf]
        %v1403 = vld [vmem:[%s403 + $0x138] sm:$0xf]
        %v1404 = vld [vmem:[%s403 + $0x13c] sm:$0xf]
        %v1405 = vld [vmem:[%s403 + $0x140] sm:$0xf]
        %v1406 = vld [vmem:[%s403 + $0x144] sm:$0xf]
        %v1407 = vld [vmem:[%s403 + $0x148] sm:$0xf]
        %v1408 = vld [vmem:[%s403 + $0x14c] sm:$0xf]
        %v1409 = vld [vmem:[%s403 + $0x150] sm:$0xf]
        %v1410 = vld [vmem:[%s403 + $0x154] sm:$0xf]
        %v1411 = vld [vmem:[%s403 + $0x158] sm:$0xf]
        %v1412 = vld [vmem:[%s403 + $0x15c] sm:$0xf]
        %v1413 = vld [vmem:[%s403 + $0x160] sm:$0xf]
        %v1414 = vld [vmem:[%s403 + $0x164] sm:$0xf]
        %v1415 = vld [vmem:[%s403 + $0x168] sm:$0xf]
        %v1416 = vld [vmem:[%s403 + $0x16c] sm:$0xf]
        %v1417 = vld [vmem:[%s403 + $0x170] sm:$0xf]
        %v1418 = vld [vmem:[%s403 + $0x174] sm:$0xf]
        %v1419 = vld [vmem:[%s403 + $0x178] sm:$0xf]
        %v1420 = vld [vmem:[%s403 + $0x17c] sm:$0xf]
        %v1421 = vld [vmem:[%s403 + $0x180] sm:$0xf]
        %v1422 = vld [vmem:[%s403 + $0x184] sm:$0xf]
        %v1423 = vld [vmem:[%s403 + $0x188] sm:$0xf]
        %v1424 = vld [vmem:[%s403 + $0x18c] sm:$0xf]
        %v1425 = vld [vmem:[%s403 + $0x190] sm:$0xf]
        %v1426 = vld [vmem:[%s403 + $0x194] sm:$0xf]
        %v1427 = vld [vmem:[%s403 + $0x198] sm:$0xf]
        %v1428 = vld [vmem:[%s403 + $0x19c] sm:$0xf]
        %v1429 = vld [vmem:[%s403 + $0x1a0] sm:$0xf]
        %v1430 = vld [vmem:[%s403 + $0x1a4] sm:$0xf]
        %v1431 = vld [vmem:[%s403 + $0x1a8] sm:$0xf]
        %v1432 = vld [vmem:[%s403 + $0x1ac] sm:$0xf]
        %v1433 = vld [vmem:[%s403 + $0x1b0] sm:$0xf]
        %v1434 = vld [vmem:[%s403 + $0x1b4] sm:$0xf]
        %v1435 = vld [vmem:[%s403 + $0x1b8] sm:$0xf]
        %v1436 = vld [vmem:[%s403 + $0x1bc] sm:$0xf]
        %v1437 = vld [vmem:[%s403 + $0x1c0] sm:$0xf]
        %v1438 = vld [vmem:[%s403 + $0x1c4] sm:$0xf]
        %v1439 = vld [vmem:[%s403 + $0x1c8] sm:$0xf]
        %v1440 = vld [vmem:[%s403 + $0x1cc] sm:$0xf]
        %v1441 = vld [vmem:[%s403 + $0x1d0] sm:$0xf]
        %v1442 = vld [vmem:[%s403 + $0x1d4] sm:$0xf]
        %v1443 = vld [vmem:[%s403 + $0x1d8] sm:$0xf]
        %v1444 = vld [vmem:[%s403 + $0x1dc] sm:$0xf]
        %v1445 = vld [vmem:[%s403 + $0x1e0] sm:$0xf]
        %v1446 = vld [vmem:[%s403 + $0x1e4] sm:$0xf]
        %v1447 = vld [vmem:[%s403 + $0x1e8] sm:$0xf]
        %v1448 = vld [vmem:[%s403 + $0x1ec] sm:$0xf]
        %v1449 = vld [vmem:[%s403 + $0x1f0] sm:$0xf]
        %v1450 = vld [vmem:[%s403 + $0x1f4] sm:$0xf]
        %v1451 = vld [vmem:[%s403 + $0x1f8] sm:$0xf]
        %v1452 = vld [vmem:[%s403 + $0x1fc] sm:$0xf]
        %v1453 = vld [vmem:[%s403 + $0x200] sm:$0xf]
        %v1454 = vld [vmem:[%s403 + $0x204] sm:$0xf]
        %v1455 = vld [vmem:[%s403 + $0x208] sm:$0xf]
        %v1456 = vld [vmem:[%s403 + $0x20c] sm:$0xf]
        %v1457 = vld [vmem:[%s403 + $0x210] sm:$0xf]
        %v1458 = vld [vmem:[%s403 + $0x214] sm:$0xf]
        %v1459 = vld [vmem:[%s403 + $0x218] sm:$0xf]
        %v1460 = vld [vmem:[%s403 + $0x21c] sm:$0xf]
        %v1461 = vld [vmem:[%s403 + $0x220] sm:$0xf]
        %v1462 = vld [vmem:[%s403 + $0x224] sm:$0xf]
        %v1463 = vld [vmem:[%s403 + $0x228] sm:$0xf]
        %v1464 = vld [vmem:[%s403 + $0x22c] sm:$0xf]
        %v1465 = vld [vmem:[%s403 + $0x230] sm:$0xf]
        %v1466 = vld [vmem:[%s403 + $0x234] sm:$0xf]
        %v1467 = vld [vmem:[%s403 + $0x238] sm:$0xf]
        %v1468 = vld [vmem:[%s403 + $0x23c] sm:$0xf]
        %v1469 = vld [vmem:[%s403 + $0x240] sm:$0xf]
        %v1470 = vld [vmem:[%s403 + $0x244] sm:$0xf]
        %v1471 = vld [vmem:[%s403 + $0x248] sm:$0xf]
        %v1472 = vld [vmem:[%s403 + $0x24c] sm:$0xf]
        %v1473 = vld [vmem:[%s403 + $0x250] sm:$0xf]
        %v1474 = vld [vmem:[%s403 + $0x254] sm:$0xf]
        %v1475 = vld [vmem:[%s403 + $0x258] sm:$0xf]
        %v1476 = vld [vmem:[%s403 + $0x25c] sm:$0xf]
        %v1477 = vld [vmem:[%s403 + $0x260] sm:$0xf]
        %v1478 = vld [vmem:[%s403 + $0x264] sm:$0xf]
        %v1479 = vld [vmem:[%s403 + $0x268] sm:$0xf]
        %v1480 = vld [vmem:[%s403 + $0x26c] sm:$0xf]
        %v1481 = vld [vmem:[%s403 + $0x270] sm:$0xf]
        %v1482 = vld [vmem:[%s403 + $0x274] sm:$0xf]
        %v1483 = vld [vmem:[%s403 + $0x278] sm:$0xf]
        %v1484 = vld [vmem:[%s403 + $0x27c] sm:$0xf]
        %v1485 = vld [vmem:[%s403 + $0x280] sm:$0xf]
        %v1486 = vld [vmem:[%s403 + $0x284] sm:$0xf]
        %v1487 = vld [vmem:[%s403 + $0x288] sm:$0xf]
        %v1488 = vld [vmem:[%s403 + $0x28c] sm:$0xf]
        %v1489 = vld [vmem:[%s403 + $0x290] sm:$0xf]
        %v1490 = vld [vmem:[%s403 + $0x294] sm:$0xf]
        %v1491 = vld [vmem:[%s403 + $0x298] sm:$0xf]
        %v1492 = vld [vmem:[%s403 + $0x29c] sm:$0xf]
        %v1493 = vld [vmem:[%s403 + $0x2a0] sm:$0xf]
        %v1494 = vld [vmem:[%s403 + $0x2a4] sm:$0xf]
        %v1495 = vld [vmem:[%s403 + $0x2a8] sm:$0xf]
        %v1496 = vld [vmem:[%s403 + $0x2ac] sm:$0xf]
        %v1497 = vld [vmem:[%s403 + $0x2b0] sm:$0xf]
        %v1498 = vld [vmem:[%s403 + $0x2b4] sm:$0xf]
        %v1499 = vld [vmem:[%s403 + $0x2b8] sm:$0xf]
        %v1500 = vld [vmem:[%s403 + $0x2bc] sm:$0xf]
        %v1501 = vld [vmem:[%s403 + $0x2c0] sm:$0xf]
        %v1502 = vld [vmem:[%s403 + $0x2c4] sm:$0xf]
        %v1503 = vld [vmem:[%s403 + $0x2c8] sm:$0xf]
        %v1504 = vld [vmem:[%s403 + $0x2cc] sm:$0xf]
        %v1505 = vld [vmem:[%s403 + $0x2d0] sm:$0xf]
        %v1506 = vld [vmem:[%s403 + $0x2d4] sm:$0xf]
        %v1507 = vld [vmem:[%s403 + $0x2d8] sm:$0xf]
        %v1508 = vld [vmem:[%s403 + $0x2dc] sm:$0xf]
        %v1509 = vld [vmem:[%s403 + $0x2e0] sm:$0xf]
        %v1510 = vld [vmem:[%s403 + $0x2e4] sm:$0xf]
        %v1511 = vld [vmem:[%s403 + $0x2e8] sm:$0xf]
        %v1512 = vld [vmem:[%s403 + $0x2ec] sm:$0xf]
        %v1513 = vld [vmem:[%s403 + $0x2f0] sm:$0xf]
        %v1514 = vld [vmem:[%s403 + $0x2f4] sm:$0xf]
        %v1515 = vld [vmem:[%s403 + $0x2f8] sm:$0xf]
        %v1516 = vld [vmem:[%s403 + $0x2fc] sm:$0xf]
        %v1517 = vld [vmem:[%s403 + $0x300] sm:$0xf]
        %v1518 = vld [vmem:[%s403 + $0x304] sm:$0xf]
        %v1519 = vld [vmem:[%s403 + $0x308] sm:$0xf]
        %v1520 = vld [vmem:[%s403 + $0x30c] sm:$0xf]
        %v1521 = vld [vmem:[%s403 + $0x310] sm:$0xf]
        %v1522 = vld [vmem:[%s403 + $0x314] sm:$0xf]
        %v1523 = vld [vmem:[%s403 + $0x318] sm:$0xf]
        %v1524 = vld [vmem:[%s403 + $0x31c] sm:$0xf]
        %v1525 = vld [vmem:[%s403 + $0x320] sm:$0xf]
        %v1526 = vld [vmem:[%s403 + $0x324] sm:$0xf]
        %v1527 = vld [vmem:[%s403 + $0x328] sm:$0xf]
        %v1528 = vld [vmem:[%s403 + $0x32c] sm:$0xf]
        %v1529 = vld [vmem:[%s403 + $0x330] sm:$0xf]
        %v1530 = vld [vmem:[%s403 + $0x334] sm:$0xf]
        %v1531 = vld [vmem:[%s403 + $0x338] sm:$0xf]
        %v1532 = vld [vmem:[%s403 + $0x33c] sm:$0xf]
        %v1533 = vld [vmem:[%s403 + $0x340] sm:$0xf]
        %v1534 = vld [vmem:[%s403 + $0x344] sm:$0xf]
        %v1535 = vld [vmem:[%s403 + $0x348] sm:$0xf]
        %v1536 = vld [vmem:[%s403 + $0x34c] sm:$0xf]
        %v1537 = vld [vmem:[%s403 + $0x350] sm:$0xf]
        %v1538 = vld [vmem:[%s403 + $0x354] sm:$0xf]
        %v1539 = vld [vmem:[%s403 + $0x358] sm:$0xf]
        %v1540 = vld [vmem:[%s403 + $0x35c] sm:$0xf]
        %v1541 = vld [vmem:[%s403 + $0x360] sm:$0xf]
        %v1542 = vld [vmem:[%s403 + $0x364] sm:$0xf]
        %v1543 = vld [vmem:[%s403 + $0x368] sm:$0xf]
        %v1544 = vld [vmem:[%s403 + $0x36c] sm:$0xf]
        %v1545 = vld [vmem:[%s403 + $0x370] sm:$0xf]
        %v1546 = vld [vmem:[%s403 + $0x374] sm:$0xf]
        %v1547 = vld [vmem:[%s403 + $0x378] sm:$0xf]
        %v1548 = vld [vmem:[%s403 + $0x37c] sm:$0xf]
        %v1549 = vld [vmem:[%s403 + $0x380] sm:$0xf]
        %v1550 = vld [vmem:[%s403 + $0x384] sm:$0xf]
        %v1551 = vld [vmem:[%s403 + $0x388] sm:$0xf]
        %v1552 = vld [vmem:[%s403 + $0x38c] sm:$0xf]
        %v1553 = vld [vmem:[%s403 + $0x390] sm:$0xf]
        %v1554 = vld [vmem:[%s403 + $0x394] sm:$0xf]
        %v1555 = vld [vmem:[%s403 + $0x398] sm:$0xf]
        %v1556 = vld [vmem:[%s403 + $0x39c] sm:$0xf]
        %v1557 = vld [vmem:[%s403 + $0x3a0] sm:$0xf]
        %v1558 = vld [vmem:[%s403 + $0x3a4] sm:$0xf]
        %v1559 = vld [vmem:[%s403 + $0x3a8] sm:$0xf]
        %v1560 = vld [vmem:[%s403 + $0x3ac] sm:$0xf]
        %v1561 = vld [vmem:[%s403 + $0x3b0] sm:$0xf]
        %v1562 = vld [vmem:[%s403 + $0x3b4] sm:$0xf]
        %v1563 = vld [vmem:[%s403 + $0x3b8] sm:$0xf]
        %v1564 = vld [vmem:[%s403 + $0x3bc] sm:$0xf]
        %v1565 = vld [vmem:[%s403 + $0x3c0] sm:$0xf]
        %v1566 = vld [vmem:[%s403 + $0x3c4] sm:$0xf]
        %v1567 = vld [vmem:[%s403 + $0x3c8] sm:$0xf]
        %v1568 = vld [vmem:[%s403 + $0x3cc] sm:$0xf]
        %v1569 = vld [vmem:[%s403 + $0x3d0] sm:$0xf]
        %v1570 = vld [vmem:[%s403 + $0x3d4] sm:$0xf]
        %v1571 = vld [vmem:[%s403 + $0x3d8] sm:$0xf]
        %v1572 = vld [vmem:[%s403 + $0x3dc] sm:$0xf]
        %v1573 = vld [vmem:[%s403 + $0x3e0] sm:$0xf]
        %v1574 = vld [vmem:[%s403 + $0x3e4] sm:$0xf]
        %v1575 = vld [vmem:[%s403 + $0x3e8] sm:$0xf]
        %v1576 = vld [vmem:[%s403 + $0x3ec] sm:$0xf]
        %v1577 = vld [vmem:[%s403 + $0x3f0] sm:$0xf]
        %v1578 = vld [vmem:[%s403 + $0x3f4] sm:$0xf]
        %v1579 = vld [vmem:[%s403 + $0x3f8] sm:$0xf]
        %v1580 = vld [vmem:[%s403 + $0x3fc] sm:$0xf]
        %v1837 = vunpack.c.l.b16 %v1325
        %v1838 = vunpack.c.l.b16 %v1326
        %v1839 = vunpack.c.l.b16 %v1327
        %v1840 = vunpack.c.l.b16 %v1328
        %v1841 = vunpack.c.l.b16 %v1329
        %v1842 = vunpack.c.l.b16 %v1330
        %v1843 = vunpack.c.l.b16 %v1331
        %v1844 = vunpack.c.l.b16 %v1332
        %v1845 = vunpack.c.l.b16 %v1333
        %v1846 = vunpack.c.l.b16 %v1334
        %v1847 = vunpack.c.l.b16 %v1335
        %v1848 = vunpack.c.l.b16 %v1336
        %v1849 = vunpack.c.l.b16 %v1337
        %v1850 = vunpack.c.l.b16 %v1338
        %v1851 = vunpack.c.l.b16 %v1339
        %v1852 = vunpack.c.l.b16 %v1340
        %v1853 = vunpack.c.l.b16 %v1341
        %v1854 = vunpack.c.l.b16 %v1342
        %v1855 = vunpack.c.l.b16 %v1343
        %v1856 = vunpack.c.l.b16 %v1344
        %v1857 = vunpack.c.l.b16 %v1345
        %v1858 = vunpack.c.l.b16 %v1346
        %v1859 = vunpack.c.l.b16 %v1347
        %v1860 = vunpack.c.l.b16 %v1348
        %v1861 = vunpack.c.l.b16 %v1349
        %v1862 = vunpack.c.l.b16 %v1350
        %v1863 = vunpack.c.l.b16 %v1351
        %v1864 = vunpack.c.l.b16 %v1352
        %v1865 = vunpack.c.l.b16 %v1353
        %v1866 = vunpack.c.l.b16 %v1354
        %v1867 = vunpack.c.l.b16 %v1355
        %v1868 = vunpack.c.l.b16 %v1356
        %v1869 = vunpack.c.l.b16 %v1357
        %v1870 = vunpack.c.l.b16 %v1358
        %v1871 = vunpack.c.l.b16 %v1359
        %v1872 = vunpack.c.l.b16 %v1360
        %v1873 = vunpack.c.l.b16 %v1361
        %v1874 = vunpack.c.l.b16 %v1362
        %v1875 = vunpack.c.l.b16 %v1363
        %v1876 = vunpack.c.l.b16 %v1364
        %v1877 = vunpack.c.l.b16 %v1365
        %v1878 = vunpack.c.l.b16 %v1366
        %v1879 = vunpack.c.l.b16 %v1367
        %v1880 = vunpack.c.l.b16 %v1368
        %v1881 = vunpack.c.l.b16 %v1369
        %v1882 = vunpack.c.l.b16 %v1370
        %v1883 = vunpack.c.l.b16 %v1371
        %v1884 = vunpack.c.l.b16 %v1372
        %v1885 = vunpack.c.l.b16 %v1373
        %v1886 = vunpack.c.l.b16 %v1374
        %v1887 = vunpack.c.l.b16 %v1375
        %v1888 = vunpack.c.l.b16 %v1376
        %v1889 = vunpack.c.l.b16 %v1377
        %v1890 = vunpack.c.l.b16 %v1378
        %v1891 = vunpack.c.l.b16 %v1379
        %v1892 = vunpack.c.l.b16 %v1380
        %v1893 = vunpack.c.l.b16 %v1381
        %v1894 = vunpack.c.l.b16 %v1382
        %v1895 = vunpack.c.l.b16 %v1383
        %v1896 = vunpack.c.l.b16 %v1384
        %v1897 = vunpack.c.l.b16 %v1385
        %v1898 = vunpack.c.l.b16 %v1386
        %v1899 = vunpack.c.l.b16 %v1387
        %v1900 = vunpack.c.l.b16 %v1388
        %v1901 = vunpack.c.l.b16 %v1389
        %v1902 = vunpack.c.l.b16 %v1390
        %v1903 = vunpack.c.l.b16 %v1391
        %v1904 = vunpack.c.l.b16 %v1392
        %v1905 = vunpack.c.l.b16 %v1393
        %v1906 = vunpack.c.l.b16 %v1394
        %v1907 = vunpack.c.l.b16 %v1395
        %v1908 = vunpack.c.l.b16 %v1396
        %v1909 = vunpack.c.l.b16 %v1397
        %v1910 = vunpack.c.l.b16 %v1398
        %v1911 = vunpack.c.l.b16 %v1399
        %v1912 = vunpack.c.l.b16 %v1400
        %v1913 = vunpack.c.l.b16 %v1401
        %v1914 = vunpack.c.l.b16 %v1402
        %v1915 = vunpack.c.l.b16 %v1403
        %v1916 = vunpack.c.l.b16 %v1404
        %v1917 = vunpack.c.l.b16 %v1405
        %v1918 = vunpack.c.l.b16 %v1406
        %v1919 = vunpack.c.l.b16 %v1407
        %v1920 = vunpack.c.l.b16 %v1408
        %v1921 = vunpack.c.l.b16 %v1409
        %v1922 = vunpack.c.l.b16 %v1410
        %v1923 = vunpack.c.l.b16 %v1411
        %v1924 = vunpack.c.l.b16 %v1412
        %v1925 = vunpack.c.l.b16 %v1413
        %v1926 = vunpack.c.l.b16 %v1414
        %v1927 = vunpack.c.l.b16 %v1415
        %v1928 = vunpack.c.l.b16 %v1416
        %v1929 = vunpack.c.l.b16 %v1417
        %v1930 = vunpack.c.l.b16 %v1418
        %v1931 = vunpack.c.l.b16 %v1419
        %v1932 = vunpack.c.l.b16 %v1420
        %v1933 = vunpack.c.l.b16 %v1421
        %v1934 = vunpack.c.l.b16 %v1422
        %v1935 = vunpack.c.l.b16 %v1423
        %v1936 = vunpack.c.l.b16 %v1424
        %v1937 = vunpack.c.l.b16 %v1425
        %v1938 = vunpack.c.l.b16 %v1426
        %v1939 = vunpack.c.l.b16 %v1427
        %v1940 = vunpack.c.l.b16 %v1428
        %v1941 = vunpack.c.l.b16 %v1429
        %v1942 = vunpack.c.l.b16 %v1430
        %v1943 = vunpack.c.l.b16 %v1431
        %v1944 = vunpack.c.l.b16 %v1432
        %v1945 = vunpack.c.l.b16 %v1433
        %v1946 = vunpack.c.l.b16 %v1434
        %v1947 = vunpack.c.l.b16 %v1435
        %v1948 = vunpack.c.l.b16 %v1436
        %v1949 = vunpack.c.l.b16 %v1437
        %v1950 = vunpack.c.l.b16 %v1438
        %v1951 = vunpack.c.l.b16 %v1439
        %v1952 = vunpack.c.l.b16 %v1440
        %v1953 = vunpack.c.l.b16 %v1441
        %v1954 = vunpack.c.l.b16 %v1442
        %v1955 = vunpack.c.l.b16 %v1443
        %v1956 = vunpack.c.l.b16 %v1444
        %v1957 = vunpack.c.l.b16 %v1445
        %v1958 = vunpack.c.l.b16 %v1446
        %v1959 = vunpack.c.l.b16 %v1447
        %v1960 = vunpack.c.l.b16 %v1448
        %v1961 = vunpack.c.l.b16 %v1449
        %v1962 = vunpack.c.l.b16 %v1450
        %v1963 = vunpack.c.l.b16 %v1451
        %v1964 = vunpack.c.l.b16 %v1452
        %v1965 = vunpack.c.l.b16 %v1453
        %v1966 = vunpack.c.l.b16 %v1454
        %v1967 = vunpack.c.l.b16 %v1455
        %v1968 = vunpack.c.l.b16 %v1456
        %v1969 = vunpack.c.l.b16 %v1457
        %v1970 = vunpack.c.l.b16 %v1458
        %v1971 = vunpack.c.l.b16 %v1459
        %v1972 = vunpack.c.l.b16 %v1460
        %v1973 = vunpack.c.l.b16 %v1461
        %v1974 = vunpack.c.l.b16 %v1462
        %v1975 = vunpack.c.l.b16 %v1463
        %v1976 = vunpack.c.l.b16 %v1464
        %v1977 = vunpack.c.l.b16 %v1465
        %v1978 = vunpack.c.l.b16 %v1466
        %v1979 = vunpack.c.l.b16 %v1467
        %v1980 = vunpack.c.l.b16 %v1468
        %v1981 = vunpack.c.l.b16 %v1469
        %v1982 = vunpack.c.l.b16 %v1470
        %v1983 = vunpack.c.l.b16 %v1471
        %v1984 = vunpack.c.l.b16 %v1472
        %v1985 = vunpack.c.l.b16 %v1473
        %v1986 = vunpack.c.l.b16 %v1474
        %v1987 = vunpack.c.l.b16 %v1475
        %v1988 = vunpack.c.l.b16 %v1476
        %v1989 = vunpack.c.l.b16 %v1477
        %v1990 = vunpack.c.l.b16 %v1478
        %v1991 = vunpack.c.l.b16 %v1479
        %v1992 = vunpack.c.l.b16 %v1480
        %v1993 = vunpack.c.l.b16 %v1481
        %v1994 = vunpack.c.l.b16 %v1482
        %v1995 = vunpack.c.l.b16 %v1483
        %v1996 = vunpack.c.l.b16 %v1484
        %v1997 = vunpack.c.l.b16 %v1485
        %v1998 = vunpack.c.l.b16 %v1486
        %v1999 = vunpack.c.l.b16 %v1487
        %v2000 = vunpack.c.l.b16 %v1488
        %v2001 = vunpack.c.l.b16 %v1489
        %v2002 = vunpack.c.l.b16 %v1490
        %v2003 = vunpack.c.l.b16 %v1491
        %v2004 = vunpack.c.l.b16 %v1492
        %v2005 = vunpack.c.l.b16 %v1493
        %v2006 = vunpack.c.l.b16 %v1494
        %v2007 = vunpack.c.l.b16 %v1495
        %v2008 = vunpack.c.l.b16 %v1496
        %v2009 = vunpack.c.l.b16 %v1497
        %v2010 = vunpack.c.l.b16 %v1498
        %v2011 = vunpack.c.l.b16 %v1499
        %v2012 = vunpack.c.l.b16 %v1500
        %v2013 = vunpack.c.l.b16 %v1501
        %v2014 = vunpack.c.l.b16 %v1502
        %v2015 = vunpack.c.l.b16 %v1503
        %v2016 = vunpack.c.l.b16 %v1504
        %v2017 = vunpack.c.l.b16 %v1505
        %v2018 = vunpack.c.l.b16 %v1506
        %v2019 = vunpack.c.l.b16 %v1507
        %v2020 = vunpack.c.l.b16 %v1508
        %v2021 = vunpack.c.l.b16 %v1509
        %v2022 = vunpack.c.l.b16 %v1510
        %v2023 = vunpack.c.l.b16 %v1511
        %v2024 = vunpack.c.l.b16 %v1512
        %v2025 = vunpack.c.l.b16 %v1513
        %v2026 = vunpack.c.l.b16 %v1514
        %v2027 = vunpack.c.l.b16 %v1515
        %v2028 = vunpack.c.l.b16 %v1516
        %v2029 = vunpack.c.l.b16 %v1517
        %v2030 = vunpack.c.l.b16 %v1518
        %v2031 = vunpack.c.l.b16 %v1519
        %v2032 = vunpack.c.l.b16 %v1520
        %v2033 = vunpack.c.l.b16 %v1521
        %v2034 = vunpack.c.l.b16 %v1522
        %v2035 = vunpack.c.l.b16 %v1523
        %v2036 = vunpack.c.l.b16 %v1524
        %v2037 = vunpack.c.l.b16 %v1525
        %v2038 = vunpack.c.l.b16 %v1526
        %v2039 = vunpack.c.l.b16 %v1527
        %v2040 = vunpack.c.l.b16 %v1528
        %v2041 = vunpack.c.l.b16 %v1529
        %v2042 = vunpack.c.l.b16 %v1530
        %v2043 = vunpack.c.l.b16 %v1531
        %v2044 = vunpack.c.l.b16 %v1532
        %v2045 = vunpack.c.l.b16 %v1533
        %v2046 = vunpack.c.l.b16 %v1534
        %v2047 = vunpack.c.l.b16 %v1535
        %v2048 = vunpack.c.l.b16 %v1536
        %v2049 = vunpack.c.l.b16 %v1537
        %v2050 = vunpack.c.l.b16 %v1538
        %v2051 = vunpack.c.l.b16 %v1539
        %v2052 = vunpack.c.l.b16 %v1540
        %v2053 = vunpack.c.l.b16 %v1541
        %v2054 = vunpack.c.l.b16 %v1542
        %v2055 = vunpack.c.l.b16 %v1543
        %v2056 = vunpack.c.l.b16 %v1544
        %v2057 = vunpack.c.l.b16 %v1545
        %v2058 = vunpack.c.l.b16 %v1546
        %v2059 = vunpack.c.l.b16 %v1547
        %v2060 = vunpack.c.l.b16 %v1548
        %v2061 = vunpack.c.l.b16 %v1549
        %v2062 = vunpack.c.l.b16 %v1550
        %v2063 = vunpack.c.l.b16 %v1551
        %v2064 = vunpack.c.l.b16 %v1552
        %v2065 = vunpack.c.l.b16 %v1553
        %v2066 = vunpack.c.l.b16 %v1554
        %v2067 = vunpack.c.l.b16 %v1555
        %v2068 = vunpack.c.l.b16 %v1556
        %v2069 = vunpack.c.l.b16 %v1557
        %v2070 = vunpack.c.l.b16 %v1558
        %v2071 = vunpack.c.l.b16 %v1559
        %v2072 = vunpack.c.l.b16 %v1560
        %v2073 = vunpack.c.l.b16 %v1561
        %v2074 = vunpack.c.l.b16 %v1562
        %v2075 = vunpack.c.l.b16 %v1563
        %v2076 = vunpack.c.l.b16 %v1564
        %v2077 = vunpack.c.l.b16 %v1565
        %v2078 = vunpack.c.l.b16 %v1566
        %v2079 = vunpack.c.l.b16 %v1567
        %v2080 = vunpack.c.l.b16 %v1568
        %v2081 = vunpack.c.l.b16 %v1569
        %v2082 = vunpack.c.l.b16 %v1570
        %v2083 = vunpack.c.l.b16 %v1571
        %v2084 = vunpack.c.l.b16 %v1572
        %v2085 = vunpack.c.l.b16 %v1573
        %v2086 = vunpack.c.l.b16 %v1574
        %v2087 = vunpack.c.l.b16 %v1575
        %v2088 = vunpack.c.l.b16 %v1576
        %v2089 = vunpack.c.l.b16 %v1577
        %v2090 = vunpack.c.l.b16 %v1578
        %v2091 = vunpack.c.l.b16 %v1579
        %v2092 = vunpack.c.l.b16 %v1580
        %v2093 = vpack.c.b16 %v1838, %v1837
        %v2094 = vpack.c.b16 %v1840, %v1839
        %v2095 = vpack.c.b16 %v1842, %v1841
        %v2096 = vpack.c.b16 %v1844, %v1843
        %v2097 = vpack.c.b16 %v1846, %v1845
        %v2098 = vpack.c.b16 %v1848, %v1847
        %v2099 = vpack.c.b16 %v1850, %v1849
        %v2100 = vpack.c.b16 %v1852, %v1851
        %v2101 = vpack.c.b16 %v1854, %v1853
        %v2102 = vpack.c.b16 %v1856, %v1855
        %v2103 = vpack.c.b16 %v1858, %v1857
        %v2104 = vpack.c.b16 %v1860, %v1859
        %v2105 = vpack.c.b16 %v1862, %v1861
        %v2106 = vpack.c.b16 %v1864, %v1863
        %v2107 = vpack.c.b16 %v1866, %v1865
        %v2108 = vpack.c.b16 %v1868, %v1867
        %v2109 = vpack.c.b16 %v1870, %v1869
        %v2110 = vpack.c.b16 %v1872, %v1871
        %v2111 = vpack.c.b16 %v1874, %v1873
        %v2112 = vpack.c.b16 %v1876, %v1875
        %v2113 = vpack.c.b16 %v1878, %v1877
        %v2114 = vpack.c.b16 %v1880, %v1879
        %v2115 = vpack.c.b16 %v1882, %v1881
        %v2116 = vpack.c.b16 %v1884, %v1883
        %v2117 = vpack.c.b16 %v1886, %v1885
        %v2118 = vpack.c.b16 %v1888, %v1887
        %v2119 = vpack.c.b16 %v1890, %v1889
        %v2120 = vpack.c.b16 %v1892, %v1891
        %v2121 = vpack.c.b16 %v1894, %v1893
        %v2122 = vpack.c.b16 %v1896, %v1895
        %v2123 = vpack.c.b16 %v1898, %v1897
        %v2124 = vpack.c.b16 %v1900, %v1899
        %v2125 = vpack.c.b16 %v1902, %v1901
        %v2126 = vpack.c.b16 %v1904, %v1903
        %v2127 = vpack.c.b16 %v1906, %v1905
        %v2128 = vpack.c.b16 %v1908, %v1907
        %v2129 = vpack.c.b16 %v1910, %v1909
        %v2130 = vpack.c.b16 %v1912, %v1911
        %v2131 = vpack.c.b16 %v1914, %v1913
        %v2132 = vpack.c.b16 %v1916, %v1915
        %v2133 = vpack.c.b16 %v1918, %v1917
        %v2134 = vpack.c.b16 %v1920, %v1919
        %v2135 = vpack.c.b16 %v1922, %v1921
        %v2136 = vpack.c.b16 %v1924, %v1923
        %v2137 = vpack.c.b16 %v1926, %v1925
        %v2138 = vpack.c.b16 %v1928, %v1927
        %v2139 = vpack.c.b16 %v1930, %v1929
        %v2140 = vpack.c.b16 %v1932, %v1931
        %v2141 = vpack.c.b16 %v1934, %v1933
        %v2142 = vpack.c.b16 %v1936, %v1935
        %v2143 = vpack.c.b16 %v1938, %v1937
        %v2144 = vpack.c.b16 %v1940, %v1939
        %v2145 = vpack.c.b16 %v1942, %v1941
        %v2146 = vpack.c.b16 %v1944, %v1943
        %v2147 = vpack.c.b16 %v1946, %v1945
        %v2148 = vpack.c.b16 %v1948, %v1947
        %v2149 = vpack.c.b16 %v1950, %v1949
        %v2150 = vpack.c.b16 %v1952, %v1951
        %v2151 = vpack.c.b16 %v1954, %v1953
        %v2152 = vpack.c.b16 %v1956, %v1955
        %v2153 = vpack.c.b16 %v1958, %v1957
        %v2154 = vpack.c.b16 %v1960, %v1959
        %v2155 = vpack.c.b16 %v1962, %v1961
        %v2156 = vpack.c.b16 %v1964, %v1963
        %v2157 = vpack.c.b16 %v1966, %v1965
        %v2158 = vpack.c.b16 %v1968, %v1967
        %v2159 = vpack.c.b16 %v1970, %v1969
        %v2160 = vpack.c.b16 %v1972, %v1971
        %v2161 = vpack.c.b16 %v1974, %v1973
        %v2162 = vpack.c.b16 %v1976, %v1975
        %v2163 = vpack.c.b16 %v1978, %v1977
        %v2164 = vpack.c.b16 %v1980, %v1979
        %v2165 = vpack.c.b16 %v1982, %v1981
        %v2166 = vpack.c.b16 %v1984, %v1983
        %v2167 = vpack.c.b16 %v1986, %v1985
        %v2168 = vpack.c.b16 %v1988, %v1987
        %v2169 = vpack.c.b16 %v1990, %v1989
        %v2170 = vpack.c.b16 %v1992, %v1991
        %v2171 = vpack.c.b16 %v1994, %v1993
        %v2172 = vpack.c.b16 %v1996, %v1995
        %v2173 = vpack.c.b16 %v1998, %v1997
        %v2174 = vpack.c.b16 %v2000, %v1999
        %v2175 = vpack.c.b16 %v2002, %v2001
        %v2176 = vpack.c.b16 %v2004, %v2003
        %v2177 = vpack.c.b16 %v2006, %v2005
        %v2178 = vpack.c.b16 %v2008, %v2007
        %v2179 = vpack.c.b16 %v2010, %v2009
        %v2180 = vpack.c.b16 %v2012, %v2011
        %v2181 = vpack.c.b16 %v2014, %v2013
        %v2182 = vpack.c.b16 %v2016, %v2015
        %v2183 = vpack.c.b16 %v2018, %v2017
        %v2184 = vpack.c.b16 %v2020, %v2019
        %v2185 = vpack.c.b16 %v2022, %v2021
        %v2186 = vpack.c.b16 %v2024, %v2023
        %v2187 = vpack.c.b16 %v2026, %v2025
        %v2188 = vpack.c.b16 %v2028, %v2027
        %v2189 = vpack.c.b16 %v2030, %v2029
        %v2190 = vpack.c.b16 %v2032, %v2031
        %v2191 = vpack.c.b16 %v2034, %v2033
        %v2192 = vpack.c.b16 %v2036, %v2035
        %v2193 = vpack.c.b16 %v2038, %v2037
        %v2194 = vpack.c.b16 %v2040, %v2039
        %v2195 = vpack.c.b16 %v2042, %v2041
        %v2196 = vpack.c.b16 %v2044, %v2043
        %v2197 = vpack.c.b16 %v2046, %v2045
        %v2198 = vpack.c.b16 %v2048, %v2047
        %v2199 = vpack.c.b16 %v2050, %v2049
        %v2200 = vpack.c.b16 %v2052, %v2051
        %v2201 = vpack.c.b16 %v2054, %v2053
        %v2202 = vpack.c.b16 %v2056, %v2055
        %v2203 = vpack.c.b16 %v2058, %v2057
        %v2204 = vpack.c.b16 %v2060, %v2059
        %v2205 = vpack.c.b16 %v2062, %v2061
        %v2206 = vpack.c.b16 %v2064, %v2063
        %v2207 = vpack.c.b16 %v2066, %v2065
        %v2208 = vpack.c.b16 %v2068, %v2067
        %v2209 = vpack.c.b16 %v2070, %v2069
        %v2210 = vpack.c.b16 %v2072, %v2071
        %v2211 = vpack.c.b16 %v2074, %v2073
        %v2212 = vpack.c.b16 %v2076, %v2075
        %v2213 = vpack.c.b16 %v2078, %v2077
        %v2214 = vpack.c.b16 %v2080, %v2079
        %v2215 = vpack.c.b16 %v2082, %v2081
        %v2216 = vpack.c.b16 %v2084, %v2083
        %v2217 = vpack.c.b16 %v2086, %v2085
        %v2218 = vpack.c.b16 %v2088, %v2087
        %v2219 = vpack.c.b16 %v2090, %v2089
        %v2220 = vpack.c.b16 %v2092, %v2091
        %2349 = vmatprep.subr.bf16.mxu0 0
        %2350 = vmatpush1.bf16.msra.mxu0 %v2093
        %2351 = vmatprep.subr.bf16.mxu0 0
        %2352 = vmatpush1.bf16.msra.mxu0 %v2094
        %2353 = vmatprep.subr.bf16.mxu0 0
        %2354 = vmatpush1.bf16.msra.mxu0 %v2095
        %2355 = vmatprep.subr.bf16.mxu0 0
        %2356 = vmatpush1.bf16.msra.mxu0 %v2096
        %2357 = vmatprep.subr.bf16.mxu0 0
        %2358 = vmatpush1.bf16.msra.mxu0 %v2097
        %2359 = vmatprep.subr.bf16.mxu0 0
        %2360 = vmatpush1.bf16.msra.mxu0 %v2098
        %2361 = vmatprep.subr.bf16.mxu0 0
        %2362 = vmatpush1.bf16.msra.mxu0 %v2099
        %2363 = vmatprep.subr.bf16.mxu0 0
        %2364 = vmatpush1.bf16.msra.mxu0 %v2100
        %2365 = vmatprep.subr.bf16.mxu0 0
        %2366 = vmatpush1.bf16.msra.mxu0 %v2101
        %2367 = vmatprep.subr.bf16.mxu0 0
        %2368 = vmatpush1.bf16.msra.mxu0 %v2102
        %2369 = vmatprep.subr.bf16.mxu0 0
        %2370 = vmatpush1.bf16.msra.mxu0 %v2103
        %2371 = vmatprep.subr.bf16.mxu0 0
        %2372 = vmatpush1.bf16.msra.mxu0 %v2104
        %2373 = vmatprep.subr.bf16.mxu0 0
        %2374 = vmatpush1.bf16.msra.mxu0 %v2105
        %2375 = vmatprep.subr.bf16.mxu0 0
        %2376 = vmatpush1.bf16.msra.mxu0 %v2106
        %2377 = vmatprep.subr.bf16.mxu0 0
        %2378 = vmatpush1.bf16.msra.mxu0 %v2107
        %2379 = vmatprep.subr.bf16.mxu0 0
        %2380 = vmatpush1.bf16.msra.mxu0 %v2108
        %2381 = vmatprep.mubr.bf16.mxu0 %v814
        %2382 = vmatmul.mubr.bf16.gmra.mrb[0].mxu0 %v813
        %v2383 = vpop.f32.mrb[0].mxu0
        %v2384 = vadd.f32 0.0, %v2383
        %v2385 = vpop.f32.mrb[0].mxu0
        %v2386 = vpop.f32.mrb[0].mxu0
        %v2387 = vadd.f32 0.0, %v2386
        %v2388 = vpop.f32.mrb[0].mxu0
        %2389 = vmatprep.mubr.bf16.mxu0 %v830
        %2390 = vmatmul.mubr.bf16.gmra.mrb[0].mxu0 %v829
        %v2391 = vpop.f32.mrb[0].mxu0
        %v2392 = vadd.f32 0.0, %v2391
        %v2393 = vpop.f32.mrb[0].mxu0
        %v2394 = vpop.f32.mrb[0].mxu0
        %v2395 = vadd.f32 0.0, %v2394
        %v2396 = vpop.f32.mrb[0].mxu0
        %2397 = vmatprep.mubr.bf16.mxu0 %v846
        %2398 = vmatmul.mubr.bf16.gmra.mrb[0].mxu0 %v845
        %v2399 = vpop.f32.mrb[0].mxu0
        %v2400 = vadd.f32 0.0, %v2399
        %v2401 = vpop.f32.mrb[0].mxu0
        %v2402 = vpop.f32.mrb[0].mxu0
        %v2403 = vadd.f32 0.0, %v2402
        %v2404 = vpop.f32.mrb[0].mxu0
        %2405 = vmatprep.mubr.bf16.mxu0 %v862
        %2406 = vmatmul.mubr.bf16.gmra.mrb[0].mxu0 %v861
        %v2407 = vpop.f32.mrb[0].mxu0
        %v2408 = vadd.f32 0.0, %v2407
        %v2409 = vpop.f32.mrb[0].mxu0
        %v2410 = vpop.f32.mrb[0].mxu0
        %v2411 = vadd.f32 0.0, %v2410
        %v2412 = vpop.f32.mrb[0].mxu0
        %2413 = vmatprep.mubr.bf16.mxu0 %v878
        %2414 = vmatmul.mubr.bf16.gmra.mrb[0].mxu0 %v877
        %v2415 = vpop.f32.mrb[0].mxu0
        %v2416 = vadd.f32 0.0, %v2415
        %v2417 = vpop.f32.mrb[0].mxu0
        %v2418 = vpop.f32.mrb[0].mxu0
        %v2419 = vadd.f32 0.0, %v2418
        %v2420 = vpop.f32.mrb[0].mxu0
        %2421 = vmatprep.mubr.bf16.mxu0 %v894
        %2422 = vmatmul.mubr.bf16.gmra.mrb[0].mxu0 %v893
        %v2423 = vpop.f32.mrb[0].mxu0
        %v2424 = vadd.f32 0.0, %v2423
        %v2425 = vpop.f32.mrb[0].mxu0
        %v2426 = vpop.f32.mrb[0].mxu0
        %v2427 = vadd.f32 0.0, %v2426
        %v2428 = vpop.f32.mrb[0].mxu0
        %2429 = vmatprep.mubr.bf16.mxu0 %v910
        %2430 = vmatmul.mubr.bf16.gmra.mrb[0].mxu0 %v909
        %v2431 = vpop.f32.mrb[0].mxu0
        %v2432 = vadd.f32 0.0, %v2431
        %v2433 = vpop.f32.mrb[0].mxu0
        %v2434 = vpop.f32.mrb[0].mxu0
        %v2435 = vadd.f32 0.0, %v2434
        %v2436 = vpop.f32.mrb[0].mxu0
        %2437 = vmatprep.mubr.bf16.mxu0 %v926
        %2438 = vmatmul.mubr.bf16.gmra.mrb[0].mxu0 %v925
        %v2439 = vpop.f32.mrb[0].mxu0
        %v2440 = vadd.f32 0.0, %v2439
        %v2441 = vpop.f32.mrb[0].mxu0
        %v2442 = vpop.f32.mrb[0].mxu0
        %v2443 = vadd.f32 0.0, %v2442
        %v2444 = vpop.f32.mrb[0].mxu0
        %2445 = vmatprep.mubr.bf16.mxu0 %v942
        %2446 = vmatmul.mubr.bf16.gmra.mrb[0].mxu0 %v941
        %v2447 = vpop.f32.mrb[0].mxu0
        %v2448 = vadd.f32 0.0, %v2447
        %v2449 = vpop.f32.mrb[0].mxu0
        %v2450 = vpop.f32.mrb[0].mxu0
        %v2451 = vadd.f32 0.0, %v2450
        %v2452 = vpop.f32.mrb[0].mxu0
        %2453 = vmatprep.mubr.bf16.mxu0 %v958
        %2454 = vmatmul.mubr.bf16.gmra.mrb[0].mxu0 %v957
        %v2455 = vpop.f32.mrb[0].mxu0
        %v2456 = vadd.f32 0.0, %v2455
        %v2457 = vpop.f32.mrb[0].mxu0
        %v2458 = vpop.f32.mrb[0].mxu0
        %v2459 = vadd.f32 0.0, %v2458
        %v2460 = vpop.f32.mrb[0].mxu0
        %2461 = vmatprep.mubr.bf16.mxu0 %v974
        %2462 = vmatmul.mubr.bf16.gmra.mrb[0].mxu0 %v973
        %v2463 = vpop.f32.mrb[0].mxu0
        %v2464 = vadd.f32 0.0, %v2463
        %v2465 = vpop.f32.mrb[0].mxu0
        %v2466 = vpop.f32.mrb[0].mxu0
        %v2467 = vadd.f32 0.0, %v2466
        %v2468 = vpop.f32.mrb[0].mxu0
        %2469 = vmatprep.mubr.bf16.mxu0 %v990
        %2470 = vmatmul.mubr.bf16.gmra.mrb[0].mxu0 %v989
        %v2471 = vpop.f32.mrb[0].mxu0
        %v2472 = vadd.f32 0.0, %v2471
        %v2473 = vpop.f32.mrb[0].mxu0
        %v2474 = vpop.f32.mrb[0].mxu0
        %v2475 = vadd.f32 0.0, %v2474
        %v2476 = vpop.f32.mrb[0].mxu0
        %2477 = vmatprep.mubr.bf16.mxu0 %v1006
        %2478 = vmatmul.mubr.bf16.gmra.mrb[0].mxu0 %v1005
        %v2479 = vpop.f32.mrb[0].mxu0
        %v2480 = vadd.f32 0.0, %v2479
        %v2481 = vpop.f32.mrb[0].mxu0
        %v2482 = vpop.f32.mrb[0].mxu0
        %v2483 = vadd.f32 0.0, %v2482
        %v2484 = vpop.f32.mrb[0].mxu0
        %2485 = vmatprep.mubr.bf16.mxu0 %v1022
        %2486 = vmatmul.mubr.bf16.gmra.mrb[0].mxu0 %v1021
        %v2487 = vpop.f32.mrb[0].mxu0
        %v2488 = vadd.f32 0.0, %v2487
        %v2489 = vpop.f32.mrb[0].mxu0
        %v2490 = vpop.f32.mrb[0].mxu0
        %v2491 = vadd.f32 0.0, %v2490
        %v2492 = vpop.f32.mrb[0].mxu0
        %2493 = vmatprep.mubr.bf16.mxu0 %v1038
        %2494 = vmatmul.mubr.bf16.gmra.mrb[0].mxu0 %v1037
        %v2495 = vpop.f32.mrb[0].mxu0
        %v2496 = vadd.f32 0.0, %v2495
        %v2497 = vpop.f32.mrb[0].mxu0
        %v2498 = vpop.f32.mrb[0].mxu0
        %v2499 = vadd.f32 0.0, %v2498
        %v2500 = vpop.f32.mrb[0].mxu0
        %2501 = vmatprep.mubr.bf16.mxu0 %v1054
        %2502 = vmatmul.mubr.bf16.gmra.mrb[0].mxu0 %v1053
        %v2503 = vpop.f32.mrb[0].mxu0
        %v2504 = vadd.f32 0.0, %v2503
        %v2505 = vpop.f32.mrb[0].mxu0
        %v2506 = vpop.f32.mrb[0].mxu0
        %v2507 = vadd.f32 0.0, %v2506
        %v2508 = vpop.f32.mrb[0].mxu0
        %2509 = vmatprep.mubr.bf16.mxu0 %v1070
        %2510 = vmatmul.mubr.bf16.gmra.mrb[0].mxu0 %v1069
        %v2511 = vpop.f32.mrb[0].mxu0
        %v2512 = vadd.f32 0.0, %v2511
        %v2513 = vpop.f32.mrb[0].mxu0
        %v2514 = vpop.f32.mrb[0].mxu0
        %v2515 = vadd.f32 0.0, %v2514
        %v2516 = vpop.f32.mrb[0].mxu0
        %2517 = vmatprep.mubr.bf16.mxu0 %v1086
        %2518 = vmatmul.mubr.bf16.gmra.mrb[0].mxu0 %v1085
        %v2519 = vpop.f32.mrb[0].mxu0
        %v2520 = vadd.f32 0.0, %v2519
        %v2521 = vpop.f32.mrb[0].mxu0
        %v2522 = vpop.f32.mrb[0].mxu0
        %v2523 = vadd.f32 0.0, %v2522
        %v2524 = vpop.f32.mrb[0].mxu0
        %2525 = vmatprep.mubr.bf16.mxu0 %v1102
        %2526 = vmatmul.mubr.bf16.gmra.mrb[0].mxu0 %v1101
        %v2527 = vpop.f32.mrb[0].mxu0
        %v2528 = vadd.f32 0.0, %v2527
        %v2529 = vpop.f32.mrb[0].mxu0
        %v2530 = vpop.f32.mrb[0].mxu0
        %v2531 = vadd.f32 0.0, %v2530
        %v2532 = vpop.f32.mrb[0].mxu0
        %2533 = vmatprep.mubr.bf16.mxu0 %v1118
        %2534 = vmatmul.mubr.bf16.gmra.mrb[0].mxu0 %v1117
        %v2535 = vpop.f32.mrb[0].mxu0
        %v2536 = vadd.f32 0.0, %v2535
        %v2537 = vpop.f32.mrb[0].mxu0
        %v2538 = vpop.f32.mrb[0].mxu0
        %v2539 = vadd.f32 0.0, %v2538
        %v2540 = vpop.f32.mrb[0].mxu0
        %2541 = vmatprep.mubr.bf16.mxu0 %v1134
        %2542 = vmatmul.mubr.bf16.gmra.mrb[0].mxu0 %v1133
        %v2543 = vpop.f32.mrb[0].mxu0
        %v2544 = vadd.f32 0.0, %v2543
        %v2545 = vpop.f32.mrb[0].mxu0
        %v2546 = vpop.f32.mrb[0].mxu0
        %v2547 = vadd.f32 0.0, %v2546
        %v2548 = vpop.f32.mrb[0].mxu0
        %2549 = vmatprep.mubr.bf16.mxu0 %v1150
        %2550 = vmatmul.mubr.bf16.gmra.mrb[0].mxu0 %v1149
        %v2551 = vpop.f32.mrb[0].mxu0
        %v2552 = vadd.f32 0.0, %v2551
        %v2553 = vpop.f32.mrb[0].mxu0
        %v2554 = vpop.f32.mrb[0].mxu0
        %v2555 = vadd.f32 0.0, %v2554
        %v2556 = vpop.f32.mrb[0].mxu0
        %2557 = vmatprep.mubr.bf16.mxu0 %v1166
        %2558 = vmatmul.mubr.bf16.gmra.mrb[0].mxu0 %v1165
        %v2559 = vpop.f32.mrb[0].mxu0
        %v2560 = vadd.f32 0.0, %v2559
        %v2561 = vpop.f32.mrb[0].mxu0
        %v2562 = vpop.f32.mrb[0].mxu0
        %v2563 = vadd.f32 0.0, %v2562
        %v2564 = vpop.f32.mrb[0].mxu0
        %2565 = vmatprep.mubr.bf16.mxu0 %v1182
        %2566 = vmatmul.mubr.bf16.gmra.mrb[0].mxu0 %v1181
        %v2567 = vpop.f32.mrb[0].mxu0
        %v2568 = vadd.f32 0.0, %v2567
        %v2569 = vpop.f32.mrb[0].mxu0
        %v2570 = vpop.f32.mrb[0].mxu0
        %v2571 = vadd.f32 0.0, %v2570
        %v2572 = vpop.f32.mrb[0].mxu0
        %2573 = vmatprep.mubr.bf16.mxu0 %v1198
        %2574 = vmatmul.mubr.bf16.gmra.mrb[0].mxu0 %v1197
        %v2575 = vpop.f32.mrb[0].mxu0
        %v2576 = vadd.f32 0.0, %v2575
        %v2577 = vpop.f32.mrb[0].mxu0
        %v2578 = vpop.f32.mrb[0].mxu0
        %v2579 = vadd.f32 0.0, %v2578
        %v2580 = vpop.f32.mrb[0].mxu0
        %2581 = vmatprep.mubr.bf16.mxu0 %v1214
        %2582 = vmatmul.mubr.bf16.gmra.mrb[0].mxu0 %v1213
        %v2583 = vpop.f32.mrb[0].mxu0
        %v2584 = vadd.f32 0.0, %v2583
        %v2585 = vpop.f32.mrb[0].mxu0
        %v2586 = vpop.f32.mrb[0].mxu0
        %v2587 = vadd.f32 0.0, %v2586
        %v2588 = vpop.f32.mrb[0].mxu0
        %2589 = vmatprep.mubr.bf16.mxu0 %v1230
        %2590 = vmatmul.mubr.bf16.gmra.mrb[0].mxu0 %v1229
        %v2591 = vpop.f32.mrb[0].mxu0
        %v2592 = vadd.f32 0.0, %v2591
        %v2593 = vpop.f32.mrb[0].mxu0
        %v2594 = vpop.f32.mrb[0].mxu0
        %v2595 = vadd.f32 0.0, %v2594
        %v2596 = vpop.f32.mrb[0].mxu0
        %2597 = vmatprep.mubr.bf16.mxu0 %v1246
        %2598 = vmatmul.mubr.bf16.gmra.mrb[0].mxu0 %v1245
        %v2599 = vpop.f32.mrb[0].mxu0
        %v2600 = vadd.f32 0.0, %v2599
        %v2601 = vpop.f32.mrb[0].mxu0
        %v2602 = vpop.f32.mrb[0].mxu0
        %v2603 = vadd.f32 0.0, %v2602
        %v2604 = vpop.f32.mrb[0].mxu0
        %2605 = vmatprep.mubr.bf16.mxu0 %v1262
        %2606 = vmatmul.mubr.bf16.gmra.mrb[0].mxu0 %v1261
        %v2607 = vpop.f32.mrb[0].mxu0
        %v2608 = vadd.f32 0.0, %v2607
        %v2609 = vpop.f32.mrb[0].mxu0
        %v2610 = vpop.f32.mrb[0].mxu0
        %v2611 = vadd.f32 0.0, %v2610
        %v2612 = vpop.f32.mrb[0].mxu0
        %2613 = vmatprep.mubr.bf16.mxu0 %v1278
        %2614 = vmatmul.mubr.bf16.gmra.mrb[0].mxu0 %v1277
        %v2615 = vpop.f32.mrb[0].mxu0
        %v2616 = vadd.f32 0.0, %v2615
        %v2617 = vpop.f32.mrb[0].mxu0
        %v2618 = vpop.f32.mrb[0].mxu0
        %v2619 = vadd.f32 0.0, %v2618
        %v2620 = vpop.f32.mrb[0].mxu0
        %2621 = vmatprep.mubr.bf16.mxu0 %v1294
        %2622 = vmatmul.mubr.bf16.gmra.mrb[0].mxu0 %v1293
        %v2623 = vpop.f32.mrb[0].mxu0
        %v2624 = vadd.f32 0.0, %v2623
        %v2625 = vpop.f32.mrb[0].mxu0
        %v2626 = vpop.f32.mrb[0].mxu0
        %v2627 = vadd.f32 0.0, %v2626
        %v2628 = vpop.f32.mrb[0].mxu0
        %2629 = vmatprep.mubr.bf16.mxu0 %v1310
        %2630 = vmatmul.mubr.bf16.gmra.mrb[0].mxu0 %v1309
        %v2631 = vpop.f32.mrb[0].mxu0
        %v2632 = vadd.f32 0.0, %v2631
        %v2633 = vpop.f32.mrb[0].mxu0
        %v2634 = vpop.f32.mrb[0].mxu0
        %v2635 = vadd.f32 0.0, %v2634
        %v2636 = vpop.f32.mrb[0].mxu0
        %2637 = vdwg.mxu0
        %2638 = vmatprep.subr.bf16.mxu0 0
        %2639 = vmatpush1.bf16.msra.mxu0 %v2109
        %2640 = vmatprep.subr.bf16.mxu0 0
        %2641 = vmatpush1.bf16.msra.mxu0 %v2110
        %2642 = vmatprep.subr.bf16.mxu0 0
        %2643 = vmatpush1.bf16.msra.mxu0 %v2111
        %2644 = vmatprep.subr.bf16.mxu0 0
        %2645 = vmatpush1.bf16.msra.mxu0 %v2112
        %2646 = vmatprep.subr.bf16.mxu0 0
        %2647 = vmatpush1.bf16.msra.mxu0 %v2113
        %2648 = vmatprep.subr.bf16.mxu0 0
        %2649 = vmatpush1.bf16.msra.mxu0 %v2114
        %2650 = vmatprep.subr.bf16.mxu0 0
        %2651 = vmatpush1.bf16.msra.mxu0 %v2115
        %2652 = vmatprep.subr.bf16.mxu0 0
        %2653 = vmatpush1.bf16.msra.mxu0 %v2116
        %2654 = vmatprep.subr.bf16.mxu0 0
        %2655 = vmatpush1.bf16.msra.mxu0 %v2117
        %2656 = vmatprep.subr.bf16.mxu0 0
        %2657 = vmatpush1.bf16.msra.mxu0 %v2118
        %2658 = vmatprep.subr.bf16.mxu0 0
        %2659 = vmatpush1.bf16.msra.mxu0 %v2119
        %2660 = vmatprep.subr.bf16.mxu0 0
        %2661 = vmatpush1.bf16.msra.mxu0 %v2120
        %2662 = vmatprep.subr.bf16.mxu0 0
        %2663 = vmatpush1.bf16.msra.mxu0 %v2121
        %2664 = vmatprep.subr.bf16.mxu0 0
        %2665 = vmatpush1.bf16.msra.mxu0 %v2122
        %2666 = vmatprep.subr.bf16.mxu0 0
        %2667 = vmatpush1.bf16.msra.mxu0 %v2123
        %2668 = vmatprep.subr.bf16.mxu0 0
        %2669 = vmatpush1.bf16.msra.mxu0 %v2124
        %2670 = vmatprep.mubr.bf16.mxu0 %v816
        %2671 = vmatmul.mubr.bf16.gmra.mrb[0].mxu0 %v815
        %v2672 = vpop.f32.mrb[0].mxu0
        %v2673 = vadd.f32 %v2384, %v2672
        %v2674 = vpop.f32.mrb[0].mxu0
        %v2675 = vpop.f32.mrb[0].mxu0
        %v2676 = vadd.f32 %v2387, %v2675
        %v2677 = vpop.f32.mrb[0].mxu0
        %2678 = vmatprep.mubr.bf16.mxu0 %v832
        %2679 = vmatmul.mubr.bf16.gmra.mrb[0].mxu0 %v831
        %v2680 = vpop.f32.mrb[0].mxu0
        %v2681 = vadd.f32 %v2392, %v2680
        %v2682 = vpop.f32.mrb[0].mxu0
        %v2683 = vpop.f32.mrb[0].mxu0
        %v2684 = vadd.f32 %v2395, %v2683
        %v2685 = vpop.f32.mrb[0].mxu0
        %2686 = vmatprep.mubr.bf16.mxu0 %v848
        %2687 = vmatmul.mubr.bf16.gmra.mrb[0].mxu0 %v847
        %v2688 = vpop.f32.mrb[0].mxu0
        %v2689 = vadd.f32 %v2400, %v2688
        %v2690 = vpop.f32.mrb[0].mxu0
        %v2691 = vpop.f32.mrb[0].mxu0
        %v2692 = vadd.f32 %v2403, %v2691
        %v2693 = vpop.f32.mrb[0].mxu0
        %2694 = vmatprep.mubr.bf16.mxu0 %v864
        %2695 = vmatmul.mubr.bf16.gmra.mrb[0].mxu0 %v863
        %v2696 = vpop.f32.mrb[0].mxu0
        %v2697 = vadd.f32 %v2408, %v2696
        %v2698 = vpop.f32.mrb[0].mxu0
        %v2699 = vpop.f32.mrb[0].mxu0
        %v2700 = vadd.f32 %v2411, %v2699
        %v2701 = vpop.f32.mrb[0].mxu0
        %2702 = vmatprep.mubr.bf16.mxu0 %v880
        %2703 = vmatmul.mubr.bf16.gmra.mrb[0].mxu0 %v879
        %v2704 = vpop.f32.mrb[0].mxu0
        %v2705 = vadd.f32 %v2416, %v2704
        %v2706 = vpop.f32.mrb[0].mxu0
        %v2707 = vpop.f32.mrb[0].mxu0
        %v2708 = vadd.f32 %v2419, %v2707
        %v2709 = vpop.f32.mrb[0].mxu0
        %2710 = vmatprep.mubr.bf16.mxu0 %v896
        %2711 = vmatmul.mubr.bf16.gmra.mrb[0].mxu0 %v895
        %v2712 = vpop.f32.mrb[0].mxu0
        %v2713 = vadd.f32 %v2424, %v2712
        %v2714 = vpop.f32.mrb[0].mxu0
        %v2715 = vpop.f32.mrb[0].mxu0
        %v2716 = vadd.f32 %v2427, %v2715
        %v2717 = vpop.f32.mrb[0].mxu0
        %2718 = vmatprep.mubr.bf16.mxu0 %v912
        %2719 = vmatmul.mubr.bf16.gmra.mrb[0].mxu0 %v911
        %v2720 = vpop.f32.mrb[0].mxu0
        %v2721 = vadd.f32 %v2432, %v2720
        %v2722 = vpop.f32.mrb[0].mxu0
        %v2723 = vpop.f32.mrb[0].mxu0
        %v2724 = vadd.f32 %v2435, %v2723
        %v2725 = vpop.f32.mrb[0].mxu0
        %2726 = vmatprep.mubr.bf16.mxu0 %v928
        %2727 = vmatmul.mubr.bf16.gmra.mrb[0].mxu0 %v927
        %v2728 = vpop.f32.mrb[0].mxu0
        %v2729 = vadd.f32 %v2440, %v2728
        %v2730 = vpop.f32.mrb[0].mxu0
        %v2731 = vpop.f32.mrb[0].mxu0
        %v2732 = vadd.f32 %v2443, %v2731
        %v2733 = vpop.f32.mrb[0].mxu0
        %2734 = vmatprep.mubr.bf16.mxu0 %v944
        %2735 = vmatmul.mubr.bf16.gmra.mrb[0].mxu0 %v943
        %v2736 = vpop.f32.mrb[0].mxu0
        %v2737 = vadd.f32 %v2448, %v2736
        %v2738 = vpop.f32.mrb[0].mxu0
        %v2739 = vpop.f32.mrb[0].mxu0
        %v2740 = vadd.f32 %v2451, %v2739
        %v2741 = vpop.f32.mrb[0].mxu0
        %2742 = vmatprep.mubr.bf16.mxu0 %v960
        %2743 = vmatmul.mubr.bf16.gmra.mrb[0].mxu0 %v959
        %v2744 = vpop.f32.mrb[0].mxu0
        %v2745 = vadd.f32 %v2456, %v2744
        %v2746 = vpop.f32.mrb[0].mxu0
        %v2747 = vpop.f32.mrb[0].mxu0
        %v2748 = vadd.f32 %v2459, %v2747
        %v2749 = vpop.f32.mrb[0].mxu0
        %2750 = vmatprep.mubr.bf16.mxu0 %v976
        %2751 = vmatmul.mubr.bf16.gmra.mrb[0].mxu0 %v975
        %v2752 = vpop.f32.mrb[0].mxu0
        %v2753 = vadd.f32 %v2464, %v2752
        %v2754 = vpop.f32.mrb[0].mxu0
        %v2755 = vpop.f32.mrb[0].mxu0
        %v2756 = vadd.f32 %v2467, %v2755
        %v2757 = vpop.f32.mrb[0].mxu0
        %2758 = vmatprep.mubr.bf16.mxu0 %v992
        %2759 = vmatmul.mubr.bf16.gmra.mrb[0].mxu0 %v991
        %v2760 = vpop.f32.mrb[0].mxu0
        %v2761 = vadd.f32 %v2472, %v2760
        %v2762 = vpop.f32.mrb[0].mxu0
        %v2763 = vpop.f32.mrb[0].mxu0
        %v2764 = vadd.f32 %v2475, %v2763
        %v2765 = vpop.f32.mrb[0].mxu0
        %2766 = vmatprep.mubr.bf16.mxu0 %v1008
        %2767 = vmatmul.mubr.bf16.gmra.mrb[0].mxu0 %v1007
        %v2768 = vpop.f32.mrb[0].mxu0
        %v2769 = vadd.f32 %v2480, %v2768
        %v2770 = vpop.f32.mrb[0].mxu0
        %v2771 = vpop.f32.mrb[0].mxu0
        %v2772 = vadd.f32 %v2483, %v2771
        %v2773 = vpop.f32.mrb[0].mxu0
        %2774 = vmatprep.mubr.bf16.mxu0 %v1024
        %2775 = vmatmul.mubr.bf16.gmra.mrb[0].mxu0 %v1023
        %v2776 = vpop.f32.mrb[0].mxu0
        %v2777 = vadd.f32 %v2488, %v2776
        %v2778 = vpop.f32.mrb[0].mxu0
        %v2779 = vpop.f32.mrb[0].mxu0
        %v2780 = vadd.f32 %v2491, %v2779
        %v2781 = vpop.f32.mrb[0].mxu0
        %2782 = vmatprep.mubr.bf16.mxu0 %v1040
        %2783 = vmatmul.mubr.bf16.gmra.mrb[0].mxu0 %v1039
        %v2784 = vpop.f32.mrb[0].mxu0
        %v2785 = vadd.f32 %v2496, %v2784
        %v2786 = vpop.f32.mrb[0].mxu0
        %v2787 = vpop.f32.mrb[0].mxu0
        %v2788 = vadd.f32 %v2499, %v2787
        %v2789 = vpop.f32.mrb[0].mxu0
        %2790 = vmatprep.mubr.bf16.mxu0 %v1056
        %2791 = vmatmul.mubr.bf16.gmra.mrb[0].mxu0 %v1055
        %v2792 = vpop.f32.mrb[0].mxu0
        %v2793 = vadd.f32 %v2504, %v2792
        %v2794 = vpop.f32.mrb[0].mxu0
        %v2795 = vpop.f32.mrb[0].mxu0
        %v2796 = vadd.f32 %v2507, %v2795
        %v2797 = vpop.f32.mrb[0].mxu0
        %2798 = vmatprep.mubr.bf16.mxu0 %v1072
        %2799 = vmatmul.mubr.bf16.gmra.mrb[0].mxu0 %v1071
        %v2800 = vpop.f32.mrb[0].mxu0
        %v2801 = vadd.f32 %v2512, %v2800
        %v2802 = vpop.f32.mrb[0].mxu0
        %v2803 = vpop.f32.mrb[0].mxu0
        %v2804 = vadd.f32 %v2515, %v2803
        %v2805 = vpop.f32.mrb[0].mxu0
        %2806 = vmatprep.mubr.bf16.mxu0 %v1088
        %2807 = vmatmul.mubr.bf16.gmra.mrb[0].mxu0 %v1087
        %v2808 = vpop.f32.mrb[0].mxu0
        %v2809 = vadd.f32 %v2520, %v2808
        %v2810 = vpop.f32.mrb[0].mxu0
        %v2811 = vpop.f32.mrb[0].mxu0
        %v2812 = vadd.f32 %v2523, %v2811
        %v2813 = vpop.f32.mrb[0].mxu0
        %2814 = vmatprep.mubr.bf16.mxu0 %v1104
        %2815 = vmatmul.mubr.bf16.gmra.mrb[0].mxu0 %v1103
        %v2816 = vpop.f32.mrb[0].mxu0
        %v2817 = vadd.f32 %v2528, %v2816
        %v2818 = vpop.f32.mrb[0].mxu0
        %v2819 = vpop.f32.mrb[0].mxu0
        %v2820 = vadd.f32 %v2531, %v2819
        %v2821 = vpop.f32.mrb[0].mxu0
        %2822 = vmatprep.mubr.bf16.mxu0 %v1120
        %2823 = vmatmul.mubr.bf16.gmra.mrb[0].mxu0 %v1119
        %v2824 = vpop.f32.mrb[0].mxu0
        %v2825 = vadd.f32 %v2536, %v2824
        %v2826 = vpop.f32.mrb[0].mxu0
        %v2827 = vpop.f32.mrb[0].mxu0
        %v2828 = vadd.f32 %v2539, %v2827
        %v2829 = vpop.f32.mrb[0].mxu0
        %2830 = vmatprep.mubr.bf16.mxu0 %v1136
        %2831 = vmatmul.mubr.bf16.gmra.mrb[0].mxu0 %v1135
        %v2832 = vpop.f32.mrb[0].mxu0
        %v2833 = vadd.f32 %v2544, %v2832
        %v2834 = vpop.f32.mrb[0].mxu0
        %v2835 = vpop.f32.mrb[0].mxu0
        %v2836 = vadd.f32 %v2547, %v2835
        %v2837 = vpop.f32.mrb[0].mxu0
        %2838 = vmatprep.mubr.bf16.mxu0 %v1152
        %2839 = vmatmul.mubr.bf16.gmra.mrb[0].mxu0 %v1151
        %v2840 = vpop.f32.mrb[0].mxu0
        %v2841 = vadd.f32 %v2552, %v2840
        %v2842 = vpop.f32.mrb[0].mxu0
        %v2843 = vpop.f32.mrb[0].mxu0
        %v2844 = vadd.f32 %v2555, %v2843
        %v2845 = vpop.f32.mrb[0].mxu0
        %2846 = vmatprep.mubr.bf16.mxu0 %v1168
        %2847 = vmatmul.mubr.bf16.gmra.mrb[0].mxu0 %v1167
        %v2848 = vpop.f32.mrb[0].mxu0
        %v2849 = vadd.f32 %v2560, %v2848
        %v2850 = vpop.f32.mrb[0].mxu0
        %v2851 = vpop.f32.mrb[0].mxu0
        %v2852 = vadd.f32 %v2563, %v2851
        %v2853 = vpop.f32.mrb[0].mxu0
        %2854 = vmatprep.mubr.bf16.mxu0 %v1184
        %2855 = vmatmul.mubr.bf16.gmra.mrb[0].mxu0 %v1183
        %v2856 = vpop.f32.mrb[0].mxu0
        %v2857 = vadd.f32 %v2568, %v2856
        %v2858 = vpop.f32.mrb[0].mxu0
        %v2859 = vpop.f32.mrb[0].mxu0
        %v2860 = vadd.f32 %v2571, %v2859
        %v2861 = vpop.f32.mrb[0].mxu0
        %2862 = vmatprep.mubr.bf16.mxu0 %v1200
        %2863 = vmatmul.mubr.bf16.gmra.mrb[0].mxu0 %v1199
        %v2864 = vpop.f32.mrb[0].mxu0
        %v2865 = vadd.f32 %v2576, %v2864
        %v2866 = vpop.f32.mrb[0].mxu0
        %v2867 = vpop.f32.mrb[0].mxu0
        %v2868 = vadd.f32 %v2579, %v2867
        %v2869 = vpop.f32.mrb[0].mxu0
        %2870 = vmatprep.mubr.bf16.mxu0 %v1216
        %2871 = vmatmul.mubr.bf16.gmra.mrb[0].mxu0 %v1215
        %v2872 = vpop.f32.mrb[0].mxu0
        %v2873 = vadd.f32 %v2584, %v2872
        %v2874 = vpop.f32.mrb[0].mxu0
        %v2875 = vpop.f32.mrb[0].mxu0
        %v2876 = vadd.f32 %v2587, %v2875
        %v2877 = vpop.f32.mrb[0].mxu0
        %2878 = vmatprep.mubr.bf16.mxu0 %v1232
        %2879 = vmatmul.mubr.bf16.gmra.mrb[0].mxu0 %v1231
        %v2880 = vpop.f32.mrb[0].mxu0
        %v2881 = vadd.f32 %v2592, %v2880
        %v2882 = vpop.f32.mrb[0].mxu0
        %v2883 = vpop.f32.mrb[0].mxu0
        %v2884 = vadd.f32 %v2595, %v2883
        %v2885 = vpop.f32.mrb[0].mxu0
        %2886 = vmatprep.mubr.bf16.mxu0 %v1248
        %2887 = vmatmul.mubr.bf16.gmra.mrb[0].mxu0 %v1247
        %v2888 = vpop.f32.mrb[0].mxu0
        %v2889 = vadd.f32 %v2600, %v2888
        %v2890 = vpop.f32.mrb[0].mxu0
        %v2891 = vpop.f32.mrb[0].mxu0
        %v2892 = vadd.f32 %v2603, %v2891
        %v2893 = vpop.f32.mrb[0].mxu0
        %2894 = vmatprep.mubr.bf16.mxu0 %v1264
        %2895 = vmatmul.mubr.bf16.gmra.mrb[0].mxu0 %v1263
        %v2896 = vpop.f32.mrb[0].mxu0
        %v2897 = vadd.f32 %v2608, %v2896
        %v2898 = vpop.f32.mrb[0].mxu0
        %v2899 = vpop.f32.mrb[0].mxu0
        %v2900 = vadd.f32 %v2611, %v2899
        %v2901 = vpop.f32.mrb[0].mxu0
        %2902 = vmatprep.mubr.bf16.mxu0 %v1280
        %2903 = vmatmul.mubr.bf16.gmra.mrb[0].mxu0 %v1279
        %v2904 = vpop.f32.mrb[0].mxu0
        %v2905 = vadd.f32 %v2616, %v2904
        %v2906 = vpop.f32.mrb[0].mxu0
        %v2907 = vpop.f32.mrb[0].mxu0
        %v2908 = vadd.f32 %v2619, %v2907
        %v2909 = vpop.f32.mrb[0].mxu0
        %2910 = vmatprep.mubr.bf16.mxu0 %v1296
        %2911 = vmatmul.mubr.bf16.gmra.mrb[0].mxu0 %v1295
        %v2912 = vpop.f32.mrb[0].mxu0
        %v2913 = vadd.f32 %v2624, %v2912
        %v2914 = vpop.f32.mrb[0].mxu0
        %v2915 = vpop.f32.mrb[0].mxu0
        %v2916 = vadd.f32 %v2627, %v2915
        %v2917 = vpop.f32.mrb[0].mxu0
        %2918 = vmatprep.mubr.bf16.mxu0 %v1312
        %2919 = vmatmul.mubr.bf16.gmra.mrb[0].mxu0 %v1311
        %v2920 = vpop.f32.mrb[0].mxu0
        %v2921 = vadd.f32 %v2632, %v2920
        %v2922 = vpop.f32.mrb[0].mxu0
        %v2923 = vpop.f32.mrb[0].mxu0
        %v2924 = vadd.f32 %v2635, %v2923
        %v2925 = vpop.f32.mrb[0].mxu0
        %2926 = vdwg.mxu0
        %2927 = vmatprep.subr.bf16.mxu0 0
        %2928 = vmatpush1.bf16.msra.mxu0 %v2125
        %2929 = vmatprep.subr.bf16.mxu0 0
        %2930 = vmatpush1.bf16.msra.mxu0 %v2126
        %2931 = vmatprep.subr.bf16.mxu0 0
        %2932 = vmatpush1.bf16.msra.mxu0 %v2127
        %2933 = vmatprep.subr.bf16.mxu0 0
        %2934 = vmatpush1.bf16.msra.mxu0 %v2128
        %2935 = vmatprep.subr.bf16.mxu0 0
        %2936 = vmatpush1.bf16.msra.mxu0 %v2129
        %2937 = vmatprep.subr.bf16.mxu0 0
        %2938 = vmatpush1.bf16.msra.mxu0 %v2130
        %2939 = vmatprep.subr.bf16.mxu0 0
        %2940 = vmatpush1.bf16.msra.mxu0 %v2131
        %2941 = vmatprep.subr.bf16.mxu0 0
        %2942 = vmatpush1.bf16.msra.mxu0 %v2132
        %2943 = vmatprep.subr.bf16.mxu0 0
        %2944 = vmatpush1.bf16.msra.mxu0 %v2133
        %2945 = vmatprep.subr.bf16.mxu0 0
        %2946 = vmatpush1.bf16.msra.mxu0 %v2134
        %2947 = vmatprep.subr.bf16.mxu0 0
        %2948 = vmatpush1.bf16.msra.mxu0 %v2135
        %2949 = vmatprep.subr.bf16.mxu0 0
        %2950 = vmatpush1.bf16.msra.mxu0 %v2136
        %2951 = vmatprep.subr.bf16.mxu0 0
        %2952 = vmatpush1.bf16.msra.mxu0 %v2137
        %2953 = vmatprep.subr.bf16.mxu0 0
        %2954 = vmatpush1.bf16.msra.mxu0 %v2138
        %2955 = vmatprep.subr.bf16.mxu0 0
        %2956 = vmatpush1.bf16.msra.mxu0 %v2139
        %2957 = vmatprep.subr.bf16.mxu0 0
        %2958 = vmatpush1.bf16.msra.mxu0 %v2140
        %2959 = vmatprep.mubr.bf16.mxu0 %v818
        %2960 = vmatmul.mubr.bf16.gmra.mrb[0].mxu0 %v817
        %v2961 = vpop.f32.mrb[0].mxu0
        %v2962 = vadd.f32 %v2673, %v2961
        %v2963 = vpop.f32.mrb[0].mxu0
        %v2964 = vpop.f32.mrb[0].mxu0
        %v2965 = vadd.f32 %v2676, %v2964
        %v2966 = vpop.f32.mrb[0].mxu0
        %2967 = vmatprep.mubr.bf16.mxu0 %v834
        %2968 = vmatmul.mubr.bf16.gmra.mrb[0].mxu0 %v833
        %v2969 = vpop.f32.mrb[0].mxu0
        %v2970 = vadd.f32 %v2681, %v2969
        %v2971 = vpop.f32.mrb[0].mxu0
        %v2972 = vpop.f32.mrb[0].mxu0
        %v2973 = vadd.f32 %v2684, %v2972
        %v2974 = vpop.f32.mrb[0].mxu0
        %2975 = vmatprep.mubr.bf16.mxu0 %v850
        %2976 = vmatmul.mubr.bf16.gmra.mrb[0].mxu0 %v849
        %v2977 = vpop.f32.mrb[0].mxu0
        %v2978 = vadd.f32 %v2689, %v2977
        %v2979 = vpop.f32.mrb[0].mxu0
        %v2980 = vpop.f32.mrb[0].mxu0
        %v2981 = vadd.f32 %v2692, %v2980
        %v2982 = vpop.f32.mrb[0].mxu0
        %2983 = vmatprep.mubr.bf16.mxu0 %v866
        %2984 = vmatmul.mubr.bf16.gmra.mrb[0].mxu0 %v865
        %v2985 = vpop.f32.mrb[0].mxu0
        %v2986 = vadd.f32 %v2697, %v2985
        %v2987 = vpop.f32.mrb[0].mxu0
        %v2988 = vpop.f32.mrb[0].mxu0
        %v2989 = vadd.f32 %v2700, %v2988
        %v2990 = vpop.f32.mrb[0].mxu0
        %2991 = vmatprep.mubr.bf16.mxu0 %v882
        %2992 = vmatmul.mubr.bf16.gmra.mrb[0].mxu0 %v881
        %v2993 = vpop.f32.mrb[0].mxu0
        %v2994 = vadd.f32 %v2705, %v2993
        %v2995 = vpop.f32.mrb[0].mxu0
        %v2996 = vpop.f32.mrb[0].mxu0
        %v2997 = vadd.f32 %v2708, %v2996
        %v2998 = vpop.f32.mrb[0].mxu0
        %2999 = vmatprep.mubr.bf16.mxu0 %v898
        %3000 = vmatmul.mubr.bf16.gmra.mrb[0].mxu0 %v897
        %v3001 = vpop.f32.mrb[0].mxu0
        %v3002 = vadd.f32 %v2713, %v3001
        %v3003 = vpop.f32.mrb[0].mxu0
        %v3004 = vpop.f32.mrb[0].mxu0
        %v3005 = vadd.f32 %v2716, %v3004
        %v3006 = vpop.f32.mrb[0].mxu0
        %3007 = vmatprep.mubr.bf16.mxu0 %v914
        %3008 = vmatmul.mubr.bf16.gmra.mrb[0].mxu0 %v913
        %v3009 = vpop.f32.mrb[0].mxu0
        %v3010 = vadd.f32 %v2721, %v3009
        %v3011 = vpop.f32.mrb[0].mxu0
        %v3012 = vpop.f32.mrb[0].mxu0
        %v3013 = vadd.f32 %v2724, %v3012
        %v3014 = vpop.f32.mrb[0].mxu0
        %3015 = vmatprep.mubr.bf16.mxu0 %v930
        %3016 = vmatmul.mubr.bf16.gmra.mrb[0].mxu0 %v929
        %v3017 = vpop.f32.mrb[0].mxu0
        %v3018 = vadd.f32 %v2729, %v3017
        %v3019 = vpop.f32.mrb[0].mxu0
        %v3020 = vpop.f32.mrb[0].mxu0
        %v3021 = vadd.f32 %v2732, %v3020
        %v3022 = vpop.f32.mrb[0].mxu0
        %3023 = vmatprep.mubr.bf16.mxu0 %v946
        %3024 = vmatmul.mubr.bf16.gmra.mrb[0].mxu0 %v945
        %v3025 = vpop.f32.mrb[0].mxu0
        %v3026 = vadd.f32 %v2737, %v3025
        %v3027 = vpop.f32.mrb[0].mxu0
        %v3028 = vpop.f32.mrb[0].mxu0
        %v3029 = vadd.f32 %v2740, %v3028
        %v3030 = vpop.f32.mrb[0].mxu0
        %3031 = vmatprep.mubr.bf16.mxu0 %v962
        %3032 = vmatmul.mubr.bf16.gmra.mrb[0].mxu0 %v961
        %v3033 = vpop.f32.mrb[0].mxu0
        %v3034 = vadd.f32 %v2745, %v3033
        %v3035 = vpop.f32.mrb[0].mxu0
        %v3036 = vpop.f32.mrb[0].mxu0
        %v3037 = vadd.f32 %v2748, %v3036
        %v3038 = vpop.f32.mrb[0].mxu0
        %3039 = vmatprep.mubr.bf16.mxu0 %v978
        %3040 = vmatmul.mubr.bf16.gmra.mrb[0].mxu0 %v977
        %v3041 = vpop.f32.mrb[0].mxu0
        %v3042 = vadd.f32 %v2753, %v3041
        %v3043 = vpop.f32.mrb[0].mxu0
        %v3044 = vpop.f32.mrb[0].mxu0
        %v3045 = vadd.f32 %v2756, %v3044
        %v3046 = vpop.f32.mrb[0].mxu0
        %3047 = vmatprep.mubr.bf16.mxu0 %v994
        %3048 = vmatmul.mubr.bf16.gmra.mrb[0].mxu0 %v993
        %v3049 = vpop.f32.mrb[0].mxu0
        %v3050 = vadd.f32 %v2761, %v3049
        %v3051 = vpop.f32.mrb[0].mxu0
        %v3052 = vpop.f32.mrb[0].mxu0
        %v3053 = vadd.f32 %v2764, %v3052
        %v3054 = vpop.f32.mrb[0].mxu0
        %3055 = vmatprep.mubr.bf16.mxu0 %v1010
        %3056 = vmatmul.mubr.bf16.gmra.mrb[0].mxu0 %v1009
        %v3057 = vpop.f32.mrb[0].mxu0
        %v3058 = vadd.f32 %v2769, %v3057
        %v3059 = vpop.f32.mrb[0].mxu0
        %v3060 = vpop.f32.mrb[0].mxu0
        %v3061 = vadd.f32 %v2772, %v3060
        %v3062 = vpop.f32.mrb[0].mxu0
        %3063 = vmatprep.mubr.bf16.mxu0 %v1026
        %3064 = vmatmul.mubr.bf16.gmra.mrb[0].mxu0 %v1025
        %v3065 = vpop.f32.mrb[0].mxu0
        %v3066 = vadd.f32 %v2777, %v3065
        %v3067 = vpop.f32.mrb[0].mxu0
        %v3068 = vpop.f32.mrb[0].mxu0
        %v3069 = vadd.f32 %v2780, %v3068
        %v3070 = vpop.f32.mrb[0].mxu0
        %3071 = vmatprep.mubr.bf16.mxu0 %v1042
        %3072 = vmatmul.mubr.bf16.gmra.mrb[0].mxu0 %v1041
        %v3073 = vpop.f32.mrb[0].mxu0
        %v3074 = vadd.f32 %v2785, %v3073
        %v3075 = vpop.f32.mrb[0].mxu0
        %v3076 = vpop.f32.mrb[0].mxu0
        %v3077 = vadd.f32 %v2788, %v3076
        %v3078 = vpop.f32.mrb[0].mxu0
        %3079 = vmatprep.mubr.bf16.mxu0 %v1058
        %3080 = vmatmul.mubr.bf16.gmra.mrb[0].mxu0 %v1057
        %v3081 = vpop.f32.mrb[0].mxu0
        %v3082 = vadd.f32 %v2793, %v3081
        %v3083 = vpop.f32.mrb[0].mxu0
        %v3084 = vpop.f32.mrb[0].mxu0
        %v3085 = vadd.f32 %v2796, %v3084
        %v3086 = vpop.f32.mrb[0].mxu0
        %3087 = vmatprep.mubr.bf16.mxu0 %v1074
        %3088 = vmatmul.mubr.bf16.gmra.mrb[0].mxu0 %v1073
        %v3089 = vpop.f32.mrb[0].mxu0
        %v3090 = vadd.f32 %v2801, %v3089
        %v3091 = vpop.f32.mrb[0].mxu0
        %v3092 = vpop.f32.mrb[0].mxu0
        %v3093 = vadd.f32 %v2804, %v3092
        %v3094 = vpop.f32.mrb[0].mxu0
        %3095 = vmatprep.mubr.bf16.mxu0 %v1090
        %3096 = vmatmul.mubr.bf16.gmra.mrb[0].mxu0 %v1089
        %v3097 = vpop.f32.mrb[0].mxu0
        %v3098 = vadd.f32 %v2809, %v3097
        %v3099 = vpop.f32.mrb[0].mxu0
        %v3100 = vpop.f32.mrb[0].mxu0
        %v3101 = vadd.f32 %v2812, %v3100
        %v3102 = vpop.f32.mrb[0].mxu0
        %3103 = vmatprep.mubr.bf16.mxu0 %v1106
        %3104 = vmatmul.mubr.bf16.gmra.mrb[0].mxu0 %v1105
        %v3105 = vpop.f32.mrb[0].mxu0
        %v3106 = vadd.f32 %v2817, %v3105
        %v3107 = vpop.f32.mrb[0].mxu0
        %v3108 = vpop.f32.mrb[0].mxu0
        %v3109 = vadd.f32 %v2820, %v3108
        %v3110 = vpop.f32.mrb[0].mxu0
        %3111 = vmatprep.mubr.bf16.mxu0 %v1122
        %3112 = vmatmul.mubr.bf16.gmra.mrb[0].mxu0 %v1121
        %v3113 = vpop.f32.mrb[0].mxu0
        %v3114 = vadd.f32 %v2825, %v3113
        %v3115 = vpop.f32.mrb[0].mxu0
        %v3116 = vpop.f32.mrb[0].mxu0
        %v3117 = vadd.f32 %v2828, %v3116
        %v3118 = vpop.f32.mrb[0].mxu0
        %3119 = vmatprep.mubr.bf16.mxu0 %v1138
        %3120 = vmatmul.mubr.bf16.gmra.mrb[0].mxu0 %v1137
        %v3121 = vpop.f32.mrb[0].mxu0
        %v3122 = vadd.f32 %v2833, %v3121
        %v3123 = vpop.f32.mrb[0].mxu0
        %v3124 = vpop.f32.mrb[0].mxu0
        %v3125 = vadd.f32 %v2836, %v3124
        %v3126 = vpop.f32.mrb[0].mxu0
        %3127 = vmatprep.mubr.bf16.mxu0 %v1154
        %3128 = vmatmul.mubr.bf16.gmra.mrb[0].mxu0 %v1153
        %v3129 = vpop.f32.mrb[0].mxu0
        %v3130 = vadd.f32 %v2841, %v3129
        %v3131 = vpop.f32.mrb[0].mxu0
        %v3132 = vpop.f32.mrb[0].mxu0
        %v3133 = vadd.f32 %v2844, %v3132
        %v3134 = vpop.f32.mrb[0].mxu0
        %3135 = vmatprep.mubr.bf16.mxu0 %v1170
        %3136 = vmatmul.mubr.bf16.gmra.mrb[0].mxu0 %v1169
        %v3137 = vpop.f32.mrb[0].mxu0
        %v3138 = vadd.f32 %v2849, %v3137
        %v3139 = vpop.f32.mrb[0].mxu0
        %v3140 = vpop.f32.mrb[0].mxu0
        %v3141 = vadd.f32 %v2852, %v3140
        %v3142 = vpop.f32.mrb[0].mxu0
        %3143 = vmatprep.mubr.bf16.mxu0 %v1186
        %3144 = vmatmul.mubr.bf16.gmra.mrb[0].mxu0 %v1185
        %v3145 = vpop.f32.mrb[0].mxu0
        %v3146 = vadd.f32 %v2857, %v3145
        %v3147 = vpop.f32.mrb[0].mxu0
        %v3148 = vpop.f32.mrb[0].mxu0
        %v3149 = vadd.f32 %v2860, %v3148
        %v3150 = vpop.f32.mrb[0].mxu0
        %3151 = vmatprep.mubr.bf16.mxu0 %v1202
        %3152 = vmatmul.mubr.bf16.gmra.mrb[0].mxu0 %v1201
        %v3153 = vpop.f32.mrb[0].mxu0
        %v3154 = vadd.f32 %v2865, %v3153
        %v3155 = vpop.f32.mrb[0].mxu0
        %v3156 = vpop.f32.mrb[0].mxu0
        %v3157 = vadd.f32 %v2868, %v3156
        %v3158 = vpop.f32.mrb[0].mxu0
        %3159 = vmatprep.mubr.bf16.mxu0 %v1218
        %3160 = vmatmul.mubr.bf16.gmra.mrb[0].mxu0 %v1217
        %v3161 = vpop.f32.mrb[0].mxu0
        %v3162 = vadd.f32 %v2873, %v3161
        %v3163 = vpop.f32.mrb[0].mxu0
        %v3164 = vpop.f32.mrb[0].mxu0
        %v3165 = vadd.f32 %v2876, %v3164
        %v3166 = vpop.f32.mrb[0].mxu0
        %3167 = vmatprep.mubr.bf16.mxu0 %v1234
        %3168 = vmatmul.mubr.bf16.gmra.mrb[0].mxu0 %v1233
        %v3169 = vpop.f32.mrb[0].mxu0
        %v3170 = vadd.f32 %v2881, %v3169
        %v3171 = vpop.f32.mrb[0].mxu0
        %v3172 = vpop.f32.mrb[0].mxu0
        %v3173 = vadd.f32 %v2884, %v3172
        %v3174 = vpop.f32.mrb[0].mxu0
        %3175 = vmatprep.mubr.bf16.mxu0 %v1250
        %3176 = vmatmul.mubr.bf16.gmra.mrb[0].mxu0 %v1249
        %v3177 = vpop.f32.mrb[0].mxu0
        %v3178 = vadd.f32 %v2889, %v3177
        %v3179 = vpop.f32.mrb[0].mxu0
        %v3180 = vpop.f32.mrb[0].mxu0
        %v3181 = vadd.f32 %v2892, %v3180
        %v3182 = vpop.f32.mrb[0].mxu0
        %3183 = vmatprep.mubr.bf16.mxu0 %v1266
        %3184 = vmatmul.mubr.bf16.gmra.mrb[0].mxu0 %v1265
        %v3185 = vpop.f32.mrb[0].mxu0
        %v3186 = vadd.f32 %v2897, %v3185
        %v3187 = vpop.f32.mrb[0].mxu0
        %v3188 = vpop.f32.mrb[0].mxu0
        %v3189 = vadd.f32 %v2900, %v3188
        %v3190 = vpop.f32.mrb[0].mxu0
        %3191 = vmatprep.mubr.bf16.mxu0 %v1282
        %3192 = vmatmul.mubr.bf16.gmra.mrb[0].mxu0 %v1281
        %v3193 = vpop.f32.mrb[0].mxu0
        %v3194 = vadd.f32 %v2905, %v3193
        %v3195 = vpop.f32.mrb[0].mxu0
        %v3196 = vpop.f32.mrb[0].mxu0
        %v3197 = vadd.f32 %v2908, %v3196
        %v3198 = vpop.f32.mrb[0].mxu0
        %3199 = vmatprep.mubr.bf16.mxu0 %v1298
        %3200 = vmatmul.mubr.bf16.gmra.mrb[0].mxu0 %v1297
        %v3201 = vpop.f32.mrb[0].mxu0
        %v3202 = vadd.f32 %v2913, %v3201
        %v3203 = vpop.f32.mrb[0].mxu0
        %v3204 = vpop.f32.mrb[0].mxu0
        %v3205 = vadd.f32 %v2916, %v3204
        %v3206 = vpop.f32.mrb[0].mxu0
        %3207 = vmatprep.mubr.bf16.mxu0 %v1314
        %3208 = vmatmul.mubr.bf16.gmra.mrb[0].mxu0 %v1313
        %v3209 = vpop.f32.mrb[0].mxu0
        %v3210 = vadd.f32 %v2921, %v3209
        %v3211 = vpop.f32.mrb[0].mxu0
        %v3212 = vpop.f32.mrb[0].mxu0
        %v3213 = vadd.f32 %v2924, %v3212
        %v3214 = vpop.f32.mrb[0].mxu0
        %3215 = vdwg.mxu0
        %3216 = vmatprep.subr.bf16.mxu0 0
        %3217 = vmatpush1.bf16.msra.mxu0 %v2141
        %3218 = vmatprep.subr.bf16.mxu0 0
        %3219 = vmatpush1.bf16.msra.mxu0 %v2142
        %3220 = vmatprep.subr.bf16.mxu0 0
        %3221 = vmatpush1.bf16.msra.mxu0 %v2143
        %3222 = vmatprep.subr.bf16.mxu0 0
        %3223 = vmatpush1.bf16.msra.mxu0 %v2144
        %3224 = vmatprep.subr.bf16.mxu0 0
        %3225 = vmatpush1.bf16.msra.mxu0 %v2145
        %3226 = vmatprep.subr.bf16.mxu0 0
        %3227 = vmatpush1.bf16.msra.mxu0 %v2146
        %3228 = vmatprep.subr.bf16.mxu0 0
        %3229 = vmatpush1.bf16.msra.mxu0 %v2147
        %3230 = vmatprep.subr.bf16.mxu0 0
        %3231 = vmatpush1.bf16.msra.mxu0 %v2148
        %3232 = vmatprep.subr.bf16.mxu0 0
        %3233 = vmatpush1.bf16.msra.mxu0 %v2149
        %3234 = vmatprep.subr.bf16.mxu0 0
        %3235 = vmatpush1.bf16.msra.mxu0 %v2150
        %3236 = vmatprep.subr.bf16.mxu0 0
        %3237 = vmatpush1.bf16.msra.mxu0 %v2151
        %3238 = vmatprep.subr.bf16.mxu0 0
        %3239 = vmatpush1.bf16.msra.mxu0 %v2152
        %3240 = vmatprep.subr.bf16.mxu0 0
        %3241 = vmatpush1.bf16.msra.mxu0 %v2153
        %3242 = vmatprep.subr.bf16.mxu0 0
        %3243 = vmatpush1.bf16.msra.mxu0 %v2154
        %3244 = vmatprep.subr.bf16.mxu0 0
        %3245 = vmatpush1.bf16.msra.mxu0 %v2155
        %3246 = vmatprep.subr.bf16.mxu0 0
        %3247 = vmatpush1.bf16.msra.mxu0 %v2156
        %3248 = vmatprep.mubr.bf16.mxu0 %v820
        %3249 = vmatmul.mubr.bf16.gmra.mrb[0].mxu0 %v819
        %v3250 = vpop.f32.mrb[0].mxu0
        %v3251 = vadd.f32 %v2962, %v3250
        %v3252 = vpop.f32.mrb[0].mxu0
        %v3253 = vpop.f32.mrb[0].mxu0
        %v3254 = vadd.f32 %v2965, %v3253
        %v3255 = vpop.f32.mrb[0].mxu0
        %3256 = vmatprep.mubr.bf16.mxu0 %v836
        %3257 = vmatmul.mubr.bf16.gmra.mrb[0].mxu0 %v835
        %v3258 = vpop.f32.mrb[0].mxu0
        %v3259 = vadd.f32 %v2970, %v3258
        %v3260 = vpop.f32.mrb[0].mxu0
        %v3261 = vpop.f32.mrb[0].mxu0
        %v3262 = vadd.f32 %v2973, %v3261
        %v3263 = vpop.f32.mrb[0].mxu0
        %3264 = vmatprep.mubr.bf16.mxu0 %v852
        %3265 = vmatmul.mubr.bf16.gmra.mrb[0].mxu0 %v851
        %v3266 = vpop.f32.mrb[0].mxu0
        %v3267 = vadd.f32 %v2978, %v3266
        %v3268 = vpop.f32.mrb[0].mxu0
        %v3269 = vpop.f32.mrb[0].mxu0
        %v3270 = vadd.f32 %v2981, %v3269
        %v3271 = vpop.f32.mrb[0].mxu0
        %3272 = vmatprep.mubr.bf16.mxu0 %v868
        %3273 = vmatmul.mubr.bf16.gmra.mrb[0].mxu0 %v867
        %v3274 = vpop.f32.mrb[0].mxu0
        %v3275 = vadd.f32 %v2986, %v3274
        %v3276 = vpop.f32.mrb[0].mxu0
        %v3277 = vpop.f32.mrb[0].mxu0
        %v3278 = vadd.f32 %v2989, %v3277
        %v3279 = vpop.f32.mrb[0].mxu0
        %3280 = vmatprep.mubr.bf16.mxu0 %v884
        %3281 = vmatmul.mubr.bf16.gmra.mrb[0].mxu0 %v883
        %v3282 = vpop.f32.mrb[0].mxu0
        %v3283 = vadd.f32 %v2994, %v3282
        %v3284 = vpop.f32.mrb[0].mxu0
        %v3285 = vpop.f32.mrb[0].mxu0
        %v3286 = vadd.f32 %v2997, %v3285
        %v3287 = vpop.f32.mrb[0].mxu0
        %3288 = vmatprep.mubr.bf16.mxu0 %v900
        %3289 = vmatmul.mubr.bf16.gmra.mrb[0].mxu0 %v899
        %v3290 = vpop.f32.mrb[0].mxu0
        %v3291 = vadd.f32 %v3002, %v3290
        %v3292 = vpop.f32.mrb[0].mxu0
        %v3293 = vpop.f32.mrb[0].mxu0
        %v3294 = vadd.f32 %v3005, %v3293
        %v3295 = vpop.f32.mrb[0].mxu0
        %3296 = vmatprep.mubr.bf16.mxu0 %v916
        %3297 = vmatmul.mubr.bf16.gmra.mrb[0].mxu0 %v915
        %v3298 = vpop.f32.mrb[0].mxu0
        %v3299 = vadd.f32 %v3010, %v3298
        %v3300 = vpop.f32.mrb[0].mxu0
        %v3301 = vpop.f32.mrb[0].mxu0
        %v3302 = vadd.f32 %v3013, %v3301
        %v3303 = vpop.f32.mrb[0].mxu0
        %3304 = vmatprep.mubr.bf16.mxu0 %v932
        %3305 = vmatmul.mubr.bf16.gmra.mrb[0].mxu0 %v931
        %v3306 = vpop.f32.mrb[0].mxu0
        %v3307 = vadd.f32 %v3018, %v3306
        %v3308 = vpop.f32.mrb[0].mxu0
        %v3309 = vpop.f32.mrb[0].mxu0
        %v3310 = vadd.f32 %v3021, %v3309
        %v3311 = vpop.f32.mrb[0].mxu0
        %3312 = vmatprep.mubr.bf16.mxu0 %v948
        %3313 = vmatmul.mubr.bf16.gmra.mrb[0].mxu0 %v947
        %v3314 = vpop.f32.mrb[0].mxu0
        %v3315 = vadd.f32 %v3026, %v3314
        %v3316 = vpop.f32.mrb[0].mxu0
        %v3317 = vpop.f32.mrb[0].mxu0
        %v3318 = vadd.f32 %v3029, %v3317
        %v3319 = vpop.f32.mrb[0].mxu0
        %3320 = vmatprep.mubr.bf16.mxu0 %v964
        %3321 = vmatmul.mubr.bf16.gmra.mrb[0].mxu0 %v963
        %v3322 = vpop.f32.mrb[0].mxu0
        %v3323 = vadd.f32 %v3034, %v3322
        %v3324 = vpop.f32.mrb[0].mxu0
        %v3325 = vpop.f32.mrb[0].mxu0
        %v3326 = vadd.f32 %v3037, %v3325
        %v3327 = vpop.f32.mrb[0].mxu0
        %3328 = vmatprep.mubr.bf16.mxu0 %v980
        %3329 = vmatmul.mubr.bf16.gmra.mrb[0].mxu0 %v979
        %v3330 = vpop.f32.mrb[0].mxu0
        %v3331 = vadd.f32 %v3042, %v3330
        %v3332 = vpop.f32.mrb[0].mxu0
        %v3333 = vpop.f32.mrb[0].mxu0
        %v3334 = vadd.f32 %v3045, %v3333
        %v3335 = vpop.f32.mrb[0].mxu0
        %3336 = vmatprep.mubr.bf16.mxu0 %v996
        %3337 = vmatmul.mubr.bf16.gmra.mrb[0].mxu0 %v995
        %v3338 = vpop.f32.mrb[0].mxu0
        %v3339 = vadd.f32 %v3050, %v3338
        %v3340 = vpop.f32.mrb[0].mxu0
        %v3341 = vpop.f32.mrb[0].mxu0
        %v3342 = vadd.f32 %v3053, %v3341
        %v3343 = vpop.f32.mrb[0].mxu0
        %3344 = vmatprep.mubr.bf16.mxu0 %v1012
        %3345 = vmatmul.mubr.bf16.gmra.mrb[0].mxu0 %v1011
        %v3346 = vpop.f32.mrb[0].mxu0
        %v3347 = vadd.f32 %v3058, %v3346
        %v3348 = vpop.f32.mrb[0].mxu0
        %v3349 = vpop.f32.mrb[0].mxu0
        %v3350 = vadd.f32 %v3061, %v3349
        %v3351 = vpop.f32.mrb[0].mxu0
        %3352 = vmatprep.mubr.bf16.mxu0 %v1028
        %3353 = vmatmul.mubr.bf16.gmra.mrb[0].mxu0 %v1027
        %v3354 = vpop.f32.mrb[0].mxu0
        %v3355 = vadd.f32 %v3066, %v3354
        %v3356 = vpop.f32.mrb[0].mxu0
        %v3357 = vpop.f32.mrb[0].mxu0
        %v3358 = vadd.f32 %v3069, %v3357
        %v3359 = vpop.f32.mrb[0].mxu0
        %3360 = vmatprep.mubr.bf16.mxu0 %v1044
        %3361 = vmatmul.mubr.bf16.gmra.mrb[0].mxu0 %v1043
        %v3362 = vpop.f32.mrb[0].mxu0
        %v3363 = vadd.f32 %v3074, %v3362
        %v3364 = vpop.f32.mrb[0].mxu0
        %v3365 = vpop.f32.mrb[0].mxu0
        %v3366 = vadd.f32 %v3077, %v3365
        %v3367 = vpop.f32.mrb[0].mxu0
        %3368 = vmatprep.mubr.bf16.mxu0 %v1060
        %3369 = vmatmul.mubr.bf16.gmra.mrb[0].mxu0 %v1059
        %v3370 = vpop.f32.mrb[0].mxu0
        %v3371 = vadd.f32 %v3082, %v3370
        %v3372 = vpop.f32.mrb[0].mxu0
        %v3373 = vpop.f32.mrb[0].mxu0
        %v3374 = vadd.f32 %v3085, %v3373
        %v3375 = vpop.f32.mrb[0].mxu0
        %3376 = vmatprep.mubr.bf16.mxu0 %v1076
        %3377 = vmatmul.mubr.bf16.gmra.mrb[0].mxu0 %v1075
        %v3378 = vpop.f32.mrb[0].mxu0
        %v3379 = vadd.f32 %v3090, %v3378
        %v3380 = vpop.f32.mrb[0].mxu0
        %v3381 = vpop.f32.mrb[0].mxu0
        %v3382 = vadd.f32 %v3093, %v3381
        %v3383 = vpop.f32.mrb[0].mxu0
        %3384 = vmatprep.mubr.bf16.mxu0 %v1092
        %3385 = vmatmul.mubr.bf16.gmra.mrb[0].mxu0 %v1091
        %v3386 = vpop.f32.mrb[0].mxu0
        %v3387 = vadd.f32 %v3098, %v3386
        %v3388 = vpop.f32.mrb[0].mxu0
        %v3389 = vpop.f32.mrb[0].mxu0
        %v3390 = vadd.f32 %v3101, %v3389
        %v3391 = vpop.f32.mrb[0].mxu0
        %3392 = vmatprep.mubr.bf16.mxu0 %v1108
        %3393 = vmatmul.mubr.bf16.gmra.mrb[0].mxu0 %v1107
        %v3394 = vpop.f32.mrb[0].mxu0
        %v3395 = vadd.f32 %v3106, %v3394
        %v3396 = vpop.f32.mrb[0].mxu0
        %v3397 = vpop.f32.mrb[0].mxu0
        %v3398 = vadd.f32 %v3109, %v3397
        %v3399 = vpop.f32.mrb[0].mxu0
        %3400 = vmatprep.mubr.bf16.mxu0 %v1124
        %3401 = vmatmul.mubr.bf16.gmra.mrb[0].mxu0 %v1123
        %v3402 = vpop.f32.mrb[0].mxu0
        %v3403 = vadd.f32 %v3114, %v3402
        %v3404 = vpop.f32.mrb[0].mxu0
        %v3405 = vpop.f32.mrb[0].mxu0
        %v3406 = vadd.f32 %v3117, %v3405
        %v3407 = vpop.f32.mrb[0].mxu0
        %3408 = vmatprep.mubr.bf16.mxu0 %v1140
        %3409 = vmatmul.mubr.bf16.gmra.mrb[0].mxu0 %v1139
        %v3410 = vpop.f32.mrb[0].mxu0
        %v3411 = vadd.f32 %v3122, %v3410
        %v3412 = vpop.f32.mrb[0].mxu0
        %v3413 = vpop.f32.mrb[0].mxu0
        %v3414 = vadd.f32 %v3125, %v3413
        %v3415 = vpop.f32.mrb[0].mxu0
        %3416 = vmatprep.mubr.bf16.mxu0 %v1156
        %3417 = vmatmul.mubr.bf16.gmra.mrb[0].mxu0 %v1155
        %v3418 = vpop.f32.mrb[0].mxu0
        %v3419 = vadd.f32 %v3130, %v3418
        %v3420 = vpop.f32.mrb[0].mxu0
        %v3421 = vpop.f32.mrb[0].mxu0
        %v3422 = vadd.f32 %v3133, %v3421
        %v3423 = vpop.f32.mrb[0].mxu0
        %3424 = vmatprep.mubr.bf16.mxu0 %v1172
        %3425 = vmatmul.mubr.bf16.gmra.mrb[0].mxu0 %v1171
        %v3426 = vpop.f32.mrb[0].mxu0
        %v3427 = vadd.f32 %v3138, %v3426
        %v3428 = vpop.f32.mrb[0].mxu0
        %v3429 = vpop.f32.mrb[0].mxu0
        %v3430 = vadd.f32 %v3141, %v3429
        %v3431 = vpop.f32.mrb[0].mxu0
        %3432 = vmatprep.mubr.bf16.mxu0 %v1188
        %3433 = vmatmul.mubr.bf16.gmra.mrb[0].mxu0 %v1187
        %v3434 = vpop.f32.mrb[0].mxu0
        %v3435 = vadd.f32 %v3146, %v3434
        %v3436 = vpop.f32.mrb[0].mxu0
        %v3437 = vpop.f32.mrb[0].mxu0
        %v3438 = vadd.f32 %v3149, %v3437
        %v3439 = vpop.f32.mrb[0].mxu0
        %3440 = vmatprep.mubr.bf16.mxu0 %v1204
        %3441 = vmatmul.mubr.bf16.gmra.mrb[0].mxu0 %v1203
        %v3442 = vpop.f32.mrb[0].mxu0
        %v3443 = vadd.f32 %v3154, %v3442
        %v3444 = vpop.f32.mrb[0].mxu0
        %v3445 = vpop.f32.mrb[0].mxu0
        %v3446 = vadd.f32 %v3157, %v3445
        %v3447 = vpop.f32.mrb[0].mxu0
        %3448 = vmatprep.mubr.bf16.mxu0 %v1220
        %3449 = vmatmul.mubr.bf16.gmra.mrb[0].mxu0 %v1219
        %v3450 = vpop.f32.mrb[0].mxu0
        %v3451 = vadd.f32 %v3162, %v3450
        %v3452 = vpop.f32.mrb[0].mxu0
        %v3453 = vpop.f32.mrb[0].mxu0
        %v3454 = vadd.f32 %v3165, %v3453
        %v3455 = vpop.f32.mrb[0].mxu0
        %3456 = vmatprep.mubr.bf16.mxu0 %v1236
        %3457 = vmatmul.mubr.bf16.gmra.mrb[0].mxu0 %v1235
        %v3458 = vpop.f32.mrb[0].mxu0
        %v3459 = vadd.f32 %v3170, %v3458
        %v3460 = vpop.f32.mrb[0].mxu0
        %v3461 = vpop.f32.mrb[0].mxu0
        %v3462 = vadd.f32 %v3173, %v3461
        %v3463 = vpop.f32.mrb[0].mxu0
        %3464 = vmatprep.mubr.bf16.mxu0 %v1252
        %3465 = vmatmul.mubr.bf16.gmra.mrb[0].mxu0 %v1251
        %v3466 = vpop.f32.mrb[0].mxu0
        %v3467 = vadd.f32 %v3178, %v3466
        %v3468 = vpop.f32.mrb[0].mxu0
        %v3469 = vpop.f32.mrb[0].mxu0
        %v3470 = vadd.f32 %v3181, %v3469
        %v3471 = vpop.f32.mrb[0].mxu0
        %3472 = vmatprep.mubr.bf16.mxu0 %v1268
        %3473 = vmatmul.mubr.bf16.gmra.mrb[0].mxu0 %v1267
        %v3474 = vpop.f32.mrb[0].mxu0
        %v3475 = vadd.f32 %v3186, %v3474
        %v3476 = vpop.f32.mrb[0].mxu0
        %v3477 = vpop.f32.mrb[0].mxu0
        %v3478 = vadd.f32 %v3189, %v3477
        %v3479 = vpop.f32.mrb[0].mxu0
        %3480 = vmatprep.mubr.bf16.mxu0 %v1284
        %3481 = vmatmul.mubr.bf16.gmra.mrb[0].mxu0 %v1283
        %v3482 = vpop.f32.mrb[0].mxu0
        %v3483 = vadd.f32 %v3194, %v3482
        %v3484 = vpop.f32.mrb[0].mxu0
        %v3485 = vpop.f32.mrb[0].mxu0
        %v3486 = vadd.f32 %v3197, %v3485
        %v3487 = vpop.f32.mrb[0].mxu0
        %3488 = vmatprep.mubr.bf16.mxu0 %v1300
        %3489 = vmatmul.mubr.bf16.gmra.mrb[0].mxu0 %v1299
        %v3490 = vpop.f32.mrb[0].mxu0
        %v3491 = vadd.f32 %v3202, %v3490
        %v3492 = vpop.f32.mrb[0].mxu0
        %v3493 = vpop.f32.mrb[0].mxu0
        %v3494 = vadd.f32 %v3205, %v3493
        %v3495 = vpop.f32.mrb[0].mxu0
        %3496 = vmatprep.mubr.bf16.mxu0 %v1316
        %3497 = vmatmul.mubr.bf16.gmra.mrb[0].mxu0 %v1315
        %v3498 = vpop.f32.mrb[0].mxu0
        %v3499 = vadd.f32 %v3210, %v3498
        %v3500 = vpop.f32.mrb[0].mxu0
        %v3501 = vpop.f32.mrb[0].mxu0
        %v3502 = vadd.f32 %v3213, %v3501
        %v3503 = vpop.f32.mrb[0].mxu0
        %3504 = vdwg.mxu0
        %3505 = vmatprep.subr.bf16.mxu0 0
        %3506 = vmatpush1.bf16.msra.mxu0 %v2157
        %3507 = vmatprep.subr.bf16.mxu0 0
        %3508 = vmatpush1.bf16.msra.mxu0 %v2158
        %3509 = vmatprep.subr.bf16.mxu0 0
        %3510 = vmatpush1.bf16.msra.mxu0 %v2159
        %3511 = vmatprep.subr.bf16.mxu0 0
        %3512 = vmatpush1.bf16.msra.mxu0 %v2160
        %3513 = vmatprep.subr.bf16.mxu0 0
        %3514 = vmatpush1.bf16.msra.mxu0 %v2161
        %3515 = vmatprep.subr.bf16.mxu0 0
        %3516 = vmatpush1.bf16.msra.mxu0 %v2162
        %3517 = vmatprep.subr.bf16.mxu0 0
        %3518 = vmatpush1.bf16.msra.mxu0 %v2163
        %3519 = vmatprep.subr.bf16.mxu0 0
        %3520 = vmatpush1.bf16.msra.mxu0 %v2164
        %3521 = vmatprep.subr.bf16.mxu0 0
        %3522 = vmatpush1.bf16.msra.mxu0 %v2165
        %3523 = vmatprep.subr.bf16.mxu0 0
        %3524 = vmatpush1.bf16.msra.mxu0 %v2166
        %3525 = vmatprep.subr.bf16.mxu0 0
        %3526 = vmatpush1.bf16.msra.mxu0 %v2167
        %3527 = vmatprep.subr.bf16.mxu0 0
        %3528 = vmatpush1.bf16.msra.mxu0 %v2168
        %3529 = vmatprep.subr.bf16.mxu0 0
        %3530 = vmatpush1.bf16.msra.mxu0 %v2169
        %3531 = vmatprep.subr.bf16.mxu0 0
        %3532 = vmatpush1.bf16.msra.mxu0 %v2170
        %3533 = vmatprep.subr.bf16.mxu0 0
        %3534 = vmatpush1.bf16.msra.mxu0 %v2171
        %3535 = vmatprep.subr.bf16.mxu0 0
        %3536 = vmatpush1.bf16.msra.mxu0 %v2172
        %3537 = vmatprep.mubr.bf16.mxu0 %v822
        %3538 = vmatmul.mubr.bf16.gmra.mrb[0].mxu0 %v821
        %v3539 = vpop.f32.mrb[0].mxu0
        %v3540 = vadd.f32 %v3251, %v3539
        %v3541 = vpop.f32.mrb[0].mxu0
        %v3542 = vpop.f32.mrb[0].mxu0
        %v3543 = vadd.f32 %v3254, %v3542
        %v3544 = vpop.f32.mrb[0].mxu0
        %3545 = vmatprep.mubr.bf16.mxu0 %v838
        %3546 = vmatmul.mubr.bf16.gmra.mrb[0].mxu0 %v837
        %v3547 = vpop.f32.mrb[0].mxu0
        %v3548 = vadd.f32 %v3259, %v3547
        %v3549 = vpop.f32.mrb[0].mxu0
        %v3550 = vpop.f32.mrb[0].mxu0
        %v3551 = vadd.f32 %v3262, %v3550
        %v3552 = vpop.f32.mrb[0].mxu0
        %3553 = vmatprep.mubr.bf16.mxu0 %v854
        %3554 = vmatmul.mubr.bf16.gmra.mrb[0].mxu0 %v853
        %v3555 = vpop.f32.mrb[0].mxu0
        %v3556 = vadd.f32 %v3267, %v3555
        %v3557 = vpop.f32.mrb[0].mxu0
        %v3558 = vpop.f32.mrb[0].mxu0
        %v3559 = vadd.f32 %v3270, %v3558
        %v3560 = vpop.f32.mrb[0].mxu0
        %3561 = vmatprep.mubr.bf16.mxu0 %v870
        %3562 = vmatmul.mubr.bf16.gmra.mrb[0].mxu0 %v869
        %v3563 = vpop.f32.mrb[0].mxu0
        %v3564 = vadd.f32 %v3275, %v3563
        %v3565 = vpop.f32.mrb[0].mxu0
        %v3566 = vpop.f32.mrb[0].mxu0
        %v3567 = vadd.f32 %v3278, %v3566
        %v3568 = vpop.f32.mrb[0].mxu0
        %3569 = vmatprep.mubr.bf16.mxu0 %v886
        %3570 = vmatmul.mubr.bf16.gmra.mrb[0].mxu0 %v885
        %v3571 = vpop.f32.mrb[0].mxu0
        %v3572 = vadd.f32 %v3283, %v3571
        %v3573 = vpop.f32.mrb[0].mxu0
        %v3574 = vpop.f32.mrb[0].mxu0
        %v3575 = vadd.f32 %v3286, %v3574
        %v3576 = vpop.f32.mrb[0].mxu0
        %3577 = vmatprep.mubr.bf16.mxu0 %v902
        %3578 = vmatmul.mubr.bf16.gmra.mrb[0].mxu0 %v901
        %v3579 = vpop.f32.mrb[0].mxu0
        %v3580 = vadd.f32 %v3291, %v3579
        %v3581 = vpop.f32.mrb[0].mxu0
        %v3582 = vpop.f32.mrb[0].mxu0
        %v3583 = vadd.f32 %v3294, %v3582
        %v3584 = vpop.f32.mrb[0].mxu0
        %3585 = vmatprep.mubr.bf16.mxu0 %v918
        %3586 = vmatmul.mubr.bf16.gmra.mrb[0].mxu0 %v917
        %v3587 = vpop.f32.mrb[0].mxu0
        %v3588 = vadd.f32 %v3299, %v3587
        %v3589 = vpop.f32.mrb[0].mxu0
        %v3590 = vpop.f32.mrb[0].mxu0
        %v3591 = vadd.f32 %v3302, %v3590
        %v3592 = vpop.f32.mrb[0].mxu0
        %3593 = vmatprep.mubr.bf16.mxu0 %v934
        %3594 = vmatmul.mubr.bf16.gmra.mrb[0].mxu0 %v933
        %v3595 = vpop.f32.mrb[0].mxu0
        %v3596 = vadd.f32 %v3307, %v3595
        %v3597 = vpop.f32.mrb[0].mxu0
        %v3598 = vpop.f32.mrb[0].mxu0
        %v3599 = vadd.f32 %v3310, %v3598
        %v3600 = vpop.f32.mrb[0].mxu0
        %3601 = vmatprep.mubr.bf16.mxu0 %v950
        %3602 = vmatmul.mubr.bf16.gmra.mrb[0].mxu0 %v949
        %v3603 = vpop.f32.mrb[0].mxu0
        %v3604 = vadd.f32 %v3315, %v3603
        %v3605 = vpop.f32.mrb[0].mxu0
        %v3606 = vpop.f32.mrb[0].mxu0
        %v3607 = vadd.f32 %v3318, %v3606
        %v3608 = vpop.f32.mrb[0].mxu0
        %3609 = vmatprep.mubr.bf16.mxu0 %v966
        %3610 = vmatmul.mubr.bf16.gmra.mrb[0].mxu0 %v965
        %v3611 = vpop.f32.mrb[0].mxu0
        %v3612 = vadd.f32 %v3323, %v3611
        %v3613 = vpop.f32.mrb[0].mxu0
        %v3614 = vpop.f32.mrb[0].mxu0
        %v3615 = vadd.f32 %v3326, %v3614
        %v3616 = vpop.f32.mrb[0].mxu0
        %3617 = vmatprep.mubr.bf16.mxu0 %v982
        %3618 = vmatmul.mubr.bf16.gmra.mrb[0].mxu0 %v981
        %v3619 = vpop.f32.mrb[0].mxu0
        %v3620 = vadd.f32 %v3331, %v3619
        %v3621 = vpop.f32.mrb[0].mxu0
        %v3622 = vpop.f32.mrb[0].mxu0
        %v3623 = vadd.f32 %v3334, %v3622
        %v3624 = vpop.f32.mrb[0].mxu0
        %3625 = vmatprep.mubr.bf16.mxu0 %v998
        %3626 = vmatmul.mubr.bf16.gmra.mrb[0].mxu0 %v997
        %v3627 = vpop.f32.mrb[0].mxu0
        %v3628 = vadd.f32 %v3339, %v3627
        %v3629 = vpop.f32.mrb[0].mxu0
        %v3630 = vpop.f32.mrb[0].mxu0
        %v3631 = vadd.f32 %v3342, %v3630
        %v3632 = vpop.f32.mrb[0].mxu0
        %3633 = vmatprep.mubr.bf16.mxu0 %v1014
        %3634 = vmatmul.mubr.bf16.gmra.mrb[0].mxu0 %v1013
        %v3635 = vpop.f32.mrb[0].mxu0
        %v3636 = vadd.f32 %v3347, %v3635
        %v3637 = vpop.f32.mrb[0].mxu0
        %v3638 = vpop.f32.mrb[0].mxu0
        %v3639 = vadd.f32 %v3350, %v3638
        %v3640 = vpop.f32.mrb[0].mxu0
        %3641 = vmatprep.mubr.bf16.mxu0 %v1030
        %3642 = vmatmul.mubr.bf16.gmra.mrb[0].mxu0 %v1029
        %v3643 = vpop.f32.mrb[0].mxu0
        %v3644 = vadd.f32 %v3355, %v3643
        %v3645 = vpop.f32.mrb[0].mxu0
        %v3646 = vpop.f32.mrb[0].mxu0
        %v3647 = vadd.f32 %v3358, %v3646
        %v3648 = vpop.f32.mrb[0].mxu0
        %3649 = vmatprep.mubr.bf16.mxu0 %v1046
        %3650 = vmatmul.mubr.bf16.gmra.mrb[0].mxu0 %v1045
        %v3651 = vpop.f32.mrb[0].mxu0
        %v3652 = vadd.f32 %v3363, %v3651
        %v3653 = vpop.f32.mrb[0].mxu0
        %v3654 = vpop.f32.mrb[0].mxu0
        %v3655 = vadd.f32 %v3366, %v3654
        %v3656 = vpop.f32.mrb[0].mxu0
        %3657 = vmatprep.mubr.bf16.mxu0 %v1062
        %3658 = vmatmul.mubr.bf16.gmra.mrb[0].mxu0 %v1061
        %v3659 = vpop.f32.mrb[0].mxu0
        %v3660 = vadd.f32 %v3371, %v3659
        %v3661 = vpop.f32.mrb[0].mxu0
        %v3662 = vpop.f32.mrb[0].mxu0
        %v3663 = vadd.f32 %v3374, %v3662
        %v3664 = vpop.f32.mrb[0].mxu0
        %3665 = vmatprep.mubr.bf16.mxu0 %v1078
        %3666 = vmatmul.mubr.bf16.gmra.mrb[0].mxu0 %v1077
        %v3667 = vpop.f32.mrb[0].mxu0
        %v3668 = vadd.f32 %v3379, %v3667
        %v3669 = vpop.f32.mrb[0].mxu0
        %v3670 = vpop.f32.mrb[0].mxu0
        %v3671 = vadd.f32 %v3382, %v3670
        %v3672 = vpop.f32.mrb[0].mxu0
        %3673 = vmatprep.mubr.bf16.mxu0 %v1094
        %3674 = vmatmul.mubr.bf16.gmra.mrb[0].mxu0 %v1093
        %v3675 = vpop.f32.mrb[0].mxu0
        %v3676 = vadd.f32 %v3387, %v3675
        %v3677 = vpop.f32.mrb[0].mxu0
        %v3678 = vpop.f32.mrb[0].mxu0
        %v3679 = vadd.f32 %v3390, %v3678
        %v3680 = vpop.f32.mrb[0].mxu0
        %3681 = vmatprep.mubr.bf16.mxu0 %v1110
        %3682 = vmatmul.mubr.bf16.gmra.mrb[0].mxu0 %v1109
        %v3683 = vpop.f32.mrb[0].mxu0
        %v3684 = vadd.f32 %v3395, %v3683
        %v3685 = vpop.f32.mrb[0].mxu0
        %v3686 = vpop.f32.mrb[0].mxu0
        %v3687 = vadd.f32 %v3398, %v3686
        %v3688 = vpop.f32.mrb[0].mxu0
        %3689 = vmatprep.mubr.bf16.mxu0 %v1126
        %3690 = vmatmul.mubr.bf16.gmra.mrb[0].mxu0 %v1125
        %v3691 = vpop.f32.mrb[0].mxu0
        %v3692 = vadd.f32 %v3403, %v3691
        %v3693 = vpop.f32.mrb[0].mxu0
        %v3694 = vpop.f32.mrb[0].mxu0
        %v3695 = vadd.f32 %v3406, %v3694
        %v3696 = vpop.f32.mrb[0].mxu0
        %3697 = vmatprep.mubr.bf16.mxu0 %v1142
        %3698 = vmatmul.mubr.bf16.gmra.mrb[0].mxu0 %v1141
        %v3699 = vpop.f32.mrb[0].mxu0
        %v3700 = vadd.f32 %v3411, %v3699
        %v3701 = vpop.f32.mrb[0].mxu0
        %v3702 = vpop.f32.mrb[0].mxu0
        %v3703 = vadd.f32 %v3414, %v3702
        %v3704 = vpop.f32.mrb[0].mxu0
        %3705 = vmatprep.mubr.bf16.mxu0 %v1158
        %3706 = vmatmul.mubr.bf16.gmra.mrb[0].mxu0 %v1157
        %v3707 = vpop.f32.mrb[0].mxu0
        %v3708 = vadd.f32 %v3419, %v3707
        %v3709 = vpop.f32.mrb[0].mxu0
        %v3710 = vpop.f32.mrb[0].mxu0
        %v3711 = vadd.f32 %v3422, %v3710
        %v3712 = vpop.f32.mrb[0].mxu0
        %3713 = vmatprep.mubr.bf16.mxu0 %v1174
        %3714 = vmatmul.mubr.bf16.gmra.mrb[0].mxu0 %v1173
        %v3715 = vpop.f32.mrb[0].mxu0
        %v3716 = vadd.f32 %v3427, %v3715
        %v3717 = vpop.f32.mrb[0].mxu0
        %v3718 = vpop.f32.mrb[0].mxu0
        %v3719 = vadd.f32 %v3430, %v3718
        %v3720 = vpop.f32.mrb[0].mxu0
        %3721 = vmatprep.mubr.bf16.mxu0 %v1190
        %3722 = vmatmul.mubr.bf16.gmra.mrb[0].mxu0 %v1189
        %v3723 = vpop.f32.mrb[0].mxu0
        %v3724 = vadd.f32 %v3435, %v3723
        %v3725 = vpop.f32.mrb[0].mxu0
        %v3726 = vpop.f32.mrb[0].mxu0
        %v3727 = vadd.f32 %v3438, %v3726
        %v3728 = vpop.f32.mrb[0].mxu0
        %3729 = vmatprep.mubr.bf16.mxu0 %v1206
        %3730 = vmatmul.mubr.bf16.gmra.mrb[0].mxu0 %v1205
        %v3731 = vpop.f32.mrb[0].mxu0
        %v3732 = vadd.f32 %v3443, %v3731
        %v3733 = vpop.f32.mrb[0].mxu0
        %v3734 = vpop.f32.mrb[0].mxu0
        %v3735 = vadd.f32 %v3446, %v3734
        %v3736 = vpop.f32.mrb[0].mxu0
        %3737 = vmatprep.mubr.bf16.mxu0 %v1222
        %3738 = vmatmul.mubr.bf16.gmra.mrb[0].mxu0 %v1221
        %v3739 = vpop.f32.mrb[0].mxu0
        %v3740 = vadd.f32 %v3451, %v3739
        %v3741 = vpop.f32.mrb[0].mxu0
        %v3742 = vpop.f32.mrb[0].mxu0
        %v3743 = vadd.f32 %v3454, %v3742
        %v3744 = vpop.f32.mrb[0].mxu0
        %3745 = vmatprep.mubr.bf16.mxu0 %v1238
        %3746 = vmatmul.mubr.bf16.gmra.mrb[0].mxu0 %v1237
        %v3747 = vpop.f32.mrb[0].mxu0
        %v3748 = vadd.f32 %v3459, %v3747
        %v3749 = vpop.f32.mrb[0].mxu0
        %v3750 = vpop.f32.mrb[0].mxu0
        %v3751 = vadd.f32 %v3462, %v3750
        %v3752 = vpop.f32.mrb[0].mxu0
        %3753 = vmatprep.mubr.bf16.mxu0 %v1254
        %3754 = vmatmul.mubr.bf16.gmra.mrb[0].mxu0 %v1253
        %v3755 = vpop.f32.mrb[0].mxu0
        %v3756 = vadd.f32 %v3467, %v3755
        %v3757 = vpop.f32.mrb[0].mxu0
        %v3758 = vpop.f32.mrb[0].mxu0
        %v3759 = vadd.f32 %v3470, %v3758
        %v3760 = vpop.f32.mrb[0].mxu0
        %3761 = vmatprep.mubr.bf16.mxu0 %v1270
        %3762 = vmatmul.mubr.bf16.gmra.mrb[0].mxu0 %v1269
        %v3763 = vpop.f32.mrb[0].mxu0
        %v3764 = vadd.f32 %v3475, %v3763
        %v3765 = vpop.f32.mrb[0].mxu0
        %v3766 = vpop.f32.mrb[0].mxu0
        %v3767 = vadd.f32 %v3478, %v3766
        %v3768 = vpop.f32.mrb[0].mxu0
        %3769 = vmatprep.mubr.bf16.mxu0 %v1286
        %3770 = vmatmul.mubr.bf16.gmra.mrb[0].mxu0 %v1285
        %v3771 = vpop.f32.mrb[0].mxu0
        %v3772 = vadd.f32 %v3483, %v3771
        %v3773 = vpop.f32.mrb[0].mxu0
        %v3774 = vpop.f32.mrb[0].mxu0
        %v3775 = vadd.f32 %v3486, %v3774
        %v3776 = vpop.f32.mrb[0].mxu0
        %3777 = vmatprep.mubr.bf16.mxu0 %v1302
        %3778 = vmatmul.mubr.bf16.gmra.mrb[0].mxu0 %v1301
        %v3779 = vpop.f32.mrb[0].mxu0
        %v3780 = vadd.f32 %v3491, %v3779
        %v3781 = vpop.f32.mrb[0].mxu0
        %v3782 = vpop.f32.mrb[0].mxu0
        %v3783 = vadd.f32 %v3494, %v3782
        %v3784 = vpop.f32.mrb[0].mxu0
        %3785 = vmatprep.mubr.bf16.mxu0 %v1318
        %3786 = vmatmul.mubr.bf16.gmra.mrb[0].mxu0 %v1317
        %v3787 = vpop.f32.mrb[0].mxu0
        %v3788 = vadd.f32 %v3499, %v3787
        %v3789 = vpop.f32.mrb[0].mxu0
        %v3790 = vpop.f32.mrb[0].mxu0
        %v3791 = vadd.f32 %v3502, %v3790
        %v3792 = vpop.f32.mrb[0].mxu0
        %3793 = vdwg.mxu0
        %3794 = vmatprep.subr.bf16.mxu0 0
        %3795 = vmatpush1.bf16.msra.mxu0 %v2173
        %3796 = vmatprep.subr.bf16.mxu0 0
        %3797 = vmatpush1.bf16.msra.mxu0 %v2174
        %3798 = vmatprep.subr.bf16.mxu0 0
        %3799 = vmatpush1.bf16.msra.mxu0 %v2175
        %3800 = vmatprep.subr.bf16.mxu0 0
        %3801 = vmatpush1.bf16.msra.mxu0 %v2176
        %3802 = vmatprep.subr.bf16.mxu0 0
        %3803 = vmatpush1.bf16.msra.mxu0 %v2177
        %3804 = vmatprep.subr.bf16.mxu0 0
        %3805 = vmatpush1.bf16.msra.mxu0 %v2178
        %3806 = vmatprep.subr.bf16.mxu0 0
        %3807 = vmatpush1.bf16.msra.mxu0 %v2179
        %3808 = vmatprep.subr.bf16.mxu0 0
        %3809 = vmatpush1.bf16.msra.mxu0 %v2180
        %3810 = vmatprep.subr.bf16.mxu0 0
        %3811 = vmatpush1.bf16.msra.mxu0 %v2181
        %3812 = vmatprep.subr.bf16.mxu0 0
        %3813 = vmatpush1.bf16.msra.mxu0 %v2182
        %3814 = vmatprep.subr.bf16.mxu0 0
        %3815 = vmatpush1.bf16.msra.mxu0 %v2183
        %3816 = vmatprep.subr.bf16.mxu0 0
        %3817 = vmatpush1.bf16.msra.mxu0 %v2184
        %3818 = vmatprep.subr.bf16.mxu0 0
        %3819 = vmatpush1.bf16.msra.mxu0 %v2185
        %3820 = vmatprep.subr.bf16.mxu0 0
        %3821 = vmatpush1.bf16.msra.mxu0 %v2186
        %3822 = vmatprep.subr.bf16.mxu0 0
        %3823 = vmatpush1.bf16.msra.mxu0 %v2187
        %3824 = vmatprep.subr.bf16.mxu0 0
        %3825 = vmatpush1.bf16.msra.mxu0 %v2188
        %3826 = vmatprep.mubr.bf16.mxu0 %v824
        %3827 = vmatmul.mubr.bf16.gmra.mrb[0].mxu0 %v823
        %v3828 = vpop.f32.mrb[0].mxu0
        %v3829 = vadd.f32 %v3540, %v3828
        %v3830 = vpop.f32.mrb[0].mxu0
        %v3831 = vpop.f32.mrb[0].mxu0
        %v3832 = vadd.f32 %v3543, %v3831
        %v3833 = vpop.f32.mrb[0].mxu0
        %3834 = vmatprep.mubr.bf16.mxu0 %v840
        %3835 = vmatmul.mubr.bf16.gmra.mrb[0].mxu0 %v839
        %v3836 = vpop.f32.mrb[0].mxu0
        %v3837 = vadd.f32 %v3548, %v3836
        %v3838 = vpop.f32.mrb[0].mxu0
        %v3839 = vpop.f32.mrb[0].mxu0
        %v3840 = vadd.f32 %v3551, %v3839
        %v3841 = vpop.f32.mrb[0].mxu0
        %3842 = vmatprep.mubr.bf16.mxu0 %v856
        %3843 = vmatmul.mubr.bf16.gmra.mrb[0].mxu0 %v855
        %v3844 = vpop.f32.mrb[0].mxu0
        %v3845 = vadd.f32 %v3556, %v3844
        %v3846 = vpop.f32.mrb[0].mxu0
        %v3847 = vpop.f32.mrb[0].mxu0
        %v3848 = vadd.f32 %v3559, %v3847
        %v3849 = vpop.f32.mrb[0].mxu0
        %3850 = vmatprep.mubr.bf16.mxu0 %v872
        %3851 = vmatmul.mubr.bf16.gmra.mrb[0].mxu0 %v871
        %v3852 = vpop.f32.mrb[0].mxu0
        %v3853 = vadd.f32 %v3564, %v3852
        %v3854 = vpop.f32.mrb[0].mxu0
        %v3855 = vpop.f32.mrb[0].mxu0
        %v3856 = vadd.f32 %v3567, %v3855
        %v3857 = vpop.f32.mrb[0].mxu0
        %3858 = vmatprep.mubr.bf16.mxu0 %v888
        %3859 = vmatmul.mubr.bf16.gmra.mrb[0].mxu0 %v887
        %v3860 = vpop.f32.mrb[0].mxu0
        %v3861 = vadd.f32 %v3572, %v3860
        %v3862 = vpop.f32.mrb[0].mxu0
        %v3863 = vpop.f32.mrb[0].mxu0
        %v3864 = vadd.f32 %v3575, %v3863
        %v3865 = vpop.f32.mrb[0].mxu0
        %3866 = vmatprep.mubr.bf16.mxu0 %v904
        %3867 = vmatmul.mubr.bf16.gmra.mrb[0].mxu0 %v903
        %v3868 = vpop.f32.mrb[0].mxu0
        %v3869 = vadd.f32 %v3580, %v3868
        %v3870 = vpop.f32.mrb[0].mxu0
        %v3871 = vpop.f32.mrb[0].mxu0
        %v3872 = vadd.f32 %v3583, %v3871
        %v3873 = vpop.f32.mrb[0].mxu0
        %3874 = vmatprep.mubr.bf16.mxu0 %v920
        %3875 = vmatmul.mubr.bf16.gmra.mrb[0].mxu0 %v919
        %v3876 = vpop.f32.mrb[0].mxu0
        %v3877 = vadd.f32 %v3588, %v3876
        %v3878 = vpop.f32.mrb[0].mxu0
        %v3879 = vpop.f32.mrb[0].mxu0
        %v3880 = vadd.f32 %v3591, %v3879
        %v3881 = vpop.f32.mrb[0].mxu0
        %3882 = vmatprep.mubr.bf16.mxu0 %v936
        %3883 = vmatmul.mubr.bf16.gmra.mrb[0].mxu0 %v935
        %v3884 = vpop.f32.mrb[0].mxu0
        %v3885 = vadd.f32 %v3596, %v3884
        %v3886 = vpop.f32.mrb[0].mxu0
        %v3887 = vpop.f32.mrb[0].mxu0
        %v3888 = vadd.f32 %v3599, %v3887
        %v3889 = vpop.f32.mrb[0].mxu0
        %3890 = vmatprep.mubr.bf16.mxu0 %v952
        %3891 = vmatmul.mubr.bf16.gmra.mrb[0].mxu0 %v951
        %v3892 = vpop.f32.mrb[0].mxu0
        %v3893 = vadd.f32 %v3604, %v3892
        %v3894 = vpop.f32.mrb[0].mxu0
        %v3895 = vpop.f32.mrb[0].mxu0
        %v3896 = vadd.f32 %v3607, %v3895
        %v3897 = vpop.f32.mrb[0].mxu0
        %3898 = vmatprep.mubr.bf16.mxu0 %v968
        %3899 = vmatmul.mubr.bf16.gmra.mrb[0].mxu0 %v967
        %v3900 = vpop.f32.mrb[0].mxu0
        %v3901 = vadd.f32 %v3612, %v3900
        %v3902 = vpop.f32.mrb[0].mxu0
        %v3903 = vpop.f32.mrb[0].mxu0
        %v3904 = vadd.f32 %v3615, %v3903
        %v3905 = vpop.f32.mrb[0].mxu0
        %3906 = vmatprep.mubr.bf16.mxu0 %v984
        %3907 = vmatmul.mubr.bf16.gmra.mrb[0].mxu0 %v983
        %v3908 = vpop.f32.mrb[0].mxu0
        %v3909 = vadd.f32 %v3620, %v3908
        %v3910 = vpop.f32.mrb[0].mxu0
        %v3911 = vpop.f32.mrb[0].mxu0
        %v3912 = vadd.f32 %v3623, %v3911
        %v3913 = vpop.f32.mrb[0].mxu0
        %3914 = vmatprep.mubr.bf16.mxu0 %v1000
        %3915 = vmatmul.mubr.bf16.gmra.mrb[0].mxu0 %v999
        %v3916 = vpop.f32.mrb[0].mxu0
        %v3917 = vadd.f32 %v3628, %v3916
        %v3918 = vpop.f32.mrb[0].mxu0
        %v3919 = vpop.f32.mrb[0].mxu0
        %v3920 = vadd.f32 %v3631, %v3919
        %v3921 = vpop.f32.mrb[0].mxu0
        %3922 = vmatprep.mubr.bf16.mxu0 %v1016
        %3923 = vmatmul.mubr.bf16.gmra.mrb[0].mxu0 %v1015
        %v3924 = vpop.f32.mrb[0].mxu0
        %v3925 = vadd.f32 %v3636, %v3924
        %v3926 = vpop.f32.mrb[0].mxu0
        %v3927 = vpop.f32.mrb[0].mxu0
        %v3928 = vadd.f32 %v3639, %v3927
        %v3929 = vpop.f32.mrb[0].mxu0
        %3930 = vmatprep.mubr.bf16.mxu0 %v1032
        %3931 = vmatmul.mubr.bf16.gmra.mrb[0].mxu0 %v1031
        %v3932 = vpop.f32.mrb[0].mxu0
        %v3933 = vadd.f32 %v3644, %v3932
        %v3934 = vpop.f32.mrb[0].mxu0
        %v3935 = vpop.f32.mrb[0].mxu0
        %v3936 = vadd.f32 %v3647, %v3935
        %v3937 = vpop.f32.mrb[0].mxu0
        %3938 = vmatprep.mubr.bf16.mxu0 %v1048
        %3939 = vmatmul.mubr.bf16.gmra.mrb[0].mxu0 %v1047
        %v3940 = vpop.f32.mrb[0].mxu0
        %v3941 = vadd.f32 %v3652, %v3940
        %v3942 = vpop.f32.mrb[0].mxu0
        %v3943 = vpop.f32.mrb[0].mxu0
        %v3944 = vadd.f32 %v3655, %v3943
        %v3945 = vpop.f32.mrb[0].mxu0
        %3946 = vmatprep.mubr.bf16.mxu0 %v1064
        %3947 = vmatmul.mubr.bf16.gmra.mrb[0].mxu0 %v1063
        %v3948 = vpop.f32.mrb[0].mxu0
        %v3949 = vadd.f32 %v3660, %v3948
        %v3950 = vpop.f32.mrb[0].mxu0
        %v3951 = vpop.f32.mrb[0].mxu0
        %v3952 = vadd.f32 %v3663, %v3951
        %v3953 = vpop.f32.mrb[0].mxu0
        %3954 = vmatprep.mubr.bf16.mxu0 %v1080
        %3955 = vmatmul.mubr.bf16.gmra.mrb[0].mxu0 %v1079
        %v3956 = vpop.f32.mrb[0].mxu0
        %v3957 = vadd.f32 %v3668, %v3956
        %v3958 = vpop.f32.mrb[0].mxu0
        %v3959 = vpop.f32.mrb[0].mxu0
        %v3960 = vadd.f32 %v3671, %v3959
        %v3961 = vpop.f32.mrb[0].mxu0
        %3962 = vmatprep.mubr.bf16.mxu0 %v1096
        %3963 = vmatmul.mubr.bf16.gmra.mrb[0].mxu0 %v1095
        %v3964 = vpop.f32.mrb[0].mxu0
        %v3965 = vadd.f32 %v3676, %v3964
        %v3966 = vpop.f32.mrb[0].mxu0
        %v3967 = vpop.f32.mrb[0].mxu0
        %v3968 = vadd.f32 %v3679, %v3967
        %v3969 = vpop.f32.mrb[0].mxu0
        %3970 = vmatprep.mubr.bf16.mxu0 %v1112
        %3971 = vmatmul.mubr.bf16.gmra.mrb[0].mxu0 %v1111
        %v3972 = vpop.f32.mrb[0].mxu0
        %v3973 = vadd.f32 %v3684, %v3972
        %v3974 = vpop.f32.mrb[0].mxu0
        %v3975 = vpop.f32.mrb[0].mxu0
        %v3976 = vadd.f32 %v3687, %v3975
        %v3977 = vpop.f32.mrb[0].mxu0
        %3978 = vmatprep.mubr.bf16.mxu0 %v1128
        %3979 = vmatmul.mubr.bf16.gmra.mrb[0].mxu0 %v1127
        %v3980 = vpop.f32.mrb[0].mxu0
        %v3981 = vadd.f32 %v3692, %v3980
        %v3982 = vpop.f32.mrb[0].mxu0
        %v3983 = vpop.f32.mrb[0].mxu0
        %v3984 = vadd.f32 %v3695, %v3983
        %v3985 = vpop.f32.mrb[0].mxu0
        %3986 = vmatprep.mubr.bf16.mxu0 %v1144
        %3987 = vmatmul.mubr.bf16.gmra.mrb[0].mxu0 %v1143
        %v3988 = vpop.f32.mrb[0].mxu0
        %v3989 = vadd.f32 %v3700, %v3988
        %v3990 = vpop.f32.mrb[0].mxu0
        %v3991 = vpop.f32.mrb[0].mxu0
        %v3992 = vadd.f32 %v3703, %v3991
        %v3993 = vpop.f32.mrb[0].mxu0
        %3994 = vmatprep.mubr.bf16.mxu0 %v1160
        %3995 = vmatmul.mubr.bf16.gmra.mrb[0].mxu0 %v1159
        %v3996 = vpop.f32.mrb[0].mxu0
        %v3997 = vadd.f32 %v3708, %v3996
        %v3998 = vpop.f32.mrb[0].mxu0
        %v3999 = vpop.f32.mrb[0].mxu0
        %v4000 = vadd.f32 %v3711, %v3999
        %v4001 = vpop.f32.mrb[0].mxu0
        %4002 = vmatprep.mubr.bf16.mxu0 %v1176
        %4003 = vmatmul.mubr.bf16.gmra.mrb[0].mxu0 %v1175
        %v4004 = vpop.f32.mrb[0].mxu0
        %v4005 = vadd.f32 %v3716, %v4004
        %v4006 = vpop.f32.mrb[0].mxu0
        %v4007 = vpop.f32.mrb[0].mxu0
        %v4008 = vadd.f32 %v3719, %v4007
        %v4009 = vpop.f32.mrb[0].mxu0
        %4010 = vmatprep.mubr.bf16.mxu0 %v1192
        %4011 = vmatmul.mubr.bf16.gmra.mrb[0].mxu0 %v1191
        %v4012 = vpop.f32.mrb[0].mxu0
        %v4013 = vadd.f32 %v3724, %v4012
        %v4014 = vpop.f32.mrb[0].mxu0
        %v4015 = vpop.f32.mrb[0].mxu0
        %v4016 = vadd.f32 %v3727, %v4015
        %v4017 = vpop.f32.mrb[0].mxu0
        %4018 = vmatprep.mubr.bf16.mxu0 %v1208
        %4019 = vmatmul.mubr.bf16.gmra.mrb[0].mxu0 %v1207
        %v4020 = vpop.f32.mrb[0].mxu0
        %v4021 = vadd.f32 %v3732, %v4020
        %v4022 = vpop.f32.mrb[0].mxu0
        %v4023 = vpop.f32.mrb[0].mxu0
        %v4024 = vadd.f32 %v3735, %v4023
        %v4025 = vpop.f32.mrb[0].mxu0
        %4026 = vmatprep.mubr.bf16.mxu0 %v1224
        %4027 = vmatmul.mubr.bf16.gmra.mrb[0].mxu0 %v1223
        %v4028 = vpop.f32.mrb[0].mxu0
        %v4029 = vadd.f32 %v3740, %v4028
        %v4030 = vpop.f32.mrb[0].mxu0
        %v4031 = vpop.f32.mrb[0].mxu0
        %v4032 = vadd.f32 %v3743, %v4031
        %v4033 = vpop.f32.mrb[0].mxu0
        %4034 = vmatprep.mubr.bf16.mxu0 %v1240
        %4035 = vmatmul.mubr.bf16.gmra.mrb[0].mxu0 %v1239
        %v4036 = vpop.f32.mrb[0].mxu0
        %v4037 = vadd.f32 %v3748, %v4036
        %v4038 = vpop.f32.mrb[0].mxu0
        %v4039 = vpop.f32.mrb[0].mxu0
        %v4040 = vadd.f32 %v3751, %v4039
        %v4041 = vpop.f32.mrb[0].mxu0
        %4042 = vmatprep.mubr.bf16.mxu0 %v1256
        %4043 = vmatmul.mubr.bf16.gmra.mrb[0].mxu0 %v1255
        %v4044 = vpop.f32.mrb[0].mxu0
        %v4045 = vadd.f32 %v3756, %v4044
        %v4046 = vpop.f32.mrb[0].mxu0
        %v4047 = vpop.f32.mrb[0].mxu0
        %v4048 = vadd.f32 %v3759, %v4047
        %v4049 = vpop.f32.mrb[0].mxu0
        %4050 = vmatprep.mubr.bf16.mxu0 %v1272
        %4051 = vmatmul.mubr.bf16.gmra.mrb[0].mxu0 %v1271
        %v4052 = vpop.f32.mrb[0].mxu0
        %v4053 = vadd.f32 %v3764, %v4052
        %v4054 = vpop.f32.mrb[0].mxu0
        %v4055 = vpop.f32.mrb[0].mxu0
        %v4056 = vadd.f32 %v3767, %v4055
        %v4057 = vpop.f32.mrb[0].mxu0
        %4058 = vmatprep.mubr.bf16.mxu0 %v1288
        %4059 = vmatmul.mubr.bf16.gmra.mrb[0].mxu0 %v1287
        %v4060 = vpop.f32.mrb[0].mxu0
        %v4061 = vadd.f32 %v3772, %v4060
        %v4062 = vpop.f32.mrb[0].mxu0
        %v4063 = vpop.f32.mrb[0].mxu0
        %v4064 = vadd.f32 %v3775, %v4063
        %v4065 = vpop.f32.mrb[0].mxu0
        %4066 = vmatprep.mubr.bf16.mxu0 %v1304
        %4067 = vmatmul.mubr.bf16.gmra.mrb[0].mxu0 %v1303
        %v4068 = vpop.f32.mrb[0].mxu0
        %v4069 = vadd.f32 %v3780, %v4068
        %v4070 = vpop.f32.mrb[0].mxu0
        %v4071 = vpop.f32.mrb[0].mxu0
        %v4072 = vadd.f32 %v3783, %v4071
        %v4073 = vpop.f32.mrb[0].mxu0
        %4074 = vmatprep.mubr.bf16.mxu0 %v1320
        %4075 = vmatmul.mubr.bf16.gmra.mrb[0].mxu0 %v1319
        %v4076 = vpop.f32.mrb[0].mxu0
        %v4077 = vadd.f32 %v3788, %v4076
        %v4078 = vpop.f32.mrb[0].mxu0
        %v4079 = vpop.f32.mrb[0].mxu0
        %v4080 = vadd.f32 %v3791, %v4079
        %v4081 = vpop.f32.mrb[0].mxu0
        %4082 = vdwg.mxu0
        %4083 = vmatprep.subr.bf16.mxu0 0
        %4084 = vmatpush1.bf16.msra.mxu0 %v2189
        %4085 = vmatprep.subr.bf16.mxu0 0
        %4086 = vmatpush1.bf16.msra.mxu0 %v2190
        %4087 = vmatprep.subr.bf16.mxu0 0
        %4088 = vmatpush1.bf16.msra.mxu0 %v2191
        %4089 = vmatprep.subr.bf16.mxu0 0
        %4090 = vmatpush1.bf16.msra.mxu0 %v2192
        %4091 = vmatprep.subr.bf16.mxu0 0
        %4092 = vmatpush1.bf16.msra.mxu0 %v2193
        %4093 = vmatprep.subr.bf16.mxu0 0
        %4094 = vmatpush1.bf16.msra.mxu0 %v2194
        %4095 = vmatprep.subr.bf16.mxu0 0
        %4096 = vmatpush1.bf16.msra.mxu0 %v2195
        %4097 = vmatprep.subr.bf16.mxu0 0
        %4098 = vmatpush1.bf16.msra.mxu0 %v2196
        %4099 = vmatprep.subr.bf16.mxu0 0
        %4100 = vmatpush1.bf16.msra.mxu0 %v2197
        %4101 = vmatprep.subr.bf16.mxu0 0
        %4102 = vmatpush1.bf16.msra.mxu0 %v2198
        %4103 = vmatprep.subr.bf16.mxu0 0
        %4104 = vmatpush1.bf16.msra.mxu0 %v2199
        %4105 = vmatprep.subr.bf16.mxu0 0
        %4106 = vmatpush1.bf16.msra.mxu0 %v2200
        %4107 = vmatprep.subr.bf16.mxu0 0
        %4108 = vmatpush1.bf16.msra.mxu0 %v2201
        %4109 = vmatprep.subr.bf16.mxu0 0
        %4110 = vmatpush1.bf16.msra.mxu0 %v2202
        %4111 = vmatprep.subr.bf16.mxu0 0
        %4112 = vmatpush1.bf16.msra.mxu0 %v2203
        %4113 = vmatprep.subr.bf16.mxu0 0
        %4114 = vmatpush1.bf16.msra.mxu0 %v2204
        %4115 = vmatprep.mubr.bf16.mxu0 %v826
        %4116 = vmatmul.mubr.bf16.gmra.mrb[0].mxu0 %v825
        %v4117 = vpop.f32.mrb[0].mxu0
        %v4118 = vadd.f32 %v3829, %v4117
        %v4119 = vpop.f32.mrb[0].mxu0
        %v4120 = vpop.f32.mrb[0].mxu0
        %v4121 = vadd.f32 %v3832, %v4120
        %v4122 = vpop.f32.mrb[0].mxu0
        %4123 = vmatprep.mubr.bf16.mxu0 %v842
        %4124 = vmatmul.mubr.bf16.gmra.mrb[0].mxu0 %v841
        %v4125 = vpop.f32.mrb[0].mxu0
        %v4126 = vadd.f32 %v3837, %v4125
        %v4127 = vpop.f32.mrb[0].mxu0
        %v4128 = vpop.f32.mrb[0].mxu0
        %v4129 = vadd.f32 %v3840, %v4128
        %v4130 = vpop.f32.mrb[0].mxu0
        %4131 = vmatprep.mubr.bf16.mxu0 %v858
        %4132 = vmatmul.mubr.bf16.gmra.mrb[0].mxu0 %v857
        %v4133 = vpop.f32.mrb[0].mxu0
        %v4134 = vadd.f32 %v3845, %v4133
        %v4135 = vpop.f32.mrb[0].mxu0
        %v4136 = vpop.f32.mrb[0].mxu0
        %v4137 = vadd.f32 %v3848, %v4136
        %v4138 = vpop.f32.mrb[0].mxu0
        %4139 = vmatprep.mubr.bf16.mxu0 %v874
        %4140 = vmatmul.mubr.bf16.gmra.mrb[0].mxu0 %v873
        %v4141 = vpop.f32.mrb[0].mxu0
        %v4142 = vadd.f32 %v3853, %v4141
        %v4143 = vpop.f32.mrb[0].mxu0
        %v4144 = vpop.f32.mrb[0].mxu0
        %v4145 = vadd.f32 %v3856, %v4144
        %v4146 = vpop.f32.mrb[0].mxu0
        %4147 = vmatprep.mubr.bf16.mxu0 %v890
        %4148 = vmatmul.mubr.bf16.gmra.mrb[0].mxu0 %v889
        %v4149 = vpop.f32.mrb[0].mxu0
        %v4150 = vadd.f32 %v3861, %v4149
        %v4151 = vpop.f32.mrb[0].mxu0
        %v4152 = vpop.f32.mrb[0].mxu0
        %v4153 = vadd.f32 %v3864, %v4152
        %v4154 = vpop.f32.mrb[0].mxu0
        %4155 = vmatprep.mubr.bf16.mxu0 %v906
        %4156 = vmatmul.mubr.bf16.gmra.mrb[0].mxu0 %v905
        %v4157 = vpop.f32.mrb[0].mxu0
        %v4158 = vadd.f32 %v3869, %v4157
        %v4159 = vpop.f32.mrb[0].mxu0
        %v4160 = vpop.f32.mrb[0].mxu0
        %v4161 = vadd.f32 %v3872, %v4160
        %v4162 = vpop.f32.mrb[0].mxu0
        %4163 = vmatprep.mubr.bf16.mxu0 %v922
        %4164 = vmatmul.mubr.bf16.gmra.mrb[0].mxu0 %v921
        %v4165 = vpop.f32.mrb[0].mxu0
        %v4166 = vadd.f32 %v3877, %v4165
        %v4167 = vpop.f32.mrb[0].mxu0
        %v4168 = vpop.f32.mrb[0].mxu0
        %v4169 = vadd.f32 %v3880, %v4168
        %v4170 = vpop.f32.mrb[0].mxu0
        %4171 = vmatprep.mubr.bf16.mxu0 %v938
        %4172 = vmatmul.mubr.bf16.gmra.mrb[0].mxu0 %v937
        %v4173 = vpop.f32.mrb[0].mxu0
        %v4174 = vadd.f32 %v3885, %v4173
        %v4175 = vpop.f32.mrb[0].mxu0
        %v4176 = vpop.f32.mrb[0].mxu0
        %v4177 = vadd.f32 %v3888, %v4176
        %v4178 = vpop.f32.mrb[0].mxu0
        %4179 = vmatprep.mubr.bf16.mxu0 %v954
        %4180 = vmatmul.mubr.bf16.gmra.mrb[0].mxu0 %v953
        %v4181 = vpop.f32.mrb[0].mxu0
        %v4182 = vadd.f32 %v3893, %v4181
        %v4183 = vpop.f32.mrb[0].mxu0
        %v4184 = vpop.f32.mrb[0].mxu0
        %v4185 = vadd.f32 %v3896, %v4184
        %v4186 = vpop.f32.mrb[0].mxu0
        %4187 = vmatprep.mubr.bf16.mxu0 %v970
        %4188 = vmatmul.mubr.bf16.gmra.mrb[0].mxu0 %v969
        %v4189 = vpop.f32.mrb[0].mxu0
        %v4190 = vadd.f32 %v3901, %v4189
        %v4191 = vpop.f32.mrb[0].mxu0
        %v4192 = vpop.f32.mrb[0].mxu0
        %v4193 = vadd.f32 %v3904, %v4192
        %v4194 = vpop.f32.mrb[0].mxu0
        %4195 = vmatprep.mubr.bf16.mxu0 %v986
        %4196 = vmatmul.mubr.bf16.gmra.mrb[0].mxu0 %v985
        %v4197 = vpop.f32.mrb[0].mxu0
        %v4198 = vadd.f32 %v3909, %v4197
        %v4199 = vpop.f32.mrb[0].mxu0
        %v4200 = vpop.f32.mrb[0].mxu0
        %v4201 = vadd.f32 %v3912, %v4200
        %v4202 = vpop.f32.mrb[0].mxu0
        %4203 = vmatprep.mubr.bf16.mxu0 %v1002
        %4204 = vmatmul.mubr.bf16.gmra.mrb[0].mxu0 %v1001
        %v4205 = vpop.f32.mrb[0].mxu0
        %v4206 = vadd.f32 %v3917, %v4205
        %v4207 = vpop.f32.mrb[0].mxu0
        %v4208 = vpop.f32.mrb[0].mxu0
        %v4209 = vadd.f32 %v3920, %v4208
        %v4210 = vpop.f32.mrb[0].mxu0
        %4211 = vmatprep.mubr.bf16.mxu0 %v1018
        %4212 = vmatmul.mubr.bf16.gmra.mrb[0].mxu0 %v1017
        %v4213 = vpop.f32.mrb[0].mxu0
        %v4214 = vadd.f32 %v3925, %v4213
        %v4215 = vpop.f32.mrb[0].mxu0
        %v4216 = vpop.f32.mrb[0].mxu0
        %v4217 = vadd.f32 %v3928, %v4216
        %v4218 = vpop.f32.mrb[0].mxu0
        %4219 = vmatprep.mubr.bf16.mxu0 %v1034
        %4220 = vmatmul.mubr.bf16.gmra.mrb[0].mxu0 %v1033
        %v4221 = vpop.f32.mrb[0].mxu0
        %v4222 = vadd.f32 %v3933, %v4221
        %v4223 = vpop.f32.mrb[0].mxu0
        %v4224 = vpop.f32.mrb[0].mxu0
        %v4225 = vadd.f32 %v3936, %v4224
        %v4226 = vpop.f32.mrb[0].mxu0
        %4227 = vmatprep.mubr.bf16.mxu0 %v1050
        %4228 = vmatmul.mubr.bf16.gmra.mrb[0].mxu0 %v1049
        %v4229 = vpop.f32.mrb[0].mxu0
        %v4230 = vadd.f32 %v3941, %v4229
        %v4231 = vpop.f32.mrb[0].mxu0
        %v4232 = vpop.f32.mrb[0].mxu0
        %v4233 = vadd.f32 %v3944, %v4232
        %v4234 = vpop.f32.mrb[0].mxu0
        %4235 = vmatprep.mubr.bf16.mxu0 %v1066
        %4236 = vmatmul.mubr.bf16.gmra.mrb[0].mxu0 %v1065
        %v4237 = vpop.f32.mrb[0].mxu0
        %v4238 = vadd.f32 %v3949, %v4237
        %v4239 = vpop.f32.mrb[0].mxu0
        %v4240 = vpop.f32.mrb[0].mxu0
        %v4241 = vadd.f32 %v3952, %v4240
        %v4242 = vpop.f32.mrb[0].mxu0
        %4243 = vmatprep.mubr.bf16.mxu0 %v1082
        %4244 = vmatmul.mubr.bf16.gmra.mrb[0].mxu0 %v1081
        %v4245 = vpop.f32.mrb[0].mxu0
        %v4246 = vadd.f32 %v3957, %v4245
        %v4247 = vpop.f32.mrb[0].mxu0
        %v4248 = vpop.f32.mrb[0].mxu0
        %v4249 = vadd.f32 %v3960, %v4248
        %v4250 = vpop.f32.mrb[0].mxu0
        %4251 = vmatprep.mubr.bf16.mxu0 %v1098
        %4252 = vmatmul.mubr.bf16.gmra.mrb[0].mxu0 %v1097
        %v4253 = vpop.f32.mrb[0].mxu0
        %v4254 = vadd.f32 %v3965, %v4253
        %v4255 = vpop.f32.mrb[0].mxu0
        %v4256 = vpop.f32.mrb[0].mxu0
        %v4257 = vadd.f32 %v3968, %v4256
        %v4258 = vpop.f32.mrb[0].mxu0
        %4259 = vmatprep.mubr.bf16.mxu0 %v1114
        %4260 = vmatmul.mubr.bf16.gmra.mrb[0].mxu0 %v1113
        %v4261 = vpop.f32.mrb[0].mxu0
        %v4262 = vadd.f32 %v3973, %v4261
        %v4263 = vpop.f32.mrb[0].mxu0
        %v4264 = vpop.f32.mrb[0].mxu0
        %v4265 = vadd.f32 %v3976, %v4264
        %v4266 = vpop.f32.mrb[0].mxu0
        %4267 = vmatprep.mubr.bf16.mxu0 %v1130
        %4268 = vmatmul.mubr.bf16.gmra.mrb[0].mxu0 %v1129
        %v4269 = vpop.f32.mrb[0].mxu0
        %v4270 = vadd.f32 %v3981, %v4269
        %v4271 = vpop.f32.mrb[0].mxu0
        %v4272 = vpop.f32.mrb[0].mxu0
        %v4273 = vadd.f32 %v3984, %v4272
        %v4274 = vpop.f32.mrb[0].mxu0
        %4275 = vmatprep.mubr.bf16.mxu0 %v1146
        %4276 = vmatmul.mubr.bf16.gmra.mrb[0].mxu0 %v1145
        %v4277 = vpop.f32.mrb[0].mxu0
        %v4278 = vadd.f32 %v3989, %v4277
        %v4279 = vpop.f32.mrb[0].mxu0
        %v4280 = vpop.f32.mrb[0].mxu0
        %v4281 = vadd.f32 %v3992, %v4280
        %v4282 = vpop.f32.mrb[0].mxu0
        %4283 = vmatprep.mubr.bf16.mxu0 %v1162
        %4284 = vmatmul.mubr.bf16.gmra.mrb[0].mxu0 %v1161
        %v4285 = vpop.f32.mrb[0].mxu0
        %v4286 = vadd.f32 %v3997, %v4285
        %v4287 = vpop.f32.mrb[0].mxu0
        %v4288 = vpop.f32.mrb[0].mxu0
        %v4289 = vadd.f32 %v4000, %v4288
        %v4290 = vpop.f32.mrb[0].mxu0
        %4291 = vmatprep.mubr.bf16.mxu0 %v1178
        %4292 = vmatmul.mubr.bf16.gmra.mrb[0].mxu0 %v1177
        %v4293 = vpop.f32.mrb[0].mxu0
        %v4294 = vadd.f32 %v4005, %v4293
        %v4295 = vpop.f32.mrb[0].mxu0
        %v4296 = vpop.f32.mrb[0].mxu0
        %v4297 = vadd.f32 %v4008, %v4296
        %v4298 = vpop.f32.mrb[0].mxu0
        %4299 = vmatprep.mubr.bf16.mxu0 %v1194
        %4300 = vmatmul.mubr.bf16.gmra.mrb[0].mxu0 %v1193
        %v4301 = vpop.f32.mrb[0].mxu0
        %v4302 = vadd.f32 %v4013, %v4301
        %v4303 = vpop.f32.mrb[0].mxu0
        %v4304 = vpop.f32.mrb[0].mxu0
        %v4305 = vadd.f32 %v4016, %v4304
        %v4306 = vpop.f32.mrb[0].mxu0
        %4307 = vmatprep.mubr.bf16.mxu0 %v1210
        %4308 = vmatmul.mubr.bf16.gmra.mrb[0].mxu0 %v1209
        %v4309 = vpop.f32.mrb[0].mxu0
        %v4310 = vadd.f32 %v4021, %v4309
        %v4311 = vpop.f32.mrb[0].mxu0
        %v4312 = vpop.f32.mrb[0].mxu0
        %v4313 = vadd.f32 %v4024, %v4312
        %v4314 = vpop.f32.mrb[0].mxu0
        %4315 = vmatprep.mubr.bf16.mxu0 %v1226
        %4316 = vmatmul.mubr.bf16.gmra.mrb[0].mxu0 %v1225
        %v4317 = vpop.f32.mrb[0].mxu0
        %v4318 = vadd.f32 %v4029, %v4317
        %v4319 = vpop.f32.mrb[0].mxu0
        %v4320 = vpop.f32.mrb[0].mxu0
        %v4321 = vadd.f32 %v4032, %v4320
        %v4322 = vpop.f32.mrb[0].mxu0
        %4323 = vmatprep.mubr.bf16.mxu0 %v1242
        %4324 = vmatmul.mubr.bf16.gmra.mrb[0].mxu0 %v1241
        %v4325 = vpop.f32.mrb[0].mxu0
        %v4326 = vadd.f32 %v4037, %v4325
        %v4327 = vpop.f32.mrb[0].mxu0
        %v4328 = vpop.f32.mrb[0].mxu0
        %v4329 = vadd.f32 %v4040, %v4328
        %v4330 = vpop.f32.mrb[0].mxu0
        %4331 = vmatprep.mubr.bf16.mxu0 %v1258
        %4332 = vmatmul.mubr.bf16.gmra.mrb[0].mxu0 %v1257
        %v4333 = vpop.f32.mrb[0].mxu0
        %v4334 = vadd.f32 %v4045, %v4333
        %v4335 = vpop.f32.mrb[0].mxu0
        %v4336 = vpop.f32.mrb[0].mxu0
        %v4337 = vadd.f32 %v4048, %v4336
        %v4338 = vpop.f32.mrb[0].mxu0
        %4339 = vmatprep.mubr.bf16.mxu0 %v1274
        %4340 = vmatmul.mubr.bf16.gmra.mrb[0].mxu0 %v1273
        %v4341 = vpop.f32.mrb[0].mxu0
        %v4342 = vadd.f32 %v4053, %v4341
        %v4343 = vpop.f32.mrb[0].mxu0
        %v4344 = vpop.f32.mrb[0].mxu0
        %v4345 = vadd.f32 %v4056, %v4344
        %v4346 = vpop.f32.mrb[0].mxu0
        %4347 = vmatprep.mubr.bf16.mxu0 %v1290
        %4348 = vmatmul.mubr.bf16.gmra.mrb[0].mxu0 %v1289
        %v4349 = vpop.f32.mrb[0].mxu0
        %v4350 = vadd.f32 %v4061, %v4349
        %v4351 = vpop.f32.mrb[0].mxu0
        %v4352 = vpop.f32.mrb[0].mxu0
        %v4353 = vadd.f32 %v4064, %v4352
        %v4354 = vpop.f32.mrb[0].mxu0
        %4355 = vmatprep.mubr.bf16.mxu0 %v1306
        %4356 = vmatmul.mubr.bf16.gmra.mrb[0].mxu0 %v1305
        %v4357 = vpop.f32.mrb[0].mxu0
        %v4358 = vadd.f32 %v4069, %v4357
        %v4359 = vpop.f32.mrb[0].mxu0
        %v4360 = vpop.f32.mrb[0].mxu0
        %v4361 = vadd.f32 %v4072, %v4360
        %v4362 = vpop.f32.mrb[0].mxu0
        %4363 = vmatprep.mubr.bf16.mxu0 %v1322
        %4364 = vmatmul.mubr.bf16.gmra.mrb[0].mxu0 %v1321
        %v4365 = vpop.f32.mrb[0].mxu0
        %v4366 = vadd.f32 %v4077, %v4365
        %v4367 = vpop.f32.mrb[0].mxu0
        %v4368 = vpop.f32.mrb[0].mxu0
        %v4369 = vadd.f32 %v4080, %v4368
        %v4370 = vpop.f32.mrb[0].mxu0
        %4371 = vdwg.mxu0
        %4372 = vmatprep.subr.bf16.mxu0 0
        %4373 = vmatpush1.bf16.msra.mxu0 %v2205
        %4374 = vmatprep.subr.bf16.mxu0 0
        %4375 = vmatpush1.bf16.msra.mxu0 %v2206
        %4376 = vmatprep.subr.bf16.mxu0 0
        %4377 = vmatpush1.bf16.msra.mxu0 %v2207
        %4378 = vmatprep.subr.bf16.mxu0 0
        %4379 = vmatpush1.bf16.msra.mxu0 %v2208
        %4380 = vmatprep.subr.bf16.mxu0 0
        %4381 = vmatpush1.bf16.msra.mxu0 %v2209
        %4382 = vmatprep.subr.bf16.mxu0 0
        %4383 = vmatpush1.bf16.msra.mxu0 %v2210
        %4384 = vmatprep.subr.bf16.mxu0 0
        %4385 = vmatpush1.bf16.msra.mxu0 %v2211
        %4386 = vmatprep.subr.bf16.mxu0 0
        %4387 = vmatpush1.bf16.msra.mxu0 %v2212
        %4388 = vmatprep.subr.bf16.mxu0 0
        %4389 = vmatpush1.bf16.msra.mxu0 %v2213
        %4390 = vmatprep.subr.bf16.mxu0 0
        %4391 = vmatpush1.bf16.msra.mxu0 %v2214
        %4392 = vmatprep.subr.bf16.mxu0 0
        %4393 = vmatpush1.bf16.msra.mxu0 %v2215
        %4394 = vmatprep.subr.bf16.mxu0 0
        %4395 = vmatpush1.bf16.msra.mxu0 %v2216
        %4396 = vmatprep.subr.bf16.mxu0 0
        %4397 = vmatpush1.bf16.msra.mxu0 %v2217
        %4398 = vmatprep.subr.bf16.mxu0 0
        %4399 = vmatpush1.bf16.msra.mxu0 %v2218
        %4400 = vmatprep.subr.bf16.mxu0 0
        %4401 = vmatpush1.bf16.msra.mxu0 %v2219
        %4402 = vmatprep.subr.bf16.mxu0 0
        %4403 = vmatpush1.bf16.msra.mxu0 %v2220
        %4404 = vmatprep.mubr.bf16.mxu0 %v828
        %4405 = vmatmul.mubr.bf16.gmra.mrb[0].mxu0 %v827
        %v4406 = vpop.f32.mrb[0].mxu0
        %v4407 = vadd.f32 %v4118, %v4406
        %v4408 = vpop.f32.mrb[0].mxu0
        %v4409 = vpop.f32.mrb[0].mxu0
        %v4410 = vadd.f32 %v4121, %v4409
        %v4411 = vpop.f32.mrb[0].mxu0
        %4412 = vmatprep.mubr.bf16.mxu0 %v844
        %4413 = vmatmul.mubr.bf16.gmra.mrb[0].mxu0 %v843
        %v4414 = vpop.f32.mrb[0].mxu0
        %v4415 = vadd.f32 %v4126, %v4414
        %v4416 = vpop.f32.mrb[0].mxu0
        %v4417 = vpop.f32.mrb[0].mxu0
        %v4418 = vadd.f32 %v4129, %v4417
        %v4419 = vpop.f32.mrb[0].mxu0
        %4420 = vmatprep.mubr.bf16.mxu0 %v860
        %4421 = vmatmul.mubr.bf16.gmra.mrb[0].mxu0 %v859
        %v4422 = vpop.f32.mrb[0].mxu0
        %v4423 = vadd.f32 %v4134, %v4422
        %v4424 = vpop.f32.mrb[0].mxu0
        %v4425 = vpop.f32.mrb[0].mxu0
        %v4426 = vadd.f32 %v4137, %v4425
        %v4427 = vpop.f32.mrb[0].mxu0
        %4428 = vmatprep.mubr.bf16.mxu0 %v876
        %4429 = vmatmul.mubr.bf16.gmra.mrb[0].mxu0 %v875
        %v4430 = vpop.f32.mrb[0].mxu0
        %v4431 = vadd.f32 %v4142, %v4430
        %v4432 = vpop.f32.mrb[0].mxu0
        %v4433 = vpop.f32.mrb[0].mxu0
        %v4434 = vadd.f32 %v4145, %v4433
        %v4435 = vpop.f32.mrb[0].mxu0
        %4436 = vmatprep.mubr.bf16.mxu0 %v892
        %4437 = vmatmul.mubr.bf16.gmra.mrb[0].mxu0 %v891
        %v4438 = vpop.f32.mrb[0].mxu0
        %v4439 = vadd.f32 %v4150, %v4438
        %v4440 = vpop.f32.mrb[0].mxu0
        %v4441 = vpop.f32.mrb[0].mxu0
        %v4442 = vadd.f32 %v4153, %v4441
        %v4443 = vpop.f32.mrb[0].mxu0
        %4444 = vmatprep.mubr.bf16.mxu0 %v908
        %4445 = vmatmul.mubr.bf16.gmra.mrb[0].mxu0 %v907
        %v4446 = vpop.f32.mrb[0].mxu0
        %v4447 = vadd.f32 %v4158, %v4446
        %v4448 = vpop.f32.mrb[0].mxu0
        %v4449 = vpop.f32.mrb[0].mxu0
        %v4450 = vadd.f32 %v4161, %v4449
        %v4451 = vpop.f32.mrb[0].mxu0
        %4452 = vmatprep.mubr.bf16.mxu0 %v924
        %4453 = vmatmul.mubr.bf16.gmra.mrb[0].mxu0 %v923
        %v4454 = vpop.f32.mrb[0].mxu0
        %v4455 = vadd.f32 %v4166, %v4454
        %v4456 = vpop.f32.mrb[0].mxu0
        %v4457 = vpop.f32.mrb[0].mxu0
        %v4458 = vadd.f32 %v4169, %v4457
        %v4459 = vpop.f32.mrb[0].mxu0
        %4460 = vmatprep.mubr.bf16.mxu0 %v940
        %4461 = vmatmul.mubr.bf16.gmra.mrb[0].mxu0 %v939
        %v4462 = vpop.f32.mrb[0].mxu0
        %v4463 = vadd.f32 %v4174, %v4462
        %v4464 = vpop.f32.mrb[0].mxu0
        %v4465 = vpop.f32.mrb[0].mxu0
        %v4466 = vadd.f32 %v4177, %v4465
        %v4467 = vpop.f32.mrb[0].mxu0
        %4468 = vmatprep.mubr.bf16.mxu0 %v956
        %4469 = vmatmul.mubr.bf16.gmra.mrb[0].mxu0 %v955
        %v4470 = vpop.f32.mrb[0].mxu0
        %v4471 = vadd.f32 %v4182, %v4470
        %v4472 = vpop.f32.mrb[0].mxu0
        %v4473 = vpop.f32.mrb[0].mxu0
        %v4474 = vadd.f32 %v4185, %v4473
        %v4475 = vpop.f32.mrb[0].mxu0
        %4476 = vmatprep.mubr.bf16.mxu0 %v972
        %4477 = vmatmul.mubr.bf16.gmra.mrb[0].mxu0 %v971
        %v4478 = vpop.f32.mrb[0].mxu0
        %v4479 = vadd.f32 %v4190, %v4478
        %v4480 = vpop.f32.mrb[0].mxu0
        %v4481 = vpop.f32.mrb[0].mxu0
        %v4482 = vadd.f32 %v4193, %v4481
        %v4483 = vpop.f32.mrb[0].mxu0
        %4484 = vmatprep.mubr.bf16.mxu0 %v988
        %4485 = vmatmul.mubr.bf16.gmra.mrb[0].mxu0 %v987
        %v4486 = vpop.f32.mrb[0].mxu0
        %v4487 = vadd.f32 %v4198, %v4486
        %v4488 = vpop.f32.mrb[0].mxu0
        %v4489 = vpop.f32.mrb[0].mxu0
        %v4490 = vadd.f32 %v4201, %v4489
        %v4491 = vpop.f32.mrb[0].mxu0
        %4492 = vmatprep.mubr.bf16.mxu0 %v1004
        %4493 = vmatmul.mubr.bf16.gmra.mrb[0].mxu0 %v1003
        %v4494 = vpop.f32.mrb[0].mxu0
        %v4495 = vadd.f32 %v4206, %v4494
        %v4496 = vpop.f32.mrb[0].mxu0
        %v4497 = vpop.f32.mrb[0].mxu0
        %v4498 = vadd.f32 %v4209, %v4497
        %v4499 = vpop.f32.mrb[0].mxu0
        %4500 = vmatprep.mubr.bf16.mxu0 %v1020
        %4501 = vmatmul.mubr.bf16.gmra.mrb[0].mxu0 %v1019
        %v4502 = vpop.f32.mrb[0].mxu0
        %v4503 = vadd.f32 %v4214, %v4502
        %v4504 = vpop.f32.mrb[0].mxu0
        %v4505 = vpop.f32.mrb[0].mxu0
        %v4506 = vadd.f32 %v4217, %v4505
        %v4507 = vpop.f32.mrb[0].mxu0
        %4508 = vmatprep.mubr.bf16.mxu0 %v1036
        %4509 = vmatmul.mubr.bf16.gmra.mrb[0].mxu0 %v1035
        %v4510 = vpop.f32.mrb[0].mxu0
        %v4511 = vadd.f32 %v4222, %v4510
        %v4512 = vpop.f32.mrb[0].mxu0
        %v4513 = vpop.f32.mrb[0].mxu0
        %v4514 = vadd.f32 %v4225, %v4513
        %v4515 = vpop.f32.mrb[0].mxu0
        %4516 = vmatprep.mubr.bf16.mxu0 %v1052
        %4517 = vmatmul.mubr.bf16.gmra.mrb[0].mxu0 %v1051
        %v4518 = vpop.f32.mrb[0].mxu0
        %v4519 = vadd.f32 %v4230, %v4518
        %v4520 = vpop.f32.mrb[0].mxu0
        %v4521 = vpop.f32.mrb[0].mxu0
        %v4522 = vadd.f32 %v4233, %v4521
        %v4523 = vpop.f32.mrb[0].mxu0
        %4524 = vmatprep.mubr.bf16.mxu0 %v1068
        %4525 = vmatmul.mubr.bf16.gmra.mrb[0].mxu0 %v1067
        %v4526 = vpop.f32.mrb[0].mxu0
        %v4527 = vadd.f32 %v4238, %v4526
        %v4528 = vpop.f32.mrb[0].mxu0
        %v4529 = vpop.f32.mrb[0].mxu0
        %v4530 = vadd.f32 %v4241, %v4529
        %v4531 = vpop.f32.mrb[0].mxu0
        %4532 = vmatprep.mubr.bf16.mxu0 %v1084
        %4533 = vmatmul.mubr.bf16.gmra.mrb[0].mxu0 %v1083
        %v4534 = vpop.f32.mrb[0].mxu0
        %v4535 = vadd.f32 %v4246, %v4534
        %v4536 = vpop.f32.mrb[0].mxu0
        %v4537 = vpop.f32.mrb[0].mxu0
        %v4538 = vadd.f32 %v4249, %v4537
        %v4539 = vpop.f32.mrb[0].mxu0
        %4540 = vmatprep.mubr.bf16.mxu0 %v1100
        %4541 = vmatmul.mubr.bf16.gmra.mrb[0].mxu0 %v1099
        %v4542 = vpop.f32.mrb[0].mxu0
        %v4543 = vadd.f32 %v4254, %v4542
        %v4544 = vpop.f32.mrb[0].mxu0
        %v4545 = vpop.f32.mrb[0].mxu0
        %v4546 = vadd.f32 %v4257, %v4545
        %v4547 = vpop.f32.mrb[0].mxu0
        %4548 = vmatprep.mubr.bf16.mxu0 %v1116
        %4549 = vmatmul.mubr.bf16.gmra.mrb[0].mxu0 %v1115
        %v4550 = vpop.f32.mrb[0].mxu0
        %v4551 = vadd.f32 %v4262, %v4550
        %v4552 = vpop.f32.mrb[0].mxu0
        %v4553 = vpop.f32.mrb[0].mxu0
        %v4554 = vadd.f32 %v4265, %v4553
        %v4555 = vpop.f32.mrb[0].mxu0
        %4556 = vmatprep.mubr.bf16.mxu0 %v1132
        %4557 = vmatmul.mubr.bf16.gmra.mrb[0].mxu0 %v1131
        %v4558 = vpop.f32.mrb[0].mxu0
        %v4559 = vadd.f32 %v4270, %v4558
        %v4560 = vpop.f32.mrb[0].mxu0
        %v4561 = vpop.f32.mrb[0].mxu0
        %v4562 = vadd.f32 %v4273, %v4561
        %v4563 = vpop.f32.mrb[0].mxu0
        %4564 = vmatprep.mubr.bf16.mxu0 %v1148
        %4565 = vmatmul.mubr.bf16.gmra.mrb[0].mxu0 %v1147
        %v4566 = vpop.f32.mrb[0].mxu0
        %v4567 = vadd.f32 %v4278, %v4566
        %v4568 = vpop.f32.mrb[0].mxu0
        %v4569 = vpop.f32.mrb[0].mxu0
        %v4570 = vadd.f32 %v4281, %v4569
        %v4571 = vpop.f32.mrb[0].mxu0
        %4572 = vmatprep.mubr.bf16.mxu0 %v1164
        %4573 = vmatmul.mubr.bf16.gmra.mrb[0].mxu0 %v1163
        %v4574 = vpop.f32.mrb[0].mxu0
        %v4575 = vadd.f32 %v4286, %v4574
        %v4576 = vpop.f32.mrb[0].mxu0
        %v4577 = vpop.f32.mrb[0].mxu0
        %v4578 = vadd.f32 %v4289, %v4577
        %v4579 = vpop.f32.mrb[0].mxu0
        %4580 = vmatprep.mubr.bf16.mxu0 %v1180
        %4581 = vmatmul.mubr.bf16.gmra.mrb[0].mxu0 %v1179
        %v4582 = vpop.f32.mrb[0].mxu0
        %v4583 = vadd.f32 %v4294, %v4582
        %v4584 = vpop.f32.mrb[0].mxu0
        %v4585 = vpop.f32.mrb[0].mxu0
        %v4586 = vadd.f32 %v4297, %v4585
        %v4587 = vpop.f32.mrb[0].mxu0
        %4588 = vmatprep.mubr.bf16.mxu0 %v1196
        %4589 = vmatmul.mubr.bf16.gmra.mrb[0].mxu0 %v1195
        %v4590 = vpop.f32.mrb[0].mxu0
        %v4591 = vadd.f32 %v4302, %v4590
        %v4592 = vpop.f32.mrb[0].mxu0
        %v4593 = vpop.f32.mrb[0].mxu0
        %v4594 = vadd.f32 %v4305, %v4593
        %v4595 = vpop.f32.mrb[0].mxu0
        %4596 = vmatprep.mubr.bf16.mxu0 %v1212
        %4597 = vmatmul.mubr.bf16.gmra.mrb[0].mxu0 %v1211
        %v4598 = vpop.f32.mrb[0].mxu0
        %v4599 = vadd.f32 %v4310, %v4598
        %v4600 = vpop.f32.mrb[0].mxu0
        %v4601 = vpop.f32.mrb[0].mxu0
        %v4602 = vadd.f32 %v4313, %v4601
        %v4603 = vpop.f32.mrb[0].mxu0
        %4604 = vmatprep.mubr.bf16.mxu0 %v1228
        %4605 = vmatmul.mubr.bf16.gmra.mrb[0].mxu0 %v1227
        %v4606 = vpop.f32.mrb[0].mxu0
        %v4607 = vadd.f32 %v4318, %v4606
        %v4608 = vpop.f32.mrb[0].mxu0
        %v4609 = vpop.f32.mrb[0].mxu0
        %v4610 = vadd.f32 %v4321, %v4609
        %v4611 = vpop.f32.mrb[0].mxu0
        %4612 = vmatprep.mubr.bf16.mxu0 %v1244
        %4613 = vmatmul.mubr.bf16.gmra.mrb[0].mxu0 %v1243
        %v4614 = vpop.f32.mrb[0].mxu0
        %v4615 = vadd.f32 %v4326, %v4614
        %v4616 = vpop.f32.mrb[0].mxu0
        %v4617 = vpop.f32.mrb[0].mxu0
        %v4618 = vadd.f32 %v4329, %v4617
        %v4619 = vpop.f32.mrb[0].mxu0
        %4620 = vmatprep.mubr.bf16.mxu0 %v1260
        %4621 = vmatmul.mubr.bf16.gmra.mrb[0].mxu0 %v1259
        %v4622 = vpop.f32.mrb[0].mxu0
        %v4623 = vadd.f32 %v4334, %v4622
        %v4624 = vpop.f32.mrb[0].mxu0
        %v4625 = vpop.f32.mrb[0].mxu0
        %v4626 = vadd.f32 %v4337, %v4625
        %v4627 = vpop.f32.mrb[0].mxu0
        %4628 = vmatprep.mubr.bf16.mxu0 %v1276
        %4629 = vmatmul.mubr.bf16.gmra.mrb[0].mxu0 %v1275
        %v4630 = vpop.f32.mrb[0].mxu0
        %v4631 = vadd.f32 %v4342, %v4630
        %v4632 = vpop.f32.mrb[0].mxu0
        %v4633 = vpop.f32.mrb[0].mxu0
        %v4634 = vadd.f32 %v4345, %v4633
        %v4635 = vpop.f32.mrb[0].mxu0
        %4636 = vmatprep.mubr.bf16.mxu0 %v1292
        %4637 = vmatmul.mubr.bf16.gmra.mrb[0].mxu0 %v1291
        %v4638 = vpop.f32.mrb[0].mxu0
        %v4639 = vadd.f32 %v4350, %v4638
        %v4640 = vpop.f32.mrb[0].mxu0
        %v4641 = vpop.f32.mrb[0].mxu0
        %v4642 = vadd.f32 %v4353, %v4641
        %v4643 = vpop.f32.mrb[0].mxu0
        %4644 = vmatprep.mubr.bf16.mxu0 %v1308
        %4645 = vmatmul.mubr.bf16.gmra.mrb[0].mxu0 %v1307
        %v4646 = vpop.f32.mrb[0].mxu0
        %v4647 = vadd.f32 %v4358, %v4646
        %v4648 = vpop.f32.mrb[0].mxu0
        %v4649 = vpop.f32.mrb[0].mxu0
        %v4650 = vadd.f32 %v4361, %v4649
        %v4651 = vpop.f32.mrb[0].mxu0
        %4652 = vmatprep.mubr.bf16.mxu0 %v1324
        %4653 = vmatmul.mubr.bf16.gmra.mrb[0].mxu0 %v1323
        %v4654 = vpop.f32.mrb[0].mxu0
        %v4655 = vadd.f32 %v4366, %v4654
        %v4656 = vpop.f32.mrb[0].mxu0
        %v4657 = vpop.f32.mrb[0].mxu0
        %v4658 = vadd.f32 %v4369, %v4657
        %v4659 = vpop.f32.mrb[0].mxu0
        %4660 = vdwg.mxu0
        %v4661 = vadd.f32 %v493, %v4407
        %v4662 = vadd.f32 %v494, %v4410
        %v4663 = vadd.f32 %v495, %v4415
        %v4664 = vadd.f32 %v496, %v4418
        %v4665 = vadd.f32 %v497, %v4423
        %v4666 = vadd.f32 %v498, %v4426
        %v4667 = vadd.f32 %v499, %v4431
        %v4668 = vadd.f32 %v500, %v4434
        %v4669 = vadd.f32 %v501, %v4439
        %v4670 = vadd.f32 %v502, %v4442
        %v4671 = vadd.f32 %v503, %v4447
        %v4672 = vadd.f32 %v504, %v4450
        %v4673 = vadd.f32 %v505, %v4455
        %v4674 = vadd.f32 %v506, %v4458
        %v4675 = vadd.f32 %v507, %v4463
        %v4676 = vadd.f32 %v508, %v4466
        %v4677 = vadd.f32 %v509, %v4471
        %v4678 = vadd.f32 %v510, %v4474
        %v4679 = vadd.f32 %v511, %v4479
        %v4680 = vadd.f32 %v512, %v4482
        %v4681 = vadd.f32 %v513, %v4487
        %v4682 = vadd.f32 %v514, %v4490
        %v4683 = vadd.f32 %v515, %v4495
        %v4684 = vadd.f32 %v516, %v4498
        %v4685 = vadd.f32 %v517, %v4503
        %v4686 = vadd.f32 %v518, %v4506
        %v4687 = vadd.f32 %v519, %v4511
        %v4688 = vadd.f32 %v520, %v4514
        %v4689 = vadd.f32 %v521, %v4519
        %v4690 = vadd.f32 %v522, %v4522
        %v4691 = vadd.f32 %v523, %v4527
        %v4692 = vadd.f32 %v524, %v4530
        %v4693 = vadd.f32 %v525, %v4535
        %v4694 = vadd.f32 %v526, %v4538
        %v4695 = vadd.f32 %v527, %v4543
        %v4696 = vadd.f32 %v528, %v4546
        %v4697 = vadd.f32 %v529, %v4551
        %v4698 = vadd.f32 %v530, %v4554
        %v4699 = vadd.f32 %v531, %v4559
        %v4700 = vadd.f32 %v532, %v4562
        %v4701 = vadd.f32 %v533, %v4567
        %v4702 = vadd.f32 %v534, %v4570
        %v4703 = vadd.f32 %v535, %v4575
        %v4704 = vadd.f32 %v536, %v4578
        %v4705 = vadd.f32 %v537, %v4583
        %v4706 = vadd.f32 %v538, %v4586
        %v4707 = vadd.f32 %v539, %v4591
        %v4708 = vadd.f32 %v540, %v4594
        %v4709 = vadd.f32 %v541, %v4599
        %v4710 = vadd.f32 %v542, %v4602
        %v4711 = vadd.f32 %v543, %v4607
        %v4712 = vadd.f32 %v544, %v4610
        %v4713 = vadd.f32 %v545, %v4615
        %v4714 = vadd.f32 %v546, %v4618
        %v4715 = vadd.f32 %v547, %v4623
        %v4716 = vadd.f32 %v548, %v4626
        %v4717 = vadd.f32 %v549, %v4631
        %v4718 = vadd.f32 %v550, %v4634
        %v4719 = vadd.f32 %v551, %v4639
        %v4720 = vadd.f32 %v552, %v4642
        %v4721 = vadd.f32 %v553, %v4647
        %v4722 = vadd.f32 %v554, %v4650
        %v4723 = vadd.f32 %v555, %v4655
        %v4724 = vadd.f32 %v556, %v4658
        %vm4725 = vcmask 64512
        %4726 = vst.msk [vmem:[#allocation2] sm:$0xff] %vm4725, %v4661
        %4727 = vst.msk [vmem:[#allocation2 + $0x8] sm:$0xff] %vm4725, %v4662
        %4728 = vst.msk [vmem:[#allocation2 + $0x10] sm:$0xff] %vm4725, %v4663
        %4729 = vst.msk [vmem:[#allocation2 + $0x18] sm:$0xff] %vm4725, %v4664
        %4730 = vst.msk [vmem:[#allocation2 + $0x20] sm:$0xff] %vm4725, %v4665
        %4731 = vst.msk [vmem:[#allocation2 + $0x28] sm:$0xff] %vm4725, %v4666
        %4732 = vst.msk [vmem:[#allocation2 + $0x30] sm:$0xff] %vm4725, %v4667
        %4733 = vst.msk [vmem:[#allocation2 + $0x38] sm:$0xff] %vm4725, %v4668
        %4734 = vst.msk [vmem:[#allocation2 + $0x40] sm:$0xff] %vm4725, %v4669
        %4735 = vst.msk [vmem:[#allocation2 + $0x48] sm:$0xff] %vm4725, %v4670
        %4736 = vst.msk [vmem:[#allocation2 + $0x50] sm:$0xff] %vm4725, %v4671
        %4737 = vst.msk [vmem:[#allocation2 + $0x58] sm:$0xff] %vm4725, %v4672
        %4738 = vst.msk [vmem:[#allocation2 + $0x60] sm:$0xff] %vm4725, %v4673
        %4739 = vst.msk [vmem:[#allocation2 + $0x68] sm:$0xff] %vm4725, %v4674
        %4740 = vst.msk [vmem:[#allocation2 + $0x70] sm:$0xff] %vm4725, %v4675
        %4741 = vst.msk [vmem:[#allocation2 + $0x78] sm:$0xff] %vm4725, %v4676
        %4742 = vst.msk [vmem:[#allocation2 + $0x80] sm:$0xff] %vm4725, %v4677
        %4743 = vst.msk [vmem:[#allocation2 + $0x88] sm:$0xff] %vm4725, %v4678
        %4744 = vst.msk [vmem:[#allocation2 + $0x90] sm:$0xff] %vm4725, %v4679
        %4745 = vst.msk [vmem:[#allocation2 + $0x98] sm:$0xff] %vm4725, %v4680
        %4746 = vst.msk [vmem:[#allocation2 + $0xa0] sm:$0xff] %vm4725, %v4681
        %4747 = vst.msk [vmem:[#allocation2 + $0xa8] sm:$0xff] %vm4725, %v4682
        %4748 = vst.msk [vmem:[#allocation2 + $0xb0] sm:$0xff] %vm4725, %v4683
        %4749 = vst.msk [vmem:[#allocation2 + $0xb8] sm:$0xff] %vm4725, %v4684
        %4750 = vst.msk [vmem:[#allocation2 + $0xc0] sm:$0xff] %vm4725, %v4685
        %4751 = vst.msk [vmem:[#allocation2 + $0xc8] sm:$0xff] %vm4725, %v4686
        %4752 = vst.msk [vmem:[#allocation2 + $0xd0] sm:$0xff] %vm4725, %v4687
        %4753 = vst.msk [vmem:[#allocation2 + $0xd8] sm:$0xff] %vm4725, %v4688
        %4754 = vst.msk [vmem:[#allocation2 + $0xe0] sm:$0xff] %vm4725, %v4689
        %4755 = vst.msk [vmem:[#allocation2 + $0xe8] sm:$0xff] %vm4725, %v4690
        %4756 = vst.msk [vmem:[#allocation2 + $0xf0] sm:$0xff] %vm4725, %v4691
        %4757 = vst.msk [vmem:[#allocation2 + $0xf8] sm:$0xff] %vm4725, %v4692
        %4758 = vst.msk [vmem:[#allocation2 + $0x100] sm:$0xff] %vm4725, %v4693
        %4759 = vst.msk [vmem:[#allocation2 + $0x108] sm:$0xff] %vm4725, %v4694
        %4760 = vst.msk [vmem:[#allocation2 + $0x110] sm:$0xff] %vm4725, %v4695
        %4761 = vst.msk [vmem:[#allocation2 + $0x118] sm:$0xff] %vm4725, %v4696
        %4762 = vst.msk [vmem:[#allocation2 + $0x120] sm:$0xff] %vm4725, %v4697
        %4763 = vst.msk [vmem:[#allocation2 + $0x128] sm:$0xff] %vm4725, %v4698
        %4764 = vst.msk [vmem:[#allocation2 + $0x130] sm:$0xff] %vm4725, %v4699
        %4765 = vst.msk [vmem:[#allocation2 + $0x138] sm:$0xff] %vm4725, %v4700
        %4766 = vst.msk [vmem:[#allocation2 + $0x140] sm:$0xff] %vm4725, %v4701
        %4767 = vst.msk [vmem:[#allocation2 + $0x148] sm:$0xff] %vm4725, %v4702
        %4768 = vst.msk [vmem:[#allocation2 + $0x150] sm:$0xff] %vm4725, %v4703
        %4769 = vst.msk [vmem:[#allocation2 + $0x158] sm:$0xff] %vm4725, %v4704
        %4770 = vst.msk [vmem:[#allocation2 + $0x160] sm:$0xff] %vm4725, %v4705
        %4771 = vst.msk [vmem:[#allocation2 + $0x168] sm:$0xff] %vm4725, %v4706
        %4772 = vst.msk [vmem:[#allocation2 + $0x170] sm:$0xff] %vm4725, %v4707
        %4773 = vst.msk [vmem:[#allocation2 + $0x178] sm:$0xff] %vm4725, %v4708
        %4774 = vst.msk [vmem:[#allocation2 + $0x180] sm:$0xff] %vm4725, %v4709
        %4775 = vst.msk [vmem:[#allocation2 + $0x188] sm:$0xff] %vm4725, %v4710
        %4776 = vst.msk [vmem:[#allocation2 + $0x190] sm:$0xff] %vm4725, %v4711
        %4777 = vst.msk [vmem:[#allocation2 + $0x198] sm:$0xff] %vm4725, %v4712
        %4778 = vst.msk [vmem:[#allocation2 + $0x1a0] sm:$0xff] %vm4725, %v4713
        %4779 = vst.msk [vmem:[#allocation2 + $0x1a8] sm:$0xff] %vm4725, %v4714
        %4780 = vst.msk [vmem:[#allocation2 + $0x1b0] sm:$0xff] %vm4725, %v4715
        %4781 = vst.msk [vmem:[#allocation2 + $0x1b8] sm:$0xff] %vm4725, %v4716
        %4782 = vst.msk [vmem:[#allocation2 + $0x1c0] sm:$0xff] %vm4725, %v4717
        %4783 = vst.msk [vmem:[#allocation2 + $0x1c8] sm:$0xff] %vm4725, %v4718
        %4784 = vst.msk [vmem:[#allocation2 + $0x1d0] sm:$0xff] %vm4725, %v4719
        %4785 = vst.msk [vmem:[#allocation2 + $0x1d8] sm:$0xff] %vm4725, %v4720
        %4786 = vst.msk [vmem:[#allocation2 + $0x1e0] sm:$0xff] %vm4725, %v4721
        %4787 = vst.msk [vmem:[#allocation2 + $0x1e8] sm:$0xff] %vm4725, %v4722
        %4788 = vst.msk [vmem:[#allocation2 + $0x1f0] sm:$0xff] %vm4725, %v4723
        %4789 = vst.msk [vmem:[#allocation2 + $0x1f8] sm:$0xff] %vm4725, %v4724
        // Predicated region
        $region69: #{tpu_custom_call.1} parent=47 // pred_check
          %p4790 = pneg %p424
        $region70: #{tpu_custom_call.1} parent=47 // pred_check_branch
          %4792 = sbr.rel (%p4790) target = $region72
        $region71: #{tpu_custom_call.1} parent=47 // pred_region
          %v4793 = vld [vmem:[#allocation2] sm:$0xff]
          %v4794 = vld [vmem:[#allocation2 + $0x8] sm:$0xff]
          %v4795 = vld [vmem:[#allocation2 + $0x10] sm:$0xff]
          %v4796 = vld [vmem:[#allocation2 + $0x18] sm:$0xff]
          %v4797 = vld [vmem:[#allocation2 + $0x20] sm:$0xff]
          %v4798 = vld [vmem:[#allocation2 + $0x28] sm:$0xff]
          %v4799 = vld [vmem:[#allocation2 + $0x30] sm:$0xff]
          %v4800 = vld [vmem:[#allocation2 + $0x38] sm:$0xff]
          %v4801 = vld [vmem:[#allocation2 + $0x40] sm:$0xff]
          %v4802 = vld [vmem:[#allocation2 + $0x48] sm:$0xff]
          %v4803 = vld [vmem:[#allocation2 + $0x50] sm:$0xff]
          %v4804 = vld [vmem:[#allocation2 + $0x58] sm:$0xff]
          %v4805 = vld [vmem:[#allocation2 + $0x60] sm:$0xff]
          %v4806 = vld [vmem:[#allocation2 + $0x68] sm:$0xff]
          %v4807 = vld [vmem:[#allocation2 + $0x70] sm:$0xff]
          %v4808 = vld [vmem:[#allocation2 + $0x78] sm:$0xff]
          %v4809 = vld [vmem:[#allocation2 + $0x80] sm:$0xff]
          %v4810 = vld [vmem:[#allocation2 + $0x88] sm:$0xff]
          %v4811 = vld [vmem:[#allocation2 + $0x90] sm:$0xff]
          %v4812 = vld [vmem:[#allocation2 + $0x98] sm:$0xff]
          %v4813 = vld [vmem:[#allocation2 + $0xa0] sm:$0xff]
          %v4814 = vld [vmem:[#allocation2 + $0xa8] sm:$0xff]
          %v4815 = vld [vmem:[#allocation2 + $0xb0] sm:$0xff]
          %v4816 = vld [vmem:[#allocation2 + $0xb8] sm:$0xff]
          %v4817 = vld [vmem:[#allocation2 + $0xc0] sm:$0xff]
          %v4818 = vld [vmem:[#allocation2 + $0xc8] sm:$0xff]
          %v4819 = vld [vmem:[#allocation2 + $0xd0] sm:$0xff]
          %v4820 = vld [vmem:[#allocation2 + $0xd8] sm:$0xff]
          %v4821 = vld [vmem:[#allocation2 + $0xe0] sm:$0xff]
          %v4822 = vld [vmem:[#allocation2 + $0xe8] sm:$0xff]
          %v4823 = vld [vmem:[#allocation2 + $0xf0] sm:$0xff]
          %v4824 = vld [vmem:[#allocation2 + $0xf8] sm:$0xff]
          %v4825 = vld [vmem:[#allocation2 + $0x100] sm:$0xff]
          %v4826 = vld [vmem:[#allocation2 + $0x108] sm:$0xff]
          %v4827 = vld [vmem:[#allocation2 + $0x110] sm:$0xff]
          %v4828 = vld [vmem:[#allocation2 + $0x118] sm:$0xff]
          %v4829 = vld [vmem:[#allocation2 + $0x120] sm:$0xff]
          %v4830 = vld [vmem:[#allocation2 + $0x128] sm:$0xff]
          %v4831 = vld [vmem:[#allocation2 + $0x130] sm:$0xff]
          %v4832 = vld [vmem:[#allocation2 + $0x138] sm:$0xff]
          %v4833 = vld [vmem:[#allocation2 + $0x140] sm:$0xff]
          %v4834 = vld [vmem:[#allocation2 + $0x148] sm:$0xff]
          %v4835 = vld [vmem:[#allocation2 + $0x150] sm:$0xff]
          %v4836 = vld [vmem:[#allocation2 + $0x158] sm:$0xff]
          %v4837 = vld [vmem:[#allocation2 + $0x160] sm:$0xff]
          %v4838 = vld [vmem:[#allocation2 + $0x168] sm:$0xff]
          %v4839 = vld [vmem:[#allocation2 + $0x170] sm:$0xff]
          %v4840 = vld [vmem:[#allocation2 + $0x178] sm:$0xff]
          %v4841 = vld [vmem:[#allocation2 + $0x180] sm:$0xff]
          %v4842 = vld [vmem:[#allocation2 + $0x188] sm:$0xff]
          %v4843 = vld [vmem:[#allocation2 + $0x190] sm:$0xff]
          %v4844 = vld [vmem:[#allocation2 + $0x198] sm:$0xff]
          %v4845 = vld [vmem:[#allocation2 + $0x1a0] sm:$0xff]
          %v4846 = vld [vmem:[#allocation2 + $0x1a8] sm:$0xff]
          %v4847 = vld [vmem:[#allocation2 + $0x1b0] sm:$0xff]
          %v4848 = vld [vmem:[#allocation2 + $0x1b8] sm:$0xff]
          %v4849 = vld [vmem:[#allocation2 + $0x1c0] sm:$0xff]
          %v4850 = vld [vmem:[#allocation2 + $0x1c8] sm:$0xff]
          %v4851 = vld [vmem:[#allocation2 + $0x1d0] sm:$0xff]
          %v4852 = vld [vmem:[#allocation2 + $0x1d8] sm:$0xff]
          %v4853 = vld [vmem:[#allocation2 + $0x1e0] sm:$0xff]
          %v4854 = vld [vmem:[#allocation2 + $0x1e8] sm:$0xff]
          %v4855 = vld [vmem:[#allocation2 + $0x1f0] sm:$0xff]
          %v4856 = vld [vmem:[#allocation2 + $0x1f8] sm:$0xff]
          %v4857 = vld [vmem:[%s415] sm:$0xff]
          %v4858 = vld [vmem:[%s415 + $0x8] sm:$0xff]
          %v4859 = vld [vmem:[%s415 + $0x10] sm:$0xff]
          %v4860 = vld [vmem:[%s415 + $0x18] sm:$0xff]
          %v4861 = vld [vmem:[%s415 + $0x20] sm:$0xff]
          %v4862 = vld [vmem:[%s415 + $0x28] sm:$0xff]
          %v4863 = vld [vmem:[%s415 + $0x30] sm:$0xff]
          %v4864 = vld [vmem:[%s415 + $0x38] sm:$0xff]
          %v4865 = vld [vmem:[%s415 + $0x40] sm:$0xff]
          %v4866 = vld [vmem:[%s415 + $0x48] sm:$0xff]
          %v4867 = vld [vmem:[%s415 + $0x50] sm:$0xff]
          %v4868 = vld [vmem:[%s415 + $0x58] sm:$0xff]
          %v4869 = vld [vmem:[%s415 + $0x60] sm:$0xff]
          %v4870 = vld [vmem:[%s415 + $0x68] sm:$0xff]
          %v4871 = vld [vmem:[%s415 + $0x70] sm:$0xff]
          %v4872 = vld [vmem:[%s415 + $0x78] sm:$0xff]
          %v4873 = vld [vmem:[%s415 + $0x80] sm:$0xff]
          %v4874 = vld [vmem:[%s415 + $0x88] sm:$0xff]
          %v4875 = vld [vmem:[%s415 + $0x90] sm:$0xff]
          %v4876 = vld [vmem:[%s415 + $0x98] sm:$0xff]
          %v4877 = vld [vmem:[%s415 + $0xa0] sm:$0xff]
          %v4878 = vld [vmem:[%s415 + $0xa8] sm:$0xff]
          %v4879 = vld [vmem:[%s415 + $0xb0] sm:$0xff]
          %v4880 = vld [vmem:[%s415 + $0xb8] sm:$0xff]
          %v4881 = vld [vmem:[%s415 + $0xc0] sm:$0xff]
          %v4882 = vld [vmem:[%s415 + $0xc8] sm:$0xff]
          %v4883 = vld [vmem:[%s415 + $0xd0] sm:$0xff]
          %v4884 = vld [vmem:[%s415 + $0xd8] sm:$0xff]
          %v4885 = vld [vmem:[%s415 + $0xe0] sm:$0xff]
          %v4886 = vld [vmem:[%s415 + $0xe8] sm:$0xff]
          %v4887 = vld [vmem:[%s415 + $0xf0] sm:$0xff]
          %v4888 = vld [vmem:[%s415 + $0xf8] sm:$0xff]
          %v4889 = vld [vmem:[%s415 + $0x100] sm:$0xff]
          %v4890 = vld [vmem:[%s415 + $0x108] sm:$0xff]
          %v4891 = vld [vmem:[%s415 + $0x110] sm:$0xff]
          %v4892 = vld [vmem:[%s415 + $0x118] sm:$0xff]
          %v4893 = vld [vmem:[%s415 + $0x120] sm:$0xff]
          %v4894 = vld [vmem:[%s415 + $0x128] sm:$0xff]
          %v4895 = vld [vmem:[%s415 + $0x130] sm:$0xff]
          %v4896 = vld [vmem:[%s415 + $0x138] sm:$0xff]
          %v4897 = vld [vmem:[%s415 + $0x140] sm:$0xff]
          %v4898 = vld [vmem:[%s415 + $0x148] sm:$0xff]
          %v4899 = vld [vmem:[%s415 + $0x150] sm:$0xff]
          %v4900 = vld [vmem:[%s415 + $0x158] sm:$0xff]
          %v4901 = vld [vmem:[%s415 + $0x160] sm:$0xff]
          %v4902 = vld [vmem:[%s415 + $0x168] sm:$0xff]
          %v4903 = vld [vmem:[%s415 + $0x170] sm:$0xff]
          %v4904 = vld [vmem:[%s415 + $0x178] sm:$0xff]
          %v4905 = vld [vmem:[%s415 + $0x180] sm:$0xff]
          %v4906 = vld [vmem:[%s415 + $0x188] sm:$0xff]
          %v4907 = vld [vmem:[%s415 + $0x190] sm:$0xff]
          %v4908 = vld [vmem:[%s415 + $0x198] sm:$0xff]
          %v4909 = vld [vmem:[%s415 + $0x1a0] sm:$0xff]
          %v4910 = vld [vmem:[%s415 + $0x1a8] sm:$0xff]
          %v4911 = vld [vmem:[%s415 + $0x1b0] sm:$0xff]
          %v4912 = vld [vmem:[%s415 + $0x1b8] sm:$0xff]
          %v4913 = vld [vmem:[%s415 + $0x1c0] sm:$0xff]
          %v4914 = vld [vmem:[%s415 + $0x1c8] sm:$0xff]
          %v4915 = vld [vmem:[%s415 + $0x1d0] sm:$0xff]
          %v4916 = vld [vmem:[%s415 + $0x1d8] sm:$0xff]
          %v4917 = vld [vmem:[%s415 + $0x1e0] sm:$0xff]
          %v4918 = vld [vmem:[%s415 + $0x1e8] sm:$0xff]
          %v4919 = vld [vmem:[%s415 + $0x1f0] sm:$0xff]
          %v4920 = vld [vmem:[%s415 + $0x1f8] sm:$0xff]
          %4922 = vset.pattern.permute.xlu0 0
          %4923 = vperm.xlu0 %4922, %v4857
          %v4924 = vpop.permute.xlu0 %4923
          %4927 = vset.pattern.permute.xlu0 0
          %4928 = vperm.xlu0 %4927, %v4858
          %v4929 = vpop.permute.xlu0 %4928
          %4932 = vset.pattern.permute.xlu0 0
          %4933 = vperm.xlu0 %4932, %v4859
          %v4934 = vpop.permute.xlu0 %4933
          %4937 = vset.pattern.permute.xlu0 0
          %4938 = vperm.xlu0 %4937, %v4860
          %v4939 = vpop.permute.xlu0 %4938
          %4942 = vset.pattern.permute.xlu0 0
          %4943 = vperm.xlu0 %4942, %v4861
          %v4944 = vpop.permute.xlu0 %4943
          %4947 = vset.pattern.permute.xlu0 0
          %4948 = vperm.xlu0 %4947, %v4862
          %v4949 = vpop.permute.xlu0 %4948
          %4952 = vset.pattern.permute.xlu0 0
          %4953 = vperm.xlu0 %4952, %v4863
          %v4954 = vpop.permute.xlu0 %4953
          %4957 = vset.pattern.permute.xlu0 0
          %4958 = vperm.xlu0 %4957, %v4864
          %v4959 = vpop.permute.xlu0 %4958
          %4962 = vset.pattern.permute.xlu0 0
          %4963 = vperm.xlu0 %4962, %v4865
          %v4964 = vpop.permute.xlu0 %4963
          %4967 = vset.pattern.permute.xlu0 0
          %4968 = vperm.xlu0 %4967, %v4866
          %v4969 = vpop.permute.xlu0 %4968
          %4972 = vset.pattern.permute.xlu0 0
          %4973 = vperm.xlu0 %4972, %v4867
          %v4974 = vpop.permute.xlu0 %4973
          %4977 = vset.pattern.permute.xlu0 0
          %4978 = vperm.xlu0 %4977, %v4868
          %v4979 = vpop.permute.xlu0 %4978
          %4982 = vset.pattern.permute.xlu0 0
          %4983 = vperm.xlu0 %4982, %v4869
          %v4984 = vpop.permute.xlu0 %4983
          %4987 = vset.pattern.permute.xlu0 0
          %4988 = vperm.xlu0 %4987, %v4870
          %v4989 = vpop.permute.xlu0 %4988
          %4992 = vset.pattern.permute.xlu0 0
          %4993 = vperm.xlu0 %4992, %v4871
          %v4994 = vpop.permute.xlu0 %4993
          %4997 = vset.pattern.permute.xlu0 0
          %4998 = vperm.xlu0 %4997, %v4872
          %v4999 = vpop.permute.xlu0 %4998
          %5002 = vset.pattern.permute.xlu0 0
          %5003 = vperm.xlu0 %5002, %v4873
          %v5004 = vpop.permute.xlu0 %5003
          %5007 = vset.pattern.permute.xlu0 0
          %5008 = vperm.xlu0 %5007, %v4874
          %v5009 = vpop.permute.xlu0 %5008
          %5012 = vset.pattern.permute.xlu0 0
          %5013 = vperm.xlu0 %5012, %v4875
          %v5014 = vpop.permute.xlu0 %5013
          %5017 = vset.pattern.permute.xlu0 0
          %5018 = vperm.xlu0 %5017, %v4876
          %v5019 = vpop.permute.xlu0 %5018
          %5022 = vset.pattern.permute.xlu0 0
          %5023 = vperm.xlu0 %5022, %v4877
          %v5024 = vpop.permute.xlu0 %5023
          %5027 = vset.pattern.permute.xlu0 0
          %5028 = vperm.xlu0 %5027, %v4878
          %v5029 = vpop.permute.xlu0 %5028
          %5032 = vset.pattern.permute.xlu0 0
          %5033 = vperm.xlu0 %5032, %v4879
          %v5034 = vpop.permute.xlu0 %5033
          %5037 = vset.pattern.permute.xlu0 0
          %5038 = vperm.xlu0 %5037, %v4880
          %v5039 = vpop.permute.xlu0 %5038
          %5042 = vset.pattern.permute.xlu0 0
          %5043 = vperm.xlu0 %5042, %v4881
          %v5044 = vpop.permute.xlu0 %5043
          %5047 = vset.pattern.permute.xlu0 0
          %5048 = vperm.xlu0 %5047, %v4882
          %v5049 = vpop.permute.xlu0 %5048
          %5052 = vset.pattern.permute.xlu0 0
          %5053 = vperm.xlu0 %5052, %v4883
          %v5054 = vpop.permute.xlu0 %5053
          %5057 = vset.pattern.permute.xlu0 0
          %5058 = vperm.xlu0 %5057, %v4884
          %v5059 = vpop.permute.xlu0 %5058
          %5062 = vset.pattern.permute.xlu0 0
          %5063 = vperm.xlu0 %5062, %v4885
          %v5064 = vpop.permute.xlu0 %5063
          %5067 = vset.pattern.permute.xlu0 0
          %5068 = vperm.xlu0 %5067, %v4886
          %v5069 = vpop.permute.xlu0 %5068
          %5072 = vset.pattern.permute.xlu0 0
          %5073 = vperm.xlu0 %5072, %v4887
          %v5074 = vpop.permute.xlu0 %5073
          %5077 = vset.pattern.permute.xlu0 0
          %5078 = vperm.xlu0 %5077, %v4888
          %v5079 = vpop.permute.xlu0 %5078
          %5082 = vset.pattern.permute.xlu0 0
          %5083 = vperm.xlu0 %5082, %v4889
          %v5084 = vpop.permute.xlu0 %5083
          %5087 = vset.pattern.permute.xlu0 0
          %5088 = vperm.xlu0 %5087, %v4890
          %v5089 = vpop.permute.xlu0 %5088
          %5092 = vset.pattern.permute.xlu0 0
          %5093 = vperm.xlu0 %5092, %v4891
          %v5094 = vpop.permute.xlu0 %5093
          %5097 = vset.pattern.permute.xlu0 0
          %5098 = vperm.xlu0 %5097, %v4892
          %v5099 = vpop.permute.xlu0 %5098
          %5102 = vset.pattern.permute.xlu0 0
          %5103 = vperm.xlu0 %5102, %v4893
          %v5104 = vpop.permute.xlu0 %5103
          %5107 = vset.pattern.permute.xlu0 0
          %5108 = vperm.xlu0 %5107, %v4894
          %v5109 = vpop.permute.xlu0 %5108
          %5112 = vset.pattern.permute.xlu0 0
          %5113 = vperm.xlu0 %5112, %v4895
          %v5114 = vpop.permute.xlu0 %5113
          %5117 = vset.pattern.permute.xlu0 0
          %5118 = vperm.xlu0 %5117, %v4896
          %v5119 = vpop.permute.xlu0 %5118
          %5122 = vset.pattern.permute.xlu0 0
          %5123 = vperm.xlu0 %5122, %v4897
          %v5124 = vpop.permute.xlu0 %5123
          %5127 = vset.pattern.permute.xlu0 0
          %5128 = vperm.xlu0 %5127, %v4898
          %v5129 = vpop.permute.xlu0 %5128
          %5132 = vset.pattern.permute.xlu0 0
          %5133 = vperm.xlu0 %5132, %v4899
          %v5134 = vpop.permute.xlu0 %5133
          %5137 = vset.pattern.permute.xlu0 0
          %5138 = vperm.xlu0 %5137, %v4900
          %v5139 = vpop.permute.xlu0 %5138
          %5142 = vset.pattern.permute.xlu0 0
          %5143 = vperm.xlu0 %5142, %v4901
          %v5144 = vpop.permute.xlu0 %5143
          %5147 = vset.pattern.permute.xlu0 0
          %5148 = vperm.xlu0 %5147, %v4902
          %v5149 = vpop.permute.xlu0 %5148
          %5152 = vset.pattern.permute.xlu0 0
          %5153 = vperm.xlu0 %5152, %v4903
          %v5154 = vpop.permute.xlu0 %5153
          %5157 = vset.pattern.permute.xlu0 0
          %5158 = vperm.xlu0 %5157, %v4904
          %v5159 = vpop.permute.xlu0 %5158
          %5162 = vset.pattern.permute.xlu0 0
          %5163 = vperm.xlu0 %5162, %v4905
          %v5164 = vpop.permute.xlu0 %5163
          %5167 = vset.pattern.permute.xlu0 0
          %5168 = vperm.xlu0 %5167, %v4906
          %v5169 = vpop.permute.xlu0 %5168
          %5172 = vset.pattern.permute.xlu0 0
          %5173 = vperm.xlu0 %5172, %v4907
          %v5174 = vpop.permute.xlu0 %5173
          %5177 = vset.pattern.permute.xlu0 0
          %5178 = vperm.xlu0 %5177, %v4908
          %v5179 = vpop.permute.xlu0 %5178
          %5182 = vset.pattern.permute.xlu0 0
          %5183 = vperm.xlu0 %5182, %v4909
          %v5184 = vpop.permute.xlu0 %5183
          %5187 = vset.pattern.permute.xlu0 0
          %5188 = vperm.xlu0 %5187, %v4910
          %v5189 = vpop.permute.xlu0 %5188
          %5192 = vset.pattern.permute.xlu0 0
          %5193 = vperm.xlu0 %5192, %v4911
          %v5194 = vpop.permute.xlu0 %5193
          %5197 = vset.pattern.permute.xlu0 0
          %5198 = vperm.xlu0 %5197, %v4912
          %v5199 = vpop.permute.xlu0 %5198
          %5202 = vset.pattern.permute.xlu0 0
          %5203 = vperm.xlu0 %5202, %v4913
          %v5204 = vpop.permute.xlu0 %5203
          %5207 = vset.pattern.permute.xlu0 0
          %5208 = vperm.xlu0 %5207, %v4914
          %v5209 = vpop.permute.xlu0 %5208
          %5212 = vset.pattern.permute.xlu0 0
          %5213 = vperm.xlu0 %5212, %v4915
          %v5214 = vpop.permute.xlu0 %5213
          %5217 = vset.pattern.permute.xlu0 0
          %5218 = vperm.xlu0 %5217, %v4916
          %v5219 = vpop.permute.xlu0 %5218
          %5222 = vset.pattern.permute.xlu0 0
          %5223 = vperm.xlu0 %5222, %v4917
          %v5224 = vpop.permute.xlu0 %5223
          %5227 = vset.pattern.permute.xlu0 0
          %5228 = vperm.xlu0 %5227, %v4918
          %v5229 = vpop.permute.xlu0 %5228
          %5232 = vset.pattern.permute.xlu0 0
          %5233 = vperm.xlu0 %5232, %v4919
          %v5234 = vpop.permute.xlu0 %5233
          %5237 = vset.pattern.permute.xlu0 0
          %5238 = vperm.xlu0 %5237, %v4920
          %v5239 = vpop.permute.xlu0 %5238
          %v5241 = vmul.f32 %v4793, %v4924
          %v5242 = vmul.f32 %v4794, %v4929
          %v5243 = vmul.f32 %v4795, %v4934
          %v5244 = vmul.f32 %v4796, %v4939
          %v5245 = vmul.f32 %v4797, %v4944
          %v5246 = vmul.f32 %v4798, %v4949
          %v5247 = vmul.f32 %v4799, %v4954
          %v5248 = vmul.f32 %v4800, %v4959
          %v5249 = vmul.f32 %v4801, %v4964
          %v5250 = vmul.f32 %v4802, %v4969
          %v5251 = vmul.f32 %v4803, %v4974
          %v5252 = vmul.f32 %v4804, %v4979
          %v5253 = vmul.f32 %v4805, %v4984
          %v5254 = vmul.f32 %v4806, %v4989
          %v5255 = vmul.f32 %v4807, %v4994
          %v5256 = vmul.f32 %v4808, %v4999
          %v5257 = vmul.f32 %v4809, %v5004
          %v5258 = vmul.f32 %v4810, %v5009
          %v5259 = vmul.f32 %v4811, %v5014
          %v5260 = vmul.f32 %v4812, %v5019
          %v5261 = vmul.f32 %v4813, %v5024
          %v5262 = vmul.f32 %v4814, %v5029
          %v5263 = vmul.f32 %v4815, %v5034
          %v5264 = vmul.f32 %v4816, %v5039
          %v5265 = vmul.f32 %v4817, %v5044
          %v5266 = vmul.f32 %v4818, %v5049
          %v5267 = vmul.f32 %v4819, %v5054
          %v5268 = vmul.f32 %v4820, %v5059
          %v5269 = vmul.f32 %v4821, %v5064
          %v5270 = vmul.f32 %v4822, %v5069
          %v5271 = vmul.f32 %v4823, %v5074
          %v5272 = vmul.f32 %v4824, %v5079
          %v5273 = vmul.f32 %v4825, %v5084
          %v5274 = vmul.f32 %v4826, %v5089
          %v5275 = vmul.f32 %v4827, %v5094
          %v5276 = vmul.f32 %v4828, %v5099
          %v5277 = vmul.f32 %v4829, %v5104
          %v5278 = vmul.f32 %v4830, %v5109
          %v5279 = vmul.f32 %v4831, %v5114
          %v5280 = vmul.f32 %v4832, %v5119
          %v5281 = vmul.f32 %v4833, %v5124
          %v5282 = vmul.f32 %v4834, %v5129
          %v5283 = vmul.f32 %v4835, %v5134
          %v5284 = vmul.f32 %v4836, %v5139
          %v5285 = vmul.f32 %v4837, %v5144
          %v5286 = vmul.f32 %v4838, %v5149
          %v5287 = vmul.f32 %v4839, %v5154
          %v5288 = vmul.f32 %v4840, %v5159
          %v5289 = vmul.f32 %v4841, %v5164
          %v5290 = vmul.f32 %v4842, %v5169
          %v5291 = vmul.f32 %v4843, %v5174
          %v5292 = vmul.f32 %v4844, %v5179
          %v5293 = vmul.f32 %v4845, %v5184
          %v5294 = vmul.f32 %v4846, %v5189
          %v5295 = vmul.f32 %v4847, %v5194
          %v5296 = vmul.f32 %v4848, %v5199
          %v5297 = vmul.f32 %v4849, %v5204
          %v5298 = vmul.f32 %v4850, %v5209
          %v5299 = vmul.f32 %v4851, %v5214
          %v5300 = vmul.f32 %v4852, %v5219
          %v5301 = vmul.f32 %v4853, %v5224
          %v5302 = vmul.f32 %v4854, %v5229
          %v5303 = vmul.f32 %v4855, %v5234
          %v5304 = vmul.f32 %v4856, %v5239
          %v5305 = vld [vmem:[#allocation5] sm:$0xff]
          %v5306 = vld [vmem:[%s409] sm:$0xff]
          %v5307 = vld [vmem:[%s409 + $0x8] sm:$0xff]
          %v5308 = vld [vmem:[%s409 + $0x10] sm:$0xff]
          %v5309 = vld [vmem:[%s409 + $0x18] sm:$0xff]
          %v5310 = vld [vmem:[%s409 + $0x20] sm:$0xff]
          %v5311 = vld [vmem:[%s409 + $0x28] sm:$0xff]
          %v5312 = vld [vmem:[%s409 + $0x30] sm:$0xff]
          %v5313 = vld [vmem:[%s409 + $0x38] sm:$0xff]
          %v5314 = vld [vmem:[%s409 + $0x40] sm:$0xff]
          %v5315 = vld [vmem:[%s409 + $0x48] sm:$0xff]
          %v5316 = vld [vmem:[%s409 + $0x50] sm:$0xff]
          %v5317 = vld [vmem:[%s409 + $0x58] sm:$0xff]
          %v5318 = vld [vmem:[%s409 + $0x60] sm:$0xff]
          %v5319 = vld [vmem:[%s409 + $0x68] sm:$0xff]
          %v5320 = vld [vmem:[%s409 + $0x70] sm:$0xff]
          %v5321 = vld [vmem:[%s409 + $0x78] sm:$0xff]
          %v5322 = vld [vmem:[%s409 + $0x80] sm:$0xff]
          %v5323 = vld [vmem:[%s409 + $0x88] sm:$0xff]
          %v5324 = vld [vmem:[%s409 + $0x90] sm:$0xff]
          %v5325 = vld [vmem:[%s409 + $0x98] sm:$0xff]
          %v5326 = vld [vmem:[%s409 + $0xa0] sm:$0xff]
          %v5327 = vld [vmem:[%s409 + $0xa8] sm:$0xff]
          %v5328 = vld [vmem:[%s409 + $0xb0] sm:$0xff]
          %v5329 = vld [vmem:[%s409 + $0xb8] sm:$0xff]
          %v5330 = vld [vmem:[%s409 + $0xc0] sm:$0xff]
          %v5331 = vld [vmem:[%s409 + $0xc8] sm:$0xff]
          %v5332 = vld [vmem:[%s409 + $0xd0] sm:$0xff]
          %v5333 = vld [vmem:[%s409 + $0xd8] sm:$0xff]
          %v5334 = vld [vmem:[%s409 + $0xe0] sm:$0xff]
          %v5335 = vld [vmem:[%s409 + $0xe8] sm:$0xff]
          %v5336 = vld [vmem:[%s409 + $0xf0] sm:$0xff]
          %v5337 = vld [vmem:[%s409 + $0xf8] sm:$0xff]
          %v5338 = vld [vmem:[%s409 + $0x100] sm:$0xff]
          %v5339 = vld [vmem:[%s409 + $0x108] sm:$0xff]
          %v5340 = vld [vmem:[%s409 + $0x110] sm:$0xff]
          %v5341 = vld [vmem:[%s409 + $0x118] sm:$0xff]
          %v5342 = vld [vmem:[%s409 + $0x120] sm:$0xff]
          %v5343 = vld [vmem:[%s409 + $0x128] sm:$0xff]
          %v5344 = vld [vmem:[%s409 + $0x130] sm:$0xff]
          %v5345 = vld [vmem:[%s409 + $0x138] sm:$0xff]
          %v5346 = vld [vmem:[%s409 + $0x140] sm:$0xff]
          %v5347 = vld [vmem:[%s409 + $0x148] sm:$0xff]
          %v5348 = vld [vmem:[%s409 + $0x150] sm:$0xff]
          %v5349 = vld [vmem:[%s409 + $0x158] sm:$0xff]
          %v5350 = vld [vmem:[%s409 + $0x160] sm:$0xff]
          %v5351 = vld [vmem:[%s409 + $0x168] sm:$0xff]
          %v5352 = vld [vmem:[%s409 + $0x170] sm:$0xff]
          %v5353 = vld [vmem:[%s409 + $0x178] sm:$0xff]
          %v5354 = vld [vmem:[%s409 + $0x180] sm:$0xff]
          %v5355 = vld [vmem:[%s409 + $0x188] sm:$0xff]
          %v5356 = vld [vmem:[%s409 + $0x190] sm:$0xff]
          %v5357 = vld [vmem:[%s409 + $0x198] sm:$0xff]
          %v5358 = vld [vmem:[%s409 + $0x1a0] sm:$0xff]
          %v5359 = vld [vmem:[%s409 + $0x1a8] sm:$0xff]
          %v5360 = vld [vmem:[%s409 + $0x1b0] sm:$0xff]
          %v5361 = vld [vmem:[%s409 + $0x1b8] sm:$0xff]
          %v5362 = vld [vmem:[%s409 + $0x1c0] sm:$0xff]
          %v5363 = vld [vmem:[%s409 + $0x1c8] sm:$0xff]
          %v5364 = vld [vmem:[%s409 + $0x1d0] sm:$0xff]
          %v5365 = vld [vmem:[%s409 + $0x1d8] sm:$0xff]
          %v5366 = vld [vmem:[%s409 + $0x1e0] sm:$0xff]
          %v5367 = vld [vmem:[%s409 + $0x1e8] sm:$0xff]
          %v5368 = vld [vmem:[%s409 + $0x1f0] sm:$0xff]
          %v5369 = vld [vmem:[%s409 + $0x1f8] sm:$0xff]
          %v5370 = vld [vmem:[#allocation7] sm:$0xff]
          %v5372 = vsel %vm4725, %v5306, 0
          %v5375 = vsel %vm4725, %v5307, 0
          %v5378 = vsel %vm4725, %v5308, 0
          %v5381 = vsel %vm4725, %v5309, 0
          %v5384 = vsel %vm4725, %v5310, 0
          %v5387 = vsel %vm4725, %v5311, 0
          %v5390 = vsel %vm4725, %v5312, 0
          %v5393 = vsel %vm4725, %v5313, 0
          %v5396 = vsel %vm4725, %v5314, 0
          %v5399 = vsel %vm4725, %v5315, 0
          %v5402 = vsel %vm4725, %v5316, 0
          %v5405 = vsel %vm4725, %v5317, 0
          %v5408 = vsel %vm4725, %v5318, 0
          %v5411 = vsel %vm4725, %v5319, 0
          %v5414 = vsel %vm4725, %v5320, 0
          %v5417 = vsel %vm4725, %v5321, 0
          %v5420 = vsel %vm4725, %v5322, 0
          %v5423 = vsel %vm4725, %v5323, 0
          %v5426 = vsel %vm4725, %v5324, 0
          %v5429 = vsel %vm4725, %v5325, 0
          %v5432 = vsel %vm4725, %v5326, 0
          %v5435 = vsel %vm4725, %v5327, 0
          %v5438 = vsel %vm4725, %v5328, 0
          %v5441 = vsel %vm4725, %v5329, 0
          %v5444 = vsel %vm4725, %v5330, 0
          %v5447 = vsel %vm4725, %v5331, 0
          %v5450 = vsel %vm4725, %v5332, 0
          %v5453 = vsel %vm4725, %v5333, 0
          %v5456 = vsel %vm4725, %v5334, 0
          %v5459 = vsel %vm4725, %v5335, 0
          %v5462 = vsel %vm4725, %v5336, 0
          %v5465 = vsel %vm4725, %v5337, 0
          %v5468 = vsel %vm4725, %v5338, 0
          %v5471 = vsel %vm4725, %v5339, 0
          %v5474 = vsel %vm4725, %v5340, 0
          %v5477 = vsel %vm4725, %v5341, 0
          %v5480 = vsel %vm4725, %v5342, 0
          %v5483 = vsel %vm4725, %v5343, 0
          %v5486 = vsel %vm4725, %v5344, 0
          %v5489 = vsel %vm4725, %v5345, 0
          %v5492 = vsel %vm4725, %v5346, 0
          %v5495 = vsel %vm4725, %v5347, 0
          %v5498 = vsel %vm4725, %v5348, 0
          %v5501 = vsel %vm4725, %v5349, 0
          %v5504 = vsel %vm4725, %v5350, 0
          %v5507 = vsel %vm4725, %v5351, 0
          %v5510 = vsel %vm4725, %v5352, 0
          %v5513 = vsel %vm4725, %v5353, 0
          %v5516 = vsel %vm4725, %v5354, 0
          %v5519 = vsel %vm4725, %v5355, 0
          %v5522 = vsel %vm4725, %v5356, 0
          %v5525 = vsel %vm4725, %v5357, 0
          %v5528 = vsel %vm4725, %v5358, 0
          %v5531 = vsel %vm4725, %v5359, 0
          %v5534 = vsel %vm4725, %v5360, 0
          %v5537 = vsel %vm4725, %v5361, 0
          %v5540 = vsel %vm4725, %v5362, 0
          %v5543 = vsel %vm4725, %v5363, 0
          %v5546 = vsel %vm4725, %v5364, 0
          %v5549 = vsel %vm4725, %v5365, 0
          %v5552 = vsel %vm4725, %v5366, 0
          %v5555 = vsel %vm4725, %v5367, 0
          %v5558 = vsel %vm4725, %v5368, 0
          %v5561 = vsel %vm4725, %v5369, 0
          %5563 = vmatprep.subr.mxu0 0.0
          %5564 = vmatpush1.msra.mxu0 %v5370
          %5565 = vmatprep.subr.mxu0 0.0
          %5566 = vmatpush1.msra.mxu0 0.0
          %5567 = vmatprep.subr.mxu0 0.0
          %5568 = vmatpush1.msra.mxu0 0.0
          %5569 = vmatprep.subr.mxu0 0.0
          %5570 = vmatpush1.msra.mxu0 0.0
          %5571 = vmatprep.subr.mxu0 0.0
          %5572 = vmatpush1.msra.mxu0 0.0
          %5573 = vmatprep.subr.mxu0 0.0
          %5574 = vmatpush1.msra.mxu0 0.0
          %5575 = vmatprep.subr.mxu0 0.0
          %5576 = vmatpush1.msra.mxu0 0.0
          %5577 = vmatprep.subr.mxu0 0.0
          %5578 = vmatpush1.msra.mxu0 0.0
          %5579 = vmatprep.subr.mxu0 0.0
          %5580 = vmatpush1.msra.mxu0 0.0
          %5581 = vmatprep.subr.mxu0 0.0
          %5582 = vmatpush1.msra.mxu0 0.0
          %5583 = vmatprep.subr.mxu0 0.0
          %5584 = vmatpush1.msra.mxu0 0.0
          %5585 = vmatprep.subr.mxu0 0.0
          %5586 = vmatpush1.msra.mxu0 0.0
          %5587 = vmatprep.subr.mxu0 0.0
          %5588 = vmatpush1.msra.mxu0 0.0
          %5589 = vmatprep.subr.mxu0 0.0
          %5590 = vmatpush1.msra.mxu0 0.0
          %5591 = vmatprep.subr.mxu0 0.0
          %5592 = vmatpush1.msra.mxu0 0.0
          %5593 = vmatprep.subr.mxu0 0.0
          %5594 = vmatpush1.msra.mxu0 0.0
          %5595 = vmatprep.subr.mxu0 0.0
          %5596 = vmatpush1.msra.mxu0 0.0
          %5597 = vmatprep.subr.mxu0 0.0
          %5598 = vmatpush1.msra.mxu0 0.0
          %5599 = vmatprep.subr.mxu0 0.0
          %5600 = vmatpush1.msra.mxu0 0.0
          %5601 = vmatprep.subr.mxu0 0.0
          %5602 = vmatpush1.msra.mxu0 0.0
          %5603 = vmatprep.subr.mxu0 0.0
          %5604 = vmatpush1.msra.mxu0 0.0
          %5605 = vmatprep.subr.mxu0 0.0
          %5606 = vmatpush1.msra.mxu0 0.0
          %5607 = vmatprep.subr.mxu0 0.0
          %5608 = vmatpush1.msra.mxu0 0.0
          %5609 = vmatprep.subr.mxu0 0.0
          %5610 = vmatpush1.msra.mxu0 0.0
          %5611 = vmatprep.subr.mxu0 0.0
          %5612 = vmatpush1.msra.mxu0 0.0
          %5613 = vmatprep.subr.mxu0 0.0
          %5614 = vmatpush1.msra.mxu0 0.0
          %5615 = vmatprep.subr.mxu0 0.0
          %5616 = vmatpush1.msra.mxu0 0.0
          %5617 = vmatprep.subr.mxu0 0.0
          %5618 = vmatpush1.msra.mxu0 0.0
          %5619 = vmatprep.subr.mxu0 0.0
          %5620 = vmatpush1.msra.mxu0 0.0
          %5621 = vmatprep.subr.mxu0 0.0
          %5622 = vmatpush1.msra.mxu0 0.0
          %5623 = vmatprep.subr.mxu0 0.0
          %5624 = vmatpush1.msra.mxu0 0.0
          %5625 = vmatprep.subr.mxu0 0.0
          %5626 = vmatpush1.msra.mxu0 0.0
          %5627 = vmatprep.mubr.f32.mxu0 0.0
          %5628 = vmatmul.mubr.f32.gmra.mrb[0].mxu0 %v5372
          %v5629 = vpop.f32.mrb[0].mxu0
          %v5630 = vadd.f32 0.0, %v5629
          %v5631 = vpop.f32.mrb[0].mxu0
          %5632 = vmatprep.mubr.f32.mxu0 0.0
          %5633 = vmatmul.mubr.f32.gmra.mrb[0].mxu0 %v5375
          %v5634 = vpop.f32.mrb[0].mxu0
          %v5635 = vadd.f32 0.0, %v5634
          %v5636 = vpop.f32.mrb[0].mxu0
          %5637 = vmatprep.mubr.f32.mxu0 0.0
          %5638 = vmatmul.mubr.f32.gmra.mrb[0].mxu0 %v5378
          %v5639 = vpop.f32.mrb[0].mxu0
          %v5640 = vadd.f32 0.0, %v5639
          %v5641 = vpop.f32.mrb[0].mxu0
          %5642 = vmatprep.mubr.f32.mxu0 0.0
          %5643 = vmatmul.mubr.f32.gmra.mrb[0].mxu0 %v5381
          %v5644 = vpop.f32.mrb[0].mxu0
          %v5645 = vadd.f32 0.0, %v5644
          %v5646 = vpop.f32.mrb[0].mxu0
          %5647 = vmatprep.mubr.f32.mxu0 0.0
          %5648 = vmatmul.mubr.f32.gmra.mrb[0].mxu0 %v5384
          %v5649 = vpop.f32.mrb[0].mxu0
          %v5650 = vadd.f32 0.0, %v5649
          %v5651 = vpop.f32.mrb[0].mxu0
          %5652 = vmatprep.mubr.f32.mxu0 0.0
          %5653 = vmatmul.mubr.f32.gmra.mrb[0].mxu0 %v5387
          %v5654 = vpop.f32.mrb[0].mxu0
          %v5655 = vadd.f32 0.0, %v5654
          %v5656 = vpop.f32.mrb[0].mxu0
          %5657 = vmatprep.mubr.f32.mxu0 0.0
          %5658 = vmatmul.mubr.f32.gmra.mrb[0].mxu0 %v5390
          %v5659 = vpop.f32.mrb[0].mxu0
          %v5660 = vadd.f32 0.0, %v5659
          %v5661 = vpop.f32.mrb[0].mxu0
          %5662 = vmatprep.mubr.f32.mxu0 0.0
          %5663 = vmatmul.mubr.f32.gmra.mrb[0].mxu0 %v5393
          %v5664 = vpop.f32.mrb[0].mxu0
          %v5665 = vadd.f32 0.0, %v5664
          %v5666 = vpop.f32.mrb[0].mxu0
          %5667 = vmatprep.mubr.f32.mxu0 0.0
          %5668 = vmatmul.mubr.f32.gmra.mrb[0].mxu0 %v5396
          %v5669 = vpop.f32.mrb[0].mxu0
          %v5670 = vadd.f32 0.0, %v5669
          %v5671 = vpop.f32.mrb[0].mxu0
          %5672 = vmatprep.mubr.f32.mxu0 0.0
          %5673 = vmatmul.mubr.f32.gmra.mrb[0].mxu0 %v5399
          %v5674 = vpop.f32.mrb[0].mxu0
          %v5675 = vadd.f32 0.0, %v5674
          %v5676 = vpop.f32.mrb[0].mxu0
          %5677 = vmatprep.mubr.f32.mxu0 0.0
          %5678 = vmatmul.mubr.f32.gmra.mrb[0].mxu0 %v5402
          %v5679 = vpop.f32.mrb[0].mxu0
          %v5680 = vadd.f32 0.0, %v5679
          %v5681 = vpop.f32.mrb[0].mxu0
          %5682 = vmatprep.mubr.f32.mxu0 0.0
          %5683 = vmatmul.mubr.f32.gmra.mrb[0].mxu0 %v5405
          %v5684 = vpop.f32.mrb[0].mxu0
          %v5685 = vadd.f32 0.0, %v5684
          %v5686 = vpop.f32.mrb[0].mxu0
          %5687 = vmatprep.mubr.f32.mxu0 0.0
          %5688 = vmatmul.mubr.f32.gmra.mrb[0].mxu0 %v5408
          %v5689 = vpop.f32.mrb[0].mxu0
          %v5690 = vadd.f32 0.0, %v5689
          %v5691 = vpop.f32.mrb[0].mxu0
          %5692 = vmatprep.mubr.f32.mxu0 0.0
          %5693 = vmatmul.mubr.f32.gmra.mrb[0].mxu0 %v5411
          %v5694 = vpop.f32.mrb[0].mxu0
          %v5695 = vadd.f32 0.0, %v5694
          %v5696 = vpop.f32.mrb[0].mxu0
          %5697 = vmatprep.mubr.f32.mxu0 0.0
          %5698 = vmatmul.mubr.f32.gmra.mrb[0].mxu0 %v5414
          %v5699 = vpop.f32.mrb[0].mxu0
          %v5700 = vadd.f32 0.0, %v5699
          %v5701 = vpop.f32.mrb[0].mxu0
          %5702 = vmatprep.mubr.f32.mxu0 0.0
          %5703 = vmatmul.mubr.f32.gmra.mrb[0].mxu0 %v5417
          %v5704 = vpop.f32.mrb[0].mxu0
          %v5705 = vadd.f32 0.0, %v5704
          %v5706 = vpop.f32.mrb[0].mxu0
          %5707 = vmatprep.mubr.f32.mxu0 0.0
          %5708 = vmatmul.mubr.f32.gmra.mrb[0].mxu0 %v5420
          %v5709 = vpop.f32.mrb[0].mxu0
          %v5710 = vadd.f32 0.0, %v5709
          %v5711 = vpop.f32.mrb[0].mxu0
          %5712 = vmatprep.mubr.f32.mxu0 0.0
          %5713 = vmatmul.mubr.f32.gmra.mrb[0].mxu0 %v5423
          %v5714 = vpop.f32.mrb[0].mxu0
          %v5715 = vadd.f32 0.0, %v5714
          %v5716 = vpop.f32.mrb[0].mxu0
          %5717 = vmatprep.mubr.f32.mxu0 0.0
          %5718 = vmatmul.mubr.f32.gmra.mrb[0].mxu0 %v5426
          %v5719 = vpop.f32.mrb[0].mxu0
          %v5720 = vadd.f32 0.0, %v5719
          %v5721 = vpop.f32.mrb[0].mxu0
          %5722 = vmatprep.mubr.f32.mxu0 0.0
          %5723 = vmatmul.mubr.f32.gmra.mrb[0].mxu0 %v5429
          %v5724 = vpop.f32.mrb[0].mxu0
          %v5725 = vadd.f32 0.0, %v5724
          %v5726 = vpop.f32.mrb[0].mxu0
          %5727 = vmatprep.mubr.f32.mxu0 0.0
          %5728 = vmatmul.mubr.f32.gmra.mrb[0].mxu0 %v5432
          %v5729 = vpop.f32.mrb[0].mxu0
          %v5730 = vadd.f32 0.0, %v5729
          %v5731 = vpop.f32.mrb[0].mxu0
          %5732 = vmatprep.mubr.f32.mxu0 0.0
          %5733 = vmatmul.mubr.f32.gmra.mrb[0].mxu0 %v5435
          %v5734 = vpop.f32.mrb[0].mxu0
          %v5735 = vadd.f32 0.0, %v5734
          %v5736 = vpop.f32.mrb[0].mxu0
          %5737 = vmatprep.mubr.f32.mxu0 0.0
          %5738 = vmatmul.mubr.f32.gmra.mrb[0].mxu0 %v5438
          %v5739 = vpop.f32.mrb[0].mxu0
          %v5740 = vadd.f32 0.0, %v5739
          %v5741 = vpop.f32.mrb[0].mxu0
          %5742 = vmatprep.mubr.f32.mxu0 0.0
          %5743 = vmatmul.mubr.f32.gmra.mrb[0].mxu0 %v5441
          %v5744 = vpop.f32.mrb[0].mxu0
          %v5745 = vadd.f32 0.0, %v5744
          %v5746 = vpop.f32.mrb[0].mxu0
          %5747 = vmatprep.mubr.f32.mxu0 0.0
          %5748 = vmatmul.mubr.f32.gmra.mrb[0].mxu0 %v5444
          %v5749 = vpop.f32.mrb[0].mxu0
          %v5750 = vadd.f32 0.0, %v5749
          %v5751 = vpop.f32.mrb[0].mxu0
          %5752 = vmatprep.mubr.f32.mxu0 0.0
          %5753 = vmatmul.mubr.f32.gmra.mrb[0].mxu0 %v5447
          %v5754 = vpop.f32.mrb[0].mxu0
          %v5755 = vadd.f32 0.0, %v5754
          %v5756 = vpop.f32.mrb[0].mxu0
          %5757 = vmatprep.mubr.f32.mxu0 0.0
          %5758 = vmatmul.mubr.f32.gmra.mrb[0].mxu0 %v5450
          %v5759 = vpop.f32.mrb[0].mxu0
          %v5760 = vadd.f32 0.0, %v5759
          %v5761 = vpop.f32.mrb[0].mxu0
          %5762 = vmatprep.mubr.f32.mxu0 0.0
          %5763 = vmatmul.mubr.f32.gmra.mrb[0].mxu0 %v5453
          %v5764 = vpop.f32.mrb[0].mxu0
          %v5765 = vadd.f32 0.0, %v5764
          %v5766 = vpop.f32.mrb[0].mxu0
          %5767 = vmatprep.mubr.f32.mxu0 0.0
          %5768 = vmatmul.mubr.f32.gmra.mrb[0].mxu0 %v5456
          %v5769 = vpop.f32.mrb[0].mxu0
          %v5770 = vadd.f32 0.0, %v5769
          %v5771 = vpop.f32.mrb[0].mxu0
          %5772 = vmatprep.mubr.f32.mxu0 0.0
          %5773 = vmatmul.mubr.f32.gmra.mrb[0].mxu0 %v5459
          %v5774 = vpop.f32.mrb[0].mxu0
          %v5775 = vadd.f32 0.0, %v5774
          %v5776 = vpop.f32.mrb[0].mxu0
          %5777 = vmatprep.mubr.f32.mxu0 0.0
          %5778 = vmatmul.mubr.f32.gmra.mrb[0].mxu0 %v5462
          %v5779 = vpop.f32.mrb[0].mxu0
          %v5780 = vadd.f32 0.0, %v5779
          %v5781 = vpop.f32.mrb[0].mxu0
          %5782 = vmatprep.mubr.f32.mxu0 0.0
          %5783 = vmatmul.mubr.f32.gmra.mrb[0].mxu0 %v5465
          %v5784 = vpop.f32.mrb[0].mxu0
          %v5785 = vadd.f32 0.0, %v5784
          %v5786 = vpop.f32.mrb[0].mxu0
          %5787 = vmatprep.mubr.f32.mxu0 0.0
          %5788 = vmatmul.mubr.f32.gmra.mrb[0].mxu0 %v5468
          %v5789 = vpop.f32.mrb[0].mxu0
          %v5790 = vadd.f32 0.0, %v5789
          %v5791 = vpop.f32.mrb[0].mxu0
          %5792 = vmatprep.mubr.f32.mxu0 0.0
          %5793 = vmatmul.mubr.f32.gmra.mrb[0].mxu0 %v5471
          %v5794 = vpop.f32.mrb[0].mxu0
          %v5795 = vadd.f32 0.0, %v5794
          %v5796 = vpop.f32.mrb[0].mxu0
          %5797 = vmatprep.mubr.f32.mxu0 0.0
          %5798 = vmatmul.mubr.f32.gmra.mrb[0].mxu0 %v5474
          %v5799 = vpop.f32.mrb[0].mxu0
          %v5800 = vadd.f32 0.0, %v5799
          %v5801 = vpop.f32.mrb[0].mxu0
          %5802 = vmatprep.mubr.f32.mxu0 0.0
          %5803 = vmatmul.mubr.f32.gmra.mrb[0].mxu0 %v5477
          %v5804 = vpop.f32.mrb[0].mxu0
          %v5805 = vadd.f32 0.0, %v5804
          %v5806 = vpop.f32.mrb[0].mxu0
          %5807 = vmatprep.mubr.f32.mxu0 0.0
          %5808 = vmatmul.mubr.f32.gmra.mrb[0].mxu0 %v5480
          %v5809 = vpop.f32.mrb[0].mxu0
          %v5810 = vadd.f32 0.0, %v5809
          %v5811 = vpop.f32.mrb[0].mxu0
          %5812 = vmatprep.mubr.f32.mxu0 0.0
          %5813 = vmatmul.mubr.f32.gmra.mrb[0].mxu0 %v5483
          %v5814 = vpop.f32.mrb[0].mxu0
          %v5815 = vadd.f32 0.0, %v5814
          %v5816 = vpop.f32.mrb[0].mxu0
          %5817 = vmatprep.mubr.f32.mxu0 0.0
          %5818 = vmatmul.mubr.f32.gmra.mrb[0].mxu0 %v5486
          %v5819 = vpop.f32.mrb[0].mxu0
          %v5820 = vadd.f32 0.0, %v5819
          %v5821 = vpop.f32.mrb[0].mxu0
          %5822 = vmatprep.mubr.f32.mxu0 0.0
          %5823 = vmatmul.mubr.f32.gmra.mrb[0].mxu0 %v5489
          %v5824 = vpop.f32.mrb[0].mxu0
          %v5825 = vadd.f32 0.0, %v5824
          %v5826 = vpop.f32.mrb[0].mxu0
          %5827 = vmatprep.mubr.f32.mxu0 0.0
          %5828 = vmatmul.mubr.f32.gmra.mrb[0].mxu0 %v5492
          %v5829 = vpop.f32.mrb[0].mxu0
          %v5830 = vadd.f32 0.0, %v5829
          %v5831 = vpop.f32.mrb[0].mxu0
          %5832 = vmatprep.mubr.f32.mxu0 0.0
          %5833 = vmatmul.mubr.f32.gmra.mrb[0].mxu0 %v5495
          %v5834 = vpop.f32.mrb[0].mxu0
          %v5835 = vadd.f32 0.0, %v5834
          %v5836 = vpop.f32.mrb[0].mxu0
          %5837 = vmatprep.mubr.f32.mxu0 0.0
          %5838 = vmatmul.mubr.f32.gmra.mrb[0].mxu0 %v5498
          %v5839 = vpop.f32.mrb[0].mxu0
          %v5840 = vadd.f32 0.0, %v5839
          %v5841 = vpop.f32.mrb[0].mxu0
          %5842 = vmatprep.mubr.f32.mxu0 0.0
          %5843 = vmatmul.mubr.f32.gmra.mrb[0].mxu0 %v5501
          %v5844 = vpop.f32.mrb[0].mxu0
          %v5845 = vadd.f32 0.0, %v5844
          %v5846 = vpop.f32.mrb[0].mxu0
          %5847 = vmatprep.mubr.f32.mxu0 0.0
          %5848 = vmatmul.mubr.f32.gmra.mrb[0].mxu0 %v5504
          %v5849 = vpop.f32.mrb[0].mxu0
          %v5850 = vadd.f32 0.0, %v5849
          %v5851 = vpop.f32.mrb[0].mxu0
          %5852 = vmatprep.mubr.f32.mxu0 0.0
          %5853 = vmatmul.mubr.f32.gmra.mrb[0].mxu0 %v5507
          %v5854 = vpop.f32.mrb[0].mxu0
          %v5855 = vadd.f32 0.0, %v5854
          %v5856 = vpop.f32.mrb[0].mxu0
          %5857 = vmatprep.mubr.f32.mxu0 0.0
          %5858 = vmatmul.mubr.f32.gmra.mrb[0].mxu0 %v5510
          %v5859 = vpop.f32.mrb[0].mxu0
          %v5860 = vadd.f32 0.0, %v5859
          %v5861 = vpop.f32.mrb[0].mxu0
          %5862 = vmatprep.mubr.f32.mxu0 0.0
          %5863 = vmatmul.mubr.f32.gmra.mrb[0].mxu0 %v5513
          %v5864 = vpop.f32.mrb[0].mxu0
          %v5865 = vadd.f32 0.0, %v5864
          %v5866 = vpop.f32.mrb[0].mxu0
          %5867 = vmatprep.mubr.f32.mxu0 0.0
          %5868 = vmatmul.mubr.f32.gmra.mrb[0].mxu0 %v5516
          %v5869 = vpop.f32.mrb[0].mxu0
          %v5870 = vadd.f32 0.0, %v5869
          %v5871 = vpop.f32.mrb[0].mxu0
          %5872 = vmatprep.mubr.f32.mxu0 0.0
          %5873 = vmatmul.mubr.f32.gmra.mrb[0].mxu0 %v5519
          %v5874 = vpop.f32.mrb[0].mxu0
          %v5875 = vadd.f32 0.0, %v5874
          %v5876 = vpop.f32.mrb[0].mxu0
          %5877 = vmatprep.mubr.f32.mxu0 0.0
          %5878 = vmatmul.mubr.f32.gmra.mrb[0].mxu0 %v5522
          %v5879 = vpop.f32.mrb[0].mxu0
          %v5880 = vadd.f32 0.0, %v5879
          %v5881 = vpop.f32.mrb[0].mxu0
          %5882 = vmatprep.mubr.f32.mxu0 0.0
          %5883 = vmatmul.mubr.f32.gmra.mrb[0].mxu0 %v5525
          %v5884 = vpop.f32.mrb[0].mxu0
          %v5885 = vadd.f32 0.0, %v5884
          %v5886 = vpop.f32.mrb[0].mxu0
          %5887 = vmatprep.mubr.f32.mxu0 0.0
          %5888 = vmatmul.mubr.f32.gmra.mrb[0].mxu0 %v5528
          %v5889 = vpop.f32.mrb[0].mxu0
          %v5890 = vadd.f32 0.0, %v5889
          %v5891 = vpop.f32.mrb[0].mxu0
          %5892 = vmatprep.mubr.f32.mxu0 0.0
          %5893 = vmatmul.mubr.f32.gmra.mrb[0].mxu0 %v5531
          %v5894 = vpop.f32.mrb[0].mxu0
          %v5895 = vadd.f32 0.0, %v5894
          %v5896 = vpop.f32.mrb[0].mxu0
          %5897 = vmatprep.mubr.f32.mxu0 0.0
          %5898 = vmatmul.mubr.f32.gmra.mrb[0].mxu0 %v5534
          %v5899 = vpop.f32.mrb[0].mxu0
          %v5900 = vadd.f32 0.0, %v5899
          %v5901 = vpop.f32.mrb[0].mxu0
          %5902 = vmatprep.mubr.f32.mxu0 0.0
          %5903 = vmatmul.mubr.f32.gmra.mrb[0].mxu0 %v5537
          %v5904 = vpop.f32.mrb[0].mxu0
          %v5905 = vadd.f32 0.0, %v5904
          %v5906 = vpop.f32.mrb[0].mxu0
          %5907 = vmatprep.mubr.f32.mxu0 0.0
          %5908 = vmatmul.mubr.f32.gmra.mrb[0].mxu0 %v5540
          %v5909 = vpop.f32.mrb[0].mxu0
          %v5910 = vadd.f32 0.0, %v5909
          %v5911 = vpop.f32.mrb[0].mxu0
          %5912 = vmatprep.mubr.f32.mxu0 0.0
          %5913 = vmatmul.mubr.f32.gmra.mrb[0].mxu0 %v5543
          %v5914 = vpop.f32.mrb[0].mxu0
          %v5915 = vadd.f32 0.0, %v5914
          %v5916 = vpop.f32.mrb[0].mxu0
          %5917 = vmatprep.mubr.f32.mxu0 0.0
          %5918 = vmatmul.mubr.f32.gmra.mrb[0].mxu0 %v5546
          %v5919 = vpop.f32.mrb[0].mxu0
          %v5920 = vadd.f32 0.0, %v5919
          %v5921 = vpop.f32.mrb[0].mxu0
          %5922 = vmatprep.mubr.f32.mxu0 0.0
          %5923 = vmatmul.mubr.f32.gmra.mrb[0].mxu0 %v5549
          %v5924 = vpop.f32.mrb[0].mxu0
          %v5925 = vadd.f32 0.0, %v5924
          %v5926 = vpop.f32.mrb[0].mxu0
          %5927 = vmatprep.mubr.f32.mxu0 0.0
          %5928 = vmatmul.mubr.f32.gmra.mrb[0].mxu0 %v5552
          %v5929 = vpop.f32.mrb[0].mxu0
          %v5930 = vadd.f32 0.0, %v5929
          %v5931 = vpop.f32.mrb[0].mxu0
          %5932 = vmatprep.mubr.f32.mxu0 0.0
          %5933 = vmatmul.mubr.f32.gmra.mrb[0].mxu0 %v5555
          %v5934 = vpop.f32.mrb[0].mxu0
          %v5935 = vadd.f32 0.0, %v5934
          %v5936 = vpop.f32.mrb[0].mxu0
          %5937 = vmatprep.mubr.f32.mxu0 0.0
          %5938 = vmatmul.mubr.f32.gmra.mrb[0].mxu0 %v5558
          %v5939 = vpop.f32.mrb[0].mxu0
          %v5940 = vadd.f32 0.0, %v5939
          %v5941 = vpop.f32.mrb[0].mxu0
          %5942 = vmatprep.mubr.f32.mxu0 0.0
          %5943 = vmatmul.mubr.f32.gmra.mrb[0].mxu0 %v5561
          %v5944 = vpop.f32.mrb[0].mxu0
          %v5945 = vadd.f32 0.0, %v5944
          %v5946 = vpop.f32.mrb[0].mxu0
          %5947 = vdwg.mxu0
          %v5949 = vsel %vm4725, %v5241, 0
          %v5952 = vsel %vm4725, %v5242, 0
          %v5955 = vsel %vm4725, %v5243, 0
          %v5958 = vsel %vm4725, %v5244, 0
          %v5961 = vsel %vm4725, %v5245, 0
          %v5964 = vsel %vm4725, %v5246, 0
          %v5967 = vsel %vm4725, %v5247, 0
          %v5970 = vsel %vm4725, %v5248, 0
          %v5973 = vsel %vm4725, %v5249, 0
          %v5976 = vsel %vm4725, %v5250, 0
          %v5979 = vsel %vm4725, %v5251, 0
          %v5982 = vsel %vm4725, %v5252, 0
          %v5985 = vsel %vm4725, %v5253, 0
          %v5988 = vsel %vm4725, %v5254, 0
          %v5991 = vsel %vm4725, %v5255, 0
          %v5994 = vsel %vm4725, %v5256, 0
          %v5997 = vsel %vm4725, %v5257, 0
          %v6000 = vsel %vm4725, %v5258, 0
          %v6003 = vsel %vm4725, %v5259, 0
          %v6006 = vsel %vm4725, %v5260, 0
          %v6009 = vsel %vm4725, %v5261, 0
          %v6012 = vsel %vm4725, %v5262, 0
          %v6015 = vsel %vm4725, %v5263, 0
          %v6018 = vsel %vm4725, %v5264, 0
          %v6021 = vsel %vm4725, %v5265, 0
          %v6024 = vsel %vm4725, %v5266, 0
          %v6027 = vsel %vm4725, %v5267, 0
          %v6030 = vsel %vm4725, %v5268, 0
          %v6033 = vsel %vm4725, %v5269, 0
          %v6036 = vsel %vm4725, %v5270, 0
          %v6039 = vsel %vm4725, %v5271, 0
          %v6042 = vsel %vm4725, %v5272, 0
          %v6045 = vsel %vm4725, %v5273, 0
          %v6048 = vsel %vm4725, %v5274, 0
          %v6051 = vsel %vm4725, %v5275, 0
          %v6054 = vsel %vm4725, %v5276, 0
          %v6057 = vsel %vm4725, %v5277, 0
          %v6060 = vsel %vm4725, %v5278, 0
          %v6063 = vsel %vm4725, %v5279, 0
          %v6066 = vsel %vm4725, %v5280, 0
          %v6069 = vsel %vm4725, %v5281, 0
          %v6072 = vsel %vm4725, %v5282, 0
          %v6075 = vsel %vm4725, %v5283, 0
          %v6078 = vsel %vm4725, %v5284, 0
          %v6081 = vsel %vm4725, %v5285, 0
          %v6084 = vsel %vm4725, %v5286, 0
          %v6087 = vsel %vm4725, %v5287, 0
          %v6090 = vsel %vm4725, %v5288, 0
          %v6093 = vsel %vm4725, %v5289, 0
          %v6096 = vsel %vm4725, %v5290, 0
          %v6099 = vsel %vm4725, %v5291, 0
          %v6102 = vsel %vm4725, %v5292, 0
          %v6105 = vsel %vm4725, %v5293, 0
          %v6108 = vsel %vm4725, %v5294, 0
          %v6111 = vsel %vm4725, %v5295, 0
          %v6114 = vsel %vm4725, %v5296, 0
          %v6117 = vsel %vm4725, %v5297, 0
          %v6120 = vsel %vm4725, %v5298, 0
          %v6123 = vsel %vm4725, %v5299, 0
          %v6126 = vsel %vm4725, %v5300, 0
          %v6129 = vsel %vm4725, %v5301, 0
          %v6132 = vsel %vm4725, %v5302, 0
          %v6135 = vsel %vm4725, %v5303, 0
          %v6138 = vsel %vm4725, %v5304, 0
          %6140 = vmatprep.subr.mxu0 0.0
          %6141 = vmatpush1.msra.mxu0 %v5305
          %6142 = vmatprep.subr.mxu0 0.0
          %6143 = vmatpush1.msra.mxu0 0.0
          %6144 = vmatprep.subr.mxu0 0.0
          %6145 = vmatpush1.msra.mxu0 0.0
          %6146 = vmatprep.subr.mxu0 0.0
          %6147 = vmatpush1.msra.mxu0 0.0
          %6148 = vmatprep.subr.mxu0 0.0
          %6149 = vmatpush1.msra.mxu0 0.0
          %6150 = vmatprep.subr.mxu0 0.0
          %6151 = vmatpush1.msra.mxu0 0.0
          %6152 = vmatprep.subr.mxu0 0.0
          %6153 = vmatpush1.msra.mxu0 0.0
          %6154 = vmatprep.subr.mxu0 0.0
          %6155 = vmatpush1.msra.mxu0 0.0
          %6156 = vmatprep.subr.mxu0 0.0
          %6157 = vmatpush1.msra.mxu0 0.0
          %6158 = vmatprep.subr.mxu0 0.0
          %6159 = vmatpush1.msra.mxu0 0.0
          %6160 = vmatprep.subr.mxu0 0.0
          %6161 = vmatpush1.msra.mxu0 0.0
          %6162 = vmatprep.subr.mxu0 0.0
          %6163 = vmatpush1.msra.mxu0 0.0
          %6164 = vmatprep.subr.mxu0 0.0
          %6165 = vmatpush1.msra.mxu0 0.0
          %6166 = vmatprep.subr.mxu0 0.0
          %6167 = vmatpush1.msra.mxu0 0.0
          %6168 = vmatprep.subr.mxu0 0.0
          %6169 = vmatpush1.msra.mxu0 0.0
          %6170 = vmatprep.subr.mxu0 0.0
          %6171 = vmatpush1.msra.mxu0 0.0
          %6172 = vmatprep.subr.mxu0 0.0
          %6173 = vmatpush1.msra.mxu0 0.0
          %6174 = vmatprep.subr.mxu0 0.0
          %6175 = vmatpush1.msra.mxu0 0.0
          %6176 = vmatprep.subr.mxu0 0.0
          %6177 = vmatpush1.msra.mxu0 0.0
          %6178 = vmatprep.subr.mxu0 0.0
          %6179 = vmatpush1.msra.mxu0 0.0
          %6180 = vmatprep.subr.mxu0 0.0
          %6181 = vmatpush1.msra.mxu0 0.0
          %6182 = vmatprep.subr.mxu0 0.0
          %6183 = vmatpush1.msra.mxu0 0.0
          %6184 = vmatprep.subr.mxu0 0.0
          %6185 = vmatpush1.msra.mxu0 0.0
          %6186 = vmatprep.subr.mxu0 0.0
          %6187 = vmatpush1.msra.mxu0 0.0
          %6188 = vmatprep.subr.mxu0 0.0
          %6189 = vmatpush1.msra.mxu0 0.0
          %6190 = vmatprep.subr.mxu0 0.0
          %6191 = vmatpush1.msra.mxu0 0.0
          %6192 = vmatprep.subr.mxu0 0.0
          %6193 = vmatpush1.msra.mxu0 0.0
          %6194 = vmatprep.subr.mxu0 0.0
          %6195 = vmatpush1.msra.mxu0 0.0
          %6196 = vmatprep.subr.mxu0 0.0
          %6197 = vmatpush1.msra.mxu0 0.0
          %6198 = vmatprep.subr.mxu0 0.0
          %6199 = vmatpush1.msra.mxu0 0.0
          %6200 = vmatprep.subr.mxu0 0.0
          %6201 = vmatpush1.msra.mxu0 0.0
          %6202 = vmatprep.subr.mxu0 0.0
          %6203 = vmatpush1.msra.mxu0 0.0
          %6204 = vmatprep.mubr.f32.mxu0 0.0
          %6205 = vmatmul.mubr.f32.gmra.mrb[0].mxu0 %v5949
          %v6206 = vpop.f32.mrb[0].mxu0
          %v6207 = vadd.f32 %v5630, %v6206
          %v6208 = vpop.f32.mrb[0].mxu0
          %6209 = vmatprep.mubr.f32.mxu0 0.0
          %6210 = vmatmul.mubr.f32.gmra.mrb[0].mxu0 %v5952
          %v6211 = vpop.f32.mrb[0].mxu0
          %v6212 = vadd.f32 %v5635, %v6211
          %v6213 = vpop.f32.mrb[0].mxu0
          %6214 = vmatprep.mubr.f32.mxu0 0.0
          %6215 = vmatmul.mubr.f32.gmra.mrb[0].mxu0 %v5955
          %v6216 = vpop.f32.mrb[0].mxu0
          %v6217 = vadd.f32 %v5640, %v6216
          %v6218 = vpop.f32.mrb[0].mxu0
          %6219 = vmatprep.mubr.f32.mxu0 0.0
          %6220 = vmatmul.mubr.f32.gmra.mrb[0].mxu0 %v5958
          %v6221 = vpop.f32.mrb[0].mxu0
          %v6222 = vadd.f32 %v5645, %v6221
          %v6223 = vpop.f32.mrb[0].mxu0
          %6224 = vmatprep.mubr.f32.mxu0 0.0
          %6225 = vmatmul.mubr.f32.gmra.mrb[0].mxu0 %v5961
          %v6226 = vpop.f32.mrb[0].mxu0
          %v6227 = vadd.f32 %v5650, %v6226
          %v6228 = vpop.f32.mrb[0].mxu0
          %6229 = vmatprep.mubr.f32.mxu0 0.0
          %6230 = vmatmul.mubr.f32.gmra.mrb[0].mxu0 %v5964
          %v6231 = vpop.f32.mrb[0].mxu0
          %v6232 = vadd.f32 %v5655, %v6231
          %v6233 = vpop.f32.mrb[0].mxu0
          %6234 = vmatprep.mubr.f32.mxu0 0.0
          %6235 = vmatmul.mubr.f32.gmra.mrb[0].mxu0 %v5967
          %v6236 = vpop.f32.mrb[0].mxu0
          %v6237 = vadd.f32 %v5660, %v6236
          %v6238 = vpop.f32.mrb[0].mxu0
          %6239 = vmatprep.mubr.f32.mxu0 0.0
          %6240 = vmatmul.mubr.f32.gmra.mrb[0].mxu0 %v5970
          %v6241 = vpop.f32.mrb[0].mxu0
          %v6242 = vadd.f32 %v5665, %v6241
          %v6243 = vpop.f32.mrb[0].mxu0
          %6244 = vmatprep.mubr.f32.mxu0 0.0
          %6245 = vmatmul.mubr.f32.gmra.mrb[0].mxu0 %v5973
          %v6246 = vpop.f32.mrb[0].mxu0
          %v6247 = vadd.f32 %v5670, %v6246
          %v6248 = vpop.f32.mrb[0].mxu0
          %6249 = vmatprep.mubr.f32.mxu0 0.0
          %6250 = vmatmul.mubr.f32.gmra.mrb[0].mxu0 %v5976
          %v6251 = vpop.f32.mrb[0].mxu0
          %v6252 = vadd.f32 %v5675, %v6251
          %v6253 = vpop.f32.mrb[0].mxu0
          %6254 = vmatprep.mubr.f32.mxu0 0.0
          %6255 = vmatmul.mubr.f32.gmra.mrb[0].mxu0 %v5979
          %v6256 = vpop.f32.mrb[0].mxu0
          %v6257 = vadd.f32 %v5680, %v6256
          %v6258 = vpop.f32.mrb[0].mxu0
          %6259 = vmatprep.mubr.f32.mxu0 0.0
          %6260 = vmatmul.mubr.f32.gmra.mrb[0].mxu0 %v5982
          %v6261 = vpop.f32.mrb[0].mxu0
          %v6262 = vadd.f32 %v5685, %v6261
          %v6263 = vpop.f32.mrb[0].mxu0
          %6264 = vmatprep.mubr.f32.mxu0 0.0
          %6265 = vmatmul.mubr.f32.gmra.mrb[0].mxu0 %v5985
          %v6266 = vpop.f32.mrb[0].mxu0
          %v6267 = vadd.f32 %v5690, %v6266
          %v6268 = vpop.f32.mrb[0].mxu0
          %6269 = vmatprep.mubr.f32.mxu0 0.0
          %6270 = vmatmul.mubr.f32.gmra.mrb[0].mxu0 %v5988
          %v6271 = vpop.f32.mrb[0].mxu0
          %v6272 = vadd.f32 %v5695, %v6271
          %v6273 = vpop.f32.mrb[0].mxu0
          %6274 = vmatprep.mubr.f32.mxu0 0.0
          %6275 = vmatmul.mubr.f32.gmra.mrb[0].mxu0 %v5991
          %v6276 = vpop.f32.mrb[0].mxu0
          %v6277 = vadd.f32 %v5700, %v6276
          %v6278 = vpop.f32.mrb[0].mxu0
          %6279 = vmatprep.mubr.f32.mxu0 0.0
          %6280 = vmatmul.mubr.f32.gmra.mrb[0].mxu0 %v5994
          %v6281 = vpop.f32.mrb[0].mxu0
          %v6282 = vadd.f32 %v5705, %v6281
          %v6283 = vpop.f32.mrb[0].mxu0
          %6284 = vmatprep.mubr.f32.mxu0 0.0
          %6285 = vmatmul.mubr.f32.gmra.mrb[0].mxu0 %v5997
          %v6286 = vpop.f32.mrb[0].mxu0
          %v6287 = vadd.f32 %v5710, %v6286
          %v6288 = vpop.f32.mrb[0].mxu0
          %6289 = vmatprep.mubr.f32.mxu0 0.0
          %6290 = vmatmul.mubr.f32.gmra.mrb[0].mxu0 %v6000
          %v6291 = vpop.f32.mrb[0].mxu0
          %v6292 = vadd.f32 %v5715, %v6291
          %v6293 = vpop.f32.mrb[0].mxu0
          %6294 = vmatprep.mubr.f32.mxu0 0.0
          %6295 = vmatmul.mubr.f32.gmra.mrb[0].mxu0 %v6003
          %v6296 = vpop.f32.mrb[0].mxu0
          %v6297 = vadd.f32 %v5720, %v6296
          %v6298 = vpop.f32.mrb[0].mxu0
          %6299 = vmatprep.mubr.f32.mxu0 0.0
          %6300 = vmatmul.mubr.f32.gmra.mrb[0].mxu0 %v6006
          %v6301 = vpop.f32.mrb[0].mxu0
          %v6302 = vadd.f32 %v5725, %v6301
          %v6303 = vpop.f32.mrb[0].mxu0
          %6304 = vmatprep.mubr.f32.mxu0 0.0
          %6305 = vmatmul.mubr.f32.gmra.mrb[0].mxu0 %v6009
          %v6306 = vpop.f32.mrb[0].mxu0
          %v6307 = vadd.f32 %v5730, %v6306
          %v6308 = vpop.f32.mrb[0].mxu0
          %6309 = vmatprep.mubr.f32.mxu0 0.0
          %6310 = vmatmul.mubr.f32.gmra.mrb[0].mxu0 %v6012
          %v6311 = vpop.f32.mrb[0].mxu0
          %v6312 = vadd.f32 %v5735, %v6311
          %v6313 = vpop.f32.mrb[0].mxu0
          %6314 = vmatprep.mubr.f32.mxu0 0.0
          %6315 = vmatmul.mubr.f32.gmra.mrb[0].mxu0 %v6015
          %v6316 = vpop.f32.mrb[0].mxu0
          %v6317 = vadd.f32 %v5740, %v6316
          %v6318 = vpop.f32.mrb[0].mxu0
          %6319 = vmatprep.mubr.f32.mxu0 0.0
          %6320 = vmatmul.mubr.f32.gmra.mrb[0].mxu0 %v6018
          %v6321 = vpop.f32.mrb[0].mxu0
          %v6322 = vadd.f32 %v5745, %v6321
          %v6323 = vpop.f32.mrb[0].mxu0
          %6324 = vmatprep.mubr.f32.mxu0 0.0
          %6325 = vmatmul.mubr.f32.gmra.mrb[0].mxu0 %v6021
          %v6326 = vpop.f32.mrb[0].mxu0
          %v6327 = vadd.f32 %v5750, %v6326
          %v6328 = vpop.f32.mrb[0].mxu0
          %6329 = vmatprep.mubr.f32.mxu0 0.0
          %6330 = vmatmul.mubr.f32.gmra.mrb[0].mxu0 %v6024
          %v6331 = vpop.f32.mrb[0].mxu0
          %v6332 = vadd.f32 %v5755, %v6331
          %v6333 = vpop.f32.mrb[0].mxu0
          %6334 = vmatprep.mubr.f32.mxu0 0.0
          %6335 = vmatmul.mubr.f32.gmra.mrb[0].mxu0 %v6027
          %v6336 = vpop.f32.mrb[0].mxu0
          %v6337 = vadd.f32 %v5760, %v6336
          %v6338 = vpop.f32.mrb[0].mxu0
          %6339 = vmatprep.mubr.f32.mxu0 0.0
          %6340 = vmatmul.mubr.f32.gmra.mrb[0].mxu0 %v6030
          %v6341 = vpop.f32.mrb[0].mxu0
          %v6342 = vadd.f32 %v5765, %v6341
          %v6343 = vpop.f32.mrb[0].mxu0
          %6344 = vmatprep.mubr.f32.mxu0 0.0
          %6345 = vmatmul.mubr.f32.gmra.mrb[0].mxu0 %v6033
          %v6346 = vpop.f32.mrb[0].mxu0
          %v6347 = vadd.f32 %v5770, %v6346
          %v6348 = vpop.f32.mrb[0].mxu0
          %6349 = vmatprep.mubr.f32.mxu0 0.0
          %6350 = vmatmul.mubr.f32.gmra.mrb[0].mxu0 %v6036
          %v6351 = vpop.f32.mrb[0].mxu0
          %v6352 = vadd.f32 %v5775, %v6351
          %v6353 = vpop.f32.mrb[0].mxu0
          %6354 = vmatprep.mubr.f32.mxu0 0.0
          %6355 = vmatmul.mubr.f32.gmra.mrb[0].mxu0 %v6039
          %v6356 = vpop.f32.mrb[0].mxu0
          %v6357 = vadd.f32 %v5780, %v6356
          %v6358 = vpop.f32.mrb[0].mxu0
          %6359 = vmatprep.mubr.f32.mxu0 0.0
          %6360 = vmatmul.mubr.f32.gmra.mrb[0].mxu0 %v6042
          %v6361 = vpop.f32.mrb[0].mxu0
          %v6362 = vadd.f32 %v5785, %v6361
          %v6363 = vpop.f32.mrb[0].mxu0
          %6364 = vmatprep.mubr.f32.mxu0 0.0
          %6365 = vmatmul.mubr.f32.gmra.mrb[0].mxu0 %v6045
          %v6366 = vpop.f32.mrb[0].mxu0
          %v6367 = vadd.f32 %v5790, %v6366
          %v6368 = vpop.f32.mrb[0].mxu0
          %6369 = vmatprep.mubr.f32.mxu0 0.0
          %6370 = vmatmul.mubr.f32.gmra.mrb[0].mxu0 %v6048
          %v6371 = vpop.f32.mrb[0].mxu0
          %v6372 = vadd.f32 %v5795, %v6371
          %v6373 = vpop.f32.mrb[0].mxu0
          %6374 = vmatprep.mubr.f32.mxu0 0.0
          %6375 = vmatmul.mubr.f32.gmra.mrb[0].mxu0 %v6051
          %v6376 = vpop.f32.mrb[0].mxu0
          %v6377 = vadd.f32 %v5800, %v6376
          %v6378 = vpop.f32.mrb[0].mxu0
          %6379 = vmatprep.mubr.f32.mxu0 0.0
          %6380 = vmatmul.mubr.f32.gmra.mrb[0].mxu0 %v6054
          %v6381 = vpop.f32.mrb[0].mxu0
          %v6382 = vadd.f32 %v5805, %v6381
          %v6383 = vpop.f32.mrb[0].mxu0
          %6384 = vmatprep.mubr.f32.mxu0 0.0
          %6385 = vmatmul.mubr.f32.gmra.mrb[0].mxu0 %v6057
          %v6386 = vpop.f32.mrb[0].mxu0
          %v6387 = vadd.f32 %v5810, %v6386
          %v6388 = vpop.f32.mrb[0].mxu0
          %6389 = vmatprep.mubr.f32.mxu0 0.0
          %6390 = vmatmul.mubr.f32.gmra.mrb[0].mxu0 %v6060
          %v6391 = vpop.f32.mrb[0].mxu0
          %v6392 = vadd.f32 %v5815, %v6391
          %v6393 = vpop.f32.mrb[0].mxu0
          %6394 = vmatprep.mubr.f32.mxu0 0.0
          %6395 = vmatmul.mubr.f32.gmra.mrb[0].mxu0 %v6063
          %v6396 = vpop.f32.mrb[0].mxu0
          %v6397 = vadd.f32 %v5820, %v6396
          %v6398 = vpop.f32.mrb[0].mxu0
          %6399 = vmatprep.mubr.f32.mxu0 0.0
          %6400 = vmatmul.mubr.f32.gmra.mrb[0].mxu0 %v6066
          %v6401 = vpop.f32.mrb[0].mxu0
          %v6402 = vadd.f32 %v5825, %v6401
          %v6403 = vpop.f32.mrb[0].mxu0
          %6404 = vmatprep.mubr.f32.mxu0 0.0
          %6405 = vmatmul.mubr.f32.gmra.mrb[0].mxu0 %v6069
          %v6406 = vpop.f32.mrb[0].mxu0
          %v6407 = vadd.f32 %v5830, %v6406
          %v6408 = vpop.f32.mrb[0].mxu0
          %6409 = vmatprep.mubr.f32.mxu0 0.0
          %6410 = vmatmul.mubr.f32.gmra.mrb[0].mxu0 %v6072
          %v6411 = vpop.f32.mrb[0].mxu0
          %v6412 = vadd.f32 %v5835, %v6411
          %v6413 = vpop.f32.mrb[0].mxu0
          %6414 = vmatprep.mubr.f32.mxu0 0.0
          %6415 = vmatmul.mubr.f32.gmra.mrb[0].mxu0 %v6075
          %v6416 = vpop.f32.mrb[0].mxu0
          %v6417 = vadd.f32 %v5840, %v6416
          %v6418 = vpop.f32.mrb[0].mxu0
          %6419 = vmatprep.mubr.f32.mxu0 0.0
          %6420 = vmatmul.mubr.f32.gmra.mrb[0].mxu0 %v6078
          %v6421 = vpop.f32.mrb[0].mxu0
          %v6422 = vadd.f32 %v5845, %v6421
          %v6423 = vpop.f32.mrb[0].mxu0
          %6424 = vmatprep.mubr.f32.mxu0 0.0
          %6425 = vmatmul.mubr.f32.gmra.mrb[0].mxu0 %v6081
          %v6426 = vpop.f32.mrb[0].mxu0
          %v6427 = vadd.f32 %v5850, %v6426
          %v6428 = vpop.f32.mrb[0].mxu0
          %6429 = vmatprep.mubr.f32.mxu0 0.0
          %6430 = vmatmul.mubr.f32.gmra.mrb[0].mxu0 %v6084
          %v6431 = vpop.f32.mrb[0].mxu0
          %v6432 = vadd.f32 %v5855, %v6431
          %v6433 = vpop.f32.mrb[0].mxu0
          %6434 = vmatprep.mubr.f32.mxu0 0.0
          %6435 = vmatmul.mubr.f32.gmra.mrb[0].mxu0 %v6087
          %v6436 = vpop.f32.mrb[0].mxu0
          %v6437 = vadd.f32 %v5860, %v6436
          %v6438 = vpop.f32.mrb[0].mxu0
          %6439 = vmatprep.mubr.f32.mxu0 0.0
          %6440 = vmatmul.mubr.f32.gmra.mrb[0].mxu0 %v6090
          %v6441 = vpop.f32.mrb[0].mxu0
          %v6442 = vadd.f32 %v5865, %v6441
          %v6443 = vpop.f32.mrb[0].mxu0
          %6444 = vmatprep.mubr.f32.mxu0 0.0
          %6445 = vmatmul.mubr.f32.gmra.mrb[0].mxu0 %v6093
          %v6446 = vpop.f32.mrb[0].mxu0
          %v6447 = vadd.f32 %v5870, %v6446
          %v6448 = vpop.f32.mrb[0].mxu0
          %6449 = vmatprep.mubr.f32.mxu0 0.0
          %6450 = vmatmul.mubr.f32.gmra.mrb[0].mxu0 %v6096
          %v6451 = vpop.f32.mrb[0].mxu0
          %v6452 = vadd.f32 %v5875, %v6451
          %v6453 = vpop.f32.mrb[0].mxu0
          %6454 = vmatprep.mubr.f32.mxu0 0.0
          %6455 = vmatmul.mubr.f32.gmra.mrb[0].mxu0 %v6099
          %v6456 = vpop.f32.mrb[0].mxu0
          %v6457 = vadd.f32 %v5880, %v6456
          %v6458 = vpop.f32.mrb[0].mxu0
          %6459 = vmatprep.mubr.f32.mxu0 0.0
          %6460 = vmatmul.mubr.f32.gmra.mrb[0].mxu0 %v6102
          %v6461 = vpop.f32.mrb[0].mxu0
          %v6462 = vadd.f32 %v5885, %v6461
          %v6463 = vpop.f32.mrb[0].mxu0
          %6464 = vmatprep.mubr.f32.mxu0 0.0
          %6465 = vmatmul.mubr.f32.gmra.mrb[0].mxu0 %v6105
          %v6466 = vpop.f32.mrb[0].mxu0
          %v6467 = vadd.f32 %v5890, %v6466
          %v6468 = vpop.f32.mrb[0].mxu0
          %6469 = vmatprep.mubr.f32.mxu0 0.0
          %6470 = vmatmul.mubr.f32.gmra.mrb[0].mxu0 %v6108
          %v6471 = vpop.f32.mrb[0].mxu0
          %v6472 = vadd.f32 %v5895, %v6471
          %v6473 = vpop.f32.mrb[0].mxu0
          %6474 = vmatprep.mubr.f32.mxu0 0.0
          %6475 = vmatmul.mubr.f32.gmra.mrb[0].mxu0 %v6111
          %v6476 = vpop.f32.mrb[0].mxu0
          %v6477 = vadd.f32 %v5900, %v6476
          %v6478 = vpop.f32.mrb[0].mxu0
          %6479 = vmatprep.mubr.f32.mxu0 0.0
          %6480 = vmatmul.mubr.f32.gmra.mrb[0].mxu0 %v6114
          %v6481 = vpop.f32.mrb[0].mxu0
          %v6482 = vadd.f32 %v5905, %v6481
          %v6483 = vpop.f32.mrb[0].mxu0
          %6484 = vmatprep.mubr.f32.mxu0 0.0
          %6485 = vmatmul.mubr.f32.gmra.mrb[0].mxu0 %v6117
          %v6486 = vpop.f32.mrb[0].mxu0
          %v6487 = vadd.f32 %v5910, %v6486
          %v6488 = vpop.f32.mrb[0].mxu0
          %6489 = vmatprep.mubr.f32.mxu0 0.0
          %6490 = vmatmul.mubr.f32.gmra.mrb[0].mxu0 %v6120
          %v6491 = vpop.f32.mrb[0].mxu0
          %v6492 = vadd.f32 %v5915, %v6491
          %v6493 = vpop.f32.mrb[0].mxu0
          %6494 = vmatprep.mubr.f32.mxu0 0.0
          %6495 = vmatmul.mubr.f32.gmra.mrb[0].mxu0 %v6123
          %v6496 = vpop.f32.mrb[0].mxu0
          %v6497 = vadd.f32 %v5920, %v6496
          %v6498 = vpop.f32.mrb[0].mxu0
          %6499 = vmatprep.mubr.f32.mxu0 0.0
          %6500 = vmatmul.mubr.f32.gmra.mrb[0].mxu0 %v6126
          %v6501 = vpop.f32.mrb[0].mxu0
          %v6502 = vadd.f32 %v5925, %v6501
          %v6503 = vpop.f32.mrb[0].mxu0
          %6504 = vmatprep.mubr.f32.mxu0 0.0
          %6505 = vmatmul.mubr.f32.gmra.mrb[0].mxu0 %v6129
          %v6506 = vpop.f32.mrb[0].mxu0
          %v6507 = vadd.f32 %v5930, %v6506
          %v6508 = vpop.f32.mrb[0].mxu0
          %6509 = vmatprep.mubr.f32.mxu0 0.0
          %6510 = vmatmul.mubr.f32.gmra.mrb[0].mxu0 %v6132
          %v6511 = vpop.f32.mrb[0].mxu0
          %v6512 = vadd.f32 %v5935, %v6511
          %v6513 = vpop.f32.mrb[0].mxu0
          %6514 = vmatprep.mubr.f32.mxu0 0.0
          %6515 = vmatmul.mubr.f32.gmra.mrb[0].mxu0 %v6135
          %v6516 = vpop.f32.mrb[0].mxu0
          %v6517 = vadd.f32 %v5940, %v6516
          %v6518 = vpop.f32.mrb[0].mxu0
          %6519 = vmatprep.mubr.f32.mxu0 0.0
          %6520 = vmatmul.mubr.f32.gmra.mrb[0].mxu0 %v6138
          %v6521 = vpop.f32.mrb[0].mxu0
          %v6522 = vadd.f32 %v5945, %v6521
          %v6523 = vpop.f32.mrb[0].mxu0
          %6524 = vdwg.mxu0
          %v6525 = vld [vmem:[#allocation8] sm:$0x1]
          %v6527 = vlaneseq
          %v6528 = vshrl.u32 %v6527, 7
          %v6529 = vsub.s32 0, %v6528
          %v6530 = vrot.slane %v6525, %v6529
          %v6532 = vadd.f32 %v6207, %v6530
          %v6533 = vadd.f32 %v6212, %v6530
          %v6534 = vadd.f32 %v6217, %v6530
          %v6535 = vadd.f32 %v6222, %v6530
          %v6536 = vadd.f32 %v6227, %v6530
          %v6537 = vadd.f32 %v6232, %v6530
          %v6538 = vadd.f32 %v6237, %v6530
          %v6539 = vadd.f32 %v6242, %v6530
          %v6540 = vadd.f32 %v6247, %v6530
          %v6541 = vadd.f32 %v6252, %v6530
          %v6542 = vadd.f32 %v6257, %v6530
          %v6543 = vadd.f32 %v6262, %v6530
          %v6544 = vadd.f32 %v6267, %v6530
          %v6545 = vadd.f32 %v6272, %v6530
          %v6546 = vadd.f32 %v6277, %v6530
          %v6547 = vadd.f32 %v6282, %v6530
          %v6548 = vadd.f32 %v6287, %v6530
          %v6549 = vadd.f32 %v6292, %v6530
          %v6550 = vadd.f32 %v6297, %v6530
          %v6551 = vadd.f32 %v6302, %v6530
          %v6552 = vadd.f32 %v6307, %v6530
          %v6553 = vadd.f32 %v6312, %v6530
          %v6554 = vadd.f32 %v6317, %v6530
          %v6555 = vadd.f32 %v6322, %v6530
          %v6556 = vadd.f32 %v6327, %v6530
          %v6557 = vadd.f32 %v6332, %v6530
          %v6558 = vadd.f32 %v6337, %v6530
          %v6559 = vadd.f32 %v6342, %v6530
          %v6560 = vadd.f32 %v6347, %v6530
          %v6561 = vadd.f32 %v6352, %v6530
          %v6562 = vadd.f32 %v6357, %v6530
          %v6563 = vadd.f32 %v6362, %v6530
          %v6564 = vadd.f32 %v6367, %v6530
          %v6565 = vadd.f32 %v6372, %v6530
          %v6566 = vadd.f32 %v6377, %v6530
          %v6567 = vadd.f32 %v6382, %v6530
          %v6568 = vadd.f32 %v6387, %v6530
          %v6569 = vadd.f32 %v6392, %v6530
          %v6570 = vadd.f32 %v6397, %v6530
          %v6571 = vadd.f32 %v6402, %v6530
          %v6572 = vadd.f32 %v6407, %v6530
          %v6573 = vadd.f32 %v6412, %v6530
          %v6574 = vadd.f32 %v6417, %v6530
          %v6575 = vadd.f32 %v6422, %v6530
          %v6576 = vadd.f32 %v6427, %v6530
          %v6577 = vadd.f32 %v6432, %v6530
          %v6578 = vadd.f32 %v6437, %v6530
          %v6579 = vadd.f32 %v6442, %v6530
          %v6580 = vadd.f32 %v6447, %v6530
          %v6581 = vadd.f32 %v6452, %v6530
          %v6582 = vadd.f32 %v6457, %v6530
          %v6583 = vadd.f32 %v6462, %v6530
          %v6584 = vadd.f32 %v6467, %v6530
          %v6585 = vadd.f32 %v6472, %v6530
          %v6586 = vadd.f32 %v6477, %v6530
          %v6587 = vadd.f32 %v6482, %v6530
          %v6588 = vadd.f32 %v6487, %v6530
          %v6589 = vadd.f32 %v6492, %v6530
          %v6590 = vadd.f32 %v6497, %v6530
          %v6591 = vadd.f32 %v6502, %v6530
          %v6592 = vadd.f32 %v6507, %v6530
          %v6593 = vadd.f32 %v6512, %v6530
          %v6594 = vadd.f32 %v6517, %v6530
          %v6595 = vadd.f32 %v6522, %v6530
          %v6596 = vmax.f32 %v6532, 0.0
          %v6597 = vmax.f32 %v6533, 0.0
          %v6598 = vmax.f32 %v6534, 0.0
          %v6599 = vmax.f32 %v6535, 0.0
          %v6600 = vmax.f32 %v6536, 0.0
          %v6601 = vmax.f32 %v6537, 0.0
          %v6602 = vmax.f32 %v6538, 0.0
          %v6603 = vmax.f32 %v6539, 0.0
          %v6604 = vmax.f32 %v6540, 0.0
          %v6605 = vmax.f32 %v6541, 0.0
          %v6606 = vmax.f32 %v6542, 0.0
          %v6607 = vmax.f32 %v6543, 0.0
          %v6608 = vmax.f32 %v6544, 0.0
          %v6609 = vmax.f32 %v6545, 0.0
          %v6610 = vmax.f32 %v6546, 0.0
          %v6611 = vmax.f32 %v6547, 0.0
          %v6612 = vmax.f32 %v6548, 0.0
          %v6613 = vmax.f32 %v6549, 0.0
          %v6614 = vmax.f32 %v6550, 0.0
          %v6615 = vmax.f32 %v6551, 0.0
          %v6616 = vmax.f32 %v6552, 0.0
          %v6617 = vmax.f32 %v6553, 0.0
          %v6618 = vmax.f32 %v6554, 0.0
          %v6619 = vmax.f32 %v6555, 0.0
          %v6620 = vmax.f32 %v6556, 0.0
          %v6621 = vmax.f32 %v6557, 0.0
          %v6622 = vmax.f32 %v6558, 0.0
          %v6623 = vmax.f32 %v6559, 0.0
          %v6624 = vmax.f32 %v6560, 0.0
          %v6625 = vmax.f32 %v6561, 0.0
          %v6626 = vmax.f32 %v6562, 0.0
          %v6627 = vmax.f32 %v6563, 0.0
          %v6628 = vmax.f32 %v6564, 0.0
          %v6629 = vmax.f32 %v6565, 0.0
          %v6630 = vmax.f32 %v6566, 0.0
          %v6631 = vmax.f32 %v6567, 0.0
          %v6632 = vmax.f32 %v6568, 0.0
          %v6633 = vmax.f32 %v6569, 0.0
          %v6634 = vmax.f32 %v6570, 0.0
          %v6635 = vmax.f32 %v6571, 0.0
          %v6636 = vmax.f32 %v6572, 0.0
          %v6637 = vmax.f32 %v6573, 0.0
          %v6638 = vmax.f32 %v6574, 0.0
          %v6639 = vmax.f32 %v6575, 0.0
          %v6640 = vmax.f32 %v6576, 0.0
          %v6641 = vmax.f32 %v6577, 0.0
          %v6642 = vmax.f32 %v6578, 0.0
          %v6643 = vmax.f32 %v6579, 0.0
          %v6644 = vmax.f32 %v6580, 0.0
          %v6645 = vmax.f32 %v6581, 0.0
          %v6646 = vmax.f32 %v6582, 0.0
          %v6647 = vmax.f32 %v6583, 0.0
          %v6648 = vmax.f32 %v6584, 0.0
          %v6649 = vmax.f32 %v6585, 0.0
          %v6650 = vmax.f32 %v6586, 0.0
          %v6651 = vmax.f32 %v6587, 0.0
          %v6652 = vmax.f32 %v6588, 0.0
          %v6653 = vmax.f32 %v6589, 0.0
          %v6654 = vmax.f32 %v6590, 0.0
          %v6655 = vmax.f32 %v6591, 0.0
          %v6656 = vmax.f32 %v6592, 0.0
          %v6657 = vmax.f32 %v6593, 0.0
          %v6658 = vmax.f32 %v6594, 0.0
          %v6659 = vmax.f32 %v6595, 0.0
          %6660 = vst.msk [vmem:[%s421] sm:$0xff] %vm4725, %v6596
          %6661 = vst.msk [vmem:[%s421 + $0x8] sm:$0xff] %vm4725, %v6597
          %6662 = vst.msk [vmem:[%s421 + $0x10] sm:$0xff] %vm4725, %v6598
          %6663 = vst.msk [vmem:[%s421 + $0x18] sm:$0xff] %vm4725, %v6599
          %6664 = vst.msk [vmem:[%s421 + $0x20] sm:$0xff] %vm4725, %v6600
          %6665 = vst.msk [vmem:[%s421 + $0x28] sm:$0xff] %vm4725, %v6601
          %6666 = vst.msk [vmem:[%s421 + $0x30] sm:$0xff] %vm4725, %v6602
          %6667 = vst.msk [vmem:[%s421 + $0x38] sm:$0xff] %vm4725, %v6603
          %6668 = vst.msk [vmem:[%s421 + $0x40] sm:$0xff] %vm4725, %v6604
          %6669 = vst.msk [vmem:[%s421 + $0x48] sm:$0xff] %vm4725, %v6605
          %6670 = vst.msk [vmem:[%s421 + $0x50] sm:$0xff] %vm4725, %v6606
          %6671 = vst.msk [vmem:[%s421 + $0x58] sm:$0xff] %vm4725, %v6607
          %6672 = vst.msk [vmem:[%s421 + $0x60] sm:$0xff] %vm4725, %v6608
          %6673 = vst.msk [vmem:[%s421 + $0x68] sm:$0xff] %vm4725, %v6609
          %6674 = vst.msk [vmem:[%s421 + $0x70] sm:$0xff] %vm4725, %v6610
          %6675 = vst.msk [vmem:[%s421 + $0x78] sm:$0xff] %vm4725, %v6611
          %6676 = vst.msk [vmem:[%s421 + $0x80] sm:$0xff] %vm4725, %v6612
          %6677 = vst.msk [vmem:[%s421 + $0x88] sm:$0xff] %vm4725, %v6613
          %6678 = vst.msk [vmem:[%s421 + $0x90] sm:$0xff] %vm4725, %v6614
          %6679 = vst.msk [vmem:[%s421 + $0x98] sm:$0xff] %vm4725, %v6615
          %6680 = vst.msk [vmem:[%s421 + $0xa0] sm:$0xff] %vm4725, %v6616
          %6681 = vst.msk [vmem:[%s421 + $0xa8] sm:$0xff] %vm4725, %v6617
          %6682 = vst.msk [vmem:[%s421 + $0xb0] sm:$0xff] %vm4725, %v6618
          %6683 = vst.msk [vmem:[%s421 + $0xb8] sm:$0xff] %vm4725, %v6619
          %6684 = vst.msk [vmem:[%s421 + $0xc0] sm:$0xff] %vm4725, %v6620
          %6685 = vst.msk [vmem:[%s421 + $0xc8] sm:$0xff] %vm4725, %v6621
          %6686 = vst.msk [vmem:[%s421 + $0xd0] sm:$0xff] %vm4725, %v6622
          %6687 = vst.msk [vmem:[%s421 + $0xd8] sm:$0xff] %vm4725, %v6623
          %6688 = vst.msk [vmem:[%s421 + $0xe0] sm:$0xff] %vm4725, %v6624
          %6689 = vst.msk [vmem:[%s421 + $0xe8] sm:$0xff] %vm4725, %v6625
          %6690 = vst.msk [vmem:[%s421 + $0xf0] sm:$0xff] %vm4725, %v6626
          %6691 = vst.msk [vmem:[%s421 + $0xf8] sm:$0xff] %vm4725, %v6627
          %6692 = vst.msk [vmem:[%s421 + $0x100] sm:$0xff] %vm4725, %v6628
          %6693 = vst.msk [vmem:[%s421 + $0x108] sm:$0xff] %vm4725, %v6629
          %6694 = vst.msk [vmem:[%s421 + $0x110] sm:$0xff] %vm4725, %v6630
          %6695 = vst.msk [vmem:[%s421 + $0x118] sm:$0xff] %vm4725, %v6631
          %6696 = vst.msk [vmem:[%s421 + $0x120] sm:$0xff] %vm4725, %v6632
          %6697 = vst.msk [vmem:[%s421 + $0x128] sm:$0xff] %vm4725, %v6633
          %6698 = vst.msk [vmem:[%s421 + $0x130] sm:$0xff] %vm4725, %v6634
          %6699 = vst.msk [vmem:[%s421 + $0x138] sm:$0xff] %vm4725, %v6635
          %6700 = vst.msk [vmem:[%s421 + $0x140] sm:$0xff] %vm4725, %v6636
          %6701 = vst.msk [vmem:[%s421 + $0x148] sm:$0xff] %vm4725, %v6637
          %6702 = vst.msk [vmem:[%s421 + $0x150] sm:$0xff] %vm4725, %v6638
          %6703 = vst.msk [vmem:[%s421 + $0x158] sm:$0xff] %vm4725, %v6639
          %6704 = vst.msk [vmem:[%s421 + $0x160] sm:$0xff] %vm4725, %v6640
          %6705 = vst.msk [vmem:[%s421 + $0x168] sm:$0xff] %vm4725, %v6641
          %6706 = vst.msk [vmem:[%s421 + $0x170] sm:$0xff] %vm4725, %v6642
          %6707 = vst.msk [vmem:[%s421 + $0x178] sm:$0xff] %vm4725, %v6643
          %6708 = vst.msk [vmem:[%s421 + $0x180] sm:$0xff] %vm4725, %v6644
          %6709 = vst.msk [vmem:[%s421 + $0x188] sm:$0xff] %vm4725, %v6645
          %6710 = vst.msk [vmem:[%s421 + $0x190] sm:$0xff] %vm4725, %v6646
          %6711 = vst.msk [vmem:[%s421 + $0x198] sm:$0xff] %vm4725, %v6647
          %6712 = vst.msk [vmem:[%s421 + $0x1a0] sm:$0xff] %vm4725, %v6648
          %6713 = vst.msk [vmem:[%s421 + $0x1a8] sm:$0xff] %vm4725, %v6649
          %6714 = vst.msk [vmem:[%s421 + $0x1b0] sm:$0xff] %vm4725, %v6650
          %6715 = vst.msk [vmem:[%s421 + $0x1b8] sm:$0xff] %vm4725, %v6651
          %6716 = vst.msk [vmem:[%s421 + $0x1c0] sm:$0xff] %vm4725, %v6652
          %6717 = vst.msk [vmem:[%s421 + $0x1c8] sm:$0xff] %vm4725, %v6653
          %6718 = vst.msk [vmem:[%s421 + $0x1d0] sm:$0xff] %vm4725, %v6654
          %6719 = vst.msk [vmem:[%s421 + $0x1d8] sm:$0xff] %vm4725, %v6655
          %6720 = vst.msk [vmem:[%s421 + $0x1e0] sm:$0xff] %vm4725, %v6656
          %6721 = vst.msk [vmem:[%s421 + $0x1e8] sm:$0xff] %vm4725, %v6657
          %6722 = vst.msk [vmem:[%s421 + $0x1f0] sm:$0xff] %vm4725, %v6658
          %6723 = vst.msk [vmem:[%s421 + $0x1f8] sm:$0xff] %vm4725, %v6659
        $region72: #{tpu_custom_call.1} parent=47 // pred_fallthru
          _
        %s6724 = smul.u32 64, %s27
        %p6725 = scmp.lt.s32.totalorder %s6724, 255
        %s6726 = scalar_select %p6725, %s6724, 255
        %s6727 = smul.addr %s6726, 8
        %s6728 = scalar_lea.vmem %s7, %s6727
        // Predicated region
        $region73: #{tpu_custom_call.1} parent=47 // pred_check
          %p6729 = pneg %p222
        $region74: #{tpu_custom_call.1} parent=47 // pred_check_branch
          %6731 = sbr.rel (%p6729) target = $region76
        $region75: #{tpu_custom_call.1} parent=47 // pred_region
          %s6732 = smul.u32 64, %s27
        $region76: #{tpu_custom_call.1} parent=47 // pred_fallthru
          _
      $region48: #{tpu_custom_call.1} parent=5 // pred_fallthru
        _
      %p6733 = scmp.le.s32.totalorder 2, %s18
      // Predicated region
      $region77: #{tpu_custom_call.1} parent=5 // pred_check
        %p6734 = pneg %p6733
      $region78: #{tpu_custom_call.1} parent=5 // pred_check_branch
        %6736 = sbr.rel (%p6734) target = $region80
      $region79: #{tpu_custom_call.1} parent=5 // pred_region
        %s6737 = ssub.s32 %s18, 2
        // Predicated region
        $region81: #{tpu_custom_call.1} parent=79 // pred_check
          %p6738 = pneg %p228
        $region82: #{tpu_custom_call.1} parent=79 // pred_check_branch
          %6740 = sbr.rel (%p6738) target = $region84
        $region83: #{tpu_custom_call.1} parent=79 // pred_region
          %s6741 = smul.u32 64, %s29
          %p6742 = scmp.lt.s32.totalorder %s6741, 255
          %s6743 = scalar_select %p6742, %s6741, 255
          %s6744 = smul.addr %s6743, 8
          %s6745 = scalar_lea.vmem %s7, %s6744
        $region84: #{tpu_custom_call.1} parent=79 // pred_fallthru
          _
      $region80: #{tpu_custom_call.1} parent=5 // pred_fallthru
        _
    $region6: #{tpu_custom_call.1} parent=1 // loop_footer
      %s22 = sadd.s32 1, %s18
    $region7: #{tpu_custom_call.1} parent=1 // loop_footer_branch
      %17 = sbr.rel target = $region3
    $region8: #{tpu_custom_call.1} parent=1 // loop_exit
      _
    %6746 = vsyncpa [#allocation4], 1
    %s6747 = scalar_lea.sflag [#allocation4], 1
    %6748 = vsyncpa %s6747, 1
    %6749 = vsyncpa [#allocation6], 1
    %6750 = vsyncpa [#allocation9], 1

</llo_original>
